<compile_context>
chip_gen: v5e
topology: v5e:2x2
jax: 0.10.0
libtpu: 0.0.40
codegen_flags: <defaults>
</compile_context>

<pallas_src>
import math

import jax
import jax.numpy as jnp
from jax import lax
from jax.experimental import pallas as pl
from jax.experimental.pallas import tpu as pltpu


def _round_up(x, m):
    return ((x + m - 1) // m) * m


# ----------------------------------------------------------------------------
# Fused kernel: one-hot embed + 2-layer bi-GRU (merged fwd/bwd loops) + Linear
# ----------------------------------------------------------------------------
def make_fused_kernel(T, B, H, G, V, O):
    """Kernel closure over static (T, B, H, G, V, O).

    G = per-gate lane-padded width (multiple of 128).  Gate layout along the
    last axis of every projected tensor is [r | z | n], each G lanes, and the
    two directions are concatenated: fwd gates in cols [0:3G], bwd in [3G:6G].
    """
    G2, G3, G6 = 2 * G, 3 * G, 6 * G

    def sigm(x):
        # tanh-form sigmoid: exactly one EUP push per vreg (v5e-safe).
        return 0.5 * (jnp.tanh(0.5 * x) + 1.0)

    def kernel(len_ref, tok_ref, e1_ref, b1_ref,
               w1f_hh_ref, b1f_hh_ref, w1b_hh_ref, b1b_hh_ref,
               w2in_f_ref, w2in_b_ref, b2_ref,
               w2f_hh_ref, b2f_hh_ref, w2b_hh_ref, b2b_hh_ref,
               wlin_b_ref, wlin_f_ref, blin_ref,
               out_ref,
               xg1, xg2, o1f, o1b):
        lens = len_ref[...]                                   # (B, 1) int32

        # ---- fused embedding lookup + layer-1 input projection ------------
        # onehot(T*B, V) @ (embedding @ W1)(V, 6G): one GEMM, no XLA gather.
        tok = tok_ref[...]                                    # (T*B, 1) int32
        v_iota = lax.broadcasted_iota(jnp.int32, (T * B, V), 1)
        onehot = (tok == v_iota).astype(jnp.float32)          # (T*B, V)
        xg1[...] = (jnp.dot(onehot, e1_ref[...],
                            preferred_element_type=jnp.float32) + b1_ref[...])

        def gru_half(gi, gh, h):
            # gi/gh: (B, 3G) gate pre-activations; h: (B, H).
            # Joint r,z sigmoid over the first 2G lanes (vreg-aligned slices).
            rz = sigm(gi[:, 0:G2] + gh[:, 0:G2])              # (B, 2G)
            r = rz[:, 0:G]                                    # (B, G)
            z = rz[:, G:G + H]                                # (B, H), offset G
            n = jnp.tanh(gi[:, G2:G3] + r * gh[:, G2:G3])     # (B, G)
            return (1.0 - z) * n[:, 0:H] + z * h              # (B, H)

        def run_layer(xg_ref, whh_f, bhh_f, whh_b, bhh_b, store):
            # One loop carries BOTH directions so their serial chains overlap.
            def body(i, carry):
                h_f, h_b = carry
                t_f = i
                t_b = T - 1 - i
                base_f = pl.multiple_of(t_f * B, B)
                base_b = pl.multiple_of(t_b * B, B)
                gi_f = xg_ref[pl.ds(base_f, B), pl.ds(0, G3)]   # (B, 3G)
                gi_b = xg_ref[pl.ds(base_b, B), pl.ds(G3, G3)]  # (B, 3G)
                gh_f = jnp.dot(h_f, whh_f,
                               preferred_element_type=jnp.float32) + bhh_f
                gh_b = jnp.dot(h_b, whh_b,
                               preferred_element_type=jnp.float32) + bhh_b
                hf_new = gru_half(gi_f, gh_f, h_f)
                hb_new = gru_half(gi_b, gh_b, h_b)
                valid_f = t_f < lens                            # (B, 1) bool
                valid_b = t_b < lens
                h_f = jnp.where(valid_f, hf_new, h_f)           # freeze > len
                h_b = jnp.where(valid_b, hb_new, h_b)
                if store:
                    # pad_packed_sequence pads with zeros beyond seq_len
                    o1f[pl.ds(base_f, B), :] = jnp.where(valid_f, h_f, 0.0)
                    o1b[pl.ds(base_b, B), :] = jnp.where(valid_b, h_b, 0.0)
                return (h_f, h_b)

            h0 = jnp.zeros((B, H), jnp.float32)
            return lax.fori_loop(0, T, body, (h0, h0), unroll=True)

        # ---- layer 1 (sequence outputs stay in VMEM) -----------------------
        run_layer(xg1, w1f_hh_ref[...], b1f_hh_ref[...],
                  w1b_hh_ref[...], b1b_hh_ref[...], store=True)

        # ---- layer-2 input projection: both directions -> one scratch ------
        xg2[...] = (jnp.dot(o1f[...], w2in_f_ref[...],
                            preferred_element_type=jnp.float32)
                    + jnp.dot(o1b[...], w2in_b_ref[...],
                              preferred_element_type=jnp.float32)
                    + b2_ref[...])

        # ---- layer 2 (only final hidden states needed) ----------------------
        h2f, h2b = run_layer(xg2, w2f_hh_ref[...], b2f_hh_ref[...],
                             w2b_hh_ref[...], b2b_hh_ref[...], store=False)

        # ---- classifier: cat([hidden[-1]=bwd, hidden[-2]=fwd]) @ W + b ------
        logits = (jnp.dot(h2b, wlin_b_ref[...],
                          preferred_element_type=jnp.float32)
                  + jnp.dot(h2f, wlin_f_ref[...],
                            preferred_element_type=jnp.float32)
                  + blin_ref[...])
        out_ref[...] = logits.astype(out_ref.dtype)

    return kernel


# ----------------------------------------------------------------------------
# Parameters (PyTorch-equivalent initialisation, weights pre-transposed)
# ----------------------------------------------------------------------------
def init_params(key, input_size, hidden_size, output_size):
    """2-layer bidirectional GRU classifier parameters (unpadded, torch layout).

    GRU weights stored pre-transposed and gate-stacked:
      w_ih: (Din, 3H)  w_hh: (H, 3H)  b_ih/b_hh: (1, 3H), gate order [r, z, n].
    """
    H = hidden_size
    k_emb, k_gru, k_lin = jax.random.split(key, 3)
    params = {}

    # nn.Embedding default init: N(0, 1)
    params["embedding"] = jax.random.normal(k_emb, (input_size, H), jnp.float32)

    # nn.GRU default init: U(-1/sqrt(H), 1/sqrt(H)) for weights and biases
    bound = 1.0 / math.sqrt(H)
    keys = jax.random.split(k_gru, 2 * 2 * 4)
    ki = 0
    gru = []
    for layer in range(2):
        din = H if layer == 0 else 2 * H
        dirs = []
        for _ in range(2):
            w_ih = jax.random.uniform(keys[ki], (din, 3 * H), jnp.float32,
                                      -bound, bound); ki += 1
            w_hh = jax.random.uniform(keys[ki], (H, 3 * H), jnp.float32,
                                      -bound, bound); ki += 1
            b_ih = jax.random.uniform(keys[ki], (1, 3 * H), jnp.float32,
                                      -bound, bound); ki += 1
            b_hh = jax.random.uniform(keys[ki], (1, 3 * H), jnp.float32,
                                      -bound, bound); ki += 1
            dirs.append((w_ih, w_hh, b_ih, b_hh))
        gru.append(dirs)
    params["gru"] = gru

    # nn.Linear(2H -> O) default init: U(-1/sqrt(2H), 1/sqrt(2H))
    lb = 1.0 / math.sqrt(2 * H)
    kw, kb = jax.random.split(k_lin)
    params["linear_w_t"] = jax.random.uniform(kw, (2 * H, output_size),
                                              jnp.float32, -lb, lb)
    params["linear_b"] = jax.random.uniform(kb, (1, output_size),
                                            jnp.float32, -lb, lb)
    return params


# ----------------------------------------------------------------------------
# One-time weight preparation: lane-pad gates to G, merge directions, fuse
# the embedding table into the layer-1 input projection.
# ----------------------------------------------------------------------------
def prepare_fused(params):
    H = params["gru"][0][0][1].shape[0]          # w_hh: (H, 3H)
    G = _round_up(H, 128)

    def pad_gate_cols(w):                        # (..., 3H) -> (..., 3G)
        parts = [w[..., i * H:(i + 1) * H] for i in range(3)]
        pad_width = [(0, 0)] * (w.ndim - 1) + [(0, G - H)]
        parts = [jnp.pad(p, pad_width) for p in parts]
        return jnp.concatenate(parts, axis=-1)

    (w1f_ih, w1f_hh, b1f_ih, b1f_hh) = params["gru"][0][0]
    (w1b_ih, w1b_hh, b1b_ih, b1b_hh) = params["gru"][0][1]
    (w2f_ih, w2f_hh, b2f_ih, b2f_hh) = params["gru"][1][0]
    (w2b_ih, w2b_hh, b2b_ih, b2b_hh) = params["gru"][1][1]

    W1 = jnp.concatenate([pad_gate_cols(w1f_ih), pad_gate_cols(w1b_ih)],
                         axis=1)                                   # (H, 6G)
    fused = {
        # embedding lookup fused into layer-1 projection: E1 = emb @ W1
        "E1": params["embedding"] @ W1,                            # (V, 6G)
        "B1": jnp.concatenate([pad_gate_cols(b1f_ih),
                               pad_gate_cols(b1b_ih)], axis=1),    # (1, 6G)
        "W1F_HH": pad_gate_cols(w1f_hh), "B1F_HH": pad_gate_cols(b1f_hh),
        "W1B_HH": pad_gate_cols(w1b_hh), "B1B_HH": pad_gate_cols(b1b_hh),
        # layer-2 input weights, split by which layer-1 stream feeds them
        "W2IN_F": jnp.concatenate([pad_gate_cols(w2f_ih[0:H]),
                                   pad_gate_cols(w2b_ih[0:H])], axis=1),
        "W2IN_B": jnp.concatenate([pad_gate_cols(w2f_ih[H:2 * H]),
                                   pad_gate_cols(w2b_ih[H:2 * H])], axis=1),
        "B2": jnp.concatenate([pad_gate_cols(b2f_ih),
                               pad_gate_cols(b2b_ih)], axis=1),    # (1, 6G)
        "W2F_HH": pad_gate_cols(w2f_hh), "B2F_HH": pad_gate_cols(b2f_hh),
        "W2B_HH": pad_gate_cols(w2b_hh), "B2B_HH": pad_gate_cols(b2b_hh),
        # classifier weights pre-split (hidden[-1]=bwd rows, hidden[-2]=fwd)
        "WLIN_B": params["linear_w_t"][0:H],
        "WLIN_F": params["linear_w_t"][H:2 * H],
        "BLIN": params["linear_b"],
    }
    return fused


# ----------------------------------------------------------------------------
# Forward
# ----------------------------------------------------------------------------
@jax.jit
def rnn_classifier_forward(fused, tokens, seq_lengths):
    """tokens: (B, T) int32; seq_lengths: (B,) int32 (sorted descending, as
    pack_padded_sequence would require).  Returns logits (B, output_size)."""
    B, T = tokens.shape
    H = fused["W1F_HH"].shape[0]
    G = fused["W1F_HH"].shape[1] // 3
    V = fused["E1"].shape[0]
    O = fused["BLIN"].shape[1]

    # Only XLA glue left outside the kernel: tiny int32 transpose/reshape.
    tok_tm = tokens.astype(jnp.int32).T.reshape(T * B, 1)   # row = t*B + b
    seq_len = seq_lengths.astype(jnp.int32).reshape(B, 1)

    args = (seq_len, tok_tm, fused["E1"], fused["B1"],
            fused["W1F_HH"], fused["B1F_HH"], fused["W1B_HH"], fused["B1B_HH"],
            fused["W2IN_F"], fused["W2IN_B"], fused["B2"],
            fused["W2F_HH"], fused["B2F_HH"], fused["W2B_HH"], fused["B2B_HH"],
            fused["WLIN_B"], fused["WLIN_F"], fused["BLIN"])

    vmem = pl.BlockSpec(memory_space=pltpu.MemorySpace.VMEM)
    return pl.pallas_call(
        make_fused_kernel(T, B, H, G, V, O),
        out_shape=jax.ShapeDtypeStruct((B, O), jnp.float32),
        in_specs=[vmem] * len(args),
        out_specs=vmem,
        scratch_shapes=[
            pltpu.VMEM((T * B, 6 * G), jnp.float32),   # xg1 (layer-1 gates)
            pltpu.VMEM((T * B, 6 * G), jnp.float32),   # xg2 (layer-2 gates)
            pltpu.VMEM((T * B, H), jnp.float32),       # o1f (layer-1 fwd out)
            pltpu.VMEM((T * B, H), jnp.float32),       # o1b (layer-1 bwd out)
        ],
    )(*args)


# ----------------------------------------------------------------------------
# Pure-JAX reference (same math, lax.scan) for correctness checking
# ----------------------------------------------------------------------------
def _ref_gru_direction(x, w_ih, w_hh, b_ih, b_hh, lens, reverse):
    T, B, _ = x.shape
    H = w_hh.shape[0]
    order = jnp.arange(T - 1, -1, -1) if reverse else jnp.arange(T)

    def step(h, t):
        gi = x[t] @ w_ih + b_ih
        gh = h @ w_hh + b_hh
        r = jax.nn.sigmoid(gi[:, :H] + gh[:, :H])
        z = jax.nn.sigmoid(gi[:, H:2 * H] + gh[:, H:2 * H])
        n = jnp.tanh(gi[:, 2 * H:] + r * gh[:, 2 * H:])
        h_new = (1.0 - z) * n + z * h
        valid = t < lens[:, None]
        h = jnp.where(valid, h_new, h)
        return h, jnp.where(valid, h, 0.0)

    h_fin, outs = lax.scan(step, jnp.zeros((B, H), jnp.float32), order)
    if reverse:
        outs = outs[::-1]
    return outs, h_fin


def rnn_classifier_reference(params, tokens, seq_lengths):
    x = jnp.take(params["embedding"], tokens.T, axis=0)
    lens = seq_lengths.astype(jnp.int32)
    h_last = []
    for layer in range(2):
        outs, hs = [], []
        for d in range(2):
            w_ih, w_hh, b_ih, b_hh = params["gru"][layer][d]
            o, h = _ref_gru_direction(x, w_ih, w_hh, b_ih, b_hh, lens,
                                      reverse=(d == 1))
            outs.append(o)
            hs.append(h)
        x = jnp.concatenate(outs, axis=-1)
        h_last = hs
    hidden_cat = jnp.concatenate([h_last[1], h_last[0]], axis=1)
    return hidden_cat @ params["linear_w_t"] + params["linear_b"]


# ----------------------------------------------------------------------------
if __name__ == "__main__":
    input_size = 30      # vocabulary size (num_embeddings)
    hidden_size = 32
    output_size = 8
    B, T = 8, 8

    key = jax.random.PRNGKey(0)
    k_params, k_tok = jax.random.split(key)

    params = init_params(k_params, input_size, hidden_size, output_size)
    fused = prepare_fused(params)            # one-time weight prep (padded/merged)

    tokens = jax.random.randint(k_tok, (B, T), 0, input_size, dtype=jnp.int32)
    # pack_padded_sequence requires lengths sorted in descending order (>= 1)
    seq_lengths = jnp.array([8, 8, 7, 6, 5, 4, 3, 2], dtype=jnp.int32)

    logits = rnn_classifier_forward(fused, tokens, seq_lengths)
    jax.block_until_ready(logits)
    assert logits.shape == (B, output_size)

    ref = rnn_classifier_reference(params, tokens, seq_lengths)
    assert bool(jnp.allclose(logits, ref, atol=1e-3, rtol=1e-3)), (
        "Pallas kernel does not match pure-JAX reference")

    print("KERNEL_OK")
</pallas_src>

<mosaic_0001>
module attributes {stable_mosaic.version = 11 : i64} {
  func.func @kernel(%arg0: memref<8x1xi32, #tpu.memory_space<vmem>>, %arg1: memref<64x1xi32, #tpu.memory_space<vmem>>, %arg2: memref<30x768xf32, #tpu.memory_space<vmem>>, %arg3: memref<1x768xf32, #tpu.memory_space<vmem>>, %arg4: memref<32x384xf32, #tpu.memory_space<vmem>>, %arg5: memref<1x384xf32, #tpu.memory_space<vmem>>, %arg6: memref<32x384xf32, #tpu.memory_space<vmem>>, %arg7: memref<1x384xf32, #tpu.memory_space<vmem>>, %arg8: memref<32x768xf32, #tpu.memory_space<vmem>>, %arg9: memref<32x768xf32, #tpu.memory_space<vmem>>, %arg10: memref<1x768xf32, #tpu.memory_space<vmem>>, %arg11: memref<32x384xf32, #tpu.memory_space<vmem>>, %arg12: memref<1x384xf32, #tpu.memory_space<vmem>>, %arg13: memref<32x384xf32, #tpu.memory_space<vmem>>, %arg14: memref<1x384xf32, #tpu.memory_space<vmem>>, %arg15: memref<32x8xf32, #tpu.memory_space<vmem>>, %arg16: memref<32x8xf32, #tpu.memory_space<vmem>>, %arg17: memref<1x8xf32, #tpu.memory_space<vmem>>, %arg18: memref<8x8xf32, #tpu.memory_space<vmem>>, %arg19: memref<64x768xf32, #tpu.memory_space<vmem>>, %arg20: memref<64x768xf32, #tpu.memory_space<vmem>>, %arg21: memref<64x32xf32, #tpu.memory_space<vmem>>, %arg22: memref<64x32xf32, #tpu.memory_space<vmem>>) attributes {dimension_semantics = [], scalar_prefetch = 0 : i64, scratch_operands = 4 : i64, tpu.core_type = #tpu.core_type<tc>} {
    %c0 = arith.constant 0 : index
    %c0_0 = arith.constant 0 : index
    %0 = vector.load %arg0[%c0, %c0_0] : memref<8x1xi32, #tpu.memory_space<vmem>>, vector<8x1xi32>
    %c0_1 = arith.constant 0 : index
    %c0_2 = arith.constant 0 : index
    %1 = vector.load %arg1[%c0_1, %c0_2] : memref<64x1xi32, #tpu.memory_space<vmem>>, vector<64x1xi32>
    %2 = tpu.iota {dimensions = array<i32: 1>} : vector<64x30xi32>
    %3 = vector.broadcast %1 : vector<64x1xi32> to vector<64x30xi32>
    %4 = arith.cmpi eq, %3, %2 : vector<64x30xi32>
    %5 = arith.extui %4 : vector<64x30xi1> to vector<64x30xi32>
    %6 = arith.sitofp %5 : vector<64x30xi32> to vector<64x30xf32>
    %c0_3 = arith.constant 0 : index
    %c0_4 = arith.constant 0 : index
    %7 = vector.load %arg2[%c0_3, %c0_4] : memref<30x768xf32, #tpu.memory_space<vmem>>, vector<30x768xf32>
    %cst = arith.constant dense<0.000000e+00> : vector<64x768xf32>
    %8 = tpu.matmul %6, %7, %cst {dimension_numbers = #tpu.dot_dimension_numbers<[1], [0], [0], [1], [0, 0, 1, 1], [], []>} : vector<64x30xf32>, vector<30x768xf32>, vector<64x768xf32> -> vector<64x768xf32>
    %c0_5 = arith.constant 0 : index
    %c0_6 = arith.constant 0 : index
    %9 = vector.load %arg3[%c0_5, %c0_6] : memref<1x768xf32, #tpu.memory_space<vmem>>, vector<1x768xf32>
    %10 = vector.broadcast %9 : vector<1x768xf32> to vector<64x768xf32>
    %11 = arith.addf %8, %10 : vector<64x768xf32>
    %c0_7 = arith.constant 0 : index
    %c0_8 = arith.constant 0 : index
    %12 = vector.load %arg19[%c0_7, %c0_8] : memref<64x768xf32, #tpu.memory_space<vmem>>, vector<64x768xf32>
    tpu.vector_store %arg19[%c0_7, %c0_8], %11 {strides = array<i32>} : memref<64x768xf32, #tpu.memory_space<vmem>>, vector<64x768xf32>,
    %c0_9 = arith.constant 0 : index
    %c0_10 = arith.constant 0 : index
    %13 = vector.load %arg4[%c0_9, %c0_10] : memref<32x384xf32, #tpu.memory_space<vmem>>, vector<32x384xf32>
    %c0_11 = arith.constant 0 : index
    %c0_12 = arith.constant 0 : index
    %14 = vector.load %arg5[%c0_11, %c0_12] : memref<1x384xf32, #tpu.memory_space<vmem>>, vector<1x384xf32>
    %c0_13 = arith.constant 0 : index
    %c0_14 = arith.constant 0 : index
    %15 = vector.load %arg6[%c0_13, %c0_14] : memref<32x384xf32, #tpu.memory_space<vmem>>, vector<32x384xf32>
    %c0_15 = arith.constant 0 : index
    %c0_16 = arith.constant 0 : index
    %16 = vector.load %arg7[%c0_15, %c0_16] : memref<1x384xf32, #tpu.memory_space<vmem>>, vector<1x384xf32>
    %cst_17 = arith.constant 0.000000e+00 : f32
    %17 = vector.broadcast %cst_17 : f32 to vector<8x32xf32>
    %c0_i32 = arith.constant 0 : i32
    %c7_i32 = arith.constant 7 : i32
    %18 = arith.subi %c7_i32, %c0_i32 : i32
    %c8_i32 = arith.constant 8 : i32
    %19 = arith.muli %c0_i32, %c8_i32 : i32
    %20 = tpu.assume_multiple %19, 8 : i32
    %c8_i32_18 = arith.constant 8 : i32
    %21 = arith.muli %18, %c8_i32_18 : i32
    %22 = tpu.assume_multiple %21, 8 : i32
    %23 = arith.index_cast %20 : i32 to index
    %c0_19 = arith.constant 0 : index
    %24 = vector.load %arg19[%23, %c0_19] : memref<64x768xf32, #tpu.memory_space<vmem>>, vector<8x384xf32>
    %25 = arith.index_cast %22 : i32 to index
    %c384 = arith.constant 384 : index
    %26 = vector.load %arg19[%25, %c384] : memref<64x768xf32, #tpu.memory_space<vmem>>, vector<8x384xf32>
    %cst_20 = arith.constant dense<0.000000e+00> : vector<8x384xf32>
    %27 = tpu.matmul %17, %13, %cst_20 {dimension_numbers = #tpu.dot_dimension_numbers<[1], [0], [0], [1], [0, 0, 1, 1], [], []>} : vector<8x32xf32>, vector<32x384xf32>, vector<8x384xf32> -> vector<8x384xf32>
    %28 = vector.broadcast %14 : vector<1x384xf32> to vector<8x384xf32>
    %29 = arith.addf %27, %28 : vector<8x384xf32>
    %cst_21 = arith.constant dense<0.000000e+00> : vector<8x384xf32>
    %30 = tpu.matmul %17, %15, %cst_21 {dimension_numbers = #tpu.dot_dimension_numbers<[1], [0], [0], [1], [0, 0, 1, 1], [], []>} : vector<8x32xf32>, vector<32x384xf32>, vector<8x384xf32> -> vector<8x384xf32>
    %31 = vector.broadcast %16 : vector<1x384xf32> to vector<8x384xf32>
    %32 = arith.addf %30, %31 : vector<8x384xf32>
    %33 = vector.extract_strided_slice %24 {offsets = [0, 0], sizes = [8, 256], strides = [1, 1]} : vector<8x384xf32> to vector<8x256xf32>
    %34 = vector.extract_strided_slice %29 {offsets = [0, 0], sizes = [8, 256], strides = [1, 1]} : vector<8x384xf32> to vector<8x256xf32>
    %35 = arith.addf %33, %34 : vector<8x256xf32>
    %cst_22 = arith.constant 5.000000e-01 : f32
    %36 = vector.broadcast %cst_22 : f32 to vector<8x256xf32>
    %37 = arith.mulf %36, %35 : vector<8x256xf32>
    %38 = math.tanh %37 : vector<8x256xf32>
    %cst_23 = arith.constant 1.000000e+00 : f32
    %39 = vector.broadcast %cst_23 : f32 to vector<8x256xf32>
    %40 = arith.addf %38, %39 : vector<8x256xf32>
    %cst_24 = arith.constant 5.000000e-01 : f32
    %41 = vector.broadcast %cst_24 : f32 to vector<8x256xf32>
    %42 = arith.mulf %41, %40 : vector<8x256xf32>
    %43 = vector.extract_strided_slice %42 {offsets = [0, 0], sizes = [8, 128], strides = [1, 1]} : vector<8x256xf32> to vector<8x128xf32>
    %44 = vector.extract_strided_slice %42 {offsets = [0, 128], sizes = [8, 32], strides = [1, 1]} : vector<8x256xf32> to vector<8x32xf32>
    %45 = vector.extract_strided_slice %24 {offsets = [0, 256], sizes = [8, 128], strides = [1, 1]} : vector<8x384xf32> to vector<8x128xf32>
    %46 = vector.extract_strided_slice %29 {offsets = [0, 256], sizes = [8, 128], strides = [1, 1]} : vector<8x384xf32> to vector<8x128xf32>
    %47 = arith.mulf %43, %46 : vector<8x128xf32>
    %48 = arith.addf %45, %47 : vector<8x128xf32>
    %49 = math.tanh %48 : vector<8x128xf32>
    %cst_25 = arith.constant 1.000000e+00 : f32
    %50 = vector.broadcast %cst_25 : f32 to vector<8x32xf32>
    %51 = arith.subf %50, %44 : vector<8x32xf32>
    %52 = vector.extract_strided_slice %49 {offsets = [0, 0], sizes = [8, 32], strides = [1, 1]} : vector<8x128xf32> to vector<8x32xf32>
    %53 = arith.mulf %51, %52 : vector<8x32xf32>
    %54 = arith.mulf %44, %17 : vector<8x32xf32>
    %55 = arith.addf %53, %54 : vector<8x32xf32>
    %56 = vector.extract_strided_slice %26 {offsets = [0, 0], sizes = [8, 256], strides = [1, 1]} : vector<8x384xf32> to vector<8x256xf32>
    %57 = vector.extract_strided_slice %32 {offsets = [0, 0], sizes = [8, 256], strides = [1, 1]} : vector<8x384xf32> to vector<8x256xf32>
    %58 = arith.addf %56, %57 : vector<8x256xf32>
    %cst_26 = arith.constant 5.000000e-01 : f32
    %59 = vector.broadcast %cst_26 : f32 to vector<8x256xf32>
    %60 = arith.mulf %59, %58 : vector<8x256xf32>
    %61 = math.tanh %60 : vector<8x256xf32>
    %cst_27 = arith.constant 1.000000e+00 : f32
    %62 = vector.broadcast %cst_27 : f32 to vector<8x256xf32>
    %63 = arith.addf %61, %62 : vector<8x256xf32>
    %cst_28 = arith.constant 5.000000e-01 : f32
    %64 = vector.broadcast %cst_28 : f32 to vector<8x256xf32>
    %65 = arith.mulf %64, %63 : vector<8x256xf32>
    %66 = vector.extract_strided_slice %65 {offsets = [0, 0], sizes = [8, 128], strides = [1, 1]} : vector<8x256xf32> to vector<8x128xf32>
    %67 = vector.extract_strided_slice %65 {offsets = [0, 128], sizes = [8, 32], strides = [1, 1]} : vector<8x256xf32> to vector<8x32xf32>
    %68 = vector.extract_strided_slice %26 {offsets = [0, 256], sizes = [8, 128], strides = [1, 1]} : vector<8x384xf32> to vector<8x128xf32>
    %69 = vector.extract_strided_slice %32 {offsets = [0, 256], sizes = [8, 128], strides = [1, 1]} : vector<8x384xf32> to vector<8x128xf32>
    %70 = arith.mulf %66, %69 : vector<8x128xf32>
    %71 = arith.addf %68, %70 : vector<8x128xf32>
    %72 = math.tanh %71 : vector<8x128xf32>
    %cst_29 = arith.constant 1.000000e+00 : f32
    %73 = vector.broadcast %cst_29 : f32 to vector<8x32xf32>
    %74 = arith.subf %73, %67 : vector<8x32xf32>
    %75 = vector.extract_strided_slice %72 {offsets = [0, 0], sizes = [8, 32], strides = [1, 1]} : vector<8x128xf32> to vector<8x32xf32>
    %76 = arith.mulf %74, %75 : vector<8x32xf32>
    %77 = arith.mulf %67, %17 : vector<8x32xf32>
    %78 = arith.addf %76, %77 : vector<8x32xf32>
    %79 = vector.broadcast %c0_i32 : i32 to vector<8x1xi32>
    %80 = arith.cmpi slt, %79, %0 : vector<8x1xi32>
    %81 = vector.broadcast %18 : i32 to vector<8x1xi32>
    %82 = arith.cmpi slt, %81, %0 : vector<8x1xi32>
    %83 = vector.shape_cast %80 : vector<8x1xi1> to vector<8x1xi1>
    %84 = vector.broadcast %83 : vector<8x1xi1> to vector<8x32xi1>
    %85 = arith.select %84, %55, %17 : vector<8x32xi1>, vector<8x32xf32>
    %86 = vector.shape_cast %82 : vector<8x1xi1> to vector<8x1xi1>
    %87 = vector.broadcast %86 : vector<8x1xi1> to vector<8x32xi1>
    %88 = arith.select %87, %78, %17 : vector<8x32xi1>, vector<8x32xf32>
    %cst_30 = arith.constant 0.000000e+00 : f32
    %89 = vector.shape_cast %80 : vector<8x1xi1> to vector<8x1xi1>
    %90 = vector.broadcast %89 : vector<8x1xi1> to vector<8x32xi1>
    %91 = vector.broadcast %cst_30 : f32 to vector<8x32xf32>
    %92 = arith.select %90, %85, %91 : vector<8x32xi1>, vector<8x32xf32>
    %93 = arith.index_cast %20 : i32 to index
    %c0_31 = arith.constant 0 : index
    %94 = vector.load %arg21[%93, %c0_31] : memref<64x32xf32, #tpu.memory_space<vmem>>, vector<8x32xf32>
    tpu.vector_store %arg21[%93, %c0_31], %92 {strides = array<i32>} : memref<64x32xf32, #tpu.memory_space<vmem>>, vector<8x32xf32>,
    %cst_32 = arith.constant 0.000000e+00 : f32
    %95 = vector.shape_cast %82 : vector<8x1xi1> to vector<8x1xi1>
    %96 = vector.broadcast %95 : vector<8x1xi1> to vector<8x32xi1>
    %97 = vector.broadcast %cst_32 : f32 to vector<8x32xf32>
    %98 = arith.select %96, %88, %97 : vector<8x32xi1>, vector<8x32xf32>
    %99 = arith.index_cast %22 : i32 to index
    %c0_33 = arith.constant 0 : index
    %100 = vector.load %arg22[%99, %c0_33] : memref<64x32xf32, #tpu.memory_space<vmem>>, vector<8x32xf32>
    tpu.vector_store %arg22[%99, %c0_33], %98 {strides = array<i32>} : memref<64x32xf32, #tpu.memory_space<vmem>>, vector<8x32xf32>,
    %c1_i32 = arith.constant 1 : i32
    %c7_i32_34 = arith.constant 7 : i32
    %101 = arith.subi %c7_i32_34, %c1_i32 : i32
    %c8_i32_35 = arith.constant 8 : i32
    %102 = arith.muli %c1_i32, %c8_i32_35 : i32
    %103 = tpu.assume_multiple %102, 8 : i32
    %c8_i32_36 = arith.constant 8 : i32
    %104 = arith.muli %101, %c8_i32_36 : i32
    %105 = tpu.assume_multiple %104, 8 : i32
    %106 = arith.index_cast %103 : i32 to index
    %c0_37 = arith.constant 0 : index
    %107 = vector.load %arg19[%106, %c0_37] : memref<64x768xf32, #tpu.memory_space<vmem>>, vector<8x384xf32>
    %108 = arith.index_cast %105 : i32 to index
    %c384_38 = arith.constant 384 : index
    %109 = vector.load %arg19[%108, %c384_38] : memref<64x768xf32, #tpu.memory_space<vmem>>, vector<8x384xf32>
    %cst_39 = arith.constant dense<0.000000e+00> : vector<8x384xf32>
    %110 = tpu.matmul %85, %13, %cst_39 {dimension_numbers = #tpu.dot_dimension_numbers<[1], [0], [0], [1], [0, 0, 1, 1], [], []>} : vector<8x32xf32>, vector<32x384xf32>, vector<8x384xf32> -> vector<8x384xf32>
    %111 = vector.broadcast %14 : vector<1x384xf32> to vector<8x384xf32>
    %112 = arith.addf %110, %111 : vector<8x384xf32>
    %cst_40 = arith.constant dense<0.000000e+00> : vector<8x384xf32>
    %113 = tpu.matmul %88, %15, %cst_40 {dimension_numbers = #tpu.dot_dimension_numbers<[1], [0], [0], [1], [0, 0, 1, 1], [], []>} : vector<8x32xf32>, vector<32x384xf32>, vector<8x384xf32> -> vector<8x384xf32>
    %114 = vector.broadcast %16 : vector<1x384xf32> to vector<8x384xf32>
    %115 = arith.addf %113, %114 : vector<8x384xf32>
    %116 = vector.extract_strided_slice %107 {offsets = [0, 0], sizes = [8, 256], strides = [1, 1]} : vector<8x384xf32> to vector<8x256xf32>
    %117 = vector.extract_strided_slice %112 {offsets = [0, 0], sizes = [8, 256], strides = [1, 1]} : vector<8x384xf32> to vector<8x256xf32>
    %118 = arith.addf %116, %117 : vector<8x256xf32>
    %cst_41 = arith.constant 5.000000e-01 : f32
    %119 = vector.broadcast %cst_41 : f32 to vector<8x256xf32>
    %120 = arith.mulf %119, %118 : vector<8x256xf32>
    %121 = math.tanh %120 : vector<8x256xf32>
    %cst_42 = arith.constant 1.000000e+00 : f32
    %122 = vector.broadcast %cst_42 : f32 to vector<8x256xf32>
    %123 = arith.addf %121, %122 : vector<8x256xf32>
    %cst_43 = arith.constant 5.000000e-01 : f32
    %124 = vector.broadcast %cst_43 : f32 to vector<8x256xf32>
    %125 = arith.mulf %124, %123 : vector<8x256xf32>
    %126 = vector.extract_strided_slice %125 {offsets = [0, 0], sizes = [8, 128], strides = [1, 1]} : vector<8x256xf32> to vector<8x128xf32>
    %127 = vector.extract_strided_slice %125 {offsets = [0, 128], sizes = [8, 32], strides = [1, 1]} : vector<8x256xf32> to vector<8x32xf32>
    %128 = vector.extract_strided_slice %107 {offsets = [0, 256], sizes = [8, 128], strides = [1, 1]} : vector<8x384xf32> to vector<8x128xf32>
    %129 = vector.extract_strided_slice %112 {offsets = [0, 256], sizes = [8, 128], strides = [1, 1]} : vector<8x384xf32> to vector<8x128xf32>
    %130 = arith.mulf %126, %129 : vector<8x128xf32>
    %131 = arith.addf %128, %130 : vector<8x128xf32>
    %132 = math.tanh %131 : vector<8x128xf32>
    %cst_44 = arith.constant 1.000000e+00 : f32
    %133 = vector.broadcast %cst_44 : f32 to vector<8x32xf32>
    %134 = arith.subf %133, %127 : vector<8x32xf32>
    %135 = vector.extract_strided_slice %132 {offsets = [0, 0], sizes = [8, 32], strides = [1, 1]} : vector<8x128xf32> to vector<8x32xf32>
    %136 = arith.mulf %134, %135 : vector<8x32xf32>
    %137 = arith.mulf %127, %85 : vector<8x32xf32>
    %138 = arith.addf %136, %137 : vector<8x32xf32>
    %139 = vector.extract_strided_slice %109 {offsets = [0, 0], sizes = [8, 256], strides = [1, 1]} : vector<8x384xf32> to vector<8x256xf32>
    %140 = vector.extract_strided_slice %115 {offsets = [0, 0], sizes = [8, 256], strides = [1, 1]} : vector<8x384xf32> to vector<8x256xf32>
    %141 = arith.addf %139, %140 : vector<8x256xf32>
    %cst_45 = arith.constant 5.000000e-01 : f32
    %142 = vector.broadcast %cst_45 : f32 to vector<8x256xf32>
    %143 = arith.mulf %142, %141 : vector<8x256xf32>
    %144 = math.tanh %143 : vector<8x256xf32>
    %cst_46 = arith.constant 1.000000e+00 : f32
    %145 = vector.broadcast %cst_46 : f32 to vector<8x256xf32>
    %146 = arith.addf %144, %145 : vector<8x256xf32>
    %cst_47 = arith.constant 5.000000e-01 : f32
    %147 = vector.broadcast %cst_47 : f32 to vector<8x256xf32>
    %148 = arith.mulf %147, %146 : vector<8x256xf32>
    %149 = vector.extract_strided_slice %148 {offsets = [0, 0], sizes = [8, 128], strides = [1, 1]} : vector<8x256xf32> to vector<8x128xf32>
    %150 = vector.extract_strided_slice %148 {offsets = [0, 128], sizes = [8, 32], strides = [1, 1]} : vector<8x256xf32> to vector<8x32xf32>
    %151 = vector.extract_strided_slice %109 {offsets = [0, 256], sizes = [8, 128], strides = [1, 1]} : vector<8x384xf32> to vector<8x128xf32>
    %152 = vector.extract_strided_slice %115 {offsets = [0, 256], sizes = [8, 128], strides = [1, 1]} : vector<8x384xf32> to vector<8x128xf32>
    %153 = arith.mulf %149, %152 : vector<8x128xf32>
    %154 = arith.addf %151, %153 : vector<8x128xf32>
    %155 = math.tanh %154 : vector<8x128xf32>
    %cst_48 = arith.constant 1.000000e+00 : f32
    %156 = vector.broadcast %cst_48 : f32 to vector<8x32xf32>
    %157 = arith.subf %156, %150 : vector<8x32xf32>
    %158 = vector.extract_strided_slice %155 {offsets = [0, 0], sizes = [8, 32], strides = [1, 1]} : vector<8x128xf32> to vector<8x32xf32>
    %159 = arith.mulf %157, %158 : vector<8x32xf32>
    %160 = arith.mulf %150, %88 : vector<8x32xf32>
    %161 = arith.addf %159, %160 : vector<8x32xf32>
    %162 = vector.broadcast %c1_i32 : i32 to vector<8x1xi32>
    %163 = arith.cmpi slt, %162, %0 : vector<8x1xi32>
    %164 = vector.broadcast %101 : i32 to vector<8x1xi32>
    %165 = arith.cmpi slt, %164, %0 : vector<8x1xi32>
    %166 = vector.shape_cast %163 : vector<8x1xi1> to vector<8x1xi1>
    %167 = vector.broadcast %166 : vector<8x1xi1> to vector<8x32xi1>
    %168 = arith.select %167, %138, %85 : vector<8x32xi1>, vector<8x32xf32>
    %169 = vector.shape_cast %165 : vector<8x1xi1> to vector<8x1xi1>
    %170 = vector.broadcast %169 : vector<8x1xi1> to vector<8x32xi1>
    %171 = arith.select %170, %161, %88 : vector<8x32xi1>, vector<8x32xf32>
    %cst_49 = arith.constant 0.000000e+00 : f32
    %172 = vector.shape_cast %163 : vector<8x1xi1> to vector<8x1xi1>
    %173 = vector.broadcast %172 : vector<8x1xi1> to vector<8x32xi1>
    %174 = vector.broadcast %cst_49 : f32 to vector<8x32xf32>
    %175 = arith.select %173, %168, %174 : vector<8x32xi1>, vector<8x32xf32>
    %176 = arith.index_cast %103 : i32 to index
    %c0_50 = arith.constant 0 : index
    %177 = vector.load %arg21[%176, %c0_50] : memref<64x32xf32, #tpu.memory_space<vmem>>, vector<8x32xf32>
    tpu.vector_store %arg21[%176, %c0_50], %175 {strides = array<i32>} : memref<64x32xf32, #tpu.memory_space<vmem>>, vector<8x32xf32>,
    %cst_51 = arith.constant 0.000000e+00 : f32
    %178 = vector.shape_cast %165 : vector<8x1xi1> to vector<8x1xi1>
    %179 = vector.broadcast %178 : vector<8x1xi1> to vector<8x32xi1>
    %180 = vector.broadcast %cst_51 : f32 to vector<8x32xf32>
    %181 = arith.select %179, %171, %180 : vector<8x32xi1>, vector<8x32xf32>
    %182 = arith.index_cast %105 : i32 to index
    %c0_52 = arith.constant 0 : index
    %183 = vector.load %arg22[%182, %c0_52] : memref<64x32xf32, #tpu.memory_space<vmem>>, vector<8x32xf32>
    tpu.vector_store %arg22[%182, %c0_52], %181 {strides = array<i32>} : memref<64x32xf32, #tpu.memory_space<vmem>>, vector<8x32xf32>,
    %c2_i32 = arith.constant 2 : i32
    %c7_i32_53 = arith.constant 7 : i32
    %184 = arith.subi %c7_i32_53, %c2_i32 : i32
    %c8_i32_54 = arith.constant 8 : i32
    %185 = arith.muli %c2_i32, %c8_i32_54 : i32
    %186 = tpu.assume_multiple %185, 8 : i32
    %c8_i32_55 = arith.constant 8 : i32
    %187 = arith.muli %184, %c8_i32_55 : i32
    %188 = tpu.assume_multiple %187, 8 : i32
    %189 = arith.index_cast %186 : i32 to index
    %c0_56 = arith.constant 0 : index
    %190 = vector.load %arg19[%189, %c0_56] : memref<64x768xf32, #tpu.memory_space<vmem>>, vector<8x384xf32>
    %191 = arith.index_cast %188 : i32 to index
    %c384_57 = arith.constant 384 : index
    %192 = vector.load %arg19[%191, %c384_57] : memref<64x768xf32, #tpu.memory_space<vmem>>, vector<8x384xf32>
    %cst_58 = arith.constant dense<0.000000e+00> : vector<8x384xf32>
    %193 = tpu.matmul %168, %13, %cst_58 {dimension_numbers = #tpu.dot_dimension_numbers<[1], [0], [0], [1], [0, 0, 1, 1], [], []>} : vector<8x32xf32>, vector<32x384xf32>, vector<8x384xf32> -> vector<8x384xf32>
    %194 = vector.broadcast %14 : vector<1x384xf32> to vector<8x384xf32>
    %195 = arith.addf %193, %194 : vector<8x384xf32>
    %cst_59 = arith.constant dense<0.000000e+00> : vector<8x384xf32>
    %196 = tpu.matmul %171, %15, %cst_59 {dimension_numbers = #tpu.dot_dimension_numbers<[1], [0], [0], [1], [0, 0, 1, 1], [], []>} : vector<8x32xf32>, vector<32x384xf32>, vector<8x384xf32> -> vector<8x384xf32>
    %197 = vector.broadcast %16 : vector<1x384xf32> to vector<8x384xf32>
    %198 = arith.addf %196, %197 : vector<8x384xf32>
    %199 = vector.extract_strided_slice %190 {offsets = [0, 0], sizes = [8, 256], strides = [1, 1]} : vector<8x384xf32> to vector<8x256xf32>
    %200 = vector.extract_strided_slice %195 {offsets = [0, 0], sizes = [8, 256], strides = [1, 1]} : vector<8x384xf32> to vector<8x256xf32>
    %201 = arith.addf %199, %200 : vector<8x256xf32>
    %cst_60 = arith.constant 5.000000e-01 : f32
    %202 = vector.broadcast %cst_60 : f32 to vector<8x256xf32>
    %203 = arith.mulf %202, %201 : vector<8x256xf32>
    %204 = math.tanh %203 : vector<8x256xf32>
    %cst_61 = arith.constant 1.000000e+00 : f32
    %205 = vector.broadcast %cst_61 : f32 to vector<8x256xf32>
    %206 = arith.addf %204, %205 : vector<8x256xf32>
    %cst_62 = arith.constant 5.000000e-01 : f32
    %207 = vector.broadcast %cst_62 : f32 to vector<8x256xf32>
    %208 = arith.mulf %207, %206 : vector<8x256xf32>
    %209 = vector.extract_strided_slice %208 {offsets = [0, 0], sizes = [8, 128], strides = [1, 1]} : vector<8x256xf32> to vector<8x128xf32>
    %210 = vector.extract_strided_slice %208 {offsets = [0, 128], sizes = [8, 32], strides = [1, 1]} : vector<8x256xf32> to vector<8x32xf32>
    %211 = vector.extract_strided_slice %190 {offsets = [0, 256], sizes = [8, 128], strides = [1, 1]} : vector<8x384xf32> to vector<8x128xf32>
    %212 = vector.extract_strided_slice %195 {offsets = [0, 256], sizes = [8, 128], strides = [1, 1]} : vector<8x384xf32> to vector<8x128xf32>
    %213 = arith.mulf %209, %212 : vector<8x128xf32>
    %214 = arith.addf %211, %213 : vector<8x128xf32>
    %215 = math.tanh %214 : vector<8x128xf32>
    %cst_63 = arith.constant 1.000000e+00 : f32
    %216 = vector.broadcast %cst_63 : f32 to vector<8x32xf32>
    %217 = arith.subf %216, %210 : vector<8x32xf32>
    %218 = vector.extract_strided_slice %215 {offsets = [0, 0], sizes = [8, 32], strides = [1, 1]} : vector<8x128xf32> to vector<8x32xf32>
    %219 = arith.mulf %217, %218 : vector<8x32xf32>
    %220 = arith.mulf %210, %168 : vector<8x32xf32>
    %221 = arith.addf %219, %220 : vector<8x32xf32>
    %222 = vector.extract_strided_slice %192 {offsets = [0, 0], sizes = [8, 256], strides = [1, 1]} : vector<8x384xf32> to vector<8x256xf32>
    %223 = vector.extract_strided_slice %198 {offsets = [0, 0], sizes = [8, 256], strides = [1, 1]} : vector<8x384xf32> to vector<8x256xf32>
    %224 = arith.addf %222, %223 : vector<8x256xf32>
    %cst_64 = arith.constant 5.000000e-01 : f32
    %225 = vector.broadcast %cst_64 : f32 to vector<8x256xf32>
    %226 = arith.mulf %225, %224 : vector<8x256xf32>
    %227 = math.tanh %226 : vector<8x256xf32>
    %cst_65 = arith.constant 1.000000e+00 : f32
    %228 = vector.broadcast %cst_65 : f32 to vector<8x256xf32>
    %229 = arith.addf %227, %228 : vector<8x256xf32>
    %cst_66 = arith.constant 5.000000e-01 : f32
    %230 = vector.broadcast %cst_66 : f32 to vector<8x256xf32>
    %231 = arith.mulf %230, %229 : vector<8x256xf32>
    %232 = vector.extract_strided_slice %231 {offsets = [0, 0], sizes = [8, 128], strides = [1, 1]} : vector<8x256xf32> to vector<8x128xf32>
    %233 = vector.extract_strided_slice %231 {offsets = [0, 128], sizes = [8, 32], strides = [1, 1]} : vector<8x256xf32> to vector<8x32xf32>
    %234 = vector.extract_strided_slice %192 {offsets = [0, 256], sizes = [8, 128], strides = [1, 1]} : vector<8x384xf32> to vector<8x128xf32>
    %235 = vector.extract_strided_slice %198 {offsets = [0, 256], sizes = [8, 128], strides = [1, 1]} : vector<8x384xf32> to vector<8x128xf32>
    %236 = arith.mulf %232, %235 : vector<8x128xf32>
    %237 = arith.addf %234, %236 : vector<8x128xf32>
    %238 = math.tanh %237 : vector<8x128xf32>
    %cst_67 = arith.constant 1.000000e+00 : f32
    %239 = vector.broadcast %cst_67 : f32 to vector<8x32xf32>
    %240 = arith.subf %239, %233 : vector<8x32xf32>
    %241 = vector.extract_strided_slice %238 {offsets = [0, 0], sizes = [8, 32], strides = [1, 1]} : vector<8x128xf32> to vector<8x32xf32>
    %242 = arith.mulf %240, %241 : vector<8x32xf32>
    %243 = arith.mulf %233, %171 : vector<8x32xf32>
    %244 = arith.addf %242, %243 : vector<8x32xf32>
    %245 = vector.broadcast %c2_i32 : i32 to vector<8x1xi32>
    %246 = arith.cmpi slt, %245, %0 : vector<8x1xi32>
    %247 = vector.broadcast %184 : i32 to vector<8x1xi32>
    %248 = arith.cmpi slt, %247, %0 : vector<8x1xi32>
    %249 = vector.shape_cast %246 : vector<8x1xi1> to vector<8x1xi1>
    %250 = vector.broadcast %249 : vector<8x1xi1> to vector<8x32xi1>
    %251 = arith.select %250, %221, %168 : vector<8x32xi1>, vector<8x32xf32>
    %252 = vector.shape_cast %248 : vector<8x1xi1> to vector<8x1xi1>
    %253 = vector.broadcast %252 : vector<8x1xi1> to vector<8x32xi1>
    %254 = arith.select %253, %244, %171 : vector<8x32xi1>, vector<8x32xf32>
    %cst_68 = arith.constant 0.000000e+00 : f32
    %255 = vector.shape_cast %246 : vector<8x1xi1> to vector<8x1xi1>
    %256 = vector.broadcast %255 : vector<8x1xi1> to vector<8x32xi1>
    %257 = vector.broadcast %cst_68 : f32 to vector<8x32xf32>
    %258 = arith.select %256, %251, %257 : vector<8x32xi1>, vector<8x32xf32>
    %259 = arith.index_cast %186 : i32 to index
    %c0_69 = arith.constant 0 : index
    %260 = vector.load %arg21[%259, %c0_69] : memref<64x32xf32, #tpu.memory_space<vmem>>, vector<8x32xf32>
    tpu.vector_store %arg21[%259, %c0_69], %258 {strides = array<i32>} : memref<64x32xf32, #tpu.memory_space<vmem>>, vector<8x32xf32>,
    %cst_70 = arith.constant 0.000000e+00 : f32
    %261 = vector.shape_cast %248 : vector<8x1xi1> to vector<8x1xi1>
    %262 = vector.broadcast %261 : vector<8x1xi1> to vector<8x32xi1>
    %263 = vector.broadcast %cst_70 : f32 to vector<8x32xf32>
    %264 = arith.select %262, %254, %263 : vector<8x32xi1>, vector<8x32xf32>
    %265 = arith.index_cast %188 : i32 to index
    %c0_71 = arith.constant 0 : index
    %266 = vector.load %arg22[%265, %c0_71] : memref<64x32xf32, #tpu.memory_space<vmem>>, vector<8x32xf32>
    tpu.vector_store %arg22[%265, %c0_71], %264 {strides = array<i32>} : memref<64x32xf32, #tpu.memory_space<vmem>>, vector<8x32xf32>,
    %c3_i32 = arith.constant 3 : i32
    %c7_i32_72 = arith.constant 7 : i32
    %267 = arith.subi %c7_i32_72, %c3_i32 : i32
    %c8_i32_73 = arith.constant 8 : i32
    %268 = arith.muli %c3_i32, %c8_i32_73 : i32
    %269 = tpu.assume_multiple %268, 8 : i32
    %c8_i32_74 = arith.constant 8 : i32
    %270 = arith.muli %267, %c8_i32_74 : i32
    %271 = tpu.assume_multiple %270, 8 : i32
    %272 = arith.index_cast %269 : i32 to index
    %c0_75 = arith.constant 0 : index
    %273 = vector.load %arg19[%272, %c0_75] : memref<64x768xf32, #tpu.memory_space<vmem>>, vector<8x384xf32>
    %274 = arith.index_cast %271 : i32 to index
    %c384_76 = arith.constant 384 : index
    %275 = vector.load %arg19[%274, %c384_76] : memref<64x768xf32, #tpu.memory_space<vmem>>, vector<8x384xf32>
    %cst_77 = arith.constant dense<0.000000e+00> : vector<8x384xf32>
    %276 = tpu.matmul %251, %13, %cst_77 {dimension_numbers = #tpu.dot_dimension_numbers<[1], [0], [0], [1], [0, 0, 1, 1], [], []>} : vector<8x32xf32>, vector<32x384xf32>, vector<8x384xf32> -> vector<8x384xf32>
    %277 = vector.broadcast %14 : vector<1x384xf32> to vector<8x384xf32>
    %278 = arith.addf %276, %277 : vector<8x384xf32>
    %cst_78 = arith.constant dense<0.000000e+00> : vector<8x384xf32>
    %279 = tpu.matmul %254, %15, %cst_78 {dimension_numbers = #tpu.dot_dimension_numbers<[1], [0], [0], [1], [0, 0, 1, 1], [], []>} : vector<8x32xf32>, vector<32x384xf32>, vector<8x384xf32> -> vector<8x384xf32>
    %280 = vector.broadcast %16 : vector<1x384xf32> to vector<8x384xf32>
    %281 = arith.addf %279, %280 : vector<8x384xf32>
    %282 = vector.extract_strided_slice %273 {offsets = [0, 0], sizes = [8, 256], strides = [1, 1]} : vector<8x384xf32> to vector<8x256xf32>
    %283 = vector.extract_strided_slice %278 {offsets = [0, 0], sizes = [8, 256], strides = [1, 1]} : vector<8x384xf32> to vector<8x256xf32>
    %284 = arith.addf %282, %283 : vector<8x256xf32>
    %cst_79 = arith.constant 5.000000e-01 : f32
    %285 = vector.broadcast %cst_79 : f32 to vector<8x256xf32>
    %286 = arith.mulf %285, %284 : vector<8x256xf32>
    %287 = math.tanh %286 : vector<8x256xf32>
    %cst_80 = arith.constant 1.000000e+00 : f32
    %288 = vector.broadcast %cst_80 : f32 to vector<8x256xf32>
    %289 = arith.addf %287, %288 : vector<8x256xf32>
    %cst_81 = arith.constant 5.000000e-01 : f32
    %290 = vector.broadcast %cst_81 : f32 to vector<8x256xf32>
    %291 = arith.mulf %290, %289 : vector<8x256xf32>
    %292 = vector.extract_strided_slice %291 {offsets = [0, 0], sizes = [8, 128], strides = [1, 1]} : vector<8x256xf32> to vector<8x128xf32>
    %293 = vector.extract_strided_slice %291 {offsets = [0, 128], sizes = [8, 32], strides = [1, 1]} : vector<8x256xf32> to vector<8x32xf32>
    %294 = vector.extract_strided_slice %273 {offsets = [0, 256], sizes = [8, 128], strides = [1, 1]} : vector<8x384xf32> to vector<8x128xf32>
    %295 = vector.extract_strided_slice %278 {offsets = [0, 256], sizes = [8, 128], strides = [1, 1]} : vector<8x384xf32> to vector<8x128xf32>
    %296 = arith.mulf %292, %295 : vector<8x128xf32>
    %297 = arith.addf %294, %296 : vector<8x128xf32>
    %298 = math.tanh %297 : vector<8x128xf32>
    %cst_82 = arith.constant 1.000000e+00 : f32
    %299 = vector.broadcast %cst_82 : f32 to vector<8x32xf32>
    %300 = arith.subf %299, %293 : vector<8x32xf32>
    %301 = vector.extract_strided_slice %298 {offsets = [0, 0], sizes = [8, 32], strides = [1, 1]} : vector<8x128xf32> to vector<8x32xf32>
    %302 = arith.mulf %300, %301 : vector<8x32xf32>
    %303 = arith.mulf %293, %251 : vector<8x32xf32>
    %304 = arith.addf %302, %303 : vector<8x32xf32>
    %305 = vector.extract_strided_slice %275 {offsets = [0, 0], sizes = [8, 256], strides = [1, 1]} : vector<8x384xf32> to vector<8x256xf32>
    %306 = vector.extract_strided_slice %281 {offsets = [0, 0], sizes = [8, 256], strides = [1, 1]} : vector<8x384xf32> to vector<8x256xf32>
    %307 = arith.addf %305, %306 : vector<8x256xf32>
    %cst_83 = arith.constant 5.000000e-01 : f32
    %308 = vector.broadcast %cst_83 : f32 to vector<8x256xf32>
    %309 = arith.mulf %308, %307 : vector<8x256xf32>
    %310 = math.tanh %309 : vector<8x256xf32>
    %cst_84 = arith.constant 1.000000e+00 : f32
    %311 = vector.broadcast %cst_84 : f32 to vector<8x256xf32>
    %312 = arith.addf %310, %311 : vector<8x256xf32>
    %cst_85 = arith.constant 5.000000e-01 : f32
    %313 = vector.broadcast %cst_85 : f32 to vector<8x256xf32>
    %314 = arith.mulf %313, %312 : vector<8x256xf32>
    %315 = vector.extract_strided_slice %314 {offsets = [0, 0], sizes = [8, 128], strides = [1, 1]} : vector<8x256xf32> to vector<8x128xf32>
    %316 = vector.extract_strided_slice %314 {offsets = [0, 128], sizes = [8, 32], strides = [1, 1]} : vector<8x256xf32> to vector<8x32xf32>
    %317 = vector.extract_strided_slice %275 {offsets = [0, 256], sizes = [8, 128], strides = [1, 1]} : vector<8x384xf32> to vector<8x128xf32>
    %318 = vector.extract_strided_slice %281 {offsets = [0, 256], sizes = [8, 128], strides = [1, 1]} : vector<8x384xf32> to vector<8x128xf32>
    %319 = arith.mulf %315, %318 : vector<8x128xf32>
    %320 = arith.addf %317, %319 : vector<8x128xf32>
    %321 = math.tanh %320 : vector<8x128xf32>
    %cst_86 = arith.constant 1.000000e+00 : f32
    %322 = vector.broadcast %cst_86 : f32 to vector<8x32xf32>
    %323 = arith.subf %322, %316 : vector<8x32xf32>
    %324 = vector.extract_strided_slice %321 {offsets = [0, 0], sizes = [8, 32], strides = [1, 1]} : vector<8x128xf32> to vector<8x32xf32>
    %325 = arith.mulf %323, %324 : vector<8x32xf32>
    %326 = arith.mulf %316, %254 : vector<8x32xf32>
    %327 = arith.addf %325, %326 : vector<8x32xf32>
    %328 = vector.broadcast %c3_i32 : i32 to vector<8x1xi32>
    %329 = arith.cmpi slt, %328, %0 : vector<8x1xi32>
    %330 = vector.broadcast %267 : i32 to vector<8x1xi32>
    %331 = arith.cmpi slt, %330, %0 : vector<8x1xi32>
    %332 = vector.shape_cast %329 : vector<8x1xi1> to vector<8x1xi1>
    %333 = vector.broadcast %332 : vector<8x1xi1> to vector<8x32xi1>
    %334 = arith.select %333, %304, %251 : vector<8x32xi1>, vector<8x32xf32>
    %335 = vector.shape_cast %331 : vector<8x1xi1> to vector<8x1xi1>
    %336 = vector.broadcast %335 : vector<8x1xi1> to vector<8x32xi1>
    %337 = arith.select %336, %327, %254 : vector<8x32xi1>, vector<8x32xf32>
    %cst_87 = arith.constant 0.000000e+00 : f32
    %338 = vector.shape_cast %329 : vector<8x1xi1> to vector<8x1xi1>
    %339 = vector.broadcast %338 : vector<8x1xi1> to vector<8x32xi1>
    %340 = vector.broadcast %cst_87 : f32 to vector<8x32xf32>
    %341 = arith.select %339, %334, %340 : vector<8x32xi1>, vector<8x32xf32>
    %342 = arith.index_cast %269 : i32 to index
    %c0_88 = arith.constant 0 : index
    %343 = vector.load %arg21[%342, %c0_88] : memref<64x32xf32, #tpu.memory_space<vmem>>, vector<8x32xf32>
    tpu.vector_store %arg21[%342, %c0_88], %341 {strides = array<i32>} : memref<64x32xf32, #tpu.memory_space<vmem>>, vector<8x32xf32>,
    %cst_89 = arith.constant 0.000000e+00 : f32
    %344 = vector.shape_cast %331 : vector<8x1xi1> to vector<8x1xi1>
    %345 = vector.broadcast %344 : vector<8x1xi1> to vector<8x32xi1>
    %346 = vector.broadcast %cst_89 : f32 to vector<8x32xf32>
    %347 = arith.select %345, %337, %346 : vector<8x32xi1>, vector<8x32xf32>
    %348 = arith.index_cast %271 : i32 to index
    %c0_90 = arith.constant 0 : index
    %349 = vector.load %arg22[%348, %c0_90] : memref<64x32xf32, #tpu.memory_space<vmem>>, vector<8x32xf32>
    tpu.vector_store %arg22[%348, %c0_90], %347 {strides = array<i32>} : memref<64x32xf32, #tpu.memory_space<vmem>>, vector<8x32xf32>,
    %c4_i32 = arith.constant 4 : i32
    %c7_i32_91 = arith.constant 7 : i32
    %350 = arith.subi %c7_i32_91, %c4_i32 : i32
    %c8_i32_92 = arith.constant 8 : i32
    %351 = arith.muli %c4_i32, %c8_i32_92 : i32
    %352 = tpu.assume_multiple %351, 8 : i32
    %c8_i32_93 = arith.constant 8 : i32
    %353 = arith.muli %350, %c8_i32_93 : i32
    %354 = tpu.assume_multiple %353, 8 : i32
    %355 = arith.index_cast %352 : i32 to index
    %c0_94 = arith.constant 0 : index
    %356 = vector.load %arg19[%355, %c0_94] : memref<64x768xf32, #tpu.memory_space<vmem>>, vector<8x384xf32>
    %357 = arith.index_cast %354 : i32 to index
    %c384_95 = arith.constant 384 : index
    %358 = vector.load %arg19[%357, %c384_95] : memref<64x768xf32, #tpu.memory_space<vmem>>, vector<8x384xf32>
    %cst_96 = arith.constant dense<0.000000e+00> : vector<8x384xf32>
    %359 = tpu.matmul %334, %13, %cst_96 {dimension_numbers = #tpu.dot_dimension_numbers<[1], [0], [0], [1], [0, 0, 1, 1], [], []>} : vector<8x32xf32>, vector<32x384xf32>, vector<8x384xf32> -> vector<8x384xf32>
    %360 = vector.broadcast %14 : vector<1x384xf32> to vector<8x384xf32>
    %361 = arith.addf %359, %360 : vector<8x384xf32>
    %cst_97 = arith.constant dense<0.000000e+00> : vector<8x384xf32>
    %362 = tpu.matmul %337, %15, %cst_97 {dimension_numbers = #tpu.dot_dimension_numbers<[1], [0], [0], [1], [0, 0, 1, 1], [], []>} : vector<8x32xf32>, vector<32x384xf32>, vector<8x384xf32> -> vector<8x384xf32>
    %363 = vector.broadcast %16 : vector<1x384xf32> to vector<8x384xf32>
    %364 = arith.addf %362, %363 : vector<8x384xf32>
    %365 = vector.extract_strided_slice %356 {offsets = [0, 0], sizes = [8, 256], strides = [1, 1]} : vector<8x384xf32> to vector<8x256xf32>
    %366 = vector.extract_strided_slice %361 {offsets = [0, 0], sizes = [8, 256], strides = [1, 1]} : vector<8x384xf32> to vector<8x256xf32>
    %367 = arith.addf %365, %366 : vector<8x256xf32>
    %cst_98 = arith.constant 5.000000e-01 : f32
    %368 = vector.broadcast %cst_98 : f32 to vector<8x256xf32>
    %369 = arith.mulf %368, %367 : vector<8x256xf32>
    %370 = math.tanh %369 : vector<8x256xf32>
    %cst_99 = arith.constant 1.000000e+00 : f32
    %371 = vector.broadcast %cst_99 : f32 to vector<8x256xf32>
    %372 = arith.addf %370, %371 : vector<8x256xf32>
    %cst_100 = arith.constant 5.000000e-01 : f32
    %373 = vector.broadcast %cst_100 : f32 to vector<8x256xf32>
    %374 = arith.mulf %373, %372 : vector<8x256xf32>
    %375 = vector.extract_strided_slice %374 {offsets = [0, 0], sizes = [8, 128], strides = [1, 1]} : vector<8x256xf32> to vector<8x128xf32>
    %376 = vector.extract_strided_slice %374 {offsets = [0, 128], sizes = [8, 32], strides = [1, 1]} : vector<8x256xf32> to vector<8x32xf32>
    %377 = vector.extract_strided_slice %356 {offsets = [0, 256], sizes = [8, 128], strides = [1, 1]} : vector<8x384xf32> to vector<8x128xf32>
    %378 = vector.extract_strided_slice %361 {offsets = [0, 256], sizes = [8, 128], strides = [1, 1]} : vector<8x384xf32> to vector<8x128xf32>
    %379 = arith.mulf %375, %378 : vector<8x128xf32>
    %380 = arith.addf %377, %379 : vector<8x128xf32>
    %381 = math.tanh %380 : vector<8x128xf32>
    %cst_101 = arith.constant 1.000000e+00 : f32
    %382 = vector.broadcast %cst_101 : f32 to vector<8x32xf32>
    %383 = arith.subf %382, %376 : vector<8x32xf32>
    %384 = vector.extract_strided_slice %381 {offsets = [0, 0], sizes = [8, 32], strides = [1, 1]} : vector<8x128xf32> to vector<8x32xf32>
    %385 = arith.mulf %383, %384 : vector<8x32xf32>
    %386 = arith.mulf %376, %334 : vector<8x32xf32>
    %387 = arith.addf %385, %386 : vector<8x32xf32>
    %388 = vector.extract_strided_slice %358 {offsets = [0, 0], sizes = [8, 256], strides = [1, 1]} : vector<8x384xf32> to vector<8x256xf32>
    %389 = vector.extract_strided_slice %364 {offsets = [0, 0], sizes = [8, 256], strides = [1, 1]} : vector<8x384xf32> to vector<8x256xf32>
    %390 = arith.addf %388, %389 : vector<8x256xf32>
    %cst_102 = arith.constant 5.000000e-01 : f32
    %391 = vector.broadcast %cst_102 : f32 to vector<8x256xf32>
    %392 = arith.mulf %391, %390 : vector<8x256xf32>
    %393 = math.tanh %392 : vector<8x256xf32>
    %cst_103 = arith.constant 1.000000e+00 : f32
    %394 = vector.broadcast %cst_103 : f32 to vector<8x256xf32>
    %395 = arith.addf %393, %394 : vector<8x256xf32>
    %cst_104 = arith.constant 5.000000e-01 : f32
    %396 = vector.broadcast %cst_104 : f32 to vector<8x256xf32>
    %397 = arith.mulf %396, %395 : vector<8x256xf32>
    %398 = vector.extract_strided_slice %397 {offsets = [0, 0], sizes = [8, 128], strides = [1, 1]} : vector<8x256xf32> to vector<8x128xf32>
    %399 = vector.extract_strided_slice %397 {offsets = [0, 128], sizes = [8, 32], strides = [1, 1]} : vector<8x256xf32> to vector<8x32xf32>
    %400 = vector.extract_strided_slice %358 {offsets = [0, 256], sizes = [8, 128], strides = [1, 1]} : vector<8x384xf32> to vector<8x128xf32>
    %401 = vector.extract_strided_slice %364 {offsets = [0, 256], sizes = [8, 128], strides = [1, 1]} : vector<8x384xf32> to vector<8x128xf32>
    %402 = arith.mulf %398, %401 : vector<8x128xf32>
    %403 = arith.addf %400, %402 : vector<8x128xf32>
    %404 = math.tanh %403 : vector<8x128xf32>
    %cst_105 = arith.constant 1.000000e+00 : f32
    %405 = vector.broadcast %cst_105 : f32 to vector<8x32xf32>
    %406 = arith.subf %405, %399 : vector<8x32xf32>
    %407 = vector.extract_strided_slice %404 {offsets = [0, 0], sizes = [8, 32], strides = [1, 1]} : vector<8x128xf32> to vector<8x32xf32>
    %408 = arith.mulf %406, %407 : vector<8x32xf32>
    %409 = arith.mulf %399, %337 : vector<8x32xf32>
    %410 = arith.addf %408, %409 : vector<8x32xf32>
    %411 = vector.broadcast %c4_i32 : i32 to vector<8x1xi32>
    %412 = arith.cmpi slt, %411, %0 : vector<8x1xi32>
    %413 = vector.broadcast %350 : i32 to vector<8x1xi32>
    %414 = arith.cmpi slt, %413, %0 : vector<8x1xi32>
    %415 = vector.shape_cast %412 : vector<8x1xi1> to vector<8x1xi1>
    %416 = vector.broadcast %415 : vector<8x1xi1> to vector<8x32xi1>
    %417 = arith.select %416, %387, %334 : vector<8x32xi1>, vector<8x32xf32>
    %418 = vector.shape_cast %414 : vector<8x1xi1> to vector<8x1xi1>
    %419 = vector.broadcast %418 : vector<8x1xi1> to vector<8x32xi1>
    %420 = arith.select %419, %410, %337 : vector<8x32xi1>, vector<8x32xf32>
    %cst_106 = arith.constant 0.000000e+00 : f32
    %421 = vector.shape_cast %412 : vector<8x1xi1> to vector<8x1xi1>
    %422 = vector.broadcast %421 : vector<8x1xi1> to vector<8x32xi1>
    %423 = vector.broadcast %cst_106 : f32 to vector<8x32xf32>
    %424 = arith.select %422, %417, %423 : vector<8x32xi1>, vector<8x32xf32>
    %425 = arith.index_cast %352 : i32 to index
    %c0_107 = arith.constant 0 : index
    %426 = vector.load %arg21[%425, %c0_107] : memref<64x32xf32, #tpu.memory_space<vmem>>, vector<8x32xf32>
    tpu.vector_store %arg21[%425, %c0_107], %424 {strides = array<i32>} : memref<64x32xf32, #tpu.memory_space<vmem>>, vector<8x32xf32>,
    %cst_108 = arith.constant 0.000000e+00 : f32
    %427 = vector.shape_cast %414 : vector<8x1xi1> to vector<8x1xi1>
    %428 = vector.broadcast %427 : vector<8x1xi1> to vector<8x32xi1>
    %429 = vector.broadcast %cst_108 : f32 to vector<8x32xf32>
    %430 = arith.select %428, %420, %429 : vector<8x32xi1>, vector<8x32xf32>
    %431 = arith.index_cast %354 : i32 to index
    %c0_109 = arith.constant 0 : index
    %432 = vector.load %arg22[%431, %c0_109] : memref<64x32xf32, #tpu.memory_space<vmem>>, vector<8x32xf32>
    tpu.vector_store %arg22[%431, %c0_109], %430 {strides = array<i32>} : memref<64x32xf32, #tpu.memory_space<vmem>>, vector<8x32xf32>,
    %c5_i32 = arith.constant 5 : i32
    %c7_i32_110 = arith.constant 7 : i32
    %433 = arith.subi %c7_i32_110, %c5_i32 : i32
    %c8_i32_111 = arith.constant 8 : i32
    %434 = arith.muli %c5_i32, %c8_i32_111 : i32
    %435 = tpu.assume_multiple %434, 8 : i32
    %c8_i32_112 = arith.constant 8 : i32
    %436 = arith.muli %433, %c8_i32_112 : i32
    %437 = tpu.assume_multiple %436, 8 : i32
    %438 = arith.index_cast %435 : i32 to index
    %c0_113 = arith.constant 0 : index
    %439 = vector.load %arg19[%438, %c0_113] : memref<64x768xf32, #tpu.memory_space<vmem>>, vector<8x384xf32>
    %440 = arith.index_cast %437 : i32 to index
    %c384_114 = arith.constant 384 : index
    %441 = vector.load %arg19[%440, %c384_114] : memref<64x768xf32, #tpu.memory_space<vmem>>, vector<8x384xf32>
    %cst_115 = arith.constant dense<0.000000e+00> : vector<8x384xf32>
    %442 = tpu.matmul %417, %13, %cst_115 {dimension_numbers = #tpu.dot_dimension_numbers<[1], [0], [0], [1], [0, 0, 1, 1], [], []>} : vector<8x32xf32>, vector<32x384xf32>, vector<8x384xf32> -> vector<8x384xf32>
    %443 = vector.broadcast %14 : vector<1x384xf32> to vector<8x384xf32>
    %444 = arith.addf %442, %443 : vector<8x384xf32>
    %cst_116 = arith.constant dense<0.000000e+00> : vector<8x384xf32>
    %445 = tpu.matmul %420, %15, %cst_116 {dimension_numbers = #tpu.dot_dimension_numbers<[1], [0], [0], [1], [0, 0, 1, 1], [], []>} : vector<8x32xf32>, vector<32x384xf32>, vector<8x384xf32> -> vector<8x384xf32>
    %446 = vector.broadcast %16 : vector<1x384xf32> to vector<8x384xf32>
    %447 = arith.addf %445, %446 : vector<8x384xf32>
    %448 = vector.extract_strided_slice %439 {offsets = [0, 0], sizes = [8, 256], strides = [1, 1]} : vector<8x384xf32> to vector<8x256xf32>
    %449 = vector.extract_strided_slice %444 {offsets = [0, 0], sizes = [8, 256], strides = [1, 1]} : vector<8x384xf32> to vector<8x256xf32>
    %450 = arith.addf %448, %449 : vector<8x256xf32>
    %cst_117 = arith.constant 5.000000e-01 : f32
    %451 = vector.broadcast %cst_117 : f32 to vector<8x256xf32>
    %452 = arith.mulf %451, %450 : vector<8x256xf32>
    %453 = math.tanh %452 : vector<8x256xf32>
    %cst_118 = arith.constant 1.000000e+00 : f32
    %454 = vector.broadcast %cst_118 : f32 to vector<8x256xf32>
    %455 = arith.addf %453, %454 : vector<8x256xf32>
    %cst_119 = arith.constant 5.000000e-01 : f32
    %456 = vector.broadcast %cst_119 : f32 to vector<8x256xf32>
    %457 = arith.mulf %456, %455 : vector<8x256xf32>
    %458 = vector.extract_strided_slice %457 {offsets = [0, 0], sizes = [8, 128], strides = [1, 1]} : vector<8x256xf32> to vector<8x128xf32>
    %459 = vector.extract_strided_slice %457 {offsets = [0, 128], sizes = [8, 32], strides = [1, 1]} : vector<8x256xf32> to vector<8x32xf32>
    %460 = vector.extract_strided_slice %439 {offsets = [0, 256], sizes = [8, 128], strides = [1, 1]} : vector<8x384xf32> to vector<8x128xf32>
    %461 = vector.extract_strided_slice %444 {offsets = [0, 256], sizes = [8, 128], strides = [1, 1]} : vector<8x384xf32> to vector<8x128xf32>
    %462 = arith.mulf %458, %461 : vector<8x128xf32>
    %463 = arith.addf %460, %462 : vector<8x128xf32>
    %464 = math.tanh %463 : vector<8x128xf32>
    %cst_120 = arith.constant 1.000000e+00 : f32
    %465 = vector.broadcast %cst_120 : f32 to vector<8x32xf32>
    %466 = arith.subf %465, %459 : vector<8x32xf32>
    %467 = vector.extract_strided_slice %464 {offsets = [0, 0], sizes = [8, 32], strides = [1, 1]} : vector<8x128xf32> to vector<8x32xf32>
    %468 = arith.mulf %466, %467 : vector<8x32xf32>
    %469 = arith.mulf %459, %417 : vector<8x32xf32>
    %470 = arith.addf %468, %469 : vector<8x32xf32>
    %471 = vector.extract_strided_slice %441 {offsets = [0, 0], sizes = [8, 256], strides = [1, 1]} : vector<8x384xf32> to vector<8x256xf32>
    %472 = vector.extract_strided_slice %447 {offsets = [0, 0], sizes = [8, 256], strides = [1, 1]} : vector<8x384xf32> to vector<8x256xf32>
    %473 = arith.addf %471, %472 : vector<8x256xf32>
    %cst_121 = arith.constant 5.000000e-01 : f32
    %474 = vector.broadcast %cst_121 : f32 to vector<8x256xf32>
    %475 = arith.mulf %474, %473 : vector<8x256xf32>
    %476 = math.tanh %475 : vector<8x256xf32>
    %cst_122 = arith.constant 1.000000e+00 : f32
    %477 = vector.broadcast %cst_122 : f32 to vector<8x256xf32>
    %478 = arith.addf %476, %477 : vector<8x256xf32>
    %cst_123 = arith.constant 5.000000e-01 : f32
    %479 = vector.broadcast %cst_123 : f32 to vector<8x256xf32>
    %480 = arith.mulf %479, %478 : vector<8x256xf32>
    %481 = vector.extract_strided_slice %480 {offsets = [0, 0], sizes = [8, 128], strides = [1, 1]} : vector<8x256xf32> to vector<8x128xf32>
    %482 = vector.extract_strided_slice %480 {offsets = [0, 128], sizes = [8, 32], strides = [1, 1]} : vector<8x256xf32> to vector<8x32xf32>
    %483 = vector.extract_strided_slice %441 {offsets = [0, 256], sizes = [8, 128], strides = [1, 1]} : vector<8x384xf32> to vector<8x128xf32>
    %484 = vector.extract_strided_slice %447 {offsets = [0, 256], sizes = [8, 128], strides = [1, 1]} : vector<8x384xf32> to vector<8x128xf32>
    %485 = arith.mulf %481, %484 : vector<8x128xf32>
    %486 = arith.addf %483, %485 : vector<8x128xf32>
    %487 = math.tanh %486 : vector<8x128xf32>
    %cst_124 = arith.constant 1.000000e+00 : f32
    %488 = vector.broadcast %cst_124 : f32 to vector<8x32xf32>
    %489 = arith.subf %488, %482 : vector<8x32xf32>
    %490 = vector.extract_strided_slice %487 {offsets = [0, 0], sizes = [8, 32], strides = [1, 1]} : vector<8x128xf32> to vector<8x32xf32>
    %491 = arith.mulf %489, %490 : vector<8x32xf32>
    %492 = arith.mulf %482, %420 : vector<8x32xf32>
    %493 = arith.addf %491, %492 : vector<8x32xf32>
    %494 = vector.broadcast %c5_i32 : i32 to vector<8x1xi32>
    %495 = arith.cmpi slt, %494, %0 : vector<8x1xi32>
    %496 = vector.broadcast %433 : i32 to vector<8x1xi32>
    %497 = arith.cmpi slt, %496, %0 : vector<8x1xi32>
    %498 = vector.shape_cast %495 : vector<8x1xi1> to vector<8x1xi1>
    %499 = vector.broadcast %498 : vector<8x1xi1> to vector<8x32xi1>
    %500 = arith.select %499, %470, %417 : vector<8x32xi1>, vector<8x32xf32>
    %501 = vector.shape_cast %497 : vector<8x1xi1> to vector<8x1xi1>
    %502 = vector.broadcast %501 : vector<8x1xi1> to vector<8x32xi1>
    %503 = arith.select %502, %493, %420 : vector<8x32xi1>, vector<8x32xf32>
    %cst_125 = arith.constant 0.000000e+00 : f32
    %504 = vector.shape_cast %495 : vector<8x1xi1> to vector<8x1xi1>
    %505 = vector.broadcast %504 : vector<8x1xi1> to vector<8x32xi1>
    %506 = vector.broadcast %cst_125 : f32 to vector<8x32xf32>
    %507 = arith.select %505, %500, %506 : vector<8x32xi1>, vector<8x32xf32>
    %508 = arith.index_cast %435 : i32 to index
    %c0_126 = arith.constant 0 : index
    %509 = vector.load %arg21[%508, %c0_126] : memref<64x32xf32, #tpu.memory_space<vmem>>, vector<8x32xf32>
    tpu.vector_store %arg21[%508, %c0_126], %507 {strides = array<i32>} : memref<64x32xf32, #tpu.memory_space<vmem>>, vector<8x32xf32>,
    %cst_127 = arith.constant 0.000000e+00 : f32
    %510 = vector.shape_cast %497 : vector<8x1xi1> to vector<8x1xi1>
    %511 = vector.broadcast %510 : vector<8x1xi1> to vector<8x32xi1>
    %512 = vector.broadcast %cst_127 : f32 to vector<8x32xf32>
    %513 = arith.select %511, %503, %512 : vector<8x32xi1>, vector<8x32xf32>
    %514 = arith.index_cast %437 : i32 to index
    %c0_128 = arith.constant 0 : index
    %515 = vector.load %arg22[%514, %c0_128] : memref<64x32xf32, #tpu.memory_space<vmem>>, vector<8x32xf32>
    tpu.vector_store %arg22[%514, %c0_128], %513 {strides = array<i32>} : memref<64x32xf32, #tpu.memory_space<vmem>>, vector<8x32xf32>,
    %c6_i32 = arith.constant 6 : i32
    %c7_i32_129 = arith.constant 7 : i32
    %516 = arith.subi %c7_i32_129, %c6_i32 : i32
    %c8_i32_130 = arith.constant 8 : i32
    %517 = arith.muli %c6_i32, %c8_i32_130 : i32
    %518 = tpu.assume_multiple %517, 8 : i32
    %c8_i32_131 = arith.constant 8 : i32
    %519 = arith.muli %516, %c8_i32_131 : i32
    %520 = tpu.assume_multiple %519, 8 : i32
    %521 = arith.index_cast %518 : i32 to index
    %c0_132 = arith.constant 0 : index
    %522 = vector.load %arg19[%521, %c0_132] : memref<64x768xf32, #tpu.memory_space<vmem>>, vector<8x384xf32>
    %523 = arith.index_cast %520 : i32 to index
    %c384_133 = arith.constant 384 : index
    %524 = vector.load %arg19[%523, %c384_133] : memref<64x768xf32, #tpu.memory_space<vmem>>, vector<8x384xf32>
    %cst_134 = arith.constant dense<0.000000e+00> : vector<8x384xf32>
    %525 = tpu.matmul %500, %13, %cst_134 {dimension_numbers = #tpu.dot_dimension_numbers<[1], [0], [0], [1], [0, 0, 1, 1], [], []>} : vector<8x32xf32>, vector<32x384xf32>, vector<8x384xf32> -> vector<8x384xf32>
    %526 = vector.broadcast %14 : vector<1x384xf32> to vector<8x384xf32>
    %527 = arith.addf %525, %526 : vector<8x384xf32>
    %cst_135 = arith.constant dense<0.000000e+00> : vector<8x384xf32>
    %528 = tpu.matmul %503, %15, %cst_135 {dimension_numbers = #tpu.dot_dimension_numbers<[1], [0], [0], [1], [0, 0, 1, 1], [], []>} : vector<8x32xf32>, vector<32x384xf32>, vector<8x384xf32> -> vector<8x384xf32>
    %529 = vector.broadcast %16 : vector<1x384xf32> to vector<8x384xf32>
    %530 = arith.addf %528, %529 : vector<8x384xf32>
    %531 = vector.extract_strided_slice %522 {offsets = [0, 0], sizes = [8, 256], strides = [1, 1]} : vector<8x384xf32> to vector<8x256xf32>
    %532 = vector.extract_strided_slice %527 {offsets = [0, 0], sizes = [8, 256], strides = [1, 1]} : vector<8x384xf32> to vector<8x256xf32>
    %533 = arith.addf %531, %532 : vector<8x256xf32>
    %cst_136 = arith.constant 5.000000e-01 : f32
    %534 = vector.broadcast %cst_136 : f32 to vector<8x256xf32>
    %535 = arith.mulf %534, %533 : vector<8x256xf32>
    %536 = math.tanh %535 : vector<8x256xf32>
    %cst_137 = arith.constant 1.000000e+00 : f32
    %537 = vector.broadcast %cst_137 : f32 to vector<8x256xf32>
    %538 = arith.addf %536, %537 : vector<8x256xf32>
    %cst_138 = arith.constant 5.000000e-01 : f32
    %539 = vector.broadcast %cst_138 : f32 to vector<8x256xf32>
    %540 = arith.mulf %539, %538 : vector<8x256xf32>
    %541 = vector.extract_strided_slice %540 {offsets = [0, 0], sizes = [8, 128], strides = [1, 1]} : vector<8x256xf32> to vector<8x128xf32>
    %542 = vector.extract_strided_slice %540 {offsets = [0, 128], sizes = [8, 32], strides = [1, 1]} : vector<8x256xf32> to vector<8x32xf32>
    %543 = vector.extract_strided_slice %522 {offsets = [0, 256], sizes = [8, 128], strides = [1, 1]} : vector<8x384xf32> to vector<8x128xf32>
    %544 = vector.extract_strided_slice %527 {offsets = [0, 256], sizes = [8, 128], strides = [1, 1]} : vector<8x384xf32> to vector<8x128xf32>
    %545 = arith.mulf %541, %544 : vector<8x128xf32>
    %546 = arith.addf %543, %545 : vector<8x128xf32>
    %547 = math.tanh %546 : vector<8x128xf32>
    %cst_139 = arith.constant 1.000000e+00 : f32
    %548 = vector.broadcast %cst_139 : f32 to vector<8x32xf32>
    %549 = arith.subf %548, %542 : vector<8x32xf32>
    %550 = vector.extract_strided_slice %547 {offsets = [0, 0], sizes = [8, 32], strides = [1, 1]} : vector<8x128xf32> to vector<8x32xf32>
    %551 = arith.mulf %549, %550 : vector<8x32xf32>
    %552 = arith.mulf %542, %500 : vector<8x32xf32>
    %553 = arith.addf %551, %552 : vector<8x32xf32>
    %554 = vector.extract_strided_slice %524 {offsets = [0, 0], sizes = [8, 256], strides = [1, 1]} : vector<8x384xf32> to vector<8x256xf32>
    %555 = vector.extract_strided_slice %530 {offsets = [0, 0], sizes = [8, 256], strides = [1, 1]} : vector<8x384xf32> to vector<8x256xf32>
    %556 = arith.addf %554, %555 : vector<8x256xf32>
    %cst_140 = arith.constant 5.000000e-01 : f32
    %557 = vector.broadcast %cst_140 : f32 to vector<8x256xf32>
    %558 = arith.mulf %557, %556 : vector<8x256xf32>
    %559 = math.tanh %558 : vector<8x256xf32>
    %cst_141 = arith.constant 1.000000e+00 : f32
    %560 = vector.broadcast %cst_141 : f32 to vector<8x256xf32>
    %561 = arith.addf %559, %560 : vector<8x256xf32>
    %cst_142 = arith.constant 5.000000e-01 : f32
    %562 = vector.broadcast %cst_142 : f32 to vector<8x256xf32>
    %563 = arith.mulf %562, %561 : vector<8x256xf32>
    %564 = vector.extract_strided_slice %563 {offsets = [0, 0], sizes = [8, 128], strides = [1, 1]} : vector<8x256xf32> to vector<8x128xf32>
    %565 = vector.extract_strided_slice %563 {offsets = [0, 128], sizes = [8, 32], strides = [1, 1]} : vector<8x256xf32> to vector<8x32xf32>
    %566 = vector.extract_strided_slice %524 {offsets = [0, 256], sizes = [8, 128], strides = [1, 1]} : vector<8x384xf32> to vector<8x128xf32>
    %567 = vector.extract_strided_slice %530 {offsets = [0, 256], sizes = [8, 128], strides = [1, 1]} : vector<8x384xf32> to vector<8x128xf32>
    %568 = arith.mulf %564, %567 : vector<8x128xf32>
    %569 = arith.addf %566, %568 : vector<8x128xf32>
    %570 = math.tanh %569 : vector<8x128xf32>
    %cst_143 = arith.constant 1.000000e+00 : f32
    %571 = vector.broadcast %cst_143 : f32 to vector<8x32xf32>
    %572 = arith.subf %571, %565 : vector<8x32xf32>
    %573 = vector.extract_strided_slice %570 {offsets = [0, 0], sizes = [8, 32], strides = [1, 1]} : vector<8x128xf32> to vector<8x32xf32>
    %574 = arith.mulf %572, %573 : vector<8x32xf32>
    %575 = arith.mulf %565, %503 : vector<8x32xf32>
    %576 = arith.addf %574, %575 : vector<8x32xf32>
    %577 = vector.broadcast %c6_i32 : i32 to vector<8x1xi32>
    %578 = arith.cmpi slt, %577, %0 : vector<8x1xi32>
    %579 = vector.broadcast %516 : i32 to vector<8x1xi32>
    %580 = arith.cmpi slt, %579, %0 : vector<8x1xi32>
    %581 = vector.shape_cast %578 : vector<8x1xi1> to vector<8x1xi1>
    %582 = vector.broadcast %581 : vector<8x1xi1> to vector<8x32xi1>
    %583 = arith.select %582, %553, %500 : vector<8x32xi1>, vector<8x32xf32>
    %584 = vector.shape_cast %580 : vector<8x1xi1> to vector<8x1xi1>
    %585 = vector.broadcast %584 : vector<8x1xi1> to vector<8x32xi1>
    %586 = arith.select %585, %576, %503 : vector<8x32xi1>, vector<8x32xf32>
    %cst_144 = arith.constant 0.000000e+00 : f32
    %587 = vector.shape_cast %578 : vector<8x1xi1> to vector<8x1xi1>
    %588 = vector.broadcast %587 : vector<8x1xi1> to vector<8x32xi1>
    %589 = vector.broadcast %cst_144 : f32 to vector<8x32xf32>
    %590 = arith.select %588, %583, %589 : vector<8x32xi1>, vector<8x32xf32>
    %591 = arith.index_cast %518 : i32 to index
    %c0_145 = arith.constant 0 : index
    %592 = vector.load %arg21[%591, %c0_145] : memref<64x32xf32, #tpu.memory_space<vmem>>, vector<8x32xf32>
    tpu.vector_store %arg21[%591, %c0_145], %590 {strides = array<i32>} : memref<64x32xf32, #tpu.memory_space<vmem>>, vector<8x32xf32>,
    %cst_146 = arith.constant 0.000000e+00 : f32
    %593 = vector.shape_cast %580 : vector<8x1xi1> to vector<8x1xi1>
    %594 = vector.broadcast %593 : vector<8x1xi1> to vector<8x32xi1>
    %595 = vector.broadcast %cst_146 : f32 to vector<8x32xf32>
    %596 = arith.select %594, %586, %595 : vector<8x32xi1>, vector<8x32xf32>
    %597 = arith.index_cast %520 : i32 to index
    %c0_147 = arith.constant 0 : index
    %598 = vector.load %arg22[%597, %c0_147] : memref<64x32xf32, #tpu.memory_space<vmem>>, vector<8x32xf32>
    tpu.vector_store %arg22[%597, %c0_147], %596 {strides = array<i32>} : memref<64x32xf32, #tpu.memory_space<vmem>>, vector<8x32xf32>,
    %c7_i32_148 = arith.constant 7 : i32
    %c7_i32_149 = arith.constant 7 : i32
    %599 = arith.subi %c7_i32_149, %c7_i32_148 : i32
    %c8_i32_150 = arith.constant 8 : i32
    %600 = arith.muli %c7_i32_148, %c8_i32_150 : i32
    %601 = tpu.assume_multiple %600, 8 : i32
    %c8_i32_151 = arith.constant 8 : i32
    %602 = arith.muli %599, %c8_i32_151 : i32
    %603 = tpu.assume_multiple %602, 8 : i32
    %604 = arith.index_cast %601 : i32 to index
    %c0_152 = arith.constant 0 : index
    %605 = vector.load %arg19[%604, %c0_152] : memref<64x768xf32, #tpu.memory_space<vmem>>, vector<8x384xf32>
    %606 = arith.index_cast %603 : i32 to index
    %c384_153 = arith.constant 384 : index
    %607 = vector.load %arg19[%606, %c384_153] : memref<64x768xf32, #tpu.memory_space<vmem>>, vector<8x384xf32>
    %cst_154 = arith.constant dense<0.000000e+00> : vector<8x384xf32>
    %608 = tpu.matmul %583, %13, %cst_154 {dimension_numbers = #tpu.dot_dimension_numbers<[1], [0], [0], [1], [0, 0, 1, 1], [], []>} : vector<8x32xf32>, vector<32x384xf32>, vector<8x384xf32> -> vector<8x384xf32>
    %609 = vector.broadcast %14 : vector<1x384xf32> to vector<8x384xf32>
    %610 = arith.addf %608, %609 : vector<8x384xf32>
    %cst_155 = arith.constant dense<0.000000e+00> : vector<8x384xf32>
    %611 = tpu.matmul %586, %15, %cst_155 {dimension_numbers = #tpu.dot_dimension_numbers<[1], [0], [0], [1], [0, 0, 1, 1], [], []>} : vector<8x32xf32>, vector<32x384xf32>, vector<8x384xf32> -> vector<8x384xf32>
    %612 = vector.broadcast %16 : vector<1x384xf32> to vector<8x384xf32>
    %613 = arith.addf %611, %612 : vector<8x384xf32>
    %614 = vector.extract_strided_slice %605 {offsets = [0, 0], sizes = [8, 256], strides = [1, 1]} : vector<8x384xf32> to vector<8x256xf32>
    %615 = vector.extract_strided_slice %610 {offsets = [0, 0], sizes = [8, 256], strides = [1, 1]} : vector<8x384xf32> to vector<8x256xf32>
    %616 = arith.addf %614, %615 : vector<8x256xf32>
    %cst_156 = arith.constant 5.000000e-01 : f32
    %617 = vector.broadcast %cst_156 : f32 to vector<8x256xf32>
    %618 = arith.mulf %617, %616 : vector<8x256xf32>
    %619 = math.tanh %618 : vector<8x256xf32>
    %cst_157 = arith.constant 1.000000e+00 : f32
    %620 = vector.broadcast %cst_157 : f32 to vector<8x256xf32>
    %621 = arith.addf %619, %620 : vector<8x256xf32>
    %cst_158 = arith.constant 5.000000e-01 : f32
    %622 = vector.broadcast %cst_158 : f32 to vector<8x256xf32>
    %623 = arith.mulf %622, %621 : vector<8x256xf32>
    %624 = vector.extract_strided_slice %623 {offsets = [0, 0], sizes = [8, 128], strides = [1, 1]} : vector<8x256xf32> to vector<8x128xf32>
    %625 = vector.extract_strided_slice %623 {offsets = [0, 128], sizes = [8, 32], strides = [1, 1]} : vector<8x256xf32> to vector<8x32xf32>
    %626 = vector.extract_strided_slice %605 {offsets = [0, 256], sizes = [8, 128], strides = [1, 1]} : vector<8x384xf32> to vector<8x128xf32>
    %627 = vector.extract_strided_slice %610 {offsets = [0, 256], sizes = [8, 128], strides = [1, 1]} : vector<8x384xf32> to vector<8x128xf32>
    %628 = arith.mulf %624, %627 : vector<8x128xf32>
    %629 = arith.addf %626, %628 : vector<8x128xf32>
    %630 = math.tanh %629 : vector<8x128xf32>
    %cst_159 = arith.constant 1.000000e+00 : f32
    %631 = vector.broadcast %cst_159 : f32 to vector<8x32xf32>
    %632 = arith.subf %631, %625 : vector<8x32xf32>
    %633 = vector.extract_strided_slice %630 {offsets = [0, 0], sizes = [8, 32], strides = [1, 1]} : vector<8x128xf32> to vector<8x32xf32>
    %634 = arith.mulf %632, %633 : vector<8x32xf32>
    %635 = arith.mulf %625, %583 : vector<8x32xf32>
    %636 = arith.addf %634, %635 : vector<8x32xf32>
    %637 = vector.extract_strided_slice %607 {offsets = [0, 0], sizes = [8, 256], strides = [1, 1]} : vector<8x384xf32> to vector<8x256xf32>
    %638 = vector.extract_strided_slice %613 {offsets = [0, 0], sizes = [8, 256], strides = [1, 1]} : vector<8x384xf32> to vector<8x256xf32>
    %639 = arith.addf %637, %638 : vector<8x256xf32>
    %cst_160 = arith.constant 5.000000e-01 : f32
    %640 = vector.broadcast %cst_160 : f32 to vector<8x256xf32>
    %641 = arith.mulf %640, %639 : vector<8x256xf32>
    %642 = math.tanh %641 : vector<8x256xf32>
    %cst_161 = arith.constant 1.000000e+00 : f32
    %643 = vector.broadcast %cst_161 : f32 to vector<8x256xf32>
    %644 = arith.addf %642, %643 : vector<8x256xf32>
    %cst_162 = arith.constant 5.000000e-01 : f32
    %645 = vector.broadcast %cst_162 : f32 to vector<8x256xf32>
    %646 = arith.mulf %645, %644 : vector<8x256xf32>
    %647 = vector.extract_strided_slice %646 {offsets = [0, 0], sizes = [8, 128], strides = [1, 1]} : vector<8x256xf32> to vector<8x128xf32>
    %648 = vector.extract_strided_slice %646 {offsets = [0, 128], sizes = [8, 32], strides = [1, 1]} : vector<8x256xf32> to vector<8x32xf32>
    %649 = vector.extract_strided_slice %607 {offsets = [0, 256], sizes = [8, 128], strides = [1, 1]} : vector<8x384xf32> to vector<8x128xf32>
    %650 = vector.extract_strided_slice %613 {offsets = [0, 256], sizes = [8, 128], strides = [1, 1]} : vector<8x384xf32> to vector<8x128xf32>
    %651 = arith.mulf %647, %650 : vector<8x128xf32>
    %652 = arith.addf %649, %651 : vector<8x128xf32>
    %653 = math.tanh %652 : vector<8x128xf32>
    %cst_163 = arith.constant 1.000000e+00 : f32
    %654 = vector.broadcast %cst_163 : f32 to vector<8x32xf32>
    %655 = arith.subf %654, %648 : vector<8x32xf32>
    %656 = vector.extract_strided_slice %653 {offsets = [0, 0], sizes = [8, 32], strides = [1, 1]} : vector<8x128xf32> to vector<8x32xf32>
    %657 = arith.mulf %655, %656 : vector<8x32xf32>
    %658 = arith.mulf %648, %586 : vector<8x32xf32>
    %659 = arith.addf %657, %658 : vector<8x32xf32>
    %660 = vector.broadcast %c7_i32_148 : i32 to vector<8x1xi32>
    %661 = arith.cmpi slt, %660, %0 : vector<8x1xi32>
    %662 = vector.broadcast %599 : i32 to vector<8x1xi32>
    %663 = arith.cmpi slt, %662, %0 : vector<8x1xi32>
    %664 = vector.shape_cast %661 : vector<8x1xi1> to vector<8x1xi1>
    %665 = vector.broadcast %664 : vector<8x1xi1> to vector<8x32xi1>
    %666 = arith.select %665, %636, %583 : vector<8x32xi1>, vector<8x32xf32>
    %667 = vector.shape_cast %663 : vector<8x1xi1> to vector<8x1xi1>
    %668 = vector.broadcast %667 : vector<8x1xi1> to vector<8x32xi1>
    %669 = arith.select %668, %659, %586 : vector<8x32xi1>, vector<8x32xf32>
    %cst_164 = arith.constant 0.000000e+00 : f32
    %670 = vector.shape_cast %661 : vector<8x1xi1> to vector<8x1xi1>
    %671 = vector.broadcast %670 : vector<8x1xi1> to vector<8x32xi1>
    %672 = vector.broadcast %cst_164 : f32 to vector<8x32xf32>
    %673 = arith.select %671, %666, %672 : vector<8x32xi1>, vector<8x32xf32>
    %674 = arith.index_cast %601 : i32 to index
    %c0_165 = arith.constant 0 : index
    %675 = vector.load %arg21[%674, %c0_165] : memref<64x32xf32, #tpu.memory_space<vmem>>, vector<8x32xf32>
    tpu.vector_store %arg21[%674, %c0_165], %673 {strides = array<i32>} : memref<64x32xf32, #tpu.memory_space<vmem>>, vector<8x32xf32>,
    %cst_166 = arith.constant 0.000000e+00 : f32
    %676 = vector.shape_cast %663 : vector<8x1xi1> to vector<8x1xi1>
    %677 = vector.broadcast %676 : vector<8x1xi1> to vector<8x32xi1>
    %678 = vector.broadcast %cst_166 : f32 to vector<8x32xf32>
    %679 = arith.select %677, %669, %678 : vector<8x32xi1>, vector<8x32xf32>
    %680 = arith.index_cast %603 : i32 to index
    %c0_167 = arith.constant 0 : index
    %681 = vector.load %arg22[%680, %c0_167] : memref<64x32xf32, #tpu.memory_space<vmem>>, vector<8x32xf32>
    tpu.vector_store %arg22[%680, %c0_167], %679 {strides = array<i32>} : memref<64x32xf32, #tpu.memory_space<vmem>>, vector<8x32xf32>,
    %c8_i32_168 = arith.constant 8 : i32
    %c0_169 = arith.constant 0 : index
    %c0_170 = arith.constant 0 : index
    %682 = vector.load %arg21[%c0_169, %c0_170] : memref<64x32xf32, #tpu.memory_space<vmem>>, vector<64x32xf32>
    %c0_171 = arith.constant 0 : index
    %c0_172 = arith.constant 0 : index
    %683 = vector.load %arg8[%c0_171, %c0_172] : memref<32x768xf32, #tpu.memory_space<vmem>>, vector<32x768xf32>
    %cst_173 = arith.constant dense<0.000000e+00> : vector<64x768xf32>
    %684 = tpu.matmul %682, %683, %cst_173 {dimension_numbers = #tpu.dot_dimension_numbers<[1], [0], [0], [1], [0, 0, 1, 1], [], []>} : vector<64x32xf32>, vector<32x768xf32>, vector<64x768xf32> -> vector<64x768xf32>
    %c0_174 = arith.constant 0 : index
    %c0_175 = arith.constant 0 : index
    %685 = vector.load %arg22[%c0_174, %c0_175] : memref<64x32xf32, #tpu.memory_space<vmem>>, vector<64x32xf32>
    %c0_176 = arith.constant 0 : index
    %c0_177 = arith.constant 0 : index
    %686 = vector.load %arg9[%c0_176, %c0_177] : memref<32x768xf32, #tpu.memory_space<vmem>>, vector<32x768xf32>
    %cst_178 = arith.constant dense<0.000000e+00> : vector<64x768xf32>
    %687 = tpu.matmul %685, %686, %cst_178 {dimension_numbers = #tpu.dot_dimension_numbers<[1], [0], [0], [1], [0, 0, 1, 1], [], []>} : vector<64x32xf32>, vector<32x768xf32>, vector<64x768xf32> -> vector<64x768xf32>
    %688 = arith.addf %684, %687 : vector<64x768xf32>
    %c0_179 = arith.constant 0 : index
    %c0_180 = arith.constant 0 : index
    %689 = vector.load %arg10[%c0_179, %c0_180] : memref<1x768xf32, #tpu.memory_space<vmem>>, vector<1x768xf32>
    %690 = vector.broadcast %689 : vector<1x768xf32> to vector<64x768xf32>
    %691 = arith.addf %688, %690 : vector<64x768xf32>
    %c0_181 = arith.constant 0 : index
    %c0_182 = arith.constant 0 : index
    %692 = vector.load %arg20[%c0_181, %c0_182] : memref<64x768xf32, #tpu.memory_space<vmem>>, vector<64x768xf32>
    tpu.vector_store %arg20[%c0_181, %c0_182], %691 {strides = array<i32>} : memref<64x768xf32, #tpu.memory_space<vmem>>, vector<64x768xf32>,
    %c0_183 = arith.constant 0 : index
    %c0_184 = arith.constant 0 : index
    %693 = vector.load %arg11[%c0_183, %c0_184] : memref<32x384xf32, #tpu.memory_space<vmem>>, vector<32x384xf32>
    %c0_185 = arith.constant 0 : index
    %c0_186 = arith.constant 0 : index
    %694 = vector.load %arg12[%c0_185, %c0_186] : memref<1x384xf32, #tpu.memory_space<vmem>>, vector<1x384xf32>
    %c0_187 = arith.constant 0 : index
    %c0_188 = arith.constant 0 : index
    %695 = vector.load %arg13[%c0_187, %c0_188] : memref<32x384xf32, #tpu.memory_space<vmem>>, vector<32x384xf32>
    %c0_189 = arith.constant 0 : index
    %c0_190 = arith.constant 0 : index
    %696 = vector.load %arg14[%c0_189, %c0_190] : memref<1x384xf32, #tpu.memory_space<vmem>>, vector<1x384xf32>
    %cst_191 = arith.constant 0.000000e+00 : f32
    %697 = vector.broadcast %cst_191 : f32 to vector<8x32xf32>
    %c0_i32_192 = arith.constant 0 : i32
    %c7_i32_193 = arith.constant 7 : i32
    %698 = arith.subi %c7_i32_193, %c0_i32_192 : i32
    %c8_i32_194 = arith.constant 8 : i32
    %699 = arith.muli %c0_i32_192, %c8_i32_194 : i32
    %700 = tpu.assume_multiple %699, 8 : i32
    %c8_i32_195 = arith.constant 8 : i32
    %701 = arith.muli %698, %c8_i32_195 : i32
    %702 = tpu.assume_multiple %701, 8 : i32
    %703 = arith.index_cast %700 : i32 to index
    %c0_196 = arith.constant 0 : index
    %704 = vector.load %arg20[%703, %c0_196] : memref<64x768xf32, #tpu.memory_space<vmem>>, vector<8x384xf32>
    %705 = arith.index_cast %702 : i32 to index
    %c384_197 = arith.constant 384 : index
    %706 = vector.load %arg20[%705, %c384_197] : memref<64x768xf32, #tpu.memory_space<vmem>>, vector<8x384xf32>
    %cst_198 = arith.constant dense<0.000000e+00> : vector<8x384xf32>
    %707 = tpu.matmul %697, %693, %cst_198 {dimension_numbers = #tpu.dot_dimension_numbers<[1], [0], [0], [1], [0, 0, 1, 1], [], []>} : vector<8x32xf32>, vector<32x384xf32>, vector<8x384xf32> -> vector<8x384xf32>
    %708 = vector.broadcast %694 : vector<1x384xf32> to vector<8x384xf32>
    %709 = arith.addf %707, %708 : vector<8x384xf32>
    %cst_199 = arith.constant dense<0.000000e+00> : vector<8x384xf32>
    %710 = tpu.matmul %697, %695, %cst_199 {dimension_numbers = #tpu.dot_dimension_numbers<[1], [0], [0], [1], [0, 0, 1, 1], [], []>} : vector<8x32xf32>, vector<32x384xf32>, vector<8x384xf32> -> vector<8x384xf32>
    %711 = vector.broadcast %696 : vector<1x384xf32> to vector<8x384xf32>
    %712 = arith.addf %710, %711 : vector<8x384xf32>
    %713 = vector.extract_strided_slice %704 {offsets = [0, 0], sizes = [8, 256], strides = [1, 1]} : vector<8x384xf32> to vector<8x256xf32>
    %714 = vector.extract_strided_slice %709 {offsets = [0, 0], sizes = [8, 256], strides = [1, 1]} : vector<8x384xf32> to vector<8x256xf32>
    %715 = arith.addf %713, %714 : vector<8x256xf32>
    %cst_200 = arith.constant 5.000000e-01 : f32
    %716 = vector.broadcast %cst_200 : f32 to vector<8x256xf32>
    %717 = arith.mulf %716, %715 : vector<8x256xf32>
    %718 = math.tanh %717 : vector<8x256xf32>
    %cst_201 = arith.constant 1.000000e+00 : f32
    %719 = vector.broadcast %cst_201 : f32 to vector<8x256xf32>
    %720 = arith.addf %718, %719 : vector<8x256xf32>
    %cst_202 = arith.constant 5.000000e-01 : f32
    %721 = vector.broadcast %cst_202 : f32 to vector<8x256xf32>
    %722 = arith.mulf %721, %720 : vector<8x256xf32>
    %723 = vector.extract_strided_slice %722 {offsets = [0, 0], sizes = [8, 128], strides = [1, 1]} : vector<8x256xf32> to vector<8x128xf32>
    %724 = vector.extract_strided_slice %722 {offsets = [0, 128], sizes = [8, 32], strides = [1, 1]} : vector<8x256xf32> to vector<8x32xf32>
    %725 = vector.extract_strided_slice %704 {offsets = [0, 256], sizes = [8, 128], strides = [1, 1]} : vector<8x384xf32> to vector<8x128xf32>
    %726 = vector.extract_strided_slice %709 {offsets = [0, 256], sizes = [8, 128], strides = [1, 1]} : vector<8x384xf32> to vector<8x128xf32>
    %727 = arith.mulf %723, %726 : vector<8x128xf32>
    %728 = arith.addf %725, %727 : vector<8x128xf32>
    %729 = math.tanh %728 : vector<8x128xf32>
    %cst_203 = arith.constant 1.000000e+00 : f32
    %730 = vector.broadcast %cst_203 : f32 to vector<8x32xf32>
    %731 = arith.subf %730, %724 : vector<8x32xf32>
    %732 = vector.extract_strided_slice %729 {offsets = [0, 0], sizes = [8, 32], strides = [1, 1]} : vector<8x128xf32> to vector<8x32xf32>
    %733 = arith.mulf %731, %732 : vector<8x32xf32>
    %734 = arith.mulf %724, %697 : vector<8x32xf32>
    %735 = arith.addf %733, %734 : vector<8x32xf32>
    %736 = vector.extract_strided_slice %706 {offsets = [0, 0], sizes = [8, 256], strides = [1, 1]} : vector<8x384xf32> to vector<8x256xf32>
    %737 = vector.extract_strided_slice %712 {offsets = [0, 0], sizes = [8, 256], strides = [1, 1]} : vector<8x384xf32> to vector<8x256xf32>
    %738 = arith.addf %736, %737 : vector<8x256xf32>
    %cst_204 = arith.constant 5.000000e-01 : f32
    %739 = vector.broadcast %cst_204 : f32 to vector<8x256xf32>
    %740 = arith.mulf %739, %738 : vector<8x256xf32>
    %741 = math.tanh %740 : vector<8x256xf32>
    %cst_205 = arith.constant 1.000000e+00 : f32
    %742 = vector.broadcast %cst_205 : f32 to vector<8x256xf32>
    %743 = arith.addf %741, %742 : vector<8x256xf32>
    %cst_206 = arith.constant 5.000000e-01 : f32
    %744 = vector.broadcast %cst_206 : f32 to vector<8x256xf32>
    %745 = arith.mulf %744, %743 : vector<8x256xf32>
    %746 = vector.extract_strided_slice %745 {offsets = [0, 0], sizes = [8, 128], strides = [1, 1]} : vector<8x256xf32> to vector<8x128xf32>
    %747 = vector.extract_strided_slice %745 {offsets = [0, 128], sizes = [8, 32], strides = [1, 1]} : vector<8x256xf32> to vector<8x32xf32>
    %748 = vector.extract_strided_slice %706 {offsets = [0, 256], sizes = [8, 128], strides = [1, 1]} : vector<8x384xf32> to vector<8x128xf32>
    %749 = vector.extract_strided_slice %712 {offsets = [0, 256], sizes = [8, 128], strides = [1, 1]} : vector<8x384xf32> to vector<8x128xf32>
    %750 = arith.mulf %746, %749 : vector<8x128xf32>
    %751 = arith.addf %748, %750 : vector<8x128xf32>
    %752 = math.tanh %751 : vector<8x128xf32>
    %cst_207 = arith.constant 1.000000e+00 : f32
    %753 = vector.broadcast %cst_207 : f32 to vector<8x32xf32>
    %754 = arith.subf %753, %747 : vector<8x32xf32>
    %755 = vector.extract_strided_slice %752 {offsets = [0, 0], sizes = [8, 32], strides = [1, 1]} : vector<8x128xf32> to vector<8x32xf32>
    %756 = arith.mulf %754, %755 : vector<8x32xf32>
    %757 = arith.mulf %747, %697 : vector<8x32xf32>
    %758 = arith.addf %756, %757 : vector<8x32xf32>
    %759 = vector.broadcast %c0_i32_192 : i32 to vector<8x1xi32>
    %760 = arith.cmpi slt, %759, %0 : vector<8x1xi32>
    %761 = vector.broadcast %698 : i32 to vector<8x1xi32>
    %762 = arith.cmpi slt, %761, %0 : vector<8x1xi32>
    %763 = vector.shape_cast %760 : vector<8x1xi1> to vector<8x1xi1>
    %764 = vector.broadcast %763 : vector<8x1xi1> to vector<8x32xi1>
    %765 = arith.select %764, %735, %697 : vector<8x32xi1>, vector<8x32xf32>
    %766 = vector.shape_cast %762 : vector<8x1xi1> to vector<8x1xi1>
    %767 = vector.broadcast %766 : vector<8x1xi1> to vector<8x32xi1>
    %768 = arith.select %767, %758, %697 : vector<8x32xi1>, vector<8x32xf32>
    %c1_i32_208 = arith.constant 1 : i32
    %c7_i32_209 = arith.constant 7 : i32
    %769 = arith.subi %c7_i32_209, %c1_i32_208 : i32
    %c8_i32_210 = arith.constant 8 : i32
    %770 = arith.muli %c1_i32_208, %c8_i32_210 : i32
    %771 = tpu.assume_multiple %770, 8 : i32
    %c8_i32_211 = arith.constant 8 : i32
    %772 = arith.muli %769, %c8_i32_211 : i32
    %773 = tpu.assume_multiple %772, 8 : i32
    %774 = arith.index_cast %771 : i32 to index
    %c0_212 = arith.constant 0 : index
    %775 = vector.load %arg20[%774, %c0_212] : memref<64x768xf32, #tpu.memory_space<vmem>>, vector<8x384xf32>
    %776 = arith.index_cast %773 : i32 to index
    %c384_213 = arith.constant 384 : index
    %777 = vector.load %arg20[%776, %c384_213] : memref<64x768xf32, #tpu.memory_space<vmem>>, vector<8x384xf32>
    %cst_214 = arith.constant dense<0.000000e+00> : vector<8x384xf32>
    %778 = tpu.matmul %765, %693, %cst_214 {dimension_numbers = #tpu.dot_dimension_numbers<[1], [0], [0], [1], [0, 0, 1, 1], [], []>} : vector<8x32xf32>, vector<32x384xf32>, vector<8x384xf32> -> vector<8x384xf32>
    %779 = vector.broadcast %694 : vector<1x384xf32> to vector<8x384xf32>
    %780 = arith.addf %778, %779 : vector<8x384xf32>
    %cst_215 = arith.constant dense<0.000000e+00> : vector<8x384xf32>
    %781 = tpu.matmul %768, %695, %cst_215 {dimension_numbers = #tpu.dot_dimension_numbers<[1], [0], [0], [1], [0, 0, 1, 1], [], []>} : vector<8x32xf32>, vector<32x384xf32>, vector<8x384xf32> -> vector<8x384xf32>
    %782 = vector.broadcast %696 : vector<1x384xf32> to vector<8x384xf32>
    %783 = arith.addf %781, %782 : vector<8x384xf32>
    %784 = vector.extract_strided_slice %775 {offsets = [0, 0], sizes = [8, 256], strides = [1, 1]} : vector<8x384xf32> to vector<8x256xf32>
    %785 = vector.extract_strided_slice %780 {offsets = [0, 0], sizes = [8, 256], strides = [1, 1]} : vector<8x384xf32> to vector<8x256xf32>
    %786 = arith.addf %784, %785 : vector<8x256xf32>
    %cst_216 = arith.constant 5.000000e-01 : f32
    %787 = vector.broadcast %cst_216 : f32 to vector<8x256xf32>
    %788 = arith.mulf %787, %786 : vector<8x256xf32>
    %789 = math.tanh %788 : vector<8x256xf32>
    %cst_217 = arith.constant 1.000000e+00 : f32
    %790 = vector.broadcast %cst_217 : f32 to vector<8x256xf32>
    %791 = arith.addf %789, %790 : vector<8x256xf32>
    %cst_218 = arith.constant 5.000000e-01 : f32
    %792 = vector.broadcast %cst_218 : f32 to vector<8x256xf32>
    %793 = arith.mulf %792, %791 : vector<8x256xf32>
    %794 = vector.extract_strided_slice %793 {offsets = [0, 0], sizes = [8, 128], strides = [1, 1]} : vector<8x256xf32> to vector<8x128xf32>
    %795 = vector.extract_strided_slice %793 {offsets = [0, 128], sizes = [8, 32], strides = [1, 1]} : vector<8x256xf32> to vector<8x32xf32>
    %796 = vector.extract_strided_slice %775 {offsets = [0, 256], sizes = [8, 128], strides = [1, 1]} : vector<8x384xf32> to vector<8x128xf32>
    %797 = vector.extract_strided_slice %780 {offsets = [0, 256], sizes = [8, 128], strides = [1, 1]} : vector<8x384xf32> to vector<8x128xf32>
    %798 = arith.mulf %794, %797 : vector<8x128xf32>
    %799 = arith.addf %796, %798 : vector<8x128xf32>
    %800 = math.tanh %799 : vector<8x128xf32>
    %cst_219 = arith.constant 1.000000e+00 : f32
    %801 = vector.broadcast %cst_219 : f32 to vector<8x32xf32>
    %802 = arith.subf %801, %795 : vector<8x32xf32>
    %803 = vector.extract_strided_slice %800 {offsets = [0, 0], sizes = [8, 32], strides = [1, 1]} : vector<8x128xf32> to vector<8x32xf32>
    %804 = arith.mulf %802, %803 : vector<8x32xf32>
    %805 = arith.mulf %795, %765 : vector<8x32xf32>
    %806 = arith.addf %804, %805 : vector<8x32xf32>
    %807 = vector.extract_strided_slice %777 {offsets = [0, 0], sizes = [8, 256], strides = [1, 1]} : vector<8x384xf32> to vector<8x256xf32>
    %808 = vector.extract_strided_slice %783 {offsets = [0, 0], sizes = [8, 256], strides = [1, 1]} : vector<8x384xf32> to vector<8x256xf32>
    %809 = arith.addf %807, %808 : vector<8x256xf32>
    %cst_220 = arith.constant 5.000000e-01 : f32
    %810 = vector.broadcast %cst_220 : f32 to vector<8x256xf32>
    %811 = arith.mulf %810, %809 : vector<8x256xf32>
    %812 = math.tanh %811 : vector<8x256xf32>
    %cst_221 = arith.constant 1.000000e+00 : f32
    %813 = vector.broadcast %cst_221 : f32 to vector<8x256xf32>
    %814 = arith.addf %812, %813 : vector<8x256xf32>
    %cst_222 = arith.constant 5.000000e-01 : f32
    %815 = vector.broadcast %cst_222 : f32 to vector<8x256xf32>
    %816 = arith.mulf %815, %814 : vector<8x256xf32>
    %817 = vector.extract_strided_slice %816 {offsets = [0, 0], sizes = [8, 128], strides = [1, 1]} : vector<8x256xf32> to vector<8x128xf32>
    %818 = vector.extract_strided_slice %816 {offsets = [0, 128], sizes = [8, 32], strides = [1, 1]} : vector<8x256xf32> to vector<8x32xf32>
    %819 = vector.extract_strided_slice %777 {offsets = [0, 256], sizes = [8, 128], strides = [1, 1]} : vector<8x384xf32> to vector<8x128xf32>
    %820 = vector.extract_strided_slice %783 {offsets = [0, 256], sizes = [8, 128], strides = [1, 1]} : vector<8x384xf32> to vector<8x128xf32>
    %821 = arith.mulf %817, %820 : vector<8x128xf32>
    %822 = arith.addf %819, %821 : vector<8x128xf32>
    %823 = math.tanh %822 : vector<8x128xf32>
    %cst_223 = arith.constant 1.000000e+00 : f32
    %824 = vector.broadcast %cst_223 : f32 to vector<8x32xf32>
    %825 = arith.subf %824, %818 : vector<8x32xf32>
    %826 = vector.extract_strided_slice %823 {offsets = [0, 0], sizes = [8, 32], strides = [1, 1]} : vector<8x128xf32> to vector<8x32xf32>
    %827 = arith.mulf %825, %826 : vector<8x32xf32>
    %828 = arith.mulf %818, %768 : vector<8x32xf32>
    %829 = arith.addf %827, %828 : vector<8x32xf32>
    %830 = vector.broadcast %c1_i32_208 : i32 to vector<8x1xi32>
    %831 = arith.cmpi slt, %830, %0 : vector<8x1xi32>
    %832 = vector.broadcast %769 : i32 to vector<8x1xi32>
    %833 = arith.cmpi slt, %832, %0 : vector<8x1xi32>
    %834 = vector.shape_cast %831 : vector<8x1xi1> to vector<8x1xi1>
    %835 = vector.broadcast %834 : vector<8x1xi1> to vector<8x32xi1>
    %836 = arith.select %835, %806, %765 : vector<8x32xi1>, vector<8x32xf32>
    %837 = vector.shape_cast %833 : vector<8x1xi1> to vector<8x1xi1>
    %838 = vector.broadcast %837 : vector<8x1xi1> to vector<8x32xi1>
    %839 = arith.select %838, %829, %768 : vector<8x32xi1>, vector<8x32xf32>
    %c2_i32_224 = arith.constant 2 : i32
    %c7_i32_225 = arith.constant 7 : i32
    %840 = arith.subi %c7_i32_225, %c2_i32_224 : i32
    %c8_i32_226 = arith.constant 8 : i32
    %841 = arith.muli %c2_i32_224, %c8_i32_226 : i32
    %842 = tpu.assume_multiple %841, 8 : i32
    %c8_i32_227 = arith.constant 8 : i32
    %843 = arith.muli %840, %c8_i32_227 : i32
    %844 = tpu.assume_multiple %843, 8 : i32
    %845 = arith.index_cast %842 : i32 to index
    %c0_228 = arith.constant 0 : index
    %846 = vector.load %arg20[%845, %c0_228] : memref<64x768xf32, #tpu.memory_space<vmem>>, vector<8x384xf32>
    %847 = arith.index_cast %844 : i32 to index
    %c384_229 = arith.constant 384 : index
    %848 = vector.load %arg20[%847, %c384_229] : memref<64x768xf32, #tpu.memory_space<vmem>>, vector<8x384xf32>
    %cst_230 = arith.constant dense<0.000000e+00> : vector<8x384xf32>
    %849 = tpu.matmul %836, %693, %cst_230 {dimension_numbers = #tpu.dot_dimension_numbers<[1], [0], [0], [1], [0, 0, 1, 1], [], []>} : vector<8x32xf32>, vector<32x384xf32>, vector<8x384xf32> -> vector<8x384xf32>
    %850 = vector.broadcast %694 : vector<1x384xf32> to vector<8x384xf32>
    %851 = arith.addf %849, %850 : vector<8x384xf32>
    %cst_231 = arith.constant dense<0.000000e+00> : vector<8x384xf32>
    %852 = tpu.matmul %839, %695, %cst_231 {dimension_numbers = #tpu.dot_dimension_numbers<[1], [0], [0], [1], [0, 0, 1, 1], [], []>} : vector<8x32xf32>, vector<32x384xf32>, vector<8x384xf32> -> vector<8x384xf32>
    %853 = vector.broadcast %696 : vector<1x384xf32> to vector<8x384xf32>
    %854 = arith.addf %852, %853 : vector<8x384xf32>
    %855 = vector.extract_strided_slice %846 {offsets = [0, 0], sizes = [8, 256], strides = [1, 1]} : vector<8x384xf32> to vector<8x256xf32>
    %856 = vector.extract_strided_slice %851 {offsets = [0, 0], sizes = [8, 256], strides = [1, 1]} : vector<8x384xf32> to vector<8x256xf32>
    %857 = arith.addf %855, %856 : vector<8x256xf32>
    %cst_232 = arith.constant 5.000000e-01 : f32
    %858 = vector.broadcast %cst_232 : f32 to vector<8x256xf32>
    %859 = arith.mulf %858, %857 : vector<8x256xf32>
    %860 = math.tanh %859 : vector<8x256xf32>
    %cst_233 = arith.constant 1.000000e+00 : f32
    %861 = vector.broadcast %cst_233 : f32 to vector<8x256xf32>
    %862 = arith.addf %860, %861 : vector<8x256xf32>
    %cst_234 = arith.constant 5.000000e-01 : f32
    %863 = vector.broadcast %cst_234 : f32 to vector<8x256xf32>
    %864 = arith.mulf %863, %862 : vector<8x256xf32>
    %865 = vector.extract_strided_slice %864 {offsets = [0, 0], sizes = [8, 128], strides = [1, 1]} : vector<8x256xf32> to vector<8x128xf32>
    %866 = vector.extract_strided_slice %864 {offsets = [0, 128], sizes = [8, 32], strides = [1, 1]} : vector<8x256xf32> to vector<8x32xf32>
    %867 = vector.extract_strided_slice %846 {offsets = [0, 256], sizes = [8, 128], strides = [1, 1]} : vector<8x384xf32> to vector<8x128xf32>
    %868 = vector.extract_strided_slice %851 {offsets = [0, 256], sizes = [8, 128], strides = [1, 1]} : vector<8x384xf32> to vector<8x128xf32>
    %869 = arith.mulf %865, %868 : vector<8x128xf32>
    %870 = arith.addf %867, %869 : vector<8x128xf32>
    %871 = math.tanh %870 : vector<8x128xf32>
    %cst_235 = arith.constant 1.000000e+00 : f32
    %872 = vector.broadcast %cst_235 : f32 to vector<8x32xf32>
    %873 = arith.subf %872, %866 : vector<8x32xf32>
    %874 = vector.extract_strided_slice %871 {offsets = [0, 0], sizes = [8, 32], strides = [1, 1]} : vector<8x128xf32> to vector<8x32xf32>
    %875 = arith.mulf %873, %874 : vector<8x32xf32>
    %876 = arith.mulf %866, %836 : vector<8x32xf32>
    %877 = arith.addf %875, %876 : vector<8x32xf32>
    %878 = vector.extract_strided_slice %848 {offsets = [0, 0], sizes = [8, 256], strides = [1, 1]} : vector<8x384xf32> to vector<8x256xf32>
    %879 = vector.extract_strided_slice %854 {offsets = [0, 0], sizes = [8, 256], strides = [1, 1]} : vector<8x384xf32> to vector<8x256xf32>
    %880 = arith.addf %878, %879 : vector<8x256xf32>
    %cst_236 = arith.constant 5.000000e-01 : f32
    %881 = vector.broadcast %cst_236 : f32 to vector<8x256xf32>
    %882 = arith.mulf %881, %880 : vector<8x256xf32>
    %883 = math.tanh %882 : vector<8x256xf32>
    %cst_237 = arith.constant 1.000000e+00 : f32
    %884 = vector.broadcast %cst_237 : f32 to vector<8x256xf32>
    %885 = arith.addf %883, %884 : vector<8x256xf32>
    %cst_238 = arith.constant 5.000000e-01 : f32
    %886 = vector.broadcast %cst_238 : f32 to vector<8x256xf32>
    %887 = arith.mulf %886, %885 : vector<8x256xf32>
    %888 = vector.extract_strided_slice %887 {offsets = [0, 0], sizes = [8, 128], strides = [1, 1]} : vector<8x256xf32> to vector<8x128xf32>
    %889 = vector.extract_strided_slice %887 {offsets = [0, 128], sizes = [8, 32], strides = [1, 1]} : vector<8x256xf32> to vector<8x32xf32>
    %890 = vector.extract_strided_slice %848 {offsets = [0, 256], sizes = [8, 128], strides = [1, 1]} : vector<8x384xf32> to vector<8x128xf32>
    %891 = vector.extract_strided_slice %854 {offsets = [0, 256], sizes = [8, 128], strides = [1, 1]} : vector<8x384xf32> to vector<8x128xf32>
    %892 = arith.mulf %888, %891 : vector<8x128xf32>
    %893 = arith.addf %890, %892 : vector<8x128xf32>
    %894 = math.tanh %893 : vector<8x128xf32>
    %cst_239 = arith.constant 1.000000e+00 : f32
    %895 = vector.broadcast %cst_239 : f32 to vector<8x32xf32>
    %896 = arith.subf %895, %889 : vector<8x32xf32>
    %897 = vector.extract_strided_slice %894 {offsets = [0, 0], sizes = [8, 32], strides = [1, 1]} : vector<8x128xf32> to vector<8x32xf32>
    %898 = arith.mulf %896, %897 : vector<8x32xf32>
    %899 = arith.mulf %889, %839 : vector<8x32xf32>
    %900 = arith.addf %898, %899 : vector<8x32xf32>
    %901 = vector.broadcast %c2_i32_224 : i32 to vector<8x1xi32>
    %902 = arith.cmpi slt, %901, %0 : vector<8x1xi32>
    %903 = vector.broadcast %840 : i32 to vector<8x1xi32>
    %904 = arith.cmpi slt, %903, %0 : vector<8x1xi32>
    %905 = vector.shape_cast %902 : vector<8x1xi1> to vector<8x1xi1>
    %906 = vector.broadcast %905 : vector<8x1xi1> to vector<8x32xi1>
    %907 = arith.select %906, %877, %836 : vector<8x32xi1>, vector<8x32xf32>
    %908 = vector.shape_cast %904 : vector<8x1xi1> to vector<8x1xi1>
    %909 = vector.broadcast %908 : vector<8x1xi1> to vector<8x32xi1>
    %910 = arith.select %909, %900, %839 : vector<8x32xi1>, vector<8x32xf32>
    %c3_i32_240 = arith.constant 3 : i32
    %c7_i32_241 = arith.constant 7 : i32
    %911 = arith.subi %c7_i32_241, %c3_i32_240 : i32
    %c8_i32_242 = arith.constant 8 : i32
    %912 = arith.muli %c3_i32_240, %c8_i32_242 : i32
    %913 = tpu.assume_multiple %912, 8 : i32
    %c8_i32_243 = arith.constant 8 : i32
    %914 = arith.muli %911, %c8_i32_243 : i32
    %915 = tpu.assume_multiple %914, 8 : i32
    %916 = arith.index_cast %913 : i32 to index
    %c0_244 = arith.constant 0 : index
    %917 = vector.load %arg20[%916, %c0_244] : memref<64x768xf32, #tpu.memory_space<vmem>>, vector<8x384xf32>
    %918 = arith.index_cast %915 : i32 to index
    %c384_245 = arith.constant 384 : index
    %919 = vector.load %arg20[%918, %c384_245] : memref<64x768xf32, #tpu.memory_space<vmem>>, vector<8x384xf32>
    %cst_246 = arith.constant dense<0.000000e+00> : vector<8x384xf32>
    %920 = tpu.matmul %907, %693, %cst_246 {dimension_numbers = #tpu.dot_dimension_numbers<[1], [0], [0], [1], [0, 0, 1, 1], [], []>} : vector<8x32xf32>, vector<32x384xf32>, vector<8x384xf32> -> vector<8x384xf32>
    %921 = vector.broadcast %694 : vector<1x384xf32> to vector<8x384xf32>
    %922 = arith.addf %920, %921 : vector<8x384xf32>
    %cst_247 = arith.constant dense<0.000000e+00> : vector<8x384xf32>
    %923 = tpu.matmul %910, %695, %cst_247 {dimension_numbers = #tpu.dot_dimension_numbers<[1], [0], [0], [1], [0, 0, 1, 1], [], []>} : vector<8x32xf32>, vector<32x384xf32>, vector<8x384xf32> -> vector<8x384xf32>
    %924 = vector.broadcast %696 : vector<1x384xf32> to vector<8x384xf32>
    %925 = arith.addf %923, %924 : vector<8x384xf32>
    %926 = vector.extract_strided_slice %917 {offsets = [0, 0], sizes = [8, 256], strides = [1, 1]} : vector<8x384xf32> to vector<8x256xf32>
    %927 = vector.extract_strided_slice %922 {offsets = [0, 0], sizes = [8, 256], strides = [1, 1]} : vector<8x384xf32> to vector<8x256xf32>
    %928 = arith.addf %926, %927 : vector<8x256xf32>
    %cst_248 = arith.constant 5.000000e-01 : f32
    %929 = vector.broadcast %cst_248 : f32 to vector<8x256xf32>
    %930 = arith.mulf %929, %928 : vector<8x256xf32>
    %931 = math.tanh %930 : vector<8x256xf32>
    %cst_249 = arith.constant 1.000000e+00 : f32
    %932 = vector.broadcast %cst_249 : f32 to vector<8x256xf32>
    %933 = arith.addf %931, %932 : vector<8x256xf32>
    %cst_250 = arith.constant 5.000000e-01 : f32
    %934 = vector.broadcast %cst_250 : f32 to vector<8x256xf32>
    %935 = arith.mulf %934, %933 : vector<8x256xf32>
    %936 = vector.extract_strided_slice %935 {offsets = [0, 0], sizes = [8, 128], strides = [1, 1]} : vector<8x256xf32> to vector<8x128xf32>
    %937 = vector.extract_strided_slice %935 {offsets = [0, 128], sizes = [8, 32], strides = [1, 1]} : vector<8x256xf32> to vector<8x32xf32>
    %938 = vector.extract_strided_slice %917 {offsets = [0, 256], sizes = [8, 128], strides = [1, 1]} : vector<8x384xf32> to vector<8x128xf32>
    %939 = vector.extract_strided_slice %922 {offsets = [0, 256], sizes = [8, 128], strides = [1, 1]} : vector<8x384xf32> to vector<8x128xf32>
    %940 = arith.mulf %936, %939 : vector<8x128xf32>
    %941 = arith.addf %938, %940 : vector<8x128xf32>
    %942 = math.tanh %941 : vector<8x128xf32>
    %cst_251 = arith.constant 1.000000e+00 : f32
    %943 = vector.broadcast %cst_251 : f32 to vector<8x32xf32>
    %944 = arith.subf %943, %937 : vector<8x32xf32>
    %945 = vector.extract_strided_slice %942 {offsets = [0, 0], sizes = [8, 32], strides = [1, 1]} : vector<8x128xf32> to vector<8x32xf32>
    %946 = arith.mulf %944, %945 : vector<8x32xf32>
    %947 = arith.mulf %937, %907 : vector<8x32xf32>
    %948 = arith.addf %946, %947 : vector<8x32xf32>
    %949 = vector.extract_strided_slice %919 {offsets = [0, 0], sizes = [8, 256], strides = [1, 1]} : vector<8x384xf32> to vector<8x256xf32>
    %950 = vector.extract_strided_slice %925 {offsets = [0, 0], sizes = [8, 256], strides = [1, 1]} : vector<8x384xf32> to vector<8x256xf32>
    %951 = arith.addf %949, %950 : vector<8x256xf32>
    %cst_252 = arith.constant 5.000000e-01 : f32
    %952 = vector.broadcast %cst_252 : f32 to vector<8x256xf32>
    %953 = arith.mulf %952, %951 : vector<8x256xf32>
    %954 = math.tanh %953 : vector<8x256xf32>
    %cst_253 = arith.constant 1.000000e+00 : f32
    %955 = vector.broadcast %cst_253 : f32 to vector<8x256xf32>
    %956 = arith.addf %954, %955 : vector<8x256xf32>
    %cst_254 = arith.constant 5.000000e-01 : f32
    %957 = vector.broadcast %cst_254 : f32 to vector<8x256xf32>
    %958 = arith.mulf %957, %956 : vector<8x256xf32>
    %959 = vector.extract_strided_slice %958 {offsets = [0, 0], sizes = [8, 128], strides = [1, 1]} : vector<8x256xf32> to vector<8x128xf32>
    %960 = vector.extract_strided_slice %958 {offsets = [0, 128], sizes = [8, 32], strides = [1, 1]} : vector<8x256xf32> to vector<8x32xf32>
    %961 = vector.extract_strided_slice %919 {offsets = [0, 256], sizes = [8, 128], strides = [1, 1]} : vector<8x384xf32> to vector<8x128xf32>
    %962 = vector.extract_strided_slice %925 {offsets = [0, 256], sizes = [8, 128], strides = [1, 1]} : vector<8x384xf32> to vector<8x128xf32>
    %963 = arith.mulf %959, %962 : vector<8x128xf32>
    %964 = arith.addf %961, %963 : vector<8x128xf32>
    %965 = math.tanh %964 : vector<8x128xf32>
    %cst_255 = arith.constant 1.000000e+00 : f32
    %966 = vector.broadcast %cst_255 : f32 to vector<8x32xf32>
    %967 = arith.subf %966, %960 : vector<8x32xf32>
    %968 = vector.extract_strided_slice %965 {offsets = [0, 0], sizes = [8, 32], strides = [1, 1]} : vector<8x128xf32> to vector<8x32xf32>
    %969 = arith.mulf %967, %968 : vector<8x32xf32>
    %970 = arith.mulf %960, %910 : vector<8x32xf32>
    %971 = arith.addf %969, %970 : vector<8x32xf32>
    %972 = vector.broadcast %c3_i32_240 : i32 to vector<8x1xi32>
    %973 = arith.cmpi slt, %972, %0 : vector<8x1xi32>
    %974 = vector.broadcast %911 : i32 to vector<8x1xi32>
    %975 = arith.cmpi slt, %974, %0 : vector<8x1xi32>
    %976 = vector.shape_cast %973 : vector<8x1xi1> to vector<8x1xi1>
    %977 = vector.broadcast %976 : vector<8x1xi1> to vector<8x32xi1>
    %978 = arith.select %977, %948, %907 : vector<8x32xi1>, vector<8x32xf32>
    %979 = vector.shape_cast %975 : vector<8x1xi1> to vector<8x1xi1>
    %980 = vector.broadcast %979 : vector<8x1xi1> to vector<8x32xi1>
    %981 = arith.select %980, %971, %910 : vector<8x32xi1>, vector<8x32xf32>
    %c4_i32_256 = arith.constant 4 : i32
    %c7_i32_257 = arith.constant 7 : i32
    %982 = arith.subi %c7_i32_257, %c4_i32_256 : i32
    %c8_i32_258 = arith.constant 8 : i32
    %983 = arith.muli %c4_i32_256, %c8_i32_258 : i32
    %984 = tpu.assume_multiple %983, 8 : i32
    %c8_i32_259 = arith.constant 8 : i32
    %985 = arith.muli %982, %c8_i32_259 : i32
    %986 = tpu.assume_multiple %985, 8 : i32
    %987 = arith.index_cast %984 : i32 to index
    %c0_260 = arith.constant 0 : index
    %988 = vector.load %arg20[%987, %c0_260] : memref<64x768xf32, #tpu.memory_space<vmem>>, vector<8x384xf32>
    %989 = arith.index_cast %986 : i32 to index
    %c384_261 = arith.constant 384 : index
    %990 = vector.load %arg20[%989, %c384_261] : memref<64x768xf32, #tpu.memory_space<vmem>>, vector<8x384xf32>
    %cst_262 = arith.constant dense<0.000000e+00> : vector<8x384xf32>
    %991 = tpu.matmul %978, %693, %cst_262 {dimension_numbers = #tpu.dot_dimension_numbers<[1], [0], [0], [1], [0, 0, 1, 1], [], []>} : vector<8x32xf32>, vector<32x384xf32>, vector<8x384xf32> -> vector<8x384xf32>
    %992 = vector.broadcast %694 : vector<1x384xf32> to vector<8x384xf32>
    %993 = arith.addf %991, %992 : vector<8x384xf32>
    %cst_263 = arith.constant dense<0.000000e+00> : vector<8x384xf32>
    %994 = tpu.matmul %981, %695, %cst_263 {dimension_numbers = #tpu.dot_dimension_numbers<[1], [0], [0], [1], [0, 0, 1, 1], [], []>} : vector<8x32xf32>, vector<32x384xf32>, vector<8x384xf32> -> vector<8x384xf32>
    %995 = vector.broadcast %696 : vector<1x384xf32> to vector<8x384xf32>
    %996 = arith.addf %994, %995 : vector<8x384xf32>
    %997 = vector.extract_strided_slice %988 {offsets = [0, 0], sizes = [8, 256], strides = [1, 1]} : vector<8x384xf32> to vector<8x256xf32>
    %998 = vector.extract_strided_slice %993 {offsets = [0, 0], sizes = [8, 256], strides = [1, 1]} : vector<8x384xf32> to vector<8x256xf32>
    %999 = arith.addf %997, %998 : vector<8x256xf32>
    %cst_264 = arith.constant 5.000000e-01 : f32
    %1000 = vector.broadcast %cst_264 : f32 to vector<8x256xf32>
    %1001 = arith.mulf %1000, %999 : vector<8x256xf32>
    %1002 = math.tanh %1001 : vector<8x256xf32>
    %cst_265 = arith.constant 1.000000e+00 : f32
    %1003 = vector.broadcast %cst_265 : f32 to vector<8x256xf32>
    %1004 = arith.addf %1002, %1003 : vector<8x256xf32>
    %cst_266 = arith.constant 5.000000e-01 : f32
    %1005 = vector.broadcast %cst_266 : f32 to vector<8x256xf32>
    %1006 = arith.mulf %1005, %1004 : vector<8x256xf32>
    %1007 = vector.extract_strided_slice %1006 {offsets = [0, 0], sizes = [8, 128], strides = [1, 1]} : vector<8x256xf32> to vector<8x128xf32>
    %1008 = vector.extract_strided_slice %1006 {offsets = [0, 128], sizes = [8, 32], strides = [1, 1]} : vector<8x256xf32> to vector<8x32xf32>
    %1009 = vector.extract_strided_slice %988 {offsets = [0, 256], sizes = [8, 128], strides = [1, 1]} : vector<8x384xf32> to vector<8x128xf32>
    %1010 = vector.extract_strided_slice %993 {offsets = [0, 256], sizes = [8, 128], strides = [1, 1]} : vector<8x384xf32> to vector<8x128xf32>
    %1011 = arith.mulf %1007, %1010 : vector<8x128xf32>
    %1012 = arith.addf %1009, %1011 : vector<8x128xf32>
    %1013 = math.tanh %1012 : vector<8x128xf32>
    %cst_267 = arith.constant 1.000000e+00 : f32
    %1014 = vector.broadcast %cst_267 : f32 to vector<8x32xf32>
    %1015 = arith.subf %1014, %1008 : vector<8x32xf32>
    %1016 = vector.extract_strided_slice %1013 {offsets = [0, 0], sizes = [8, 32], strides = [1, 1]} : vector<8x128xf32> to vector<8x32xf32>
    %1017 = arith.mulf %1015, %1016 : vector<8x32xf32>
    %1018 = arith.mulf %1008, %978 : vector<8x32xf32>
    %1019 = arith.addf %1017, %1018 : vector<8x32xf32>
    %1020 = vector.extract_strided_slice %990 {offsets = [0, 0], sizes = [8, 256], strides = [1, 1]} : vector<8x384xf32> to vector<8x256xf32>
    %1021 = vector.extract_strided_slice %996 {offsets = [0, 0], sizes = [8, 256], strides = [1, 1]} : vector<8x384xf32> to vector<8x256xf32>
    %1022 = arith.addf %1020, %1021 : vector<8x256xf32>
    %cst_268 = arith.constant 5.000000e-01 : f32
    %1023 = vector.broadcast %cst_268 : f32 to vector<8x256xf32>
    %1024 = arith.mulf %1023, %1022 : vector<8x256xf32>
    %1025 = math.tanh %1024 : vector<8x256xf32>
    %cst_269 = arith.constant 1.000000e+00 : f32
    %1026 = vector.broadcast %cst_269 : f32 to vector<8x256xf32>
    %1027 = arith.addf %1025, %1026 : vector<8x256xf32>
    %cst_270 = arith.constant 5.000000e-01 : f32
    %1028 = vector.broadcast %cst_270 : f32 to vector<8x256xf32>
    %1029 = arith.mulf %1028, %1027 : vector<8x256xf32>
    %1030 = vector.extract_strided_slice %1029 {offsets = [0, 0], sizes = [8, 128], strides = [1, 1]} : vector<8x256xf32> to vector<8x128xf32>
    %1031 = vector.extract_strided_slice %1029 {offsets = [0, 128], sizes = [8, 32], strides = [1, 1]} : vector<8x256xf32> to vector<8x32xf32>
    %1032 = vector.extract_strided_slice %990 {offsets = [0, 256], sizes = [8, 128], strides = [1, 1]} : vector<8x384xf32> to vector<8x128xf32>
    %1033 = vector.extract_strided_slice %996 {offsets = [0, 256], sizes = [8, 128], strides = [1, 1]} : vector<8x384xf32> to vector<8x128xf32>
    %1034 = arith.mulf %1030, %1033 : vector<8x128xf32>
    %1035 = arith.addf %1032, %1034 : vector<8x128xf32>
    %1036 = math.tanh %1035 : vector<8x128xf32>
    %cst_271 = arith.constant 1.000000e+00 : f32
    %1037 = vector.broadcast %cst_271 : f32 to vector<8x32xf32>
    %1038 = arith.subf %1037, %1031 : vector<8x32xf32>
    %1039 = vector.extract_strided_slice %1036 {offsets = [0, 0], sizes = [8, 32], strides = [1, 1]} : vector<8x128xf32> to vector<8x32xf32>
    %1040 = arith.mulf %1038, %1039 : vector<8x32xf32>
    %1041 = arith.mulf %1031, %981 : vector<8x32xf32>
    %1042 = arith.addf %1040, %1041 : vector<8x32xf32>
    %1043 = vector.broadcast %c4_i32_256 : i32 to vector<8x1xi32>
    %1044 = arith.cmpi slt, %1043, %0 : vector<8x1xi32>
    %1045 = vector.broadcast %982 : i32 to vector<8x1xi32>
    %1046 = arith.cmpi slt, %1045, %0 : vector<8x1xi32>
    %1047 = vector.shape_cast %1044 : vector<8x1xi1> to vector<8x1xi1>
    %1048 = vector.broadcast %1047 : vector<8x1xi1> to vector<8x32xi1>
    %1049 = arith.select %1048, %1019, %978 : vector<8x32xi1>, vector<8x32xf32>
    %1050 = vector.shape_cast %1046 : vector<8x1xi1> to vector<8x1xi1>
    %1051 = vector.broadcast %1050 : vector<8x1xi1> to vector<8x32xi1>
    %1052 = arith.select %1051, %1042, %981 : vector<8x32xi1>, vector<8x32xf32>
    %c5_i32_272 = arith.constant 5 : i32
    %c7_i32_273 = arith.constant 7 : i32
    %1053 = arith.subi %c7_i32_273, %c5_i32_272 : i32
    %c8_i32_274 = arith.constant 8 : i32
    %1054 = arith.muli %c5_i32_272, %c8_i32_274 : i32
    %1055 = tpu.assume_multiple %1054, 8 : i32
    %c8_i32_275 = arith.constant 8 : i32
    %1056 = arith.muli %1053, %c8_i32_275 : i32
    %1057 = tpu.assume_multiple %1056, 8 : i32
    %1058 = arith.index_cast %1055 : i32 to index
    %c0_276 = arith.constant 0 : index
    %1059 = vector.load %arg20[%1058, %c0_276] : memref<64x768xf32, #tpu.memory_space<vmem>>, vector<8x384xf32>
    %1060 = arith.index_cast %1057 : i32 to index
    %c384_277 = arith.constant 384 : index
    %1061 = vector.load %arg20[%1060, %c384_277] : memref<64x768xf32, #tpu.memory_space<vmem>>, vector<8x384xf32>
    %cst_278 = arith.constant dense<0.000000e+00> : vector<8x384xf32>
    %1062 = tpu.matmul %1049, %693, %cst_278 {dimension_numbers = #tpu.dot_dimension_numbers<[1], [0], [0], [1], [0, 0, 1, 1], [], []>} : vector<8x32xf32>, vector<32x384xf32>, vector<8x384xf32> -> vector<8x384xf32>
    %1063 = vector.broadcast %694 : vector<1x384xf32> to vector<8x384xf32>
    %1064 = arith.addf %1062, %1063 : vector<8x384xf32>
    %cst_279 = arith.constant dense<0.000000e+00> : vector<8x384xf32>
    %1065 = tpu.matmul %1052, %695, %cst_279 {dimension_numbers = #tpu.dot_dimension_numbers<[1], [0], [0], [1], [0, 0, 1, 1], [], []>} : vector<8x32xf32>, vector<32x384xf32>, vector<8x384xf32> -> vector<8x384xf32>
    %1066 = vector.broadcast %696 : vector<1x384xf32> to vector<8x384xf32>
    %1067 = arith.addf %1065, %1066 : vector<8x384xf32>
    %1068 = vector.extract_strided_slice %1059 {offsets = [0, 0], sizes = [8, 256], strides = [1, 1]} : vector<8x384xf32> to vector<8x256xf32>
    %1069 = vector.extract_strided_slice %1064 {offsets = [0, 0], sizes = [8, 256], strides = [1, 1]} : vector<8x384xf32> to vector<8x256xf32>
    %1070 = arith.addf %1068, %1069 : vector<8x256xf32>
    %cst_280 = arith.constant 5.000000e-01 : f32
    %1071 = vector.broadcast %cst_280 : f32 to vector<8x256xf32>
    %1072 = arith.mulf %1071, %1070 : vector<8x256xf32>
    %1073 = math.tanh %1072 : vector<8x256xf32>
    %cst_281 = arith.constant 1.000000e+00 : f32
    %1074 = vector.broadcast %cst_281 : f32 to vector<8x256xf32>
    %1075 = arith.addf %1073, %1074 : vector<8x256xf32>
    %cst_282 = arith.constant 5.000000e-01 : f32
    %1076 = vector.broadcast %cst_282 : f32 to vector<8x256xf32>
    %1077 = arith.mulf %1076, %1075 : vector<8x256xf32>
    %1078 = vector.extract_strided_slice %1077 {offsets = [0, 0], sizes = [8, 128], strides = [1, 1]} : vector<8x256xf32> to vector<8x128xf32>
    %1079 = vector.extract_strided_slice %1077 {offsets = [0, 128], sizes = [8, 32], strides = [1, 1]} : vector<8x256xf32> to vector<8x32xf32>
    %1080 = vector.extract_strided_slice %1059 {offsets = [0, 256], sizes = [8, 128], strides = [1, 1]} : vector<8x384xf32> to vector<8x128xf32>
    %1081 = vector.extract_strided_slice %1064 {offsets = [0, 256], sizes = [8, 128], strides = [1, 1]} : vector<8x384xf32> to vector<8x128xf32>
    %1082 = arith.mulf %1078, %1081 : vector<8x128xf32>
    %1083 = arith.addf %1080, %1082 : vector<8x128xf32>
    %1084 = math.tanh %1083 : vector<8x128xf32>
    %cst_283 = arith.constant 1.000000e+00 : f32
    %1085 = vector.broadcast %cst_283 : f32 to vector<8x32xf32>
    %1086 = arith.subf %1085, %1079 : vector<8x32xf32>
    %1087 = vector.extract_strided_slice %1084 {offsets = [0, 0], sizes = [8, 32], strides = [1, 1]} : vector<8x128xf32> to vector<8x32xf32>
    %1088 = arith.mulf %1086, %1087 : vector<8x32xf32>
    %1089 = arith.mulf %1079, %1049 : vector<8x32xf32>
    %1090 = arith.addf %1088, %1089 : vector<8x32xf32>
    %1091 = vector.extract_strided_slice %1061 {offsets = [0, 0], sizes = [8, 256], strides = [1, 1]} : vector<8x384xf32> to vector<8x256xf32>
    %1092 = vector.extract_strided_slice %1067 {offsets = [0, 0], sizes = [8, 256], strides = [1, 1]} : vector<8x384xf32> to vector<8x256xf32>
    %1093 = arith.addf %1091, %1092 : vector<8x256xf32>
    %cst_284 = arith.constant 5.000000e-01 : f32
    %1094 = vector.broadcast %cst_284 : f32 to vector<8x256xf32>
    %1095 = arith.mulf %1094, %1093 : vector<8x256xf32>
    %1096 = math.tanh %1095 : vector<8x256xf32>
    %cst_285 = arith.constant 1.000000e+00 : f32
    %1097 = vector.broadcast %cst_285 : f32 to vector<8x256xf32>
    %1098 = arith.addf %1096, %1097 : vector<8x256xf32>
    %cst_286 = arith.constant 5.000000e-01 : f32
    %1099 = vector.broadcast %cst_286 : f32 to vector<8x256xf32>
    %1100 = arith.mulf %1099, %1098 : vector<8x256xf32>
    %1101 = vector.extract_strided_slice %1100 {offsets = [0, 0], sizes = [8, 128], strides = [1, 1]} : vector<8x256xf32> to vector<8x128xf32>
    %1102 = vector.extract_strided_slice %1100 {offsets = [0, 128], sizes = [8, 32], strides = [1, 1]} : vector<8x256xf32> to vector<8x32xf32>
    %1103 = vector.extract_strided_slice %1061 {offsets = [0, 256], sizes = [8, 128], strides = [1, 1]} : vector<8x384xf32> to vector<8x128xf32>
    %1104 = vector.extract_strided_slice %1067 {offsets = [0, 256], sizes = [8, 128], strides = [1, 1]} : vector<8x384xf32> to vector<8x128xf32>
    %1105 = arith.mulf %1101, %1104 : vector<8x128xf32>
    %1106 = arith.addf %1103, %1105 : vector<8x128xf32>
    %1107 = math.tanh %1106 : vector<8x128xf32>
    %cst_287 = arith.constant 1.000000e+00 : f32
    %1108 = vector.broadcast %cst_287 : f32 to vector<8x32xf32>
    %1109 = arith.subf %1108, %1102 : vector<8x32xf32>
    %1110 = vector.extract_strided_slice %1107 {offsets = [0, 0], sizes = [8, 32], strides = [1, 1]} : vector<8x128xf32> to vector<8x32xf32>
    %1111 = arith.mulf %1109, %1110 : vector<8x32xf32>
    %1112 = arith.mulf %1102, %1052 : vector<8x32xf32>
    %1113 = arith.addf %1111, %1112 : vector<8x32xf32>
    %1114 = vector.broadcast %c5_i32_272 : i32 to vector<8x1xi32>
    %1115 = arith.cmpi slt, %1114, %0 : vector<8x1xi32>
    %1116 = vector.broadcast %1053 : i32 to vector<8x1xi32>
    %1117 = arith.cmpi slt, %1116, %0 : vector<8x1xi32>
    %1118 = vector.shape_cast %1115 : vector<8x1xi1> to vector<8x1xi1>
    %1119 = vector.broadcast %1118 : vector<8x1xi1> to vector<8x32xi1>
    %1120 = arith.select %1119, %1090, %1049 : vector<8x32xi1>, vector<8x32xf32>
    %1121 = vector.shape_cast %1117 : vector<8x1xi1> to vector<8x1xi1>
    %1122 = vector.broadcast %1121 : vector<8x1xi1> to vector<8x32xi1>
    %1123 = arith.select %1122, %1113, %1052 : vector<8x32xi1>, vector<8x32xf32>
    %c6_i32_288 = arith.constant 6 : i32
    %c7_i32_289 = arith.constant 7 : i32
    %1124 = arith.subi %c7_i32_289, %c6_i32_288 : i32
    %c8_i32_290 = arith.constant 8 : i32
    %1125 = arith.muli %c6_i32_288, %c8_i32_290 : i32
    %1126 = tpu.assume_multiple %1125, 8 : i32
    %c8_i32_291 = arith.constant 8 : i32
    %1127 = arith.muli %1124, %c8_i32_291 : i32
    %1128 = tpu.assume_multiple %1127, 8 : i32
    %1129 = arith.index_cast %1126 : i32 to index
    %c0_292 = arith.constant 0 : index
    %1130 = vector.load %arg20[%1129, %c0_292] : memref<64x768xf32, #tpu.memory_space<vmem>>, vector<8x384xf32>
    %1131 = arith.index_cast %1128 : i32 to index
    %c384_293 = arith.constant 384 : index
    %1132 = vector.load %arg20[%1131, %c384_293] : memref<64x768xf32, #tpu.memory_space<vmem>>, vector<8x384xf32>
    %cst_294 = arith.constant dense<0.000000e+00> : vector<8x384xf32>
    %1133 = tpu.matmul %1120, %693, %cst_294 {dimension_numbers = #tpu.dot_dimension_numbers<[1], [0], [0], [1], [0, 0, 1, 1], [], []>} : vector<8x32xf32>, vector<32x384xf32>, vector<8x384xf32> -> vector<8x384xf32>
    %1134 = vector.broadcast %694 : vector<1x384xf32> to vector<8x384xf32>
    %1135 = arith.addf %1133, %1134 : vector<8x384xf32>
    %cst_295 = arith.constant dense<0.000000e+00> : vector<8x384xf32>
    %1136 = tpu.matmul %1123, %695, %cst_295 {dimension_numbers = #tpu.dot_dimension_numbers<[1], [0], [0], [1], [0, 0, 1, 1], [], []>} : vector<8x32xf32>, vector<32x384xf32>, vector<8x384xf32> -> vector<8x384xf32>
    %1137 = vector.broadcast %696 : vector<1x384xf32> to vector<8x384xf32>
    %1138 = arith.addf %1136, %1137 : vector<8x384xf32>
    %1139 = vector.extract_strided_slice %1130 {offsets = [0, 0], sizes = [8, 256], strides = [1, 1]} : vector<8x384xf32> to vector<8x256xf32>
    %1140 = vector.extract_strided_slice %1135 {offsets = [0, 0], sizes = [8, 256], strides = [1, 1]} : vector<8x384xf32> to vector<8x256xf32>
    %1141 = arith.addf %1139, %1140 : vector<8x256xf32>
    %cst_296 = arith.constant 5.000000e-01 : f32
    %1142 = vector.broadcast %cst_296 : f32 to vector<8x256xf32>
    %1143 = arith.mulf %1142, %1141 : vector<8x256xf32>
    %1144 = math.tanh %1143 : vector<8x256xf32>
    %cst_297 = arith.constant 1.000000e+00 : f32
    %1145 = vector.broadcast %cst_297 : f32 to vector<8x256xf32>
    %1146 = arith.addf %1144, %1145 : vector<8x256xf32>
    %cst_298 = arith.constant 5.000000e-01 : f32
    %1147 = vector.broadcast %cst_298 : f32 to vector<8x256xf32>
    %1148 = arith.mulf %1147, %1146 : vector<8x256xf32>
    %1149 = vector.extract_strided_slice %1148 {offsets = [0, 0], sizes = [8, 128], strides = [1, 1]} : vector<8x256xf32> to vector<8x128xf32>
    %1150 = vector.extract_strided_slice %1148 {offsets = [0, 128], sizes = [8, 32], strides = [1, 1]} : vector<8x256xf32> to vector<8x32xf32>
    %1151 = vector.extract_strided_slice %1130 {offsets = [0, 256], sizes = [8, 128], strides = [1, 1]} : vector<8x384xf32> to vector<8x128xf32>
    %1152 = vector.extract_strided_slice %1135 {offsets = [0, 256], sizes = [8, 128], strides = [1, 1]} : vector<8x384xf32> to vector<8x128xf32>
    %1153 = arith.mulf %1149, %1152 : vector<8x128xf32>
    %1154 = arith.addf %1151, %1153 : vector<8x128xf32>
    %1155 = math.tanh %1154 : vector<8x128xf32>
    %cst_299 = arith.constant 1.000000e+00 : f32
    %1156 = vector.broadcast %cst_299 : f32 to vector<8x32xf32>
    %1157 = arith.subf %1156, %1150 : vector<8x32xf32>
    %1158 = vector.extract_strided_slice %1155 {offsets = [0, 0], sizes = [8, 32], strides = [1, 1]} : vector<8x128xf32> to vector<8x32xf32>
    %1159 = arith.mulf %1157, %1158 : vector<8x32xf32>
    %1160 = arith.mulf %1150, %1120 : vector<8x32xf32>
    %1161 = arith.addf %1159, %1160 : vector<8x32xf32>
    %1162 = vector.extract_strided_slice %1132 {offsets = [0, 0], sizes = [8, 256], strides = [1, 1]} : vector<8x384xf32> to vector<8x256xf32>
    %1163 = vector.extract_strided_slice %1138 {offsets = [0, 0], sizes = [8, 256], strides = [1, 1]} : vector<8x384xf32> to vector<8x256xf32>
    %1164 = arith.addf %1162, %1163 : vector<8x256xf32>
    %cst_300 = arith.constant 5.000000e-01 : f32
    %1165 = vector.broadcast %cst_300 : f32 to vector<8x256xf32>
    %1166 = arith.mulf %1165, %1164 : vector<8x256xf32>
    %1167 = math.tanh %1166 : vector<8x256xf32>
    %cst_301 = arith.constant 1.000000e+00 : f32
    %1168 = vector.broadcast %cst_301 : f32 to vector<8x256xf32>
    %1169 = arith.addf %1167, %1168 : vector<8x256xf32>
    %cst_302 = arith.constant 5.000000e-01 : f32
    %1170 = vector.broadcast %cst_302 : f32 to vector<8x256xf32>
    %1171 = arith.mulf %1170, %1169 : vector<8x256xf32>
    %1172 = vector.extract_strided_slice %1171 {offsets = [0, 0], sizes = [8, 128], strides = [1, 1]} : vector<8x256xf32> to vector<8x128xf32>
    %1173 = vector.extract_strided_slice %1171 {offsets = [0, 128], sizes = [8, 32], strides = [1, 1]} : vector<8x256xf32> to vector<8x32xf32>
    %1174 = vector.extract_strided_slice %1132 {offsets = [0, 256], sizes = [8, 128], strides = [1, 1]} : vector<8x384xf32> to vector<8x128xf32>
    %1175 = vector.extract_strided_slice %1138 {offsets = [0, 256], sizes = [8, 128], strides = [1, 1]} : vector<8x384xf32> to vector<8x128xf32>
    %1176 = arith.mulf %1172, %1175 : vector<8x128xf32>
    %1177 = arith.addf %1174, %1176 : vector<8x128xf32>
    %1178 = math.tanh %1177 : vector<8x128xf32>
    %cst_303 = arith.constant 1.000000e+00 : f32
    %1179 = vector.broadcast %cst_303 : f32 to vector<8x32xf32>
    %1180 = arith.subf %1179, %1173 : vector<8x32xf32>
    %1181 = vector.extract_strided_slice %1178 {offsets = [0, 0], sizes = [8, 32], strides = [1, 1]} : vector<8x128xf32> to vector<8x32xf32>
    %1182 = arith.mulf %1180, %1181 : vector<8x32xf32>
    %1183 = arith.mulf %1173, %1123 : vector<8x32xf32>
    %1184 = arith.addf %1182, %1183 : vector<8x32xf32>
    %1185 = vector.broadcast %c6_i32_288 : i32 to vector<8x1xi32>
    %1186 = arith.cmpi slt, %1185, %0 : vector<8x1xi32>
    %1187 = vector.broadcast %1124 : i32 to vector<8x1xi32>
    %1188 = arith.cmpi slt, %1187, %0 : vector<8x1xi32>
    %1189 = vector.shape_cast %1186 : vector<8x1xi1> to vector<8x1xi1>
    %1190 = vector.broadcast %1189 : vector<8x1xi1> to vector<8x32xi1>
    %1191 = arith.select %1190, %1161, %1120 : vector<8x32xi1>, vector<8x32xf32>
    %1192 = vector.shape_cast %1188 : vector<8x1xi1> to vector<8x1xi1>
    %1193 = vector.broadcast %1192 : vector<8x1xi1> to vector<8x32xi1>
    %1194 = arith.select %1193, %1184, %1123 : vector<8x32xi1>, vector<8x32xf32>
    %c7_i32_304 = arith.constant 7 : i32
    %c7_i32_305 = arith.constant 7 : i32
    %1195 = arith.subi %c7_i32_305, %c7_i32_304 : i32
    %c8_i32_306 = arith.constant 8 : i32
    %1196 = arith.muli %c7_i32_304, %c8_i32_306 : i32
    %1197 = tpu.assume_multiple %1196, 8 : i32
    %c8_i32_307 = arith.constant 8 : i32
    %1198 = arith.muli %1195, %c8_i32_307 : i32
    %1199 = tpu.assume_multiple %1198, 8 : i32
    %1200 = arith.index_cast %1197 : i32 to index
    %c0_308 = arith.constant 0 : index
    %1201 = vector.load %arg20[%1200, %c0_308] : memref<64x768xf32, #tpu.memory_space<vmem>>, vector<8x384xf32>
    %1202 = arith.index_cast %1199 : i32 to index
    %c384_309 = arith.constant 384 : index
    %1203 = vector.load %arg20[%1202, %c384_309] : memref<64x768xf32, #tpu.memory_space<vmem>>, vector<8x384xf32>
    %cst_310 = arith.constant dense<0.000000e+00> : vector<8x384xf32>
    %1204 = tpu.matmul %1191, %693, %cst_310 {dimension_numbers = #tpu.dot_dimension_numbers<[1], [0], [0], [1], [0, 0, 1, 1], [], []>} : vector<8x32xf32>, vector<32x384xf32>, vector<8x384xf32> -> vector<8x384xf32>
    %1205 = vector.broadcast %694 : vector<1x384xf32> to vector<8x384xf32>
    %1206 = arith.addf %1204, %1205 : vector<8x384xf32>
    %cst_311 = arith.constant dense<0.000000e+00> : vector<8x384xf32>
    %1207 = tpu.matmul %1194, %695, %cst_311 {dimension_numbers = #tpu.dot_dimension_numbers<[1], [0], [0], [1], [0, 0, 1, 1], [], []>} : vector<8x32xf32>, vector<32x384xf32>, vector<8x384xf32> -> vector<8x384xf32>
    %1208 = vector.broadcast %696 : vector<1x384xf32> to vector<8x384xf32>
    %1209 = arith.addf %1207, %1208 : vector<8x384xf32>
    %1210 = vector.extract_strided_slice %1201 {offsets = [0, 0], sizes = [8, 256], strides = [1, 1]} : vector<8x384xf32> to vector<8x256xf32>
    %1211 = vector.extract_strided_slice %1206 {offsets = [0, 0], sizes = [8, 256], strides = [1, 1]} : vector<8x384xf32> to vector<8x256xf32>
    %1212 = arith.addf %1210, %1211 : vector<8x256xf32>
    %cst_312 = arith.constant 5.000000e-01 : f32
    %1213 = vector.broadcast %cst_312 : f32 to vector<8x256xf32>
    %1214 = arith.mulf %1213, %1212 : vector<8x256xf32>
    %1215 = math.tanh %1214 : vector<8x256xf32>
    %cst_313 = arith.constant 1.000000e+00 : f32
    %1216 = vector.broadcast %cst_313 : f32 to vector<8x256xf32>
    %1217 = arith.addf %1215, %1216 : vector<8x256xf32>
    %cst_314 = arith.constant 5.000000e-01 : f32
    %1218 = vector.broadcast %cst_314 : f32 to vector<8x256xf32>
    %1219 = arith.mulf %1218, %1217 : vector<8x256xf32>
    %1220 = vector.extract_strided_slice %1219 {offsets = [0, 0], sizes = [8, 128], strides = [1, 1]} : vector<8x256xf32> to vector<8x128xf32>
    %1221 = vector.extract_strided_slice %1219 {offsets = [0, 128], sizes = [8, 32], strides = [1, 1]} : vector<8x256xf32> to vector<8x32xf32>
    %1222 = vector.extract_strided_slice %1201 {offsets = [0, 256], sizes = [8, 128], strides = [1, 1]} : vector<8x384xf32> to vector<8x128xf32>
    %1223 = vector.extract_strided_slice %1206 {offsets = [0, 256], sizes = [8, 128], strides = [1, 1]} : vector<8x384xf32> to vector<8x128xf32>
    %1224 = arith.mulf %1220, %1223 : vector<8x128xf32>
    %1225 = arith.addf %1222, %1224 : vector<8x128xf32>
    %1226 = math.tanh %1225 : vector<8x128xf32>
    %cst_315 = arith.constant 1.000000e+00 : f32
    %1227 = vector.broadcast %cst_315 : f32 to vector<8x32xf32>
    %1228 = arith.subf %1227, %1221 : vector<8x32xf32>
    %1229 = vector.extract_strided_slice %1226 {offsets = [0, 0], sizes = [8, 32], strides = [1, 1]} : vector<8x128xf32> to vector<8x32xf32>
    %1230 = arith.mulf %1228, %1229 : vector<8x32xf32>
    %1231 = arith.mulf %1221, %1191 : vector<8x32xf32>
    %1232 = arith.addf %1230, %1231 : vector<8x32xf32>
    %1233 = vector.extract_strided_slice %1203 {offsets = [0, 0], sizes = [8, 256], strides = [1, 1]} : vector<8x384xf32> to vector<8x256xf32>
    %1234 = vector.extract_strided_slice %1209 {offsets = [0, 0], sizes = [8, 256], strides = [1, 1]} : vector<8x384xf32> to vector<8x256xf32>
    %1235 = arith.addf %1233, %1234 : vector<8x256xf32>
    %cst_316 = arith.constant 5.000000e-01 : f32
    %1236 = vector.broadcast %cst_316 : f32 to vector<8x256xf32>
    %1237 = arith.mulf %1236, %1235 : vector<8x256xf32>
    %1238 = math.tanh %1237 : vector<8x256xf32>
    %cst_317 = arith.constant 1.000000e+00 : f32
    %1239 = vector.broadcast %cst_317 : f32 to vector<8x256xf32>
    %1240 = arith.addf %1238, %1239 : vector<8x256xf32>
    %cst_318 = arith.constant 5.000000e-01 : f32
    %1241 = vector.broadcast %cst_318 : f32 to vector<8x256xf32>
    %1242 = arith.mulf %1241, %1240 : vector<8x256xf32>
    %1243 = vector.extract_strided_slice %1242 {offsets = [0, 0], sizes = [8, 128], strides = [1, 1]} : vector<8x256xf32> to vector<8x128xf32>
    %1244 = vector.extract_strided_slice %1242 {offsets = [0, 128], sizes = [8, 32], strides = [1, 1]} : vector<8x256xf32> to vector<8x32xf32>
    %1245 = vector.extract_strided_slice %1203 {offsets = [0, 256], sizes = [8, 128], strides = [1, 1]} : vector<8x384xf32> to vector<8x128xf32>
    %1246 = vector.extract_strided_slice %1209 {offsets = [0, 256], sizes = [8, 128], strides = [1, 1]} : vector<8x384xf32> to vector<8x128xf32>
    %1247 = arith.mulf %1243, %1246 : vector<8x128xf32>
    %1248 = arith.addf %1245, %1247 : vector<8x128xf32>
    %1249 = math.tanh %1248 : vector<8x128xf32>
    %cst_319 = arith.constant 1.000000e+00 : f32
    %1250 = vector.broadcast %cst_319 : f32 to vector<8x32xf32>
    %1251 = arith.subf %1250, %1244 : vector<8x32xf32>
    %1252 = vector.extract_strided_slice %1249 {offsets = [0, 0], sizes = [8, 32], strides = [1, 1]} : vector<8x128xf32> to vector<8x32xf32>
    %1253 = arith.mulf %1251, %1252 : vector<8x32xf32>
    %1254 = arith.mulf %1244, %1194 : vector<8x32xf32>
    %1255 = arith.addf %1253, %1254 : vector<8x32xf32>
    %1256 = vector.broadcast %c7_i32_304 : i32 to vector<8x1xi32>
    %1257 = arith.cmpi slt, %1256, %0 : vector<8x1xi32>
    %1258 = vector.broadcast %1195 : i32 to vector<8x1xi32>
    %1259 = arith.cmpi slt, %1258, %0 : vector<8x1xi32>
    %1260 = vector.shape_cast %1257 : vector<8x1xi1> to vector<8x1xi1>
    %1261 = vector.broadcast %1260 : vector<8x1xi1> to vector<8x32xi1>
    %1262 = arith.select %1261, %1232, %1191 : vector<8x32xi1>, vector<8x32xf32>
    %1263 = vector.shape_cast %1259 : vector<8x1xi1> to vector<8x1xi1>
    %1264 = vector.broadcast %1263 : vector<8x1xi1> to vector<8x32xi1>
    %1265 = arith.select %1264, %1255, %1194 : vector<8x32xi1>, vector<8x32xf32>
    %c8_i32_320 = arith.constant 8 : i32
    %c0_321 = arith.constant 0 : index
    %c0_322 = arith.constant 0 : index
    %1266 = vector.load %arg15[%c0_321, %c0_322] : memref<32x8xf32, #tpu.memory_space<vmem>>, vector<32x8xf32>
    %cst_323 = arith.constant dense<0.000000e+00> : vector<8x8xf32>
    %1267 = tpu.matmul %1265, %1266, %cst_323 {dimension_numbers = #tpu.dot_dimension_numbers<[1], [0], [0], [1], [0, 0, 1, 1], [], []>} : vector<8x32xf32>, vector<32x8xf32>, vector<8x8xf32> -> vector<8x8xf32>
    %c0_324 = arith.constant 0 : index
    %c0_325 = arith.constant 0 : index
    %1268 = vector.load %arg16[%c0_324, %c0_325] : memref<32x8xf32, #tpu.memory_space<vmem>>, vector<32x8xf32>
    %cst_326 = arith.constant dense<0.000000e+00> : vector<8x8xf32>
    %1269 = tpu.matmul %1262, %1268, %cst_326 {dimension_numbers = #tpu.dot_dimension_numbers<[1], [0], [0], [1], [0, 0, 1, 1], [], []>} : vector<8x32xf32>, vector<32x8xf32>, vector<8x8xf32> -> vector<8x8xf32>
    %1270 = arith.addf %1267, %1269 : vector<8x8xf32>
    %c0_327 = arith.constant 0 : index
    %c0_328 = arith.constant 0 : index
    %1271 = vector.load %arg17[%c0_327, %c0_328] : memref<1x8xf32, #tpu.memory_space<vmem>>, vector<1x8xf32>
    %1272 = vector.broadcast %1271 : vector<1x8xf32> to vector<8x8xf32>
    %1273 = arith.addf %1270, %1272 : vector<8x8xf32>
    %c0_329 = arith.constant 0 : index
    %c0_330 = arith.constant 0 : index
    %1274 = vector.load %arg18[%c0_329, %c0_330] : memref<8x8xf32, #tpu.memory_space<vmem>>, vector<8x8xf32>
    tpu.vector_store %arg18[%c0_329, %c0_330], %1273 {strides = array<i32>} : memref<8x8xf32, #tpu.memory_space<vmem>>, vector<8x8xf32>,
    return
  }
}

</mosaic_0001>

<llo_original>
// kernel: rnn_classifier_forward.1
$region0: #{rnn_classifier_forward.1}
  #allocation0 [shape = 'u32[]', space=smem, size = 0x4, offset = 0x4, fixed_abs, tag = 'smem constant byte address 0x4 - core index']
  #allocation1 [shape = 'u32[72,128]{1,0:T(1,128)}', space=vmem, size = 0x9000, scoped, tag = 'internal scratch']
  #allocation2 [shape = 'f32[64,768]{1,0:T(8,128)}', space=vmem, size = 0x30000, scoped, tag = 'scratch operand']
  #allocation3 [shape = 'f32[64,768]{1,0:T(8,128)}', space=vmem, size = 0x30000, scoped, tag = 'scratch operand']
  #allocation4 [shape = 'f32[64,32]{1,0:T(8,128)}', space=vmem, size = 0x8000, scoped, tag = 'scratch operand']
  #allocation5 [shape = 'f32[64,32]{1,0:T(8,128)}', space=vmem, size = 0x8000, scoped, tag = 'scratch operand']
  %s0 = inlined_call_operand.vmem [shape: s32[8,1], index: 0, kind: input, shape index: {}]
  %s1 = inlined_call_operand.vmem [shape: s32[64,1], index: 1, kind: input, shape index: {}]
  %s2 = inlined_call_operand.hbm [shape: f32[30,768], index: 2, kind: input, shape index: {}]
  %s3 = inlined_call_operand.vmem [shape: f32[1,768], index: 3, kind: input, shape index: {}]
  %s4 = inlined_call_operand.vmem [shape: f32[32,384], index: 4, kind: input, shape index: {}]
  %s5 = inlined_call_operand.vmem [shape: f32[1,384], index: 5, kind: input, shape index: {}]
  %s6 = inlined_call_operand.hbm [shape: f32[32,384], index: 6, kind: input, shape index: {}]
  %s7 = inlined_call_operand.vmem [shape: f32[1,384], index: 7, kind: input, shape index: {}]
  %s8 = inlined_call_operand.hbm [shape: f32[32,768], index: 8, kind: input, shape index: {}]
  %s9 = inlined_call_operand.hbm [shape: f32[32,768], index: 9, kind: input, shape index: {}]
  %s10 = inlined_call_operand.vmem [shape: f32[1,768], index: 10, kind: input, shape index: {}]
  %s11 = inlined_call_operand.hbm [shape: f32[32,384], index: 11, kind: input, shape index: {}]
  %s12 = inlined_call_operand.vmem [shape: f32[1,384], index: 12, kind: input, shape index: {}]
  %s13 = inlined_call_operand.hbm [shape: f32[32,384], index: 13, kind: input, shape index: {}]
  %s14 = inlined_call_operand.vmem [shape: f32[1,384], index: 14, kind: input, shape index: {}]
  %s15 = inlined_call_operand.vmem [shape: f32[32,8], index: 15, kind: input, shape index: {}]
  %s16 = inlined_call_operand.vmem [shape: f32[32,8], index: 16, kind: input, shape index: {}]
  %s17 = inlined_call_operand.vmem [shape: f32[1,8], index: 17, kind: input, shape index: {}]
  %s18 = inlined_call_operand.hbm [shape: f32[8,8], index: 18, kind: output, shape index: {}]
  %s19 = sld [smem:[#allocation0]]
  $region106: #{rnn_classifier_forward.1} parent=0
    _
  %s21 = ssub.s32 1, %s19
  %s22 = scalar_select 0, %s21, %s19
  $region1: #{rnn_classifier_forward.1} parent=0
    #allocation6 [shape = 'u8[98304]{0}', space=vmem, size = 0x18000, scoped, tag = 'input window, operand 2, single buffered']
    #allocation7 [shape = 's32[1]{0}', space=sflag, size = 0x4, scoped, tag = 'scoped memory for rnn_classifier_forward.1']
    #allocation8 [shape = 's32[1]{0}', space=sflag, size = 0x4, scoped, tag = 'scoped memory for rnn_classifier_forward.1']
    #allocation9 [shape = 'u8[49152]{0}', space=vmem, size = 0xc000, scoped, tag = 'input window, operand 6, single buffered']
    #allocation10 [shape = 's32[1]{0}', space=sflag, size = 0x4, scoped, tag = 'scoped memory for rnn_classifier_forward.1']
    #allocation11 [shape = 'u8[98304]{0}', space=vmem, size = 0x18000, scoped, tag = 'input window, operand 8, single buffered']
    #allocation12 [shape = 'u8[98304]{0}', space=vmem, size = 0x18000, scoped, tag = 'input window, operand 9, single buffered']
    #allocation13 [shape = 's32[1]{0}', space=sflag, size = 0x4, scoped, tag = 'scoped memory for rnn_classifier_forward.1']
    #allocation14 [shape = 'u8[49152]{0}', space=vmem, size = 0xc000, scoped, tag = 'input window, operand 11, single buffered']
    #allocation15 [shape = 'u8[49152]{0}', space=vmem, size = 0xc000, scoped, tag = 'input window, operand 13, single buffered']
    #allocation16 [shape = 's32[1]{0}', space=sflag, size = 0x4, scoped, tag = 'scoped memory for rnn_classifier_forward.1']
    #allocation17 [shape = 'u8[4096]{0}', space=vmem, size = 0x1000, scoped, tag = 'output window, operand 0, single buffered']
    %23 = vsyncpa [#allocation7], 0
    %24 = vsyncpa [#allocation10], 0
    %25 = vsyncpa [#allocation13], 0
    %26 = vsyncpa [#allocation16], 0
    %27 = vsyncpa [#allocation8], 0
    // Predicated region
    $region2: #{rnn_classifier_forward.1} parent=1 // pred_check
      _
    $region3: #{rnn_classifier_forward.1} parent=1 // pred_check_branch
      %29 = sbr.rel (0) target = $region5
    $region4: #{rnn_classifier_forward.1} parent=1 // pred_region
      _
    $region5: #{rnn_classifier_forward.1} parent=1 // pred_fallthru
      _
    // Predicated region
    $region6: #{rnn_classifier_forward.1} parent=1 // pred_check
      _
    $region7: #{rnn_classifier_forward.1} parent=1 // pred_check_branch
      %31 = sbr.rel (0) target = $region9
    $region8: #{rnn_classifier_forward.1} parent=1 // pred_region
      _
    $region9: #{rnn_classifier_forward.1} parent=1 // pred_fallthru
      _
    // Predicated region
    $region10: #{rnn_classifier_forward.1} parent=1 // pred_check
      _
    $region11: #{rnn_classifier_forward.1} parent=1 // pred_check_branch
      %33 = sbr.rel (0) target = $region13
    $region12: #{rnn_classifier_forward.1} parent=1 // pred_region
      %35 = vsyncadd [#allocation7], 0
      %s36 = sshll.u32 %s2, 4
      %s37 = int_to_ptr.hbm [resolvable:$true] %s36
      %s38 = sshll.u32 [#allocation6], 4
      %s39 = int_to_ptr.vmem [resolvable:$true] %s38
      %44 = dma.hbm_to_vmem [thread:$0]  %s37, 3072, %s39, [#allocation7], 768, 768, 48
    $region13: #{rnn_classifier_forward.1} parent=1 // pred_fallthru
      _
    // Predicated region
    $region14: #{rnn_classifier_forward.1} parent=1 // pred_check
      _
    $region15: #{rnn_classifier_forward.1} parent=1 // pred_check_branch
      %46 = sbr.rel (0) target = $region17
    $region16: #{rnn_classifier_forward.1} parent=1 // pred_region
      _
    $region17: #{rnn_classifier_forward.1} parent=1 // pred_fallthru
      _
    // Predicated region
    $region18: #{rnn_classifier_forward.1} parent=1 // pred_check
      _
    $region19: #{rnn_classifier_forward.1} parent=1 // pred_check_branch
      %48 = sbr.rel (0) target = $region21
    $region20: #{rnn_classifier_forward.1} parent=1 // pred_region
      _
    $region21: #{rnn_classifier_forward.1} parent=1 // pred_fallthru
      _
    // Predicated region
    $region22: #{rnn_classifier_forward.1} parent=1 // pred_check
      _
    $region23: #{rnn_classifier_forward.1} parent=1 // pred_check_branch
      %50 = sbr.rel (0) target = $region25
    $region24: #{rnn_classifier_forward.1} parent=1 // pred_region
      _
    $region25: #{rnn_classifier_forward.1} parent=1 // pred_fallthru
      _
    // Predicated region
    $region26: #{rnn_classifier_forward.1} parent=1 // pred_check
      _
    $region27: #{rnn_classifier_forward.1} parent=1 // pred_check_branch
      %52 = sbr.rel (0) target = $region29
    $region28: #{rnn_classifier_forward.1} parent=1 // pred_region
      %54 = vsyncadd [#allocation10], 0
      %s55 = sshll.u32 %s6, 4
      %s56 = int_to_ptr.hbm [resolvable:$true] %s55
      %s57 = sshll.u32 [#allocation9], 4
      %s58 = int_to_ptr.vmem [resolvable:$true] %s57
      %63 = dma.hbm_to_vmem [thread:$0]  %s56, 1536, %s58, [#allocation10], 384, 384, 24
    $region29: #{rnn_classifier_forward.1} parent=1 // pred_fallthru
      _
    // Predicated region
    $region30: #{rnn_classifier_forward.1} parent=1 // pred_check
      _
    $region31: #{rnn_classifier_forward.1} parent=1 // pred_check_branch
      %65 = sbr.rel (0) target = $region33
    $region32: #{rnn_classifier_forward.1} parent=1 // pred_region
      _
    $region33: #{rnn_classifier_forward.1} parent=1 // pred_fallthru
      _
    // Predicated region
    $region34: #{rnn_classifier_forward.1} parent=1 // pred_check
      _
    $region35: #{rnn_classifier_forward.1} parent=1 // pred_check_branch
      %67 = sbr.rel (0) target = $region37
    $region36: #{rnn_classifier_forward.1} parent=1 // pred_region
      %69 = vsyncadd [#allocation10], 0
      %s70 = sshll.u32 %s8, 4
      %s71 = int_to_ptr.hbm [resolvable:$true] %s70
      %s72 = sshll.u32 [#allocation11], 4
      %s73 = int_to_ptr.vmem [resolvable:$true] %s72
      %78 = dma.hbm_to_vmem [thread:$0]  %s71, 3072, %s73, [#allocation10], 768, 768, 48
    $region37: #{rnn_classifier_forward.1} parent=1 // pred_fallthru
      _
    // Predicated region
    $region38: #{rnn_classifier_forward.1} parent=1 // pred_check
      _
    $region39: #{rnn_classifier_forward.1} parent=1 // pred_check_branch
      %80 = sbr.rel (0) target = $region41
    $region40: #{rnn_classifier_forward.1} parent=1 // pred_region
      %82 = vsyncadd [#allocation13], 0
      %s83 = sshll.u32 %s9, 4
      %s84 = int_to_ptr.hbm [resolvable:$true] %s83
      %s85 = sshll.u32 [#allocation12], 4
      %s86 = int_to_ptr.vmem [resolvable:$true] %s85
      %91 = dma.hbm_to_vmem [thread:$0]  %s84, 3072, %s86, [#allocation13], 768, 768, 48
    $region41: #{rnn_classifier_forward.1} parent=1 // pred_fallthru
      _
    // Predicated region
    $region42: #{rnn_classifier_forward.1} parent=1 // pred_check
      _
    $region43: #{rnn_classifier_forward.1} parent=1 // pred_check_branch
      %93 = sbr.rel (0) target = $region45
    $region44: #{rnn_classifier_forward.1} parent=1 // pred_region
      _
    $region45: #{rnn_classifier_forward.1} parent=1 // pred_fallthru
      _
    // Predicated region
    $region46: #{rnn_classifier_forward.1} parent=1 // pred_check
      _
    $region47: #{rnn_classifier_forward.1} parent=1 // pred_check_branch
      %95 = sbr.rel (0) target = $region49
    $region48: #{rnn_classifier_forward.1} parent=1 // pred_region
      %97 = vsyncadd [#allocation13], 0
      %s98 = sshll.u32 %s11, 4
      %s99 = int_to_ptr.hbm [resolvable:$true] %s98
      %s100 = sshll.u32 [#allocation14], 4
      %s101 = int_to_ptr.vmem [resolvable:$true] %s100
      %106 = dma.hbm_to_vmem [thread:$0]  %s99, 1536, %s101, [#allocation13], 384, 384, 24
    $region49: #{rnn_classifier_forward.1} parent=1 // pred_fallthru
      _
    // Predicated region
    $region50: #{rnn_classifier_forward.1} parent=1 // pred_check
      _
    $region51: #{rnn_classifier_forward.1} parent=1 // pred_check_branch
      %108 = sbr.rel (0) target = $region53
    $region52: #{rnn_classifier_forward.1} parent=1 // pred_region
      _
    $region53: #{rnn_classifier_forward.1} parent=1 // pred_fallthru
      _
    // Predicated region
    $region54: #{rnn_classifier_forward.1} parent=1 // pred_check
      _
    $region55: #{rnn_classifier_forward.1} parent=1 // pred_check_branch
      %110 = sbr.rel (0) target = $region57
    $region56: #{rnn_classifier_forward.1} parent=1 // pred_region
      %112 = vsyncadd [#allocation16], 0
      %s113 = sshll.u32 %s13, 4
      %s114 = int_to_ptr.hbm [resolvable:$true] %s113
      %s115 = sshll.u32 [#allocation15], 4
      %s116 = int_to_ptr.vmem [resolvable:$true] %s115
      %121 = dma.hbm_to_vmem [thread:$0]  %s114, 1536, %s116, [#allocation16], 384, 384, 24
    $region57: #{rnn_classifier_forward.1} parent=1 // pred_fallthru
      _
    // Predicated region
    $region58: #{rnn_classifier_forward.1} parent=1 // pred_check
      _
    $region59: #{rnn_classifier_forward.1} parent=1 // pred_check_branch
      %123 = sbr.rel (0) target = $region61
    $region60: #{rnn_classifier_forward.1} parent=1 // pred_region
      _
    $region61: #{rnn_classifier_forward.1} parent=1 // pred_fallthru
      _
    // Predicated region
    $region62: #{rnn_classifier_forward.1} parent=1 // pred_check
      _
    $region63: #{rnn_classifier_forward.1} parent=1 // pred_check_branch
      %125 = sbr.rel (0) target = $region65
    $region64: #{rnn_classifier_forward.1} parent=1 // pred_region
      _
    $region65: #{rnn_classifier_forward.1} parent=1 // pred_fallthru
      _
    // Predicated region
    $region66: #{rnn_classifier_forward.1} parent=1 // pred_check
      _
    $region67: #{rnn_classifier_forward.1} parent=1 // pred_check_branch
      %127 = sbr.rel (0) target = $region69
    $region68: #{rnn_classifier_forward.1} parent=1 // pred_region
      _
    $region69: #{rnn_classifier_forward.1} parent=1 // pred_fallthru
      _
    // Predicated region
    $region70: #{rnn_classifier_forward.1} parent=1 // pred_check
      _
    $region71: #{rnn_classifier_forward.1} parent=1 // pred_check_branch
      %129 = sbr.rel (0) target = $region73
    $region72: #{rnn_classifier_forward.1} parent=1 // pred_region
      _
    $region73: #{rnn_classifier_forward.1} parent=1 // pred_fallthru
      _
    // Predicated region
    $region74: #{rnn_classifier_forward.1} parent=1 // pred_check
      _
    $region75: #{rnn_classifier_forward.1} parent=1 // pred_check_branch
      %131 = sbr.rel (0) target = $region77
    $region76: #{rnn_classifier_forward.1} parent=1 // pred_region
      %133 = dma.done [#allocation7], 3072
    $region77: #{rnn_classifier_forward.1} parent=1 // pred_fallthru
      _
    // Predicated region
    $region78: #{rnn_classifier_forward.1} parent=1 // pred_check
      _
    $region79: #{rnn_classifier_forward.1} parent=1 // pred_check_branch
      %135 = sbr.rel (0) target = $region81
    $region80: #{rnn_classifier_forward.1} parent=1 // pred_region
      %137 = dma.done [#allocation10], 1536
    $region81: #{rnn_classifier_forward.1} parent=1 // pred_fallthru
      _
    // Predicated region
    $region82: #{rnn_classifier_forward.1} parent=1 // pred_check
      _
    $region83: #{rnn_classifier_forward.1} parent=1 // pred_check_branch
      %139 = sbr.rel (0) target = $region85
    $region84: #{rnn_classifier_forward.1} parent=1 // pred_region
      %141 = dma.done [#allocation10], 3072
    $region85: #{rnn_classifier_forward.1} parent=1 // pred_fallthru
      _
    // Predicated region
    $region86: #{rnn_classifier_forward.1} parent=1 // pred_check
      _
    $region87: #{rnn_classifier_forward.1} parent=1 // pred_check_branch
      %143 = sbr.rel (0) target = $region89
    $region88: #{rnn_classifier_forward.1} parent=1 // pred_region
      %145 = dma.done [#allocation13], 3072
    $region89: #{rnn_classifier_forward.1} parent=1 // pred_fallthru
      _
    // Predicated region
    $region90: #{rnn_classifier_forward.1} parent=1 // pred_check
      _
    $region91: #{rnn_classifier_forward.1} parent=1 // pred_check_branch
      %147 = sbr.rel (0) target = $region93
    $region92: #{rnn_classifier_forward.1} parent=1 // pred_region
      %149 = dma.done [#allocation13], 1536
    $region93: #{rnn_classifier_forward.1} parent=1 // pred_fallthru
      _
    // Predicated region
    $region94: #{rnn_classifier_forward.1} parent=1 // pred_check
      _
    $region95: #{rnn_classifier_forward.1} parent=1 // pred_check_branch
      %151 = sbr.rel (0) target = $region97
    $region96: #{rnn_classifier_forward.1} parent=1 // pred_region
      %153 = dma.done [#allocation16], 1536
    $region97: #{rnn_classifier_forward.1} parent=1 // pred_fallthru
      _
    %v154 = vld [vmem:[%s0] sm:$0xff]
    %v155 = vld [vmem:[%s1] sm:$0xff]
    %v156 = vld [vmem:[%s1 + $0x8] sm:$0xff]
    %v157 = vld [vmem:[%s1 + $0x10] sm:$0xff]
    %v158 = vld [vmem:[%s1 + $0x18] sm:$0xff]
    %v159 = vld [vmem:[%s1 + $0x20] sm:$0xff]
    %v160 = vld [vmem:[%s1 + $0x28] sm:$0xff]
    %v161 = vld [vmem:[%s1 + $0x30] sm:$0xff]
    %v162 = vld [vmem:[%s1 + $0x38] sm:$0xff]
    %v163 = vlaneseq
    %v164 = vand.u32 %v163, 127
    %165 = vset.pattern.permute.xlu0 0
    %166 = vperm.xlu0 %165, %v155
    %v167 = vpop.permute.xlu0 %166
    %168 = vset.pattern.permute.xlu0 0
    %169 = vperm.xlu0 %168, %v156
    %v170 = vpop.permute.xlu0 %169
    %171 = vset.pattern.permute.xlu0 0
    %172 = vperm.xlu0 %171, %v157
    %v173 = vpop.permute.xlu0 %172
    %174 = vset.pattern.permute.xlu0 0
    %175 = vperm.xlu0 %174, %v158
    %v176 = vpop.permute.xlu0 %175
    %177 = vset.pattern.permute.xlu0 0
    %178 = vperm.xlu0 %177, %v159
    %v179 = vpop.permute.xlu0 %178
    %180 = vset.pattern.permute.xlu0 0
    %181 = vperm.xlu0 %180, %v160
    %v182 = vpop.permute.xlu0 %181
    %183 = vset.pattern.permute.xlu0 0
    %184 = vperm.xlu0 %183, %v161
    %v185 = vpop.permute.xlu0 %184
    %186 = vset.pattern.permute.xlu0 0
    %187 = vperm.xlu0 %186, %v162
    %v188 = vpop.permute.xlu0 %187
    %vm189 = vcmp.eq.s32.totalorder %v167, %v164
    %vm190 = vcmp.eq.s32.totalorder %v170, %v164
    %vm191 = vcmp.eq.s32.totalorder %v173, %v164
    %vm192 = vcmp.eq.s32.totalorder %v176, %v164
    %vm193 = vcmp.eq.s32.totalorder %v179, %v164
    %vm194 = vcmp.eq.s32.totalorder %v182, %v164
    %vm195 = vcmp.eq.s32.totalorder %v185, %v164
    %vm196 = vcmp.eq.s32.totalorder %v188, %v164
    %v197 = vsel %vm189, 1, 0
    %v198 = vsel %vm190, 1, 0
    %v199 = vsel %vm191, 1, 0
    %v200 = vsel %vm192, 1, 0
    %v201 = vsel %vm193, 1, 0
    %v202 = vsel %vm194, 1, 0
    %v203 = vsel %vm195, 1, 0
    %v204 = vsel %vm196, 1, 0
    %v205 = vcvt.s32.f32 %v197
    %v206 = vcvt.s32.f32 %v198
    %v207 = vcvt.s32.f32 %v199
    %v208 = vcvt.s32.f32 %v200
    %v209 = vcvt.s32.f32 %v201
    %v210 = vcvt.s32.f32 %v202
    %v211 = vcvt.s32.f32 %v203
    %v212 = vcvt.s32.f32 %v204
    %v213 = vld [vmem:[#allocation6] sm:$0xff]
    %v214 = vld [vmem:[#allocation6 + $0x8] sm:$0xff]
    %v215 = vld [vmem:[#allocation6 + $0x10] sm:$0xff]
    %v216 = vld [vmem:[#allocation6 + $0x18] sm:$0xff]
    %v217 = vld [vmem:[#allocation6 + $0x20] sm:$0xff]
    %v218 = vld [vmem:[#allocation6 + $0x28] sm:$0xff]
    %v219 = vld [vmem:[#allocation6 + $0x30] sm:$0xff]
    %v220 = vld [vmem:[#allocation6 + $0x38] sm:$0xff]
    %v221 = vld [vmem:[#allocation6 + $0x40] sm:$0xff]
    %v222 = vld [vmem:[#allocation6 + $0x48] sm:$0xff]
    %v223 = vld [vmem:[#allocation6 + $0x50] sm:$0xff]
    %v224 = vld [vmem:[#allocation6 + $0x58] sm:$0xff]
    %v225 = vld [vmem:[#allocation6 + $0x60] sm:$0xff]
    %v226 = vld [vmem:[#allocation6 + $0x68] sm:$0xff]
    %v227 = vld [vmem:[#allocation6 + $0x70] sm:$0xff]
    %v228 = vld [vmem:[#allocation6 + $0x78] sm:$0xff]
    %v229 = vld [vmem:[#allocation6 + $0x80] sm:$0xff]
    %v230 = vld [vmem:[#allocation6 + $0x88] sm:$0xff]
    %v231 = vld [vmem:[#allocation6 + $0x90] sm:$0x3f]
    %v232 = vld [vmem:[#allocation6 + $0x98] sm:$0x3f]
    %v233 = vld [vmem:[#allocation6 + $0xa0] sm:$0x3f]
    %v234 = vld [vmem:[#allocation6 + $0xa8] sm:$0x3f]
    %v235 = vld [vmem:[#allocation6 + $0xb0] sm:$0x3f]
    %v236 = vld [vmem:[#allocation6 + $0xb8] sm:$0x3f]
    %v237 = vld [vmem:[%s3] sm:$0x3f]
    %v239 = vperm.slane %v237, 0
    %v240 = vperm.slane %v237, 1
    %v241 = vperm.slane %v237, 2
    %v242 = vperm.slane %v237, 3
    %v243 = vperm.slane %v237, 4
    %v244 = vperm.slane %v237, 5
    %vm251 = vcmask 244736
    %v253 = vsel %vm251, %v205, 0
    %v256 = vsel %vm251, %v206, 0
    %v259 = vsel %vm251, %v207, 0
    %v262 = vsel %vm251, %v208, 0
    %v265 = vsel %vm251, %v209, 0
    %v268 = vsel %vm251, %v210, 0
    %v271 = vsel %vm251, %v211, 0
    %v274 = vsel %vm251, %v212, 0
    %vm276 = vcmask 1045504
    %v278 = vsel %vm276, %v231, 0
    %v281 = vsel %vm276, %v232, 0
    %v284 = vsel %vm276, %v233, 0
    %v287 = vsel %vm276, %v234, 0
    %v290 = vsel %vm276, %v235, 0
    %v293 = vsel %vm276, %v236, 0
    %295 = vmatpush.msra.mxu0 0.0
    %296 = vmatpush.msra.mxu0 0.0
    %297 = vmatpush.msra.mxu0 0.0
    %298 = vmatpush.msra.mxu0 0.0
    %299 = vmatpush.msra.mxu0 0.0
    %300 = vmatpush.msra.mxu0 0.0
    %301 = vmatpush.msra.mxu0 0.0
    %302 = vmatpush.msra.mxu0 0.0
    %303 = vmatpush.msra.mxu0 0.0
    %304 = vmatpush.msra.mxu0 0.0
    %305 = vmatpush.msra.mxu0 0.0
    %306 = vmatpush.msra.mxu0 0.0
    %307 = vmatpush.msra.mxu0 %v278
    %308 = vmatpush.msra.mxu0 %v225
    %309 = vmatpush.msra.mxu0 %v219
    %310 = vmatpush.msra.mxu0 %v213
    %311 = vmatmul.f32.gmra.mxu0 %v253
    %v312 = vpop.f32.mrf.mxu0
    %v313 = vadd.f32 %v239, %v312
    %314 = vmatmul.f32.gmra.mxu0 %v256
    %v315 = vpop.f32.mrf.mxu0
    %v316 = vadd.f32 %v239, %v315
    %317 = vmatmul.f32.gmra.mxu0 %v259
    %v318 = vpop.f32.mrf.mxu0
    %v319 = vadd.f32 %v239, %v318
    %320 = vmatmul.f32.gmra.mxu0 %v262
    %v321 = vpop.f32.mrf.mxu0
    %v322 = vadd.f32 %v239, %v321
    %323 = vmatmul.f32.gmra.mxu0 %v265
    %v324 = vpop.f32.mrf.mxu0
    %v325 = vadd.f32 %v239, %v324
    %326 = vmatmul.f32.gmra.mxu0 %v268
    %v327 = vpop.f32.mrf.mxu0
    %v328 = vadd.f32 %v239, %v327
    %329 = vmatmul.f32.gmra.mxu0 %v271
    %v330 = vpop.f32.mrf.mxu0
    %v331 = vadd.f32 %v239, %v330
    %332 = vmatmul.f32.gmra.mxu0 %v274
    %v333 = vpop.f32.mrf.mxu0
    %v334 = vadd.f32 %v239, %v333
    %335 = vdwg.mxu0
    %336 = vmatpush.msra.mxu0 0.0
    %337 = vmatpush.msra.mxu0 0.0
    %338 = vmatpush.msra.mxu0 0.0
    %339 = vmatpush.msra.mxu0 0.0
    %340 = vmatpush.msra.mxu0 0.0
    %341 = vmatpush.msra.mxu0 0.0
    %342 = vmatpush.msra.mxu0 0.0
    %343 = vmatpush.msra.mxu0 0.0
    %344 = vmatpush.msra.mxu0 0.0
    %345 = vmatpush.msra.mxu0 0.0
    %346 = vmatpush.msra.mxu0 0.0
    %347 = vmatpush.msra.mxu0 0.0
    %348 = vmatpush.msra.mxu0 %v281
    %349 = vmatpush.msra.mxu0 %v226
    %350 = vmatpush.msra.mxu0 %v220
    %351 = vmatpush.msra.mxu0 %v214
    %352 = vmatmul.f32.gmra.mxu0 %v253
    %v353 = vpop.f32.mrf.mxu0
    %v354 = vadd.f32 %v240, %v353
    %355 = vmatmul.f32.gmra.mxu0 %v256
    %v356 = vpop.f32.mrf.mxu0
    %v357 = vadd.f32 %v240, %v356
    %358 = vmatmul.f32.gmra.mxu0 %v259
    %v359 = vpop.f32.mrf.mxu0
    %v360 = vadd.f32 %v240, %v359
    %361 = vmatmul.f32.gmra.mxu0 %v262
    %v362 = vpop.f32.mrf.mxu0
    %v363 = vadd.f32 %v240, %v362
    %364 = vmatmul.f32.gmra.mxu0 %v265
    %v365 = vpop.f32.mrf.mxu0
    %v366 = vadd.f32 %v240, %v365
    %367 = vmatmul.f32.gmra.mxu0 %v268
    %v368 = vpop.f32.mrf.mxu0
    %v369 = vadd.f32 %v240, %v368
    %370 = vmatmul.f32.gmra.mxu0 %v271
    %v371 = vpop.f32.mrf.mxu0
    %v372 = vadd.f32 %v240, %v371
    %373 = vmatmul.f32.gmra.mxu0 %v274
    %v374 = vpop.f32.mrf.mxu0
    %v375 = vadd.f32 %v240, %v374
    %376 = vdwg.mxu0
    %377 = vmatpush.msra.mxu0 0.0
    %378 = vmatpush.msra.mxu0 0.0
    %379 = vmatpush.msra.mxu0 0.0
    %380 = vmatpush.msra.mxu0 0.0
    %381 = vmatpush.msra.mxu0 0.0
    %382 = vmatpush.msra.mxu0 0.0
    %383 = vmatpush.msra.mxu0 0.0
    %384 = vmatpush.msra.mxu0 0.0
    %385 = vmatpush.msra.mxu0 0.0
    %386 = vmatpush.msra.mxu0 0.0
    %387 = vmatpush.msra.mxu0 0.0
    %388 = vmatpush.msra.mxu0 0.0
    %389 = vmatpush.msra.mxu0 %v284
    %390 = vmatpush.msra.mxu0 %v227
    %391 = vmatpush.msra.mxu0 %v221
    %392 = vmatpush.msra.mxu0 %v215
    %393 = vmatmul.f32.gmra.mxu0 %v253
    %v394 = vpop.f32.mrf.mxu0
    %v395 = vadd.f32 %v241, %v394
    %396 = vmatmul.f32.gmra.mxu0 %v256
    %v397 = vpop.f32.mrf.mxu0
    %v398 = vadd.f32 %v241, %v397
    %399 = vmatmul.f32.gmra.mxu0 %v259
    %v400 = vpop.f32.mrf.mxu0
    %v401 = vadd.f32 %v241, %v400
    %402 = vmatmul.f32.gmra.mxu0 %v262
    %v403 = vpop.f32.mrf.mxu0
    %v404 = vadd.f32 %v241, %v403
    %405 = vmatmul.f32.gmra.mxu0 %v265
    %v406 = vpop.f32.mrf.mxu0
    %v407 = vadd.f32 %v241, %v406
    %408 = vmatmul.f32.gmra.mxu0 %v268
    %v409 = vpop.f32.mrf.mxu0
    %v410 = vadd.f32 %v241, %v409
    %411 = vmatmul.f32.gmra.mxu0 %v271
    %v412 = vpop.f32.mrf.mxu0
    %v413 = vadd.f32 %v241, %v412
    %414 = vmatmul.f32.gmra.mxu0 %v274
    %v415 = vpop.f32.mrf.mxu0
    %v416 = vadd.f32 %v241, %v415
    %417 = vdwg.mxu0
    %418 = vmatpush.msra.mxu0 0.0
    %419 = vmatpush.msra.mxu0 0.0
    %420 = vmatpush.msra.mxu0 0.0
    %421 = vmatpush.msra.mxu0 0.0
    %422 = vmatpush.msra.mxu0 0.0
    %423 = vmatpush.msra.mxu0 0.0
    %424 = vmatpush.msra.mxu0 0.0
    %425 = vmatpush.msra.mxu0 0.0
    %426 = vmatpush.msra.mxu0 0.0
    %427 = vmatpush.msra.mxu0 0.0
    %428 = vmatpush.msra.mxu0 0.0
    %429 = vmatpush.msra.mxu0 0.0
    %430 = vmatpush.msra.mxu0 %v287
    %431 = vmatpush.msra.mxu0 %v228
    %432 = vmatpush.msra.mxu0 %v222
    %433 = vmatpush.msra.mxu0 %v216
    %434 = vmatmul.f32.gmra.mxu0 %v253
    %v435 = vpop.f32.mrf.mxu0
    %v436 = vadd.f32 %v242, %v435
    %437 = vmatmul.f32.gmra.mxu0 %v256
    %v438 = vpop.f32.mrf.mxu0
    %v439 = vadd.f32 %v242, %v438
    %440 = vmatmul.f32.gmra.mxu0 %v259
    %v441 = vpop.f32.mrf.mxu0
    %v442 = vadd.f32 %v242, %v441
    %443 = vmatmul.f32.gmra.mxu0 %v262
    %v444 = vpop.f32.mrf.mxu0
    %v445 = vadd.f32 %v242, %v444
    %446 = vmatmul.f32.gmra.mxu0 %v265
    %v447 = vpop.f32.mrf.mxu0
    %v448 = vadd.f32 %v242, %v447
    %449 = vmatmul.f32.gmra.mxu0 %v268
    %v450 = vpop.f32.mrf.mxu0
    %v451 = vadd.f32 %v242, %v450
    %452 = vmatmul.f32.gmra.mxu0 %v271
    %v453 = vpop.f32.mrf.mxu0
    %v454 = vadd.f32 %v242, %v453
    %455 = vmatmul.f32.gmra.mxu0 %v274
    %v456 = vpop.f32.mrf.mxu0
    %v457 = vadd.f32 %v242, %v456
    %458 = vdwg.mxu0
    %459 = vmatpush.msra.mxu0 0.0
    %460 = vmatpush.msra.mxu0 0.0
    %461 = vmatpush.msra.mxu0 0.0
    %462 = vmatpush.msra.mxu0 0.0
    %463 = vmatpush.msra.mxu0 0.0
    %464 = vmatpush.msra.mxu0 0.0
    %465 = vmatpush.msra.mxu0 0.0
    %466 = vmatpush.msra.mxu0 0.0
    %467 = vmatpush.msra.mxu0 0.0
    %468 = vmatpush.msra.mxu0 0.0
    %469 = vmatpush.msra.mxu0 0.0
    %470 = vmatpush.msra.mxu0 0.0
    %471 = vmatpush.msra.mxu0 %v290
    %472 = vmatpush.msra.mxu0 %v229
    %473 = vmatpush.msra.mxu0 %v223
    %474 = vmatpush.msra.mxu0 %v217
    %475 = vmatmul.f32.gmra.mxu0 %v253
    %v476 = vpop.f32.mrf.mxu0
    %v477 = vadd.f32 %v243, %v476
    %478 = vmatmul.f32.gmra.mxu0 %v256
    %v479 = vpop.f32.mrf.mxu0
    %v480 = vadd.f32 %v243, %v479
    %481 = vmatmul.f32.gmra.mxu0 %v259
    %v482 = vpop.f32.mrf.mxu0
    %v483 = vadd.f32 %v243, %v482
    %484 = vmatmul.f32.gmra.mxu0 %v262
    %v485 = vpop.f32.mrf.mxu0
    %v486 = vadd.f32 %v243, %v485
    %487 = vmatmul.f32.gmra.mxu0 %v265
    %v488 = vpop.f32.mrf.mxu0
    %v489 = vadd.f32 %v243, %v488
    %490 = vmatmul.f32.gmra.mxu0 %v268
    %v491 = vpop.f32.mrf.mxu0
    %v492 = vadd.f32 %v243, %v491
    %493 = vmatmul.f32.gmra.mxu0 %v271
    %v494 = vpop.f32.mrf.mxu0
    %v495 = vadd.f32 %v243, %v494
    %496 = vmatmul.f32.gmra.mxu0 %v274
    %v497 = vpop.f32.mrf.mxu0
    %v498 = vadd.f32 %v243, %v497
    %499 = vdwg.mxu0
    %500 = vmatpush.msra.mxu0 0.0
    %501 = vmatpush.msra.mxu0 0.0
    %502 = vmatpush.msra.mxu0 0.0
    %503 = vmatpush.msra.mxu0 0.0
    %504 = vmatpush.msra.mxu0 0.0
    %505 = vmatpush.msra.mxu0 0.0
    %506 = vmatpush.msra.mxu0 0.0
    %507 = vmatpush.msra.mxu0 0.0
    %508 = vmatpush.msra.mxu0 0.0
    %509 = vmatpush.msra.mxu0 0.0
    %510 = vmatpush.msra.mxu0 0.0
    %511 = vmatpush.msra.mxu0 0.0
    %512 = vmatpush.msra.mxu0 %v293
    %513 = vmatpush.msra.mxu0 %v230
    %514 = vmatpush.msra.mxu0 %v224
    %515 = vmatpush.msra.mxu0 %v218
    %516 = vmatmul.f32.gmra.mxu0 %v253
    %v517 = vpop.f32.mrf.mxu0
    %v518 = vadd.f32 %v244, %v517
    %519 = vmatmul.f32.gmra.mxu0 %v256
    %v520 = vpop.f32.mrf.mxu0
    %v521 = vadd.f32 %v244, %v520
    %522 = vmatmul.f32.gmra.mxu0 %v259
    %v523 = vpop.f32.mrf.mxu0
    %v524 = vadd.f32 %v244, %v523
    %525 = vmatmul.f32.gmra.mxu0 %v262
    %v526 = vpop.f32.mrf.mxu0
    %v527 = vadd.f32 %v244, %v526
    %528 = vmatmul.f32.gmra.mxu0 %v265
    %v529 = vpop.f32.mrf.mxu0
    %v530 = vadd.f32 %v244, %v529
    %531 = vmatmul.f32.gmra.mxu0 %v268
    %v532 = vpop.f32.mrf.mxu0
    %v533 = vadd.f32 %v244, %v532
    %534 = vmatmul.f32.gmra.mxu0 %v271
    %v535 = vpop.f32.mrf.mxu0
    %v536 = vadd.f32 %v244, %v535
    %537 = vmatmul.f32.gmra.mxu0 %v274
    %v538 = vpop.f32.mrf.mxu0
    %v539 = vadd.f32 %v244, %v538
    %540 = vdwg.mxu0
    %541 = vst [vmem:[#allocation2] sm:$0xff] %v313
    %542 = vst [vmem:[#allocation2 + $0x8] sm:$0xff] %v354
    %543 = vst [vmem:[#allocation2 + $0x10] sm:$0xff] %v395
    %544 = vst [vmem:[#allocation2 + $0x18] sm:$0xff] %v436
    %545 = vst [vmem:[#allocation2 + $0x20] sm:$0xff] %v477
    %546 = vst [vmem:[#allocation2 + $0x28] sm:$0xff] %v518
    %547 = vst [vmem:[#allocation2 + $0x30] sm:$0xff] %v316
    %548 = vst [vmem:[#allocation2 + $0x38] sm:$0xff] %v357
    %549 = vst [vmem:[#allocation2 + $0x40] sm:$0xff] %v398
    %550 = vst [vmem:[#allocation2 + $0x48] sm:$0xff] %v439
    %551 = vst [vmem:[#allocation2 + $0x50] sm:$0xff] %v480
    %552 = vst [vmem:[#allocation2 + $0x58] sm:$0xff] %v521
    %553 = vst [vmem:[#allocation2 + $0x60] sm:$0xff] %v319
    %554 = vst [vmem:[#allocation2 + $0x68] sm:$0xff] %v360
    %555 = vst [vmem:[#allocation2 + $0x70] sm:$0xff] %v401
    %556 = vst [vmem:[#allocation2 + $0x78] sm:$0xff] %v442
    %557 = vst [vmem:[#allocation2 + $0x80] sm:$0xff] %v483
    %558 = vst [vmem:[#allocation2 + $0x88] sm:$0xff] %v524
    %559 = vst [vmem:[#allocation2 + $0x90] sm:$0xff] %v322
    %560 = vst [vmem:[#allocation2 + $0x98] sm:$0xff] %v363
    %561 = vst [vmem:[#allocation2 + $0xa0] sm:$0xff] %v404
    %562 = vst [vmem:[#allocation2 + $0xa8] sm:$0xff] %v445
    %563 = vst [vmem:[#allocation2 + $0xb0] sm:$0xff] %v486
    %564 = vst [vmem:[#allocation2 + $0xb8] sm:$0xff] %v527
    %565 = vst [vmem:[#allocation2 + $0xc0] sm:$0xff] %v325
    %566 = vst [vmem:[#allocation2 + $0xc8] sm:$0xff] %v366
    %567 = vst [vmem:[#allocation2 + $0xd0] sm:$0xff] %v407
    %568 = vst [vmem:[#allocation2 + $0xd8] sm:$0xff] %v448
    %569 = vst [vmem:[#allocation2 + $0xe0] sm:$0xff] %v489
    %570 = vst [vmem:[#allocation2 + $0xe8] sm:$0xff] %v530
    %571 = vst [vmem:[#allocation2 + $0xf0] sm:$0xff] %v328
    %572 = vst [vmem:[#allocation2 + $0xf8] sm:$0xff] %v369
    %573 = vst [vmem:[#allocation2 + $0x100] sm:$0xff] %v410
    %574 = vst [vmem:[#allocation2 + $0x108] sm:$0xff] %v451
    %575 = vst [vmem:[#allocation2 + $0x110] sm:$0xff] %v492
    %576 = vst [vmem:[#allocation2 + $0x118] sm:$0xff] %v533
    %577 = vst [vmem:[#allocation2 + $0x120] sm:$0xff] %v331
    %578 = vst [vmem:[#allocation2 + $0x128] sm:$0xff] %v372
    %579 = vst [vmem:[#allocation2 + $0x130] sm:$0xff] %v413
    %580 = vst [vmem:[#allocation2 + $0x138] sm:$0xff] %v454
    %581 = vst [vmem:[#allocation2 + $0x140] sm:$0xff] %v495
    %582 = vst [vmem:[#allocation2 + $0x148] sm:$0xff] %v536
    %583 = vst [vmem:[#allocation2 + $0x150] sm:$0xff] %v334
    %584 = vst [vmem:[#allocation2 + $0x158] sm:$0xff] %v375
    %585 = vst [vmem:[#allocation2 + $0x160] sm:$0xff] %v416
    %586 = vst [vmem:[#allocation2 + $0x168] sm:$0xff] %v457
    %587 = vst [vmem:[#allocation2 + $0x170] sm:$0xff] %v498
    %588 = vst [vmem:[#allocation2 + $0x178] sm:$0xff] %v539
    %v589 = vld [vmem:[%s4] sm:$0xff]
    %v590 = vld [vmem:[%s4 + $0x8] sm:$0xff]
    %v591 = vld [vmem:[%s4 + $0x10] sm:$0xff]
    %v592 = vld [vmem:[%s4 + $0x18] sm:$0xff]
    %v593 = vld [vmem:[%s4 + $0x20] sm:$0xff]
    %v594 = vld [vmem:[%s4 + $0x28] sm:$0xff]
    %v595 = vld [vmem:[%s4 + $0x30] sm:$0xff]
    %v596 = vld [vmem:[%s4 + $0x38] sm:$0xff]
    %v597 = vld [vmem:[%s4 + $0x40] sm:$0xff]
    %v598 = vld [vmem:[%s4 + $0x48] sm:$0xff]
    %v599 = vld [vmem:[%s4 + $0x50] sm:$0xff]
    %v600 = vld [vmem:[%s4 + $0x58] sm:$0xff]
    %v601 = vld [vmem:[%s5] sm:$0x7]
    %v602 = vld [vmem:[#allocation9] sm:$0xff]
    %v603 = vld [vmem:[#allocation9 + $0x8] sm:$0xff]
    %v604 = vld [vmem:[#allocation9 + $0x10] sm:$0xff]
    %v605 = vld [vmem:[#allocation9 + $0x18] sm:$0xff]
    %v606 = vld [vmem:[#allocation9 + $0x20] sm:$0xff]
    %v607 = vld [vmem:[#allocation9 + $0x28] sm:$0xff]
    %v608 = vld [vmem:[#allocation9 + $0x30] sm:$0xff]
    %v609 = vld [vmem:[#allocation9 + $0x38] sm:$0xff]
    %v610 = vld [vmem:[#allocation9 + $0x40] sm:$0xff]
    %v611 = vld [vmem:[#allocation9 + $0x48] sm:$0xff]
    %v612 = vld [vmem:[#allocation9 + $0x50] sm:$0xff]
    %v613 = vld [vmem:[#allocation9 + $0x58] sm:$0xff]
    %v614 = vld [vmem:[%s7] sm:$0x7]
    %s615 = smul.u32 0, 6
    %s616 = smul.addr %s615, 8
    %s617 = scalar_lea.vmem [#allocation2], %s616
    %v618 = vld [vmem:[%s617] sm:$0xff]
    %v619 = vld [vmem:[%s617 + $0x8] sm:$0xff]
    %v620 = vld [vmem:[%s617 + $0x10] sm:$0xff]
    %s621 = smul.u32 7, 6
    %s622 = smul.addr %s621, 8
    %s623 = scalar_lea.vmem [#allocation2], %s622
    %v624 = vld [vmem:[%s623 + $0x18] sm:$0xff]
    %v625 = vld [vmem:[%s623 + $0x20] sm:$0xff]
    %v626 = vld [vmem:[%s623 + $0x28] sm:$0xff]
    %v628 = vperm.slane %v601, 0
    %v629 = vperm.slane %v601, 1
    %v630 = vperm.slane %v601, 2
    %vm634 = vcmask 261120
    %v636 = vsel %vm634, 0.0, 0
    %638 = vmatpush.msra.mxu0 0.0
    %639 = vmatpush.msra.mxu0 0.0
    %640 = vmatpush.msra.mxu0 0.0
    %641 = vmatpush.msra.mxu0 0.0
    %642 = vmatpush.msra.mxu0 0.0
    %643 = vmatpush.msra.mxu0 0.0
    %644 = vmatpush.msra.mxu0 0.0
    %645 = vmatpush.msra.mxu0 0.0
    %646 = vmatpush.msra.mxu0 0.0
    %647 = vmatpush.msra.mxu0 0.0
    %648 = vmatpush.msra.mxu0 0.0
    %649 = vmatpush.msra.mxu0 0.0
    %650 = vmatpush.msra.mxu0 %v598
    %651 = vmatpush.msra.mxu0 %v595
    %652 = vmatpush.msra.mxu0 %v592
    %653 = vmatpush.msra.mxu0 %v589
    %654 = vmatmul.f32.gmra.mxu0 %v636
    %v655 = vpop.f32.mrf.mxu0
    %v656 = vadd.f32 %v628, %v655
    %657 = vdwg.mxu0
    %658 = vmatpush.msra.mxu0 0.0
    %659 = vmatpush.msra.mxu0 0.0
    %660 = vmatpush.msra.mxu0 0.0
    %661 = vmatpush.msra.mxu0 0.0
    %662 = vmatpush.msra.mxu0 0.0
    %663 = vmatpush.msra.mxu0 0.0
    %664 = vmatpush.msra.mxu0 0.0
    %665 = vmatpush.msra.mxu0 0.0
    %666 = vmatpush.msra.mxu0 0.0
    %667 = vmatpush.msra.mxu0 0.0
    %668 = vmatpush.msra.mxu0 0.0
    %669 = vmatpush.msra.mxu0 0.0
    %670 = vmatpush.msra.mxu0 %v599
    %671 = vmatpush.msra.mxu0 %v596
    %672 = vmatpush.msra.mxu0 %v593
    %673 = vmatpush.msra.mxu0 %v590
    %674 = vmatmul.f32.gmra.mxu0 %v636
    %v675 = vpop.f32.mrf.mxu0
    %v676 = vadd.f32 %v629, %v675
    %677 = vdwg.mxu0
    %678 = vmatpush.msra.mxu0 0.0
    %679 = vmatpush.msra.mxu0 0.0
    %680 = vmatpush.msra.mxu0 0.0
    %681 = vmatpush.msra.mxu0 0.0
    %682 = vmatpush.msra.mxu0 0.0
    %683 = vmatpush.msra.mxu0 0.0
    %684 = vmatpush.msra.mxu0 0.0
    %685 = vmatpush.msra.mxu0 0.0
    %686 = vmatpush.msra.mxu0 0.0
    %687 = vmatpush.msra.mxu0 0.0
    %688 = vmatpush.msra.mxu0 0.0
    %689 = vmatpush.msra.mxu0 0.0
    %690 = vmatpush.msra.mxu0 %v600
    %691 = vmatpush.msra.mxu0 %v597
    %692 = vmatpush.msra.mxu0 %v594
    %693 = vmatpush.msra.mxu0 %v591
    %694 = vmatmul.f32.gmra.mxu0 %v636
    %v695 = vpop.f32.mrf.mxu0
    %v696 = vadd.f32 %v630, %v695
    %697 = vdwg.mxu0
    %v699 = vperm.slane %v614, 0
    %v700 = vperm.slane %v614, 1
    %v701 = vperm.slane %v614, 2
    %705 = vmatpush.msra.mxu0 0.0
    %706 = vmatpush.msra.mxu0 0.0
    %707 = vmatpush.msra.mxu0 0.0
    %708 = vmatpush.msra.mxu0 0.0
    %709 = vmatpush.msra.mxu0 0.0
    %710 = vmatpush.msra.mxu0 0.0
    %711 = vmatpush.msra.mxu0 0.0
    %712 = vmatpush.msra.mxu0 0.0
    %713 = vmatpush.msra.mxu0 0.0
    %714 = vmatpush.msra.mxu0 0.0
    %715 = vmatpush.msra.mxu0 0.0
    %716 = vmatpush.msra.mxu0 0.0
    %717 = vmatpush.msra.mxu0 %v611
    %718 = vmatpush.msra.mxu0 %v608
    %719 = vmatpush.msra.mxu0 %v605
    %720 = vmatpush.msra.mxu0 %v602
    %721 = vmatmul.f32.gmra.mxu0 %v636
    %v722 = vpop.f32.mrf.mxu0
    %v723 = vadd.f32 %v699, %v722
    %724 = vdwg.mxu0
    %725 = vmatpush.msra.mxu0 0.0
    %726 = vmatpush.msra.mxu0 0.0
    %727 = vmatpush.msra.mxu0 0.0
    %728 = vmatpush.msra.mxu0 0.0
    %729 = vmatpush.msra.mxu0 0.0
    %730 = vmatpush.msra.mxu0 0.0
    %731 = vmatpush.msra.mxu0 0.0
    %732 = vmatpush.msra.mxu0 0.0
    %733 = vmatpush.msra.mxu0 0.0
    %734 = vmatpush.msra.mxu0 0.0
    %735 = vmatpush.msra.mxu0 0.0
    %736 = vmatpush.msra.mxu0 0.0
    %737 = vmatpush.msra.mxu0 %v612
    %738 = vmatpush.msra.mxu0 %v609
    %739 = vmatpush.msra.mxu0 %v606
    %740 = vmatpush.msra.mxu0 %v603
    %741 = vmatmul.f32.gmra.mxu0 %v636
    %v742 = vpop.f32.mrf.mxu0
    %v743 = vadd.f32 %v700, %v742
    %744 = vdwg.mxu0
    %745 = vmatpush.msra.mxu0 0.0
    %746 = vmatpush.msra.mxu0 0.0
    %747 = vmatpush.msra.mxu0 0.0
    %748 = vmatpush.msra.mxu0 0.0
    %749 = vmatpush.msra.mxu0 0.0
    %750 = vmatpush.msra.mxu0 0.0
    %751 = vmatpush.msra.mxu0 0.0
    %752 = vmatpush.msra.mxu0 0.0
    %753 = vmatpush.msra.mxu0 0.0
    %754 = vmatpush.msra.mxu0 0.0
    %755 = vmatpush.msra.mxu0 0.0
    %756 = vmatpush.msra.mxu0 0.0
    %757 = vmatpush.msra.mxu0 %v613
    %758 = vmatpush.msra.mxu0 %v610
    %759 = vmatpush.msra.mxu0 %v607
    %760 = vmatpush.msra.mxu0 %v604
    %761 = vmatmul.f32.gmra.mxu0 %v636
    %v762 = vpop.f32.mrf.mxu0
    %v763 = vadd.f32 %v701, %v762
    %764 = vdwg.mxu0
    %v765 = vadd.f32 %v618, %v656
    %v766 = vadd.f32 %v619, %v676
    %v767 = vmul.f32 %v765, 0.5
    %v768 = vmul.f32 %v766, 0.5
    %v769 = vtanh.pop %v767
    %v770 = vtanh.pop %v768
    %v771 = vadd.f32 %v769, 1.0
    %v772 = vadd.f32 %v770, 1.0
    %v773 = vmul.f32 %v771, 0.5
    %v774 = vmul.f32 %v772, 0.5
    %v775 = vmul.f32 %v773, %v696
    %v776 = vadd.f32 %v620, %v775
    %v777 = vtanh.pop %v776
    %v778 = vsub.f32 1.0, %v774
    %v779 = vmul.f32 %v778, %v777
    %v780 = vmul.f32 %v774, 0.0
    %v781 = vadd.f32 %v779, %v780
    %v782 = vadd.f32 %v624, %v723
    %v783 = vadd.f32 %v625, %v743
    %v784 = vmul.f32 %v782, 0.5
    %v785 = vmul.f32 %v783, 0.5
    %v786 = vtanh.pop %v784
    %v787 = vtanh.pop %v785
    %v788 = vadd.f32 %v786, 1.0
    %v789 = vadd.f32 %v787, 1.0
    %v790 = vmul.f32 %v788, 0.5
    %v791 = vmul.f32 %v789, 0.5
    %v792 = vmul.f32 %v790, %v763
    %v793 = vadd.f32 %v626, %v792
    %v794 = vtanh.pop %v793
    %v795 = vsub.f32 1.0, %v791
    %v796 = vmul.f32 %v795, %v794
    %v797 = vmul.f32 %v791, 0.0
    %v798 = vadd.f32 %v796, %v797
    %vm799 = vcmp.gt.s32.totalorder %v154, 0
    %vm800 = vcmp.gt.s32.totalorder %v154, 7
    %v801 = vsel %vm799, 1, 0
    %802 = vset.pattern.permute.xlu0 0
    %803 = vperm.xlu0 %802, %v801
    %v804 = vpop.permute.xlu0 %803
    %vm805 = vcmp.eq.s32.totalorder %v804, 1
    %v806 = vsel %vm805, %v781, 0.0
    %v807 = vsel %vm800, 1, 0
    %808 = vset.pattern.permute.xlu0 0
    %809 = vperm.xlu0 %808, %v807
    %v810 = vpop.permute.xlu0 %809
    %vm811 = vcmp.eq.s32.totalorder %v810, 1
    %v812 = vsel %vm811, %v798, 0.0
    %813 = vst.msk [vmem:[#allocation4] sm:$0xff] %vm634, %v806
    %s814 = scalar_lea.vmem [#allocation5], 56
    %815 = vst.msk [vmem:[%s814] sm:$0xff] %vm634, %v812
    %s816 = smul.u32 1, 6
    %s817 = smul.addr %s816, 8
    %s818 = scalar_lea.vmem [#allocation2], %s817
    %v819 = vld [vmem:[%s818] sm:$0xff]
    %v820 = vld [vmem:[%s818 + $0x8] sm:$0xff]
    %v821 = vld [vmem:[%s818 + $0x10] sm:$0xff]
    %s822 = smul.u32 6, 6
    %s823 = smul.addr %s822, 8
    %s824 = scalar_lea.vmem [#allocation2], %s823
    %v825 = vld [vmem:[%s824 + $0x18] sm:$0xff]
    %v826 = vld [vmem:[%s824 + $0x20] sm:$0xff]
    %v827 = vld [vmem:[%s824 + $0x28] sm:$0xff]
    %v829 = vsel %vm634, %v806, 0
    %831 = vmatpush.msra.mxu0 0.0
    %832 = vmatpush.msra.mxu0 0.0
    %833 = vmatpush.msra.mxu0 0.0
    %834 = vmatpush.msra.mxu0 0.0
    %835 = vmatpush.msra.mxu0 0.0
    %836 = vmatpush.msra.mxu0 0.0
    %837 = vmatpush.msra.mxu0 0.0
    %838 = vmatpush.msra.mxu0 0.0
    %839 = vmatpush.msra.mxu0 0.0
    %840 = vmatpush.msra.mxu0 0.0
    %841 = vmatpush.msra.mxu0 0.0
    %842 = vmatpush.msra.mxu0 0.0
    %843 = vmatpush.msra.mxu0 %v598
    %844 = vmatpush.msra.mxu0 %v595
    %845 = vmatpush.msra.mxu0 %v592
    %846 = vmatpush.msra.mxu0 %v589
    %847 = vmatmul.f32.gmra.mxu0 %v829
    %v848 = vpop.f32.mrf.mxu0
    %v849 = vadd.f32 %v628, %v848
    %850 = vdwg.mxu0
    %851 = vmatpush.msra.mxu0 0.0
    %852 = vmatpush.msra.mxu0 0.0
    %853 = vmatpush.msra.mxu0 0.0
    %854 = vmatpush.msra.mxu0 0.0
    %855 = vmatpush.msra.mxu0 0.0
    %856 = vmatpush.msra.mxu0 0.0
    %857 = vmatpush.msra.mxu0 0.0
    %858 = vmatpush.msra.mxu0 0.0
    %859 = vmatpush.msra.mxu0 0.0
    %860 = vmatpush.msra.mxu0 0.0
    %861 = vmatpush.msra.mxu0 0.0
    %862 = vmatpush.msra.mxu0 0.0
    %863 = vmatpush.msra.mxu0 %v599
    %864 = vmatpush.msra.mxu0 %v596
    %865 = vmatpush.msra.mxu0 %v593
    %866 = vmatpush.msra.mxu0 %v590
    %867 = vmatmul.f32.gmra.mxu0 %v829
    %v868 = vpop.f32.mrf.mxu0
    %v869 = vadd.f32 %v629, %v868
    %870 = vdwg.mxu0
    %871 = vmatpush.msra.mxu0 0.0
    %872 = vmatpush.msra.mxu0 0.0
    %873 = vmatpush.msra.mxu0 0.0
    %874 = vmatpush.msra.mxu0 0.0
    %875 = vmatpush.msra.mxu0 0.0
    %876 = vmatpush.msra.mxu0 0.0
    %877 = vmatpush.msra.mxu0 0.0
    %878 = vmatpush.msra.mxu0 0.0
    %879 = vmatpush.msra.mxu0 0.0
    %880 = vmatpush.msra.mxu0 0.0
    %881 = vmatpush.msra.mxu0 0.0
    %882 = vmatpush.msra.mxu0 0.0
    %883 = vmatpush.msra.mxu0 %v600
    %884 = vmatpush.msra.mxu0 %v597
    %885 = vmatpush.msra.mxu0 %v594
    %886 = vmatpush.msra.mxu0 %v591
    %887 = vmatmul.f32.gmra.mxu0 %v829
    %v888 = vpop.f32.mrf.mxu0
    %v889 = vadd.f32 %v630, %v888
    %890 = vdwg.mxu0
    %v892 = vsel %vm634, %v812, 0
    %894 = vmatpush.msra.mxu0 0.0
    %895 = vmatpush.msra.mxu0 0.0
    %896 = vmatpush.msra.mxu0 0.0
    %897 = vmatpush.msra.mxu0 0.0
    %898 = vmatpush.msra.mxu0 0.0
    %899 = vmatpush.msra.mxu0 0.0
    %900 = vmatpush.msra.mxu0 0.0
    %901 = vmatpush.msra.mxu0 0.0
    %902 = vmatpush.msra.mxu0 0.0
    %903 = vmatpush.msra.mxu0 0.0
    %904 = vmatpush.msra.mxu0 0.0
    %905 = vmatpush.msra.mxu0 0.0
    %906 = vmatpush.msra.mxu0 %v611
    %907 = vmatpush.msra.mxu0 %v608
    %908 = vmatpush.msra.mxu0 %v605
    %909 = vmatpush.msra.mxu0 %v602
    %910 = vmatmul.f32.gmra.mxu0 %v892
    %v911 = vpop.f32.mrf.mxu0
    %v912 = vadd.f32 %v699, %v911
    %913 = vdwg.mxu0
    %914 = vmatpush.msra.mxu0 0.0
    %915 = vmatpush.msra.mxu0 0.0
    %916 = vmatpush.msra.mxu0 0.0
    %917 = vmatpush.msra.mxu0 0.0
    %918 = vmatpush.msra.mxu0 0.0
    %919 = vmatpush.msra.mxu0 0.0
    %920 = vmatpush.msra.mxu0 0.0
    %921 = vmatpush.msra.mxu0 0.0
    %922 = vmatpush.msra.mxu0 0.0
    %923 = vmatpush.msra.mxu0 0.0
    %924 = vmatpush.msra.mxu0 0.0
    %925 = vmatpush.msra.mxu0 0.0
    %926 = vmatpush.msra.mxu0 %v612
    %927 = vmatpush.msra.mxu0 %v609
    %928 = vmatpush.msra.mxu0 %v606
    %929 = vmatpush.msra.mxu0 %v603
    %930 = vmatmul.f32.gmra.mxu0 %v892
    %v931 = vpop.f32.mrf.mxu0
    %v932 = vadd.f32 %v700, %v931
    %933 = vdwg.mxu0
    %934 = vmatpush.msra.mxu0 0.0
    %935 = vmatpush.msra.mxu0 0.0
    %936 = vmatpush.msra.mxu0 0.0
    %937 = vmatpush.msra.mxu0 0.0
    %938 = vmatpush.msra.mxu0 0.0
    %939 = vmatpush.msra.mxu0 0.0
    %940 = vmatpush.msra.mxu0 0.0
    %941 = vmatpush.msra.mxu0 0.0
    %942 = vmatpush.msra.mxu0 0.0
    %943 = vmatpush.msra.mxu0 0.0
    %944 = vmatpush.msra.mxu0 0.0
    %945 = vmatpush.msra.mxu0 0.0
    %946 = vmatpush.msra.mxu0 %v613
    %947 = vmatpush.msra.mxu0 %v610
    %948 = vmatpush.msra.mxu0 %v607
    %949 = vmatpush.msra.mxu0 %v604
    %950 = vmatmul.f32.gmra.mxu0 %v892
    %v951 = vpop.f32.mrf.mxu0
    %v952 = vadd.f32 %v701, %v951
    %953 = vdwg.mxu0
    %v954 = vadd.f32 %v819, %v849
    %v955 = vadd.f32 %v820, %v869
    %v956 = vmul.f32 %v954, 0.5
    %v957 = vmul.f32 %v955, 0.5
    %v958 = vtanh.pop %v956
    %v959 = vtanh.pop %v957
    %v960 = vadd.f32 %v958, 1.0
    %v961 = vadd.f32 %v959, 1.0
    %v962 = vmul.f32 %v960, 0.5
    %v963 = vmul.f32 %v961, 0.5
    %v964 = vmul.f32 %v962, %v889
    %v965 = vadd.f32 %v821, %v964
    %v966 = vtanh.pop %v965
    %v967 = vsub.f32 1.0, %v963
    %v968 = vmul.f32 %v967, %v966
    %v969 = vmul.f32 %v963, %v806
    %v970 = vadd.f32 %v968, %v969
    %v971 = vadd.f32 %v825, %v912
    %v972 = vadd.f32 %v826, %v932
    %v973 = vmul.f32 %v971, 0.5
    %v974 = vmul.f32 %v972, 0.5
    %v975 = vtanh.pop %v973
    %v976 = vtanh.pop %v974
    %v977 = vadd.f32 %v975, 1.0
    %v978 = vadd.f32 %v976, 1.0
    %v979 = vmul.f32 %v977, 0.5
    %v980 = vmul.f32 %v978, 0.5
    %v981 = vmul.f32 %v979, %v952
    %v982 = vadd.f32 %v827, %v981
    %v983 = vtanh.pop %v982
    %v984 = vsub.f32 1.0, %v980
    %v985 = vmul.f32 %v984, %v983
    %v986 = vmul.f32 %v980, %v812
    %v987 = vadd.f32 %v985, %v986
    %vm988 = vcmp.gt.s32.totalorder %v154, 1
    %vm989 = vcmp.gt.s32.totalorder %v154, 6
    %v990 = vsel %vm988, 1, 0
    %991 = vset.pattern.permute.xlu0 0
    %992 = vperm.xlu0 %991, %v990
    %v993 = vpop.permute.xlu0 %992
    %vm994 = vcmp.eq.s32.totalorder %v993, 1
    %v995 = vsel %vm994, %v970, %v806
    %v996 = vsel %vm989, 1, 0
    %997 = vset.pattern.permute.xlu0 0
    %998 = vperm.xlu0 %997, %v996
    %v999 = vpop.permute.xlu0 %998
    %vm1000 = vcmp.eq.s32.totalorder %v999, 1
    %v1001 = vsel %vm1000, %v987, %v812
    %v1002 = vsel %vm994, %v970, 0.0
    %s1003 = scalar_lea.vmem [#allocation4], 8
    %1004 = vst.msk [vmem:[%s1003] sm:$0xff] %vm634, %v1002
    %v1005 = vsel %vm1000, %v987, 0.0
    %s1006 = scalar_lea.vmem [#allocation5], 48
    %1007 = vst.msk [vmem:[%s1006] sm:$0xff] %vm634, %v1005
    %s1008 = smul.u32 2, 6
    %s1009 = smul.addr %s1008, 8
    %s1010 = scalar_lea.vmem [#allocation2], %s1009
    %v1011 = vld [vmem:[%s1010] sm:$0xff]
    %v1012 = vld [vmem:[%s1010 + $0x8] sm:$0xff]
    %v1013 = vld [vmem:[%s1010 + $0x10] sm:$0xff]
    %s1014 = smul.u32 5, 6
    %s1015 = smul.addr %s1014, 8
    %s1016 = scalar_lea.vmem [#allocation2], %s1015
    %v1017 = vld [vmem:[%s1016 + $0x18] sm:$0xff]
    %v1018 = vld [vmem:[%s1016 + $0x20] sm:$0xff]
    %v1019 = vld [vmem:[%s1016 + $0x28] sm:$0xff]
    %v1021 = vsel %vm634, %v995, 0
    %1023 = vmatpush.msra.mxu0 0.0
    %1024 = vmatpush.msra.mxu0 0.0
    %1025 = vmatpush.msra.mxu0 0.0
    %1026 = vmatpush.msra.mxu0 0.0
    %1027 = vmatpush.msra.mxu0 0.0
    %1028 = vmatpush.msra.mxu0 0.0
    %1029 = vmatpush.msra.mxu0 0.0
    %1030 = vmatpush.msra.mxu0 0.0
    %1031 = vmatpush.msra.mxu0 0.0
    %1032 = vmatpush.msra.mxu0 0.0
    %1033 = vmatpush.msra.mxu0 0.0
    %1034 = vmatpush.msra.mxu0 0.0
    %1035 = vmatpush.msra.mxu0 %v598
    %1036 = vmatpush.msra.mxu0 %v595
    %1037 = vmatpush.msra.mxu0 %v592
    %1038 = vmatpush.msra.mxu0 %v589
    %1039 = vmatmul.f32.gmra.mxu0 %v1021
    %v1040 = vpop.f32.mrf.mxu0
    %v1041 = vadd.f32 %v628, %v1040
    %1042 = vdwg.mxu0
    %1043 = vmatpush.msra.mxu0 0.0
    %1044 = vmatpush.msra.mxu0 0.0
    %1045 = vmatpush.msra.mxu0 0.0
    %1046 = vmatpush.msra.mxu0 0.0
    %1047 = vmatpush.msra.mxu0 0.0
    %1048 = vmatpush.msra.mxu0 0.0
    %1049 = vmatpush.msra.mxu0 0.0
    %1050 = vmatpush.msra.mxu0 0.0
    %1051 = vmatpush.msra.mxu0 0.0
    %1052 = vmatpush.msra.mxu0 0.0
    %1053 = vmatpush.msra.mxu0 0.0
    %1054 = vmatpush.msra.mxu0 0.0
    %1055 = vmatpush.msra.mxu0 %v599
    %1056 = vmatpush.msra.mxu0 %v596
    %1057 = vmatpush.msra.mxu0 %v593
    %1058 = vmatpush.msra.mxu0 %v590
    %1059 = vmatmul.f32.gmra.mxu0 %v1021
    %v1060 = vpop.f32.mrf.mxu0
    %v1061 = vadd.f32 %v629, %v1060
    %1062 = vdwg.mxu0
    %1063 = vmatpush.msra.mxu0 0.0
    %1064 = vmatpush.msra.mxu0 0.0
    %1065 = vmatpush.msra.mxu0 0.0
    %1066 = vmatpush.msra.mxu0 0.0
    %1067 = vmatpush.msra.mxu0 0.0
    %1068 = vmatpush.msra.mxu0 0.0
    %1069 = vmatpush.msra.mxu0 0.0
    %1070 = vmatpush.msra.mxu0 0.0
    %1071 = vmatpush.msra.mxu0 0.0
    %1072 = vmatpush.msra.mxu0 0.0
    %1073 = vmatpush.msra.mxu0 0.0
    %1074 = vmatpush.msra.mxu0 0.0
    %1075 = vmatpush.msra.mxu0 %v600
    %1076 = vmatpush.msra.mxu0 %v597
    %1077 = vmatpush.msra.mxu0 %v594
    %1078 = vmatpush.msra.mxu0 %v591
    %1079 = vmatmul.f32.gmra.mxu0 %v1021
    %v1080 = vpop.f32.mrf.mxu0
    %v1081 = vadd.f32 %v630, %v1080
    %1082 = vdwg.mxu0
    %v1084 = vsel %vm634, %v1001, 0
    %1086 = vmatpush.msra.mxu0 0.0
    %1087 = vmatpush.msra.mxu0 0.0
    %1088 = vmatpush.msra.mxu0 0.0
    %1089 = vmatpush.msra.mxu0 0.0
    %1090 = vmatpush.msra.mxu0 0.0
    %1091 = vmatpush.msra.mxu0 0.0
    %1092 = vmatpush.msra.mxu0 0.0
    %1093 = vmatpush.msra.mxu0 0.0
    %1094 = vmatpush.msra.mxu0 0.0
    %1095 = vmatpush.msra.mxu0 0.0
    %1096 = vmatpush.msra.mxu0 0.0
    %1097 = vmatpush.msra.mxu0 0.0
    %1098 = vmatpush.msra.mxu0 %v611
    %1099 = vmatpush.msra.mxu0 %v608
    %1100 = vmatpush.msra.mxu0 %v605
    %1101 = vmatpush.msra.mxu0 %v602
    %1102 = vmatmul.f32.gmra.mxu0 %v1084
    %v1103 = vpop.f32.mrf.mxu0
    %v1104 = vadd.f32 %v699, %v1103
    %1105 = vdwg.mxu0
    %1106 = vmatpush.msra.mxu0 0.0
    %1107 = vmatpush.msra.mxu0 0.0
    %1108 = vmatpush.msra.mxu0 0.0
    %1109 = vmatpush.msra.mxu0 0.0
    %1110 = vmatpush.msra.mxu0 0.0
    %1111 = vmatpush.msra.mxu0 0.0
    %1112 = vmatpush.msra.mxu0 0.0
    %1113 = vmatpush.msra.mxu0 0.0
    %1114 = vmatpush.msra.mxu0 0.0
    %1115 = vmatpush.msra.mxu0 0.0
    %1116 = vmatpush.msra.mxu0 0.0
    %1117 = vmatpush.msra.mxu0 0.0
    %1118 = vmatpush.msra.mxu0 %v612
    %1119 = vmatpush.msra.mxu0 %v609
    %1120 = vmatpush.msra.mxu0 %v606
    %1121 = vmatpush.msra.mxu0 %v603
    %1122 = vmatmul.f32.gmra.mxu0 %v1084
    %v1123 = vpop.f32.mrf.mxu0
    %v1124 = vadd.f32 %v700, %v1123
    %1125 = vdwg.mxu0
    %1126 = vmatpush.msra.mxu0 0.0
    %1127 = vmatpush.msra.mxu0 0.0
    %1128 = vmatpush.msra.mxu0 0.0
    %1129 = vmatpush.msra.mxu0 0.0
    %1130 = vmatpush.msra.mxu0 0.0
    %1131 = vmatpush.msra.mxu0 0.0
    %1132 = vmatpush.msra.mxu0 0.0
    %1133 = vmatpush.msra.mxu0 0.0
    %1134 = vmatpush.msra.mxu0 0.0
    %1135 = vmatpush.msra.mxu0 0.0
    %1136 = vmatpush.msra.mxu0 0.0
    %1137 = vmatpush.msra.mxu0 0.0
    %1138 = vmatpush.msra.mxu0 %v613
    %1139 = vmatpush.msra.mxu0 %v610
    %1140 = vmatpush.msra.mxu0 %v607
    %1141 = vmatpush.msra.mxu0 %v604
    %1142 = vmatmul.f32.gmra.mxu0 %v1084
    %v1143 = vpop.f32.mrf.mxu0
    %v1144 = vadd.f32 %v701, %v1143
    %1145 = vdwg.mxu0
    %v1146 = vadd.f32 %v1011, %v1041
    %v1147 = vadd.f32 %v1012, %v1061
    %v1148 = vmul.f32 %v1146, 0.5
    %v1149 = vmul.f32 %v1147, 0.5
    %v1150 = vtanh.pop %v1148
    %v1151 = vtanh.pop %v1149
    %v1152 = vadd.f32 %v1150, 1.0
    %v1153 = vadd.f32 %v1151, 1.0
    %v1154 = vmul.f32 %v1152, 0.5
    %v1155 = vmul.f32 %v1153, 0.5
    %v1156 = vmul.f32 %v1154, %v1081
    %v1157 = vadd.f32 %v1013, %v1156
    %v1158 = vtanh.pop %v1157
    %v1159 = vsub.f32 1.0, %v1155
    %v1160 = vmul.f32 %v1159, %v1158
    %v1161 = vmul.f32 %v1155, %v995
    %v1162 = vadd.f32 %v1160, %v1161
    %v1163 = vadd.f32 %v1017, %v1104
    %v1164 = vadd.f32 %v1018, %v1124
    %v1165 = vmul.f32 %v1163, 0.5
    %v1166 = vmul.f32 %v1164, 0.5
    %v1167 = vtanh.pop %v1165
    %v1168 = vtanh.pop %v1166
    %v1169 = vadd.f32 %v1167, 1.0
    %v1170 = vadd.f32 %v1168, 1.0
    %v1171 = vmul.f32 %v1169, 0.5
    %v1172 = vmul.f32 %v1170, 0.5
    %v1173 = vmul.f32 %v1171, %v1144
    %v1174 = vadd.f32 %v1019, %v1173
    %v1175 = vtanh.pop %v1174
    %v1176 = vsub.f32 1.0, %v1172
    %v1177 = vmul.f32 %v1176, %v1175
    %v1178 = vmul.f32 %v1172, %v1001
    %v1179 = vadd.f32 %v1177, %v1178
    %vm1180 = vcmp.gt.s32.totalorder %v154, 2
    %vm1181 = vcmp.gt.s32.totalorder %v154, 5
    %v1182 = vsel %vm1180, 1, 0
    %1183 = vset.pattern.permute.xlu0 0
    %1184 = vperm.xlu0 %1183, %v1182
    %v1185 = vpop.permute.xlu0 %1184
    %vm1186 = vcmp.eq.s32.totalorder %v1185, 1
    %v1187 = vsel %vm1186, %v1162, %v995
    %v1188 = vsel %vm1181, 1, 0
    %1189 = vset.pattern.permute.xlu0 0
    %1190 = vperm.xlu0 %1189, %v1188
    %v1191 = vpop.permute.xlu0 %1190
    %vm1192 = vcmp.eq.s32.totalorder %v1191, 1
    %v1193 = vsel %vm1192, %v1179, %v1001
    %v1194 = vsel %vm1186, %v1162, 0.0
    %s1195 = scalar_lea.vmem [#allocation4], 16
    %1196 = vst.msk [vmem:[%s1195] sm:$0xff] %vm634, %v1194
    %v1197 = vsel %vm1192, %v1179, 0.0
    %s1198 = scalar_lea.vmem [#allocation5], 40
    %1199 = vst.msk [vmem:[%s1198] sm:$0xff] %vm634, %v1197
    %s1200 = smul.u32 3, 6
    %s1201 = smul.addr %s1200, 8
    %s1202 = scalar_lea.vmem [#allocation2], %s1201
    %v1203 = vld [vmem:[%s1202] sm:$0xff]
    %v1204 = vld [vmem:[%s1202 + $0x8] sm:$0xff]
    %v1205 = vld [vmem:[%s1202 + $0x10] sm:$0xff]
    %s1206 = smul.u32 4, 6
    %s1207 = smul.addr %s1206, 8
    %s1208 = scalar_lea.vmem [#allocation2], %s1207
    %v1209 = vld [vmem:[%s1208 + $0x18] sm:$0xff]
    %v1210 = vld [vmem:[%s1208 + $0x20] sm:$0xff]
    %v1211 = vld [vmem:[%s1208 + $0x28] sm:$0xff]
    %v1213 = vsel %vm634, %v1187, 0
    %1215 = vmatpush.msra.mxu0 0.0
    %1216 = vmatpush.msra.mxu0 0.0
    %1217 = vmatpush.msra.mxu0 0.0
    %1218 = vmatpush.msra.mxu0 0.0
    %1219 = vmatpush.msra.mxu0 0.0
    %1220 = vmatpush.msra.mxu0 0.0
    %1221 = vmatpush.msra.mxu0 0.0
    %1222 = vmatpush.msra.mxu0 0.0
    %1223 = vmatpush.msra.mxu0 0.0
    %1224 = vmatpush.msra.mxu0 0.0
    %1225 = vmatpush.msra.mxu0 0.0
    %1226 = vmatpush.msra.mxu0 0.0
    %1227 = vmatpush.msra.mxu0 %v598
    %1228 = vmatpush.msra.mxu0 %v595
    %1229 = vmatpush.msra.mxu0 %v592
    %1230 = vmatpush.msra.mxu0 %v589
    %1231 = vmatmul.f32.gmra.mxu0 %v1213
    %v1232 = vpop.f32.mrf.mxu0
    %v1233 = vadd.f32 %v628, %v1232
    %1234 = vdwg.mxu0
    %1235 = vmatpush.msra.mxu0 0.0
    %1236 = vmatpush.msra.mxu0 0.0
    %1237 = vmatpush.msra.mxu0 0.0
    %1238 = vmatpush.msra.mxu0 0.0
    %1239 = vmatpush.msra.mxu0 0.0
    %1240 = vmatpush.msra.mxu0 0.0
    %1241 = vmatpush.msra.mxu0 0.0
    %1242 = vmatpush.msra.mxu0 0.0
    %1243 = vmatpush.msra.mxu0 0.0
    %1244 = vmatpush.msra.mxu0 0.0
    %1245 = vmatpush.msra.mxu0 0.0
    %1246 = vmatpush.msra.mxu0 0.0
    %1247 = vmatpush.msra.mxu0 %v599
    %1248 = vmatpush.msra.mxu0 %v596
    %1249 = vmatpush.msra.mxu0 %v593
    %1250 = vmatpush.msra.mxu0 %v590
    %1251 = vmatmul.f32.gmra.mxu0 %v1213
    %v1252 = vpop.f32.mrf.mxu0
    %v1253 = vadd.f32 %v629, %v1252
    %1254 = vdwg.mxu0
    %1255 = vmatpush.msra.mxu0 0.0
    %1256 = vmatpush.msra.mxu0 0.0
    %1257 = vmatpush.msra.mxu0 0.0
    %1258 = vmatpush.msra.mxu0 0.0
    %1259 = vmatpush.msra.mxu0 0.0
    %1260 = vmatpush.msra.mxu0 0.0
    %1261 = vmatpush.msra.mxu0 0.0
    %1262 = vmatpush.msra.mxu0 0.0
    %1263 = vmatpush.msra.mxu0 0.0
    %1264 = vmatpush.msra.mxu0 0.0
    %1265 = vmatpush.msra.mxu0 0.0
    %1266 = vmatpush.msra.mxu0 0.0
    %1267 = vmatpush.msra.mxu0 %v600
    %1268 = vmatpush.msra.mxu0 %v597
    %1269 = vmatpush.msra.mxu0 %v594
    %1270 = vmatpush.msra.mxu0 %v591
    %1271 = vmatmul.f32.gmra.mxu0 %v1213
    %v1272 = vpop.f32.mrf.mxu0
    %v1273 = vadd.f32 %v630, %v1272
    %1274 = vdwg.mxu0
    %v1276 = vsel %vm634, %v1193, 0
    %1278 = vmatpush.msra.mxu0 0.0
    %1279 = vmatpush.msra.mxu0 0.0
    %1280 = vmatpush.msra.mxu0 0.0
    %1281 = vmatpush.msra.mxu0 0.0
    %1282 = vmatpush.msra.mxu0 0.0
    %1283 = vmatpush.msra.mxu0 0.0
    %1284 = vmatpush.msra.mxu0 0.0
    %1285 = vmatpush.msra.mxu0 0.0
    %1286 = vmatpush.msra.mxu0 0.0
    %1287 = vmatpush.msra.mxu0 0.0
    %1288 = vmatpush.msra.mxu0 0.0
    %1289 = vmatpush.msra.mxu0 0.0
    %1290 = vmatpush.msra.mxu0 %v611
    %1291 = vmatpush.msra.mxu0 %v608
    %1292 = vmatpush.msra.mxu0 %v605
    %1293 = vmatpush.msra.mxu0 %v602
    %1294 = vmatmul.f32.gmra.mxu0 %v1276
    %v1295 = vpop.f32.mrf.mxu0
    %v1296 = vadd.f32 %v699, %v1295
    %1297 = vdwg.mxu0
    %1298 = vmatpush.msra.mxu0 0.0
    %1299 = vmatpush.msra.mxu0 0.0
    %1300 = vmatpush.msra.mxu0 0.0
    %1301 = vmatpush.msra.mxu0 0.0
    %1302 = vmatpush.msra.mxu0 0.0
    %1303 = vmatpush.msra.mxu0 0.0
    %1304 = vmatpush.msra.mxu0 0.0
    %1305 = vmatpush.msra.mxu0 0.0
    %1306 = vmatpush.msra.mxu0 0.0
    %1307 = vmatpush.msra.mxu0 0.0
    %1308 = vmatpush.msra.mxu0 0.0
    %1309 = vmatpush.msra.mxu0 0.0
    %1310 = vmatpush.msra.mxu0 %v612
    %1311 = vmatpush.msra.mxu0 %v609
    %1312 = vmatpush.msra.mxu0 %v606
    %1313 = vmatpush.msra.mxu0 %v603
    %1314 = vmatmul.f32.gmra.mxu0 %v1276
    %v1315 = vpop.f32.mrf.mxu0
    %v1316 = vadd.f32 %v700, %v1315
    %1317 = vdwg.mxu0
    %1318 = vmatpush.msra.mxu0 0.0
    %1319 = vmatpush.msra.mxu0 0.0
    %1320 = vmatpush.msra.mxu0 0.0
    %1321 = vmatpush.msra.mxu0 0.0
    %1322 = vmatpush.msra.mxu0 0.0
    %1323 = vmatpush.msra.mxu0 0.0
    %1324 = vmatpush.msra.mxu0 0.0
    %1325 = vmatpush.msra.mxu0 0.0
    %1326 = vmatpush.msra.mxu0 0.0
    %1327 = vmatpush.msra.mxu0 0.0
    %1328 = vmatpush.msra.mxu0 0.0
    %1329 = vmatpush.msra.mxu0 0.0
    %1330 = vmatpush.msra.mxu0 %v613
    %1331 = vmatpush.msra.mxu0 %v610
    %1332 = vmatpush.msra.mxu0 %v607
    %1333 = vmatpush.msra.mxu0 %v604
    %1334 = vmatmul.f32.gmra.mxu0 %v1276
    %v1335 = vpop.f32.mrf.mxu0
    %v1336 = vadd.f32 %v701, %v1335
    %1337 = vdwg.mxu0
    %v1338 = vadd.f32 %v1203, %v1233
    %v1339 = vadd.f32 %v1204, %v1253
    %v1340 = vmul.f32 %v1338, 0.5
    %v1341 = vmul.f32 %v1339, 0.5
    %v1342 = vtanh.pop %v1340
    %v1343 = vtanh.pop %v1341
    %v1344 = vadd.f32 %v1342, 1.0
    %v1345 = vadd.f32 %v1343, 1.0
    %v1346 = vmul.f32 %v1344, 0.5
    %v1347 = vmul.f32 %v1345, 0.5
    %v1348 = vmul.f32 %v1346, %v1273
    %v1349 = vadd.f32 %v1205, %v1348
    %v1350 = vtanh.pop %v1349
    %v1351 = vsub.f32 1.0, %v1347
    %v1352 = vmul.f32 %v1351, %v1350
    %v1353 = vmul.f32 %v1347, %v1187
    %v1354 = vadd.f32 %v1352, %v1353
    %v1355 = vadd.f32 %v1209, %v1296
    %v1356 = vadd.f32 %v1210, %v1316
    %v1357 = vmul.f32 %v1355, 0.5
    %v1358 = vmul.f32 %v1356, 0.5
    %v1359 = vtanh.pop %v1357
    %v1360 = vtanh.pop %v1358
    %v1361 = vadd.f32 %v1359, 1.0
    %v1362 = vadd.f32 %v1360, 1.0
    %v1363 = vmul.f32 %v1361, 0.5
    %v1364 = vmul.f32 %v1362, 0.5
    %v1365 = vmul.f32 %v1363, %v1336
    %v1366 = vadd.f32 %v1211, %v1365
    %v1367 = vtanh.pop %v1366
    %v1368 = vsub.f32 1.0, %v1364
    %v1369 = vmul.f32 %v1368, %v1367
    %v1370 = vmul.f32 %v1364, %v1193
    %v1371 = vadd.f32 %v1369, %v1370
    %vm1372 = vcmp.gt.s32.totalorder %v154, 3
    %vm1373 = vcmp.gt.s32.totalorder %v154, 4
    %v1374 = vsel %vm1372, 1, 0
    %1375 = vset.pattern.permute.xlu0 0
    %1376 = vperm.xlu0 %1375, %v1374
    %v1377 = vpop.permute.xlu0 %1376
    %vm1378 = vcmp.eq.s32.totalorder %v1377, 1
    %v1379 = vsel %vm1378, %v1354, %v1187
    %v1380 = vsel %vm1373, 1, 0
    %1381 = vset.pattern.permute.xlu0 0
    %1382 = vperm.xlu0 %1381, %v1380
    %v1383 = vpop.permute.xlu0 %1382
    %vm1384 = vcmp.eq.s32.totalorder %v1383, 1
    %v1385 = vsel %vm1384, %v1371, %v1193
    %v1386 = vsel %vm1378, %v1354, 0.0
    %s1387 = scalar_lea.vmem [#allocation4], 24
    %1388 = vst.msk [vmem:[%s1387] sm:$0xff] %vm634, %v1386
    %v1389 = vsel %vm1384, %v1371, 0.0
    %s1390 = scalar_lea.vmem [#allocation5], 32
    %1391 = vst.msk [vmem:[%s1390] sm:$0xff] %vm634, %v1389
    %v1392 = vld [vmem:[%s1208] sm:$0xff]
    %v1393 = vld [vmem:[%s1208 + $0x8] sm:$0xff]
    %v1394 = vld [vmem:[%s1208 + $0x10] sm:$0xff]
    %v1395 = vld [vmem:[%s1202 + $0x18] sm:$0xff]
    %v1396 = vld [vmem:[%s1202 + $0x20] sm:$0xff]
    %v1397 = vld [vmem:[%s1202 + $0x28] sm:$0xff]
    %v1399 = vsel %vm634, %v1379, 0
    %1401 = vmatpush.msra.mxu0 0.0
    %1402 = vmatpush.msra.mxu0 0.0
    %1403 = vmatpush.msra.mxu0 0.0
    %1404 = vmatpush.msra.mxu0 0.0
    %1405 = vmatpush.msra.mxu0 0.0
    %1406 = vmatpush.msra.mxu0 0.0
    %1407 = vmatpush.msra.mxu0 0.0
    %1408 = vmatpush.msra.mxu0 0.0
    %1409 = vmatpush.msra.mxu0 0.0
    %1410 = vmatpush.msra.mxu0 0.0
    %1411 = vmatpush.msra.mxu0 0.0
    %1412 = vmatpush.msra.mxu0 0.0
    %1413 = vmatpush.msra.mxu0 %v598
    %1414 = vmatpush.msra.mxu0 %v595
    %1415 = vmatpush.msra.mxu0 %v592
    %1416 = vmatpush.msra.mxu0 %v589
    %1417 = vmatmul.f32.gmra.mxu0 %v1399
    %v1418 = vpop.f32.mrf.mxu0
    %v1419 = vadd.f32 %v628, %v1418
    %1420 = vdwg.mxu0
    %1421 = vmatpush.msra.mxu0 0.0
    %1422 = vmatpush.msra.mxu0 0.0
    %1423 = vmatpush.msra.mxu0 0.0
    %1424 = vmatpush.msra.mxu0 0.0
    %1425 = vmatpush.msra.mxu0 0.0
    %1426 = vmatpush.msra.mxu0 0.0
    %1427 = vmatpush.msra.mxu0 0.0
    %1428 = vmatpush.msra.mxu0 0.0
    %1429 = vmatpush.msra.mxu0 0.0
    %1430 = vmatpush.msra.mxu0 0.0
    %1431 = vmatpush.msra.mxu0 0.0
    %1432 = vmatpush.msra.mxu0 0.0
    %1433 = vmatpush.msra.mxu0 %v599
    %1434 = vmatpush.msra.mxu0 %v596
    %1435 = vmatpush.msra.mxu0 %v593
    %1436 = vmatpush.msra.mxu0 %v590
    %1437 = vmatmul.f32.gmra.mxu0 %v1399
    %v1438 = vpop.f32.mrf.mxu0
    %v1439 = vadd.f32 %v629, %v1438
    %1440 = vdwg.mxu0
    %1441 = vmatpush.msra.mxu0 0.0
    %1442 = vmatpush.msra.mxu0 0.0
    %1443 = vmatpush.msra.mxu0 0.0
    %1444 = vmatpush.msra.mxu0 0.0
    %1445 = vmatpush.msra.mxu0 0.0
    %1446 = vmatpush.msra.mxu0 0.0
    %1447 = vmatpush.msra.mxu0 0.0
    %1448 = vmatpush.msra.mxu0 0.0
    %1449 = vmatpush.msra.mxu0 0.0
    %1450 = vmatpush.msra.mxu0 0.0
    %1451 = vmatpush.msra.mxu0 0.0
    %1452 = vmatpush.msra.mxu0 0.0
    %1453 = vmatpush.msra.mxu0 %v600
    %1454 = vmatpush.msra.mxu0 %v597
    %1455 = vmatpush.msra.mxu0 %v594
    %1456 = vmatpush.msra.mxu0 %v591
    %1457 = vmatmul.f32.gmra.mxu0 %v1399
    %v1458 = vpop.f32.mrf.mxu0
    %v1459 = vadd.f32 %v630, %v1458
    %1460 = vdwg.mxu0
    %v1462 = vsel %vm634, %v1385, 0
    %1464 = vmatpush.msra.mxu0 0.0
    %1465 = vmatpush.msra.mxu0 0.0
    %1466 = vmatpush.msra.mxu0 0.0
    %1467 = vmatpush.msra.mxu0 0.0
    %1468 = vmatpush.msra.mxu0 0.0
    %1469 = vmatpush.msra.mxu0 0.0
    %1470 = vmatpush.msra.mxu0 0.0
    %1471 = vmatpush.msra.mxu0 0.0
    %1472 = vmatpush.msra.mxu0 0.0
    %1473 = vmatpush.msra.mxu0 0.0
    %1474 = vmatpush.msra.mxu0 0.0
    %1475 = vmatpush.msra.mxu0 0.0
    %1476 = vmatpush.msra.mxu0 %v611
    %1477 = vmatpush.msra.mxu0 %v608
    %1478 = vmatpush.msra.mxu0 %v605
    %1479 = vmatpush.msra.mxu0 %v602
    %1480 = vmatmul.f32.gmra.mxu0 %v1462
    %v1481 = vpop.f32.mrf.mxu0
    %v1482 = vadd.f32 %v699, %v1481
    %1483 = vdwg.mxu0
    %1484 = vmatpush.msra.mxu0 0.0
    %1485 = vmatpush.msra.mxu0 0.0
    %1486 = vmatpush.msra.mxu0 0.0
    %1487 = vmatpush.msra.mxu0 0.0
    %1488 = vmatpush.msra.mxu0 0.0
    %1489 = vmatpush.msra.mxu0 0.0
    %1490 = vmatpush.msra.mxu0 0.0
    %1491 = vmatpush.msra.mxu0 0.0
    %1492 = vmatpush.msra.mxu0 0.0
    %1493 = vmatpush.msra.mxu0 0.0
    %1494 = vmatpush.msra.mxu0 0.0
    %1495 = vmatpush.msra.mxu0 0.0
    %1496 = vmatpush.msra.mxu0 %v612
    %1497 = vmatpush.msra.mxu0 %v609
    %1498 = vmatpush.msra.mxu0 %v606
    %1499 = vmatpush.msra.mxu0 %v603
    %1500 = vmatmul.f32.gmra.mxu0 %v1462
    %v1501 = vpop.f32.mrf.mxu0
    %v1502 = vadd.f32 %v700, %v1501
    %1503 = vdwg.mxu0
    %1504 = vmatpush.msra.mxu0 0.0
    %1505 = vmatpush.msra.mxu0 0.0
    %1506 = vmatpush.msra.mxu0 0.0
    %1507 = vmatpush.msra.mxu0 0.0
    %1508 = vmatpush.msra.mxu0 0.0
    %1509 = vmatpush.msra.mxu0 0.0
    %1510 = vmatpush.msra.mxu0 0.0
    %1511 = vmatpush.msra.mxu0 0.0
    %1512 = vmatpush.msra.mxu0 0.0
    %1513 = vmatpush.msra.mxu0 0.0
    %1514 = vmatpush.msra.mxu0 0.0
    %1515 = vmatpush.msra.mxu0 0.0
    %1516 = vmatpush.msra.mxu0 %v613
    %1517 = vmatpush.msra.mxu0 %v610
    %1518 = vmatpush.msra.mxu0 %v607
    %1519 = vmatpush.msra.mxu0 %v604
    %1520 = vmatmul.f32.gmra.mxu0 %v1462
    %v1521 = vpop.f32.mrf.mxu0
    %v1522 = vadd.f32 %v701, %v1521
    %1523 = vdwg.mxu0
    %v1524 = vadd.f32 %v1392, %v1419
    %v1525 = vadd.f32 %v1393, %v1439
    %v1526 = vmul.f32 %v1524, 0.5
    %v1527 = vmul.f32 %v1525, 0.5
    %v1528 = vtanh.pop %v1526
    %v1529 = vtanh.pop %v1527
    %v1530 = vadd.f32 %v1528, 1.0
    %v1531 = vadd.f32 %v1529, 1.0
    %v1532 = vmul.f32 %v1530, 0.5
    %v1533 = vmul.f32 %v1531, 0.5
    %v1534 = vmul.f32 %v1532, %v1459
    %v1535 = vadd.f32 %v1394, %v1534
    %v1536 = vtanh.pop %v1535
    %v1537 = vsub.f32 1.0, %v1533
    %v1538 = vmul.f32 %v1537, %v1536
    %v1539 = vmul.f32 %v1533, %v1379
    %v1540 = vadd.f32 %v1538, %v1539
    %v1541 = vadd.f32 %v1395, %v1482
    %v1542 = vadd.f32 %v1396, %v1502
    %v1543 = vmul.f32 %v1541, 0.5
    %v1544 = vmul.f32 %v1542, 0.5
    %v1545 = vtanh.pop %v1543
    %v1546 = vtanh.pop %v1544
    %v1547 = vadd.f32 %v1545, 1.0
    %v1548 = vadd.f32 %v1546, 1.0
    %v1549 = vmul.f32 %v1547, 0.5
    %v1550 = vmul.f32 %v1548, 0.5
    %v1551 = vmul.f32 %v1549, %v1522
    %v1552 = vadd.f32 %v1397, %v1551
    %v1553 = vtanh.pop %v1552
    %v1554 = vsub.f32 1.0, %v1550
    %v1555 = vmul.f32 %v1554, %v1553
    %v1556 = vmul.f32 %v1550, %v1385
    %v1557 = vadd.f32 %v1555, %v1556
    %v1558 = vsel %vm1384, %v1540, %v1379
    %v1559 = vsel %vm1378, %v1557, %v1385
    %v1560 = vsel %vm1384, %v1540, 0.0
    %s1561 = scalar_lea.vmem [#allocation4], 32
    %1562 = vst.msk [vmem:[%s1561] sm:$0xff] %vm634, %v1560
    %v1563 = vsel %vm1378, %v1557, 0.0
    %s1564 = scalar_lea.vmem [#allocation5], 24
    %1565 = vst.msk [vmem:[%s1564] sm:$0xff] %vm634, %v1563
    %v1566 = vld [vmem:[%s1016] sm:$0xff]
    %v1567 = vld [vmem:[%s1016 + $0x8] sm:$0xff]
    %v1568 = vld [vmem:[%s1016 + $0x10] sm:$0xff]
    %v1569 = vld [vmem:[%s1010 + $0x18] sm:$0xff]
    %v1570 = vld [vmem:[%s1010 + $0x20] sm:$0xff]
    %v1571 = vld [vmem:[%s1010 + $0x28] sm:$0xff]
    %v1573 = vsel %vm634, %v1558, 0
    %1575 = vmatpush.msra.mxu0 0.0
    %1576 = vmatpush.msra.mxu0 0.0
    %1577 = vmatpush.msra.mxu0 0.0
    %1578 = vmatpush.msra.mxu0 0.0
    %1579 = vmatpush.msra.mxu0 0.0
    %1580 = vmatpush.msra.mxu0 0.0
    %1581 = vmatpush.msra.mxu0 0.0
    %1582 = vmatpush.msra.mxu0 0.0
    %1583 = vmatpush.msra.mxu0 0.0
    %1584 = vmatpush.msra.mxu0 0.0
    %1585 = vmatpush.msra.mxu0 0.0
    %1586 = vmatpush.msra.mxu0 0.0
    %1587 = vmatpush.msra.mxu0 %v598
    %1588 = vmatpush.msra.mxu0 %v595
    %1589 = vmatpush.msra.mxu0 %v592
    %1590 = vmatpush.msra.mxu0 %v589
    %1591 = vmatmul.f32.gmra.mxu0 %v1573
    %v1592 = vpop.f32.mrf.mxu0
    %v1593 = vadd.f32 %v628, %v1592
    %1594 = vdwg.mxu0
    %1595 = vmatpush.msra.mxu0 0.0
    %1596 = vmatpush.msra.mxu0 0.0
    %1597 = vmatpush.msra.mxu0 0.0
    %1598 = vmatpush.msra.mxu0 0.0
    %1599 = vmatpush.msra.mxu0 0.0
    %1600 = vmatpush.msra.mxu0 0.0
    %1601 = vmatpush.msra.mxu0 0.0
    %1602 = vmatpush.msra.mxu0 0.0
    %1603 = vmatpush.msra.mxu0 0.0
    %1604 = vmatpush.msra.mxu0 0.0
    %1605 = vmatpush.msra.mxu0 0.0
    %1606 = vmatpush.msra.mxu0 0.0
    %1607 = vmatpush.msra.mxu0 %v599
    %1608 = vmatpush.msra.mxu0 %v596
    %1609 = vmatpush.msra.mxu0 %v593
    %1610 = vmatpush.msra.mxu0 %v590
    %1611 = vmatmul.f32.gmra.mxu0 %v1573
    %v1612 = vpop.f32.mrf.mxu0
    %v1613 = vadd.f32 %v629, %v1612
    %1614 = vdwg.mxu0
    %1615 = vmatpush.msra.mxu0 0.0
    %1616 = vmatpush.msra.mxu0 0.0
    %1617 = vmatpush.msra.mxu0 0.0
    %1618 = vmatpush.msra.mxu0 0.0
    %1619 = vmatpush.msra.mxu0 0.0
    %1620 = vmatpush.msra.mxu0 0.0
    %1621 = vmatpush.msra.mxu0 0.0
    %1622 = vmatpush.msra.mxu0 0.0
    %1623 = vmatpush.msra.mxu0 0.0
    %1624 = vmatpush.msra.mxu0 0.0
    %1625 = vmatpush.msra.mxu0 0.0
    %1626 = vmatpush.msra.mxu0 0.0
    %1627 = vmatpush.msra.mxu0 %v600
    %1628 = vmatpush.msra.mxu0 %v597
    %1629 = vmatpush.msra.mxu0 %v594
    %1630 = vmatpush.msra.mxu0 %v591
    %1631 = vmatmul.f32.gmra.mxu0 %v1573
    %v1632 = vpop.f32.mrf.mxu0
    %v1633 = vadd.f32 %v630, %v1632
    %1634 = vdwg.mxu0
    %v1636 = vsel %vm634, %v1559, 0
    %1638 = vmatpush.msra.mxu0 0.0
    %1639 = vmatpush.msra.mxu0 0.0
    %1640 = vmatpush.msra.mxu0 0.0
    %1641 = vmatpush.msra.mxu0 0.0
    %1642 = vmatpush.msra.mxu0 0.0
    %1643 = vmatpush.msra.mxu0 0.0
    %1644 = vmatpush.msra.mxu0 0.0
    %1645 = vmatpush.msra.mxu0 0.0
    %1646 = vmatpush.msra.mxu0 0.0
    %1647 = vmatpush.msra.mxu0 0.0
    %1648 = vmatpush.msra.mxu0 0.0
    %1649 = vmatpush.msra.mxu0 0.0
    %1650 = vmatpush.msra.mxu0 %v611
    %1651 = vmatpush.msra.mxu0 %v608
    %1652 = vmatpush.msra.mxu0 %v605
    %1653 = vmatpush.msra.mxu0 %v602
    %1654 = vmatmul.f32.gmra.mxu0 %v1636
    %v1655 = vpop.f32.mrf.mxu0
    %v1656 = vadd.f32 %v699, %v1655
    %1657 = vdwg.mxu0
    %1658 = vmatpush.msra.mxu0 0.0
    %1659 = vmatpush.msra.mxu0 0.0
    %1660 = vmatpush.msra.mxu0 0.0
    %1661 = vmatpush.msra.mxu0 0.0
    %1662 = vmatpush.msra.mxu0 0.0
    %1663 = vmatpush.msra.mxu0 0.0
    %1664 = vmatpush.msra.mxu0 0.0
    %1665 = vmatpush.msra.mxu0 0.0
    %1666 = vmatpush.msra.mxu0 0.0
    %1667 = vmatpush.msra.mxu0 0.0
    %1668 = vmatpush.msra.mxu0 0.0
    %1669 = vmatpush.msra.mxu0 0.0
    %1670 = vmatpush.msra.mxu0 %v612
    %1671 = vmatpush.msra.mxu0 %v609
    %1672 = vmatpush.msra.mxu0 %v606
    %1673 = vmatpush.msra.mxu0 %v603
    %1674 = vmatmul.f32.gmra.mxu0 %v1636
    %v1675 = vpop.f32.mrf.mxu0
    %v1676 = vadd.f32 %v700, %v1675
    %1677 = vdwg.mxu0
    %1678 = vmatpush.msra.mxu0 0.0
    %1679 = vmatpush.msra.mxu0 0.0
    %1680 = vmatpush.msra.mxu0 0.0
    %1681 = vmatpush.msra.mxu0 0.0
    %1682 = vmatpush.msra.mxu0 0.0
    %1683 = vmatpush.msra.mxu0 0.0
    %1684 = vmatpush.msra.mxu0 0.0
    %1685 = vmatpush.msra.mxu0 0.0
    %1686 = vmatpush.msra.mxu0 0.0
    %1687 = vmatpush.msra.mxu0 0.0
    %1688 = vmatpush.msra.mxu0 0.0
    %1689 = vmatpush.msra.mxu0 0.0
    %1690 = vmatpush.msra.mxu0 %v613
    %1691 = vmatpush.msra.mxu0 %v610
    %1692 = vmatpush.msra.mxu0 %v607
    %1693 = vmatpush.msra.mxu0 %v604
    %1694 = vmatmul.f32.gmra.mxu0 %v1636
    %v1695 = vpop.f32.mrf.mxu0
    %v1696 = vadd.f32 %v701, %v1695
    %1697 = vdwg.mxu0
    %v1698 = vadd.f32 %v1566, %v1593
    %v1699 = vadd.f32 %v1567, %v1613
    %v1700 = vmul.f32 %v1698, 0.5
    %v1701 = vmul.f32 %v1699, 0.5
    %v1702 = vtanh.pop %v1700
    %v1703 = vtanh.pop %v1701
    %v1704 = vadd.f32 %v1702, 1.0
    %v1705 = vadd.f32 %v1703, 1.0
    %v1706 = vmul.f32 %v1704, 0.5
    %v1707 = vmul.f32 %v1705, 0.5
    %v1708 = vmul.f32 %v1706, %v1633
    %v1709 = vadd.f32 %v1568, %v1708
    %v1710 = vtanh.pop %v1709
    %v1711 = vsub.f32 1.0, %v1707
    %v1712 = vmul.f32 %v1711, %v1710
    %v1713 = vmul.f32 %v1707, %v1558
    %v1714 = vadd.f32 %v1712, %v1713
    %v1715 = vadd.f32 %v1569, %v1656
    %v1716 = vadd.f32 %v1570, %v1676
    %v1717 = vmul.f32 %v1715, 0.5
    %v1718 = vmul.f32 %v1716, 0.5
    %v1719 = vtanh.pop %v1717
    %v1720 = vtanh.pop %v1718
    %v1721 = vadd.f32 %v1719, 1.0
    %v1722 = vadd.f32 %v1720, 1.0
    %v1723 = vmul.f32 %v1721, 0.5
    %v1724 = vmul.f32 %v1722, 0.5
    %v1725 = vmul.f32 %v1723, %v1696
    %v1726 = vadd.f32 %v1571, %v1725
    %v1727 = vtanh.pop %v1726
    %v1728 = vsub.f32 1.0, %v1724
    %v1729 = vmul.f32 %v1728, %v1727
    %v1730 = vmul.f32 %v1724, %v1559
    %v1731 = vadd.f32 %v1729, %v1730
    %v1732 = vsel %vm1192, %v1714, %v1558
    %v1733 = vsel %vm1186, %v1731, %v1559
    %v1734 = vsel %vm1192, %v1714, 0.0
    %s1735 = scalar_lea.vmem [#allocation4], 40
    %1736 = vst.msk [vmem:[%s1735] sm:$0xff] %vm634, %v1734
    %v1737 = vsel %vm1186, %v1731, 0.0
    %s1738 = scalar_lea.vmem [#allocation5], 16
    %1739 = vst.msk [vmem:[%s1738] sm:$0xff] %vm634, %v1737
    %v1740 = vld [vmem:[%s824] sm:$0xff]
    %v1741 = vld [vmem:[%s824 + $0x8] sm:$0xff]
    %v1742 = vld [vmem:[%s824 + $0x10] sm:$0xff]
    %v1743 = vld [vmem:[%s818 + $0x18] sm:$0xff]
    %v1744 = vld [vmem:[%s818 + $0x20] sm:$0xff]
    %v1745 = vld [vmem:[%s818 + $0x28] sm:$0xff]
    %v1747 = vsel %vm634, %v1732, 0
    %1749 = vmatpush.msra.mxu0 0.0
    %1750 = vmatpush.msra.mxu0 0.0
    %1751 = vmatpush.msra.mxu0 0.0
    %1752 = vmatpush.msra.mxu0 0.0
    %1753 = vmatpush.msra.mxu0 0.0
    %1754 = vmatpush.msra.mxu0 0.0
    %1755 = vmatpush.msra.mxu0 0.0
    %1756 = vmatpush.msra.mxu0 0.0
    %1757 = vmatpush.msra.mxu0 0.0
    %1758 = vmatpush.msra.mxu0 0.0
    %1759 = vmatpush.msra.mxu0 0.0
    %1760 = vmatpush.msra.mxu0 0.0
    %1761 = vmatpush.msra.mxu0 %v598
    %1762 = vmatpush.msra.mxu0 %v595
    %1763 = vmatpush.msra.mxu0 %v592
    %1764 = vmatpush.msra.mxu0 %v589
    %1765 = vmatmul.f32.gmra.mxu0 %v1747
    %v1766 = vpop.f32.mrf.mxu0
    %v1767 = vadd.f32 %v628, %v1766
    %1768 = vdwg.mxu0
    %1769 = vmatpush.msra.mxu0 0.0
    %1770 = vmatpush.msra.mxu0 0.0
    %1771 = vmatpush.msra.mxu0 0.0
    %1772 = vmatpush.msra.mxu0 0.0
    %1773 = vmatpush.msra.mxu0 0.0
    %1774 = vmatpush.msra.mxu0 0.0
    %1775 = vmatpush.msra.mxu0 0.0
    %1776 = vmatpush.msra.mxu0 0.0
    %1777 = vmatpush.msra.mxu0 0.0
    %1778 = vmatpush.msra.mxu0 0.0
    %1779 = vmatpush.msra.mxu0 0.0
    %1780 = vmatpush.msra.mxu0 0.0
    %1781 = vmatpush.msra.mxu0 %v599
    %1782 = vmatpush.msra.mxu0 %v596
    %1783 = vmatpush.msra.mxu0 %v593
    %1784 = vmatpush.msra.mxu0 %v590
    %1785 = vmatmul.f32.gmra.mxu0 %v1747
    %v1786 = vpop.f32.mrf.mxu0
    %v1787 = vadd.f32 %v629, %v1786
    %1788 = vdwg.mxu0
    %1789 = vmatpush.msra.mxu0 0.0
    %1790 = vmatpush.msra.mxu0 0.0
    %1791 = vmatpush.msra.mxu0 0.0
    %1792 = vmatpush.msra.mxu0 0.0
    %1793 = vmatpush.msra.mxu0 0.0
    %1794 = vmatpush.msra.mxu0 0.0
    %1795 = vmatpush.msra.mxu0 0.0
    %1796 = vmatpush.msra.mxu0 0.0
    %1797 = vmatpush.msra.mxu0 0.0
    %1798 = vmatpush.msra.mxu0 0.0
    %1799 = vmatpush.msra.mxu0 0.0
    %1800 = vmatpush.msra.mxu0 0.0
    %1801 = vmatpush.msra.mxu0 %v600
    %1802 = vmatpush.msra.mxu0 %v597
    %1803 = vmatpush.msra.mxu0 %v594
    %1804 = vmatpush.msra.mxu0 %v591
    %1805 = vmatmul.f32.gmra.mxu0 %v1747
    %v1806 = vpop.f32.mrf.mxu0
    %v1807 = vadd.f32 %v630, %v1806
    %1808 = vdwg.mxu0
    %v1810 = vsel %vm634, %v1733, 0
    %1812 = vmatpush.msra.mxu0 0.0
    %1813 = vmatpush.msra.mxu0 0.0
    %1814 = vmatpush.msra.mxu0 0.0
    %1815 = vmatpush.msra.mxu0 0.0
    %1816 = vmatpush.msra.mxu0 0.0
    %1817 = vmatpush.msra.mxu0 0.0
    %1818 = vmatpush.msra.mxu0 0.0
    %1819 = vmatpush.msra.mxu0 0.0
    %1820 = vmatpush.msra.mxu0 0.0
    %1821 = vmatpush.msra.mxu0 0.0
    %1822 = vmatpush.msra.mxu0 0.0
    %1823 = vmatpush.msra.mxu0 0.0
    %1824 = vmatpush.msra.mxu0 %v611
    %1825 = vmatpush.msra.mxu0 %v608
    %1826 = vmatpush.msra.mxu0 %v605
    %1827 = vmatpush.msra.mxu0 %v602
    %1828 = vmatmul.f32.gmra.mxu0 %v1810
    %v1829 = vpop.f32.mrf.mxu0
    %v1830 = vadd.f32 %v699, %v1829
    %1831 = vdwg.mxu0
    %1832 = vmatpush.msra.mxu0 0.0
    %1833 = vmatpush.msra.mxu0 0.0
    %1834 = vmatpush.msra.mxu0 0.0
    %1835 = vmatpush.msra.mxu0 0.0
    %1836 = vmatpush.msra.mxu0 0.0
    %1837 = vmatpush.msra.mxu0 0.0
    %1838 = vmatpush.msra.mxu0 0.0
    %1839 = vmatpush.msra.mxu0 0.0
    %1840 = vmatpush.msra.mxu0 0.0
    %1841 = vmatpush.msra.mxu0 0.0
    %1842 = vmatpush.msra.mxu0 0.0
    %1843 = vmatpush.msra.mxu0 0.0
    %1844 = vmatpush.msra.mxu0 %v612
    %1845 = vmatpush.msra.mxu0 %v609
    %1846 = vmatpush.msra.mxu0 %v606
    %1847 = vmatpush.msra.mxu0 %v603
    %1848 = vmatmul.f32.gmra.mxu0 %v1810
    %v1849 = vpop.f32.mrf.mxu0
    %v1850 = vadd.f32 %v700, %v1849
    %1851 = vdwg.mxu0
    %1852 = vmatpush.msra.mxu0 0.0
    %1853 = vmatpush.msra.mxu0 0.0
    %1854 = vmatpush.msra.mxu0 0.0
    %1855 = vmatpush.msra.mxu0 0.0
    %1856 = vmatpush.msra.mxu0 0.0
    %1857 = vmatpush.msra.mxu0 0.0
    %1858 = vmatpush.msra.mxu0 0.0
    %1859 = vmatpush.msra.mxu0 0.0
    %1860 = vmatpush.msra.mxu0 0.0
    %1861 = vmatpush.msra.mxu0 0.0
    %1862 = vmatpush.msra.mxu0 0.0
    %1863 = vmatpush.msra.mxu0 0.0
    %1864 = vmatpush.msra.mxu0 %v613
    %1865 = vmatpush.msra.mxu0 %v610
    %1866 = vmatpush.msra.mxu0 %v607
    %1867 = vmatpush.msra.mxu0 %v604
    %1868 = vmatmul.f32.gmra.mxu0 %v1810
    %v1869 = vpop.f32.mrf.mxu0
    %v1870 = vadd.f32 %v701, %v1869
    %1871 = vdwg.mxu0
    %v1872 = vadd.f32 %v1740, %v1767
    %v1873 = vadd.f32 %v1741, %v1787
    %v1874 = vmul.f32 %v1872, 0.5
    %v1875 = vmul.f32 %v1873, 0.5
    %v1876 = vtanh.pop %v1874
    %v1877 = vtanh.pop %v1875
    %v1878 = vadd.f32 %v1876, 1.0
    %v1879 = vadd.f32 %v1877, 1.0
    %v1880 = vmul.f32 %v1878, 0.5
    %v1881 = vmul.f32 %v1879, 0.5
    %v1882 = vmul.f32 %v1880, %v1807
    %v1883 = vadd.f32 %v1742, %v1882
    %v1884 = vtanh.pop %v1883
    %v1885 = vsub.f32 1.0, %v1881
    %v1886 = vmul.f32 %v1885, %v1884
    %v1887 = vmul.f32 %v1881, %v1732
    %v1888 = vadd.f32 %v1886, %v1887
    %v1889 = vadd.f32 %v1743, %v1830
    %v1890 = vadd.f32 %v1744, %v1850
    %v1891 = vmul.f32 %v1889, 0.5
    %v1892 = vmul.f32 %v1890, 0.5
    %v1893 = vtanh.pop %v1891
    %v1894 = vtanh.pop %v1892
    %v1895 = vadd.f32 %v1893, 1.0
    %v1896 = vadd.f32 %v1894, 1.0
    %v1897 = vmul.f32 %v1895, 0.5
    %v1898 = vmul.f32 %v1896, 0.5
    %v1899 = vmul.f32 %v1897, %v1870
    %v1900 = vadd.f32 %v1745, %v1899
    %v1901 = vtanh.pop %v1900
    %v1902 = vsub.f32 1.0, %v1898
    %v1903 = vmul.f32 %v1902, %v1901
    %v1904 = vmul.f32 %v1898, %v1733
    %v1905 = vadd.f32 %v1903, %v1904
    %v1906 = vsel %vm1000, %v1888, %v1732
    %v1907 = vsel %vm994, %v1905, %v1733
    %v1908 = vsel %vm1000, %v1888, 0.0
    %s1909 = scalar_lea.vmem [#allocation4], 48
    %1910 = vst.msk [vmem:[%s1909] sm:$0xff] %vm634, %v1908
    %v1911 = vsel %vm994, %v1905, 0.0
    %s1912 = scalar_lea.vmem [#allocation5], 8
    %1913 = vst.msk [vmem:[%s1912] sm:$0xff] %vm634, %v1911
    %v1914 = vld [vmem:[%s623] sm:$0xff]
    %v1915 = vld [vmem:[%s623 + $0x8] sm:$0xff]
    %v1916 = vld [vmem:[%s623 + $0x10] sm:$0xff]
    %v1917 = vld [vmem:[%s617 + $0x18] sm:$0xff]
    %v1918 = vld [vmem:[%s617 + $0x20] sm:$0xff]
    %v1919 = vld [vmem:[%s617 + $0x28] sm:$0xff]
    %v1921 = vsel %vm634, %v1906, 0
    %1923 = vmatpush.msra.mxu0 0.0
    %1924 = vmatpush.msra.mxu0 0.0
    %1925 = vmatpush.msra.mxu0 0.0
    %1926 = vmatpush.msra.mxu0 0.0
    %1927 = vmatpush.msra.mxu0 0.0
    %1928 = vmatpush.msra.mxu0 0.0
    %1929 = vmatpush.msra.mxu0 0.0
    %1930 = vmatpush.msra.mxu0 0.0
    %1931 = vmatpush.msra.mxu0 0.0
    %1932 = vmatpush.msra.mxu0 0.0
    %1933 = vmatpush.msra.mxu0 0.0
    %1934 = vmatpush.msra.mxu0 0.0
    %1935 = vmatpush.msra.mxu0 %v598
    %1936 = vmatpush.msra.mxu0 %v595
    %1937 = vmatpush.msra.mxu0 %v592
    %1938 = vmatpush.msra.mxu0 %v589
    %1939 = vmatmul.f32.gmra.mxu0 %v1921
    %v1940 = vpop.f32.mrf.mxu0
    %v1941 = vadd.f32 %v628, %v1940
    %1942 = vdwg.mxu0
    %1943 = vmatpush.msra.mxu0 0.0
    %1944 = vmatpush.msra.mxu0 0.0
    %1945 = vmatpush.msra.mxu0 0.0
    %1946 = vmatpush.msra.mxu0 0.0
    %1947 = vmatpush.msra.mxu0 0.0
    %1948 = vmatpush.msra.mxu0 0.0
    %1949 = vmatpush.msra.mxu0 0.0
    %1950 = vmatpush.msra.mxu0 0.0
    %1951 = vmatpush.msra.mxu0 0.0
    %1952 = vmatpush.msra.mxu0 0.0
    %1953 = vmatpush.msra.mxu0 0.0
    %1954 = vmatpush.msra.mxu0 0.0
    %1955 = vmatpush.msra.mxu0 %v599
    %1956 = vmatpush.msra.mxu0 %v596
    %1957 = vmatpush.msra.mxu0 %v593
    %1958 = vmatpush.msra.mxu0 %v590
    %1959 = vmatmul.f32.gmra.mxu0 %v1921
    %v1960 = vpop.f32.mrf.mxu0
    %v1961 = vadd.f32 %v629, %v1960
    %1962 = vdwg.mxu0
    %1963 = vmatpush.msra.mxu0 0.0
    %1964 = vmatpush.msra.mxu0 0.0
    %1965 = vmatpush.msra.mxu0 0.0
    %1966 = vmatpush.msra.mxu0 0.0
    %1967 = vmatpush.msra.mxu0 0.0
    %1968 = vmatpush.msra.mxu0 0.0
    %1969 = vmatpush.msra.mxu0 0.0
    %1970 = vmatpush.msra.mxu0 0.0
    %1971 = vmatpush.msra.mxu0 0.0
    %1972 = vmatpush.msra.mxu0 0.0
    %1973 = vmatpush.msra.mxu0 0.0
    %1974 = vmatpush.msra.mxu0 0.0
    %1975 = vmatpush.msra.mxu0 %v600
    %1976 = vmatpush.msra.mxu0 %v597
    %1977 = vmatpush.msra.mxu0 %v594
    %1978 = vmatpush.msra.mxu0 %v591
    %1979 = vmatmul.f32.gmra.mxu0 %v1921
    %v1980 = vpop.f32.mrf.mxu0
    %v1981 = vadd.f32 %v630, %v1980
    %1982 = vdwg.mxu0
    %v1984 = vsel %vm634, %v1907, 0
    %1986 = vmatpush.msra.mxu0 0.0
    %1987 = vmatpush.msra.mxu0 0.0
    %1988 = vmatpush.msra.mxu0 0.0
    %1989 = vmatpush.msra.mxu0 0.0
    %1990 = vmatpush.msra.mxu0 0.0
    %1991 = vmatpush.msra.mxu0 0.0
    %1992 = vmatpush.msra.mxu0 0.0
    %1993 = vmatpush.msra.mxu0 0.0
    %1994 = vmatpush.msra.mxu0 0.0
    %1995 = vmatpush.msra.mxu0 0.0
    %1996 = vmatpush.msra.mxu0 0.0
    %1997 = vmatpush.msra.mxu0 0.0
    %1998 = vmatpush.msra.mxu0 %v611
    %1999 = vmatpush.msra.mxu0 %v608
    %2000 = vmatpush.msra.mxu0 %v605
    %2001 = vmatpush.msra.mxu0 %v602
    %2002 = vmatmul.f32.gmra.mxu0 %v1984
    %v2003 = vpop.f32.mrf.mxu0
    %v2004 = vadd.f32 %v699, %v2003
    %2005 = vdwg.mxu0
    %2006 = vmatpush.msra.mxu0 0.0
    %2007 = vmatpush.msra.mxu0 0.0
    %2008 = vmatpush.msra.mxu0 0.0
    %2009 = vmatpush.msra.mxu0 0.0
    %2010 = vmatpush.msra.mxu0 0.0
    %2011 = vmatpush.msra.mxu0 0.0
    %2012 = vmatpush.msra.mxu0 0.0
    %2013 = vmatpush.msra.mxu0 0.0
    %2014 = vmatpush.msra.mxu0 0.0
    %2015 = vmatpush.msra.mxu0 0.0
    %2016 = vmatpush.msra.mxu0 0.0
    %2017 = vmatpush.msra.mxu0 0.0
    %2018 = vmatpush.msra.mxu0 %v612
    %2019 = vmatpush.msra.mxu0 %v609
    %2020 = vmatpush.msra.mxu0 %v606
    %2021 = vmatpush.msra.mxu0 %v603
    %2022 = vmatmul.f32.gmra.mxu0 %v1984
    %v2023 = vpop.f32.mrf.mxu0
    %v2024 = vadd.f32 %v700, %v2023
    %2025 = vdwg.mxu0
    %2026 = vmatpush.msra.mxu0 0.0
    %2027 = vmatpush.msra.mxu0 0.0
    %2028 = vmatpush.msra.mxu0 0.0
    %2029 = vmatpush.msra.mxu0 0.0
    %2030 = vmatpush.msra.mxu0 0.0
    %2031 = vmatpush.msra.mxu0 0.0
    %2032 = vmatpush.msra.mxu0 0.0
    %2033 = vmatpush.msra.mxu0 0.0
    %2034 = vmatpush.msra.mxu0 0.0
    %2035 = vmatpush.msra.mxu0 0.0
    %2036 = vmatpush.msra.mxu0 0.0
    %2037 = vmatpush.msra.mxu0 0.0
    %2038 = vmatpush.msra.mxu0 %v613
    %2039 = vmatpush.msra.mxu0 %v610
    %2040 = vmatpush.msra.mxu0 %v607
    %2041 = vmatpush.msra.mxu0 %v604
    %2042 = vmatmul.f32.gmra.mxu0 %v1984
    %v2043 = vpop.f32.mrf.mxu0
    %v2044 = vadd.f32 %v701, %v2043
    %2045 = vdwg.mxu0
    %v2046 = vadd.f32 %v1914, %v1941
    %v2047 = vadd.f32 %v1915, %v1961
    %v2048 = vmul.f32 %v2046, 0.5
    %v2049 = vmul.f32 %v2047, 0.5
    %v2050 = vtanh.pop %v2048
    %v2051 = vtanh.pop %v2049
    %v2052 = vadd.f32 %v2050, 1.0
    %v2053 = vadd.f32 %v2051, 1.0
    %v2054 = vmul.f32 %v2052, 0.5
    %v2055 = vmul.f32 %v2053, 0.5
    %v2056 = vmul.f32 %v2054, %v1981
    %v2057 = vadd.f32 %v1916, %v2056
    %v2058 = vtanh.pop %v2057
    %v2059 = vsub.f32 1.0, %v2055
    %v2060 = vmul.f32 %v2059, %v2058
    %v2061 = vmul.f32 %v2055, %v1906
    %v2062 = vadd.f32 %v2060, %v2061
    %v2063 = vadd.f32 %v1917, %v2004
    %v2064 = vadd.f32 %v1918, %v2024
    %v2065 = vmul.f32 %v2063, 0.5
    %v2066 = vmul.f32 %v2064, 0.5
    %v2067 = vtanh.pop %v2065
    %v2068 = vtanh.pop %v2066
    %v2069 = vadd.f32 %v2067, 1.0
    %v2070 = vadd.f32 %v2068, 1.0
    %v2071 = vmul.f32 %v2069, 0.5
    %v2072 = vmul.f32 %v2070, 0.5
    %v2073 = vmul.f32 %v2071, %v2044
    %v2074 = vadd.f32 %v1919, %v2073
    %v2075 = vtanh.pop %v2074
    %v2076 = vsub.f32 1.0, %v2072
    %v2077 = vmul.f32 %v2076, %v2075
    %v2078 = vmul.f32 %v2072, %v1907
    %v2079 = vadd.f32 %v2077, %v2078
    %v2080 = vsel %vm811, %v2062, 0.0
    %s2081 = scalar_lea.vmem [#allocation4], 56
    %2082 = vst.msk [vmem:[%s2081] sm:$0xff] %vm634, %v2080
    %v2083 = vsel %vm805, %v2079, 0.0
    %2084 = vst.msk [vmem:[#allocation5] sm:$0xff] %vm634, %v2083
    %v2085 = vld [vmem:[#allocation4] sm:$0xff]
    %v2086 = vld [vmem:[#allocation4 + $0x8] sm:$0xff]
    %v2087 = vld [vmem:[#allocation4 + $0x10] sm:$0xff]
    %v2088 = vld [vmem:[#allocation4 + $0x18] sm:$0xff]
    %v2089 = vld [vmem:[#allocation4 + $0x20] sm:$0xff]
    %v2090 = vld [vmem:[#allocation4 + $0x28] sm:$0xff]
    %v2091 = vld [vmem:[#allocation4 + $0x30] sm:$0xff]
    %v2092 = vld [vmem:[#allocation4 + $0x38] sm:$0xff]
    %v2093 = vld [vmem:[#allocation11] sm:$0xff]
    %v2094 = vld [vmem:[#allocation11 + $0x8] sm:$0xff]
    %v2095 = vld [vmem:[#allocation11 + $0x10] sm:$0xff]
    %v2096 = vld [vmem:[#allocation11 + $0x18] sm:$0xff]
    %v2097 = vld [vmem:[#allocation11 + $0x20] sm:$0xff]
    %v2098 = vld [vmem:[#allocation11 + $0x28] sm:$0xff]
    %v2099 = vld [vmem:[#allocation11 + $0x30] sm:$0xff]
    %v2100 = vld [vmem:[#allocation11 + $0x38] sm:$0xff]
    %v2101 = vld [vmem:[#allocation11 + $0x40] sm:$0xff]
    %v2102 = vld [vmem:[#allocation11 + $0x48] sm:$0xff]
    %v2103 = vld [vmem:[#allocation11 + $0x50] sm:$0xff]
    %v2104 = vld [vmem:[#allocation11 + $0x58] sm:$0xff]
    %v2105 = vld [vmem:[#allocation11 + $0x60] sm:$0xff]
    %v2106 = vld [vmem:[#allocation11 + $0x68] sm:$0xff]
    %v2107 = vld [vmem:[#allocation11 + $0x70] sm:$0xff]
    %v2108 = vld [vmem:[#allocation11 + $0x78] sm:$0xff]
    %v2109 = vld [vmem:[#allocation11 + $0x80] sm:$0xff]
    %v2110 = vld [vmem:[#allocation11 + $0x88] sm:$0xff]
    %v2111 = vld [vmem:[#allocation11 + $0x90] sm:$0xff]
    %v2112 = vld [vmem:[#allocation11 + $0x98] sm:$0xff]
    %v2113 = vld [vmem:[#allocation11 + $0xa0] sm:$0xff]
    %v2114 = vld [vmem:[#allocation11 + $0xa8] sm:$0xff]
    %v2115 = vld [vmem:[#allocation11 + $0xb0] sm:$0xff]
    %v2116 = vld [vmem:[#allocation11 + $0xb8] sm:$0xff]
    %v2117 = vld [vmem:[#allocation5] sm:$0xff]
    %v2118 = vld [vmem:[#allocation5 + $0x8] sm:$0xff]
    %v2119 = vld [vmem:[#allocation5 + $0x10] sm:$0xff]
    %v2120 = vld [vmem:[#allocation5 + $0x18] sm:$0xff]
    %v2121 = vld [vmem:[#allocation5 + $0x20] sm:$0xff]
    %v2122 = vld [vmem:[#allocation5 + $0x28] sm:$0xff]
    %v2123 = vld [vmem:[#allocation5 + $0x30] sm:$0xff]
    %v2124 = vld [vmem:[#allocation5 + $0x38] sm:$0xff]
    %v2125 = vld [vmem:[#allocation12] sm:$0xff]
    %v2126 = vld [vmem:[#allocation12 + $0x8] sm:$0xff]
    %v2127 = vld [vmem:[#allocation12 + $0x10] sm:$0xff]
    %v2128 = vld [vmem:[#allocation12 + $0x18] sm:$0xff]
    %v2129 = vld [vmem:[#allocation12 + $0x20] sm:$0xff]
    %v2130 = vld [vmem:[#allocation12 + $0x28] sm:$0xff]
    %v2131 = vld [vmem:[#allocation12 + $0x30] sm:$0xff]
    %v2132 = vld [vmem:[#allocation12 + $0x38] sm:$0xff]
    %v2133 = vld [vmem:[#allocation12 + $0x40] sm:$0xff]
    %v2134 = vld [vmem:[#allocation12 + $0x48] sm:$0xff]
    %v2135 = vld [vmem:[#allocation12 + $0x50] sm:$0xff]
    %v2136 = vld [vmem:[#allocation12 + $0x58] sm:$0xff]
    %v2137 = vld [vmem:[#allocation12 + $0x60] sm:$0xff]
    %v2138 = vld [vmem:[#allocation12 + $0x68] sm:$0xff]
    %v2139 = vld [vmem:[#allocation12 + $0x70] sm:$0xff]
    %v2140 = vld [vmem:[#allocation12 + $0x78] sm:$0xff]
    %v2141 = vld [vmem:[#allocation12 + $0x80] sm:$0xff]
    %v2142 = vld [vmem:[#allocation12 + $0x88] sm:$0xff]
    %v2143 = vld [vmem:[#allocation12 + $0x90] sm:$0xff]
    %v2144 = vld [vmem:[#allocation12 + $0x98] sm:$0xff]
    %v2145 = vld [vmem:[#allocation12 + $0xa0] sm:$0xff]
    %v2146 = vld [vmem:[#allocation12 + $0xa8] sm:$0xff]
    %v2147 = vld [vmem:[#allocation12 + $0xb0] sm:$0xff]
    %v2148 = vld [vmem:[#allocation12 + $0xb8] sm:$0xff]
    %v2150 = vsel %vm634, %v2117, 0
    %v2153 = vsel %vm634, %v2118, 0
    %v2156 = vsel %vm634, %v2119, 0
    %v2159 = vsel %vm634, %v2120, 0
    %v2162 = vsel %vm634, %v2121, 0
    %v2165 = vsel %vm634, %v2122, 0
    %v2168 = vsel %vm634, %v2123, 0
    %v2171 = vsel %vm634, %v2124, 0
    %2173 = vmatpush.msra.mxu0 0.0
    %2174 = vmatpush.msra.mxu0 0.0
    %2175 = vmatpush.msra.mxu0 0.0
    %2176 = vmatpush.msra.mxu0 0.0
    %2177 = vmatpush.msra.mxu0 0.0
    %2178 = vmatpush.msra.mxu0 0.0
    %2179 = vmatpush.msra.mxu0 0.0
    %2180 = vmatpush.msra.mxu0 0.0
    %2181 = vmatpush.msra.mxu0 0.0
    %2182 = vmatpush.msra.mxu0 0.0
    %2183 = vmatpush.msra.mxu0 0.0
    %2184 = vmatpush.msra.mxu0 0.0
    %2185 = vmatpush.msra.mxu0 %v2143
    %2186 = vmatpush.msra.mxu0 %v2137
    %2187 = vmatpush.msra.mxu0 %v2131
    %2188 = vmatpush.msra.mxu0 %v2125
    %2189 = vmatmul.f32.gmra.mxu0 %v2150
    %v2190 = vpop.f32.mrf.mxu0
    %v2191 = vadd.f32 0.0, %v2190
    %2192 = vmatmul.f32.gmra.mxu0 %v2153
    %v2193 = vpop.f32.mrf.mxu0
    %v2194 = vadd.f32 0.0, %v2193
    %2195 = vmatmul.f32.gmra.mxu0 %v2156
    %v2196 = vpop.f32.mrf.mxu0
    %v2197 = vadd.f32 0.0, %v2196
    %2198 = vmatmul.f32.gmra.mxu0 %v2159
    %v2199 = vpop.f32.mrf.mxu0
    %v2200 = vadd.f32 0.0, %v2199
    %2201 = vmatmul.f32.gmra.mxu0 %v2162
    %v2202 = vpop.f32.mrf.mxu0
    %v2203 = vadd.f32 0.0, %v2202
    %2204 = vmatmul.f32.gmra.mxu0 %v2165
    %v2205 = vpop.f32.mrf.mxu0
    %v2206 = vadd.f32 0.0, %v2205
    %2207 = vmatmul.f32.gmra.mxu0 %v2168
    %v2208 = vpop.f32.mrf.mxu0
    %v2209 = vadd.f32 0.0, %v2208
    %2210 = vmatmul.f32.gmra.mxu0 %v2171
    %v2211 = vpop.f32.mrf.mxu0
    %v2212 = vadd.f32 0.0, %v2211
    %2213 = vdwg.mxu0
    %2214 = vmatpush.msra.mxu0 0.0
    %2215 = vmatpush.msra.mxu0 0.0
    %2216 = vmatpush.msra.mxu0 0.0
    %2217 = vmatpush.msra.mxu0 0.0
    %2218 = vmatpush.msra.mxu0 0.0
    %2219 = vmatpush.msra.mxu0 0.0
    %2220 = vmatpush.msra.mxu0 0.0
    %2221 = vmatpush.msra.mxu0 0.0
    %2222 = vmatpush.msra.mxu0 0.0
    %2223 = vmatpush.msra.mxu0 0.0
    %2224 = vmatpush.msra.mxu0 0.0
    %2225 = vmatpush.msra.mxu0 0.0
    %2226 = vmatpush.msra.mxu0 %v2144
    %2227 = vmatpush.msra.mxu0 %v2138
    %2228 = vmatpush.msra.mxu0 %v2132
    %2229 = vmatpush.msra.mxu0 %v2126
    %2230 = vmatmul.f32.gmra.mxu0 %v2150
    %v2231 = vpop.f32.mrf.mxu0
    %v2232 = vadd.f32 0.0, %v2231
    %2233 = vmatmul.f32.gmra.mxu0 %v2153
    %v2234 = vpop.f32.mrf.mxu0
    %v2235 = vadd.f32 0.0, %v2234
    %2236 = vmatmul.f32.gmra.mxu0 %v2156
    %v2237 = vpop.f32.mrf.mxu0
    %v2238 = vadd.f32 0.0, %v2237
    %2239 = vmatmul.f32.gmra.mxu0 %v2159
    %v2240 = vpop.f32.mrf.mxu0
    %v2241 = vadd.f32 0.0, %v2240
    %2242 = vmatmul.f32.gmra.mxu0 %v2162
    %v2243 = vpop.f32.mrf.mxu0
    %v2244 = vadd.f32 0.0, %v2243
    %2245 = vmatmul.f32.gmra.mxu0 %v2165
    %v2246 = vpop.f32.mrf.mxu0
    %v2247 = vadd.f32 0.0, %v2246
    %2248 = vmatmul.f32.gmra.mxu0 %v2168
    %v2249 = vpop.f32.mrf.mxu0
    %v2250 = vadd.f32 0.0, %v2249
    %2251 = vmatmul.f32.gmra.mxu0 %v2171
    %v2252 = vpop.f32.mrf.mxu0
    %v2253 = vadd.f32 0.0, %v2252
    %2254 = vdwg.mxu0
    %2255 = vmatpush.msra.mxu0 0.0
    %2256 = vmatpush.msra.mxu0 0.0
    %2257 = vmatpush.msra.mxu0 0.0
    %2258 = vmatpush.msra.mxu0 0.0
    %2259 = vmatpush.msra.mxu0 0.0
    %2260 = vmatpush.msra.mxu0 0.0
    %2261 = vmatpush.msra.mxu0 0.0
    %2262 = vmatpush.msra.mxu0 0.0
    %2263 = vmatpush.msra.mxu0 0.0
    %2264 = vmatpush.msra.mxu0 0.0
    %2265 = vmatpush.msra.mxu0 0.0
    %2266 = vmatpush.msra.mxu0 0.0
    %2267 = vmatpush.msra.mxu0 %v2145
    %2268 = vmatpush.msra.mxu0 %v2139
    %2269 = vmatpush.msra.mxu0 %v2133
    %2270 = vmatpush.msra.mxu0 %v2127
    %2271 = vmatmul.f32.gmra.mxu0 %v2150
    %v2272 = vpop.f32.mrf.mxu0
    %v2273 = vadd.f32 0.0, %v2272
    %2274 = vmatmul.f32.gmra.mxu0 %v2153
    %v2275 = vpop.f32.mrf.mxu0
    %v2276 = vadd.f32 0.0, %v2275
    %2277 = vmatmul.f32.gmra.mxu0 %v2156
    %v2278 = vpop.f32.mrf.mxu0
    %v2279 = vadd.f32 0.0, %v2278
    %2280 = vmatmul.f32.gmra.mxu0 %v2159
    %v2281 = vpop.f32.mrf.mxu0
    %v2282 = vadd.f32 0.0, %v2281
    %2283 = vmatmul.f32.gmra.mxu0 %v2162
    %v2284 = vpop.f32.mrf.mxu0
    %v2285 = vadd.f32 0.0, %v2284
    %2286 = vmatmul.f32.gmra.mxu0 %v2165
    %v2287 = vpop.f32.mrf.mxu0
    %v2288 = vadd.f32 0.0, %v2287
    %2289 = vmatmul.f32.gmra.mxu0 %v2168
    %v2290 = vpop.f32.mrf.mxu0
    %v2291 = vadd.f32 0.0, %v2290
    %2292 = vmatmul.f32.gmra.mxu0 %v2171
    %v2293 = vpop.f32.mrf.mxu0
    %v2294 = vadd.f32 0.0, %v2293
    %2295 = vdwg.mxu0
    %2296 = vmatpush.msra.mxu0 0.0
    %2297 = vmatpush.msra.mxu0 0.0
    %2298 = vmatpush.msra.mxu0 0.0
    %2299 = vmatpush.msra.mxu0 0.0
    %2300 = vmatpush.msra.mxu0 0.0
    %2301 = vmatpush.msra.mxu0 0.0
    %2302 = vmatpush.msra.mxu0 0.0
    %2303 = vmatpush.msra.mxu0 0.0
    %2304 = vmatpush.msra.mxu0 0.0
    %2305 = vmatpush.msra.mxu0 0.0
    %2306 = vmatpush.msra.mxu0 0.0
    %2307 = vmatpush.msra.mxu0 0.0
    %2308 = vmatpush.msra.mxu0 %v2146
    %2309 = vmatpush.msra.mxu0 %v2140
    %2310 = vmatpush.msra.mxu0 %v2134
    %2311 = vmatpush.msra.mxu0 %v2128
    %2312 = vmatmul.f32.gmra.mxu0 %v2150
    %v2313 = vpop.f32.mrf.mxu0
    %v2314 = vadd.f32 0.0, %v2313
    %2315 = vmatmul.f32.gmra.mxu0 %v2153
    %v2316 = vpop.f32.mrf.mxu0
    %v2317 = vadd.f32 0.0, %v2316
    %2318 = vmatmul.f32.gmra.mxu0 %v2156
    %v2319 = vpop.f32.mrf.mxu0
    %v2320 = vadd.f32 0.0, %v2319
    %2321 = vmatmul.f32.gmra.mxu0 %v2159
    %v2322 = vpop.f32.mrf.mxu0
    %v2323 = vadd.f32 0.0, %v2322
    %2324 = vmatmul.f32.gmra.mxu0 %v2162
    %v2325 = vpop.f32.mrf.mxu0
    %v2326 = vadd.f32 0.0, %v2325
    %2327 = vmatmul.f32.gmra.mxu0 %v2165
    %v2328 = vpop.f32.mrf.mxu0
    %v2329 = vadd.f32 0.0, %v2328
    %2330 = vmatmul.f32.gmra.mxu0 %v2168
    %v2331 = vpop.f32.mrf.mxu0
    %v2332 = vadd.f32 0.0, %v2331
    %2333 = vmatmul.f32.gmra.mxu0 %v2171
    %v2334 = vpop.f32.mrf.mxu0
    %v2335 = vadd.f32 0.0, %v2334
    %2336 = vdwg.mxu0
    %2337 = vmatpush.msra.mxu0 0.0
    %2338 = vmatpush.msra.mxu0 0.0
    %2339 = vmatpush.msra.mxu0 0.0
    %2340 = vmatpush.msra.mxu0 0.0
    %2341 = vmatpush.msra.mxu0 0.0
    %2342 = vmatpush.msra.mxu0 0.0
    %2343 = vmatpush.msra.mxu0 0.0
    %2344 = vmatpush.msra.mxu0 0.0
    %2345 = vmatpush.msra.mxu0 0.0
    %2346 = vmatpush.msra.mxu0 0.0
    %2347 = vmatpush.msra.mxu0 0.0
    %2348 = vmatpush.msra.mxu0 0.0
    %2349 = vmatpush.msra.mxu0 %v2147
    %2350 = vmatpush.msra.mxu0 %v2141
    %2351 = vmatpush.msra.mxu0 %v2135
    %2352 = vmatpush.msra.mxu0 %v2129
    %2353 = vmatmul.f32.gmra.mxu0 %v2150
    %v2354 = vpop.f32.mrf.mxu0
    %v2355 = vadd.f32 0.0, %v2354
    %2356 = vmatmul.f32.gmra.mxu0 %v2153
    %v2357 = vpop.f32.mrf.mxu0
    %v2358 = vadd.f32 0.0, %v2357
    %2359 = vmatmul.f32.gmra.mxu0 %v2156
    %v2360 = vpop.f32.mrf.mxu0
    %v2361 = vadd.f32 0.0, %v2360
    %2362 = vmatmul.f32.gmra.mxu0 %v2159
    %v2363 = vpop.f32.mrf.mxu0
    %v2364 = vadd.f32 0.0, %v2363
    %2365 = vmatmul.f32.gmra.mxu0 %v2162
    %v2366 = vpop.f32.mrf.mxu0
    %v2367 = vadd.f32 0.0, %v2366
    %2368 = vmatmul.f32.gmra.mxu0 %v2165
    %v2369 = vpop.f32.mrf.mxu0
    %v2370 = vadd.f32 0.0, %v2369
    %2371 = vmatmul.f32.gmra.mxu0 %v2168
    %v2372 = vpop.f32.mrf.mxu0
    %v2373 = vadd.f32 0.0, %v2372
    %2374 = vmatmul.f32.gmra.mxu0 %v2171
    %v2375 = vpop.f32.mrf.mxu0
    %v2376 = vadd.f32 0.0, %v2375
    %2377 = vdwg.mxu0
    %2378 = vmatpush.msra.mxu0 0.0
    %2379 = vmatpush.msra.mxu0 0.0
    %2380 = vmatpush.msra.mxu0 0.0
    %2381 = vmatpush.msra.mxu0 0.0
    %2382 = vmatpush.msra.mxu0 0.0
    %2383 = vmatpush.msra.mxu0 0.0
    %2384 = vmatpush.msra.mxu0 0.0
    %2385 = vmatpush.msra.mxu0 0.0
    %2386 = vmatpush.msra.mxu0 0.0
    %2387 = vmatpush.msra.mxu0 0.0
    %2388 = vmatpush.msra.mxu0 0.0
    %2389 = vmatpush.msra.mxu0 0.0
    %2390 = vmatpush.msra.mxu0 %v2148
    %2391 = vmatpush.msra.mxu0 %v2142
    %2392 = vmatpush.msra.mxu0 %v2136
    %2393 = vmatpush.msra.mxu0 %v2130
    %2394 = vmatmul.f32.gmra.mxu0 %v2150
    %v2395 = vpop.f32.mrf.mxu0
    %v2396 = vadd.f32 0.0, %v2395
    %2397 = vmatmul.f32.gmra.mxu0 %v2153
    %v2398 = vpop.f32.mrf.mxu0
    %v2399 = vadd.f32 0.0, %v2398
    %2400 = vmatmul.f32.gmra.mxu0 %v2156
    %v2401 = vpop.f32.mrf.mxu0
    %v2402 = vadd.f32 0.0, %v2401
    %2403 = vmatmul.f32.gmra.mxu0 %v2159
    %v2404 = vpop.f32.mrf.mxu0
    %v2405 = vadd.f32 0.0, %v2404
    %2406 = vmatmul.f32.gmra.mxu0 %v2162
    %v2407 = vpop.f32.mrf.mxu0
    %v2408 = vadd.f32 0.0, %v2407
    %2409 = vmatmul.f32.gmra.mxu0 %v2165
    %v2410 = vpop.f32.mrf.mxu0
    %v2411 = vadd.f32 0.0, %v2410
    %2412 = vmatmul.f32.gmra.mxu0 %v2168
    %v2413 = vpop.f32.mrf.mxu0
    %v2414 = vadd.f32 0.0, %v2413
    %2415 = vmatmul.f32.gmra.mxu0 %v2171
    %v2416 = vpop.f32.mrf.mxu0
    %v2417 = vadd.f32 0.0, %v2416
    %2418 = vdwg.mxu0
    %v2420 = vsel %vm634, %v2085, 0
    %v2423 = vsel %vm634, %v2086, 0
    %v2426 = vsel %vm634, %v2087, 0
    %v2429 = vsel %vm634, %v2088, 0
    %v2432 = vsel %vm634, %v2089, 0
    %v2435 = vsel %vm634, %v2090, 0
    %v2438 = vsel %vm634, %v2091, 0
    %v2441 = vsel %vm634, %v2092, 0
    %2443 = vmatpush.msra.mxu0 0.0
    %2444 = vmatpush.msra.mxu0 0.0
    %2445 = vmatpush.msra.mxu0 0.0
    %2446 = vmatpush.msra.mxu0 0.0
    %2447 = vmatpush.msra.mxu0 0.0
    %2448 = vmatpush.msra.mxu0 0.0
    %2449 = vmatpush.msra.mxu0 0.0
    %2450 = vmatpush.msra.mxu0 0.0
    %2451 = vmatpush.msra.mxu0 0.0
    %2452 = vmatpush.msra.mxu0 0.0
    %2453 = vmatpush.msra.mxu0 0.0
    %2454 = vmatpush.msra.mxu0 0.0
    %2455 = vmatpush.msra.mxu0 %v2111
    %2456 = vmatpush.msra.mxu0 %v2105
    %2457 = vmatpush.msra.mxu0 %v2099
    %2458 = vmatpush.msra.mxu0 %v2093
    %2459 = vmatmul.f32.gmra.mxu0 %v2420
    %v2460 = vpop.f32.mrf.mxu0
    %v2461 = vadd.f32 %v2191, %v2460
    %2462 = vmatmul.f32.gmra.mxu0 %v2423
    %v2463 = vpop.f32.mrf.mxu0
    %v2464 = vadd.f32 %v2194, %v2463
    %2465 = vmatmul.f32.gmra.mxu0 %v2426
    %v2466 = vpop.f32.mrf.mxu0
    %v2467 = vadd.f32 %v2197, %v2466
    %2468 = vmatmul.f32.gmra.mxu0 %v2429
    %v2469 = vpop.f32.mrf.mxu0
    %v2470 = vadd.f32 %v2200, %v2469
    %2471 = vmatmul.f32.gmra.mxu0 %v2432
    %v2472 = vpop.f32.mrf.mxu0
    %v2473 = vadd.f32 %v2203, %v2472
    %2474 = vmatmul.f32.gmra.mxu0 %v2435
    %v2475 = vpop.f32.mrf.mxu0
    %v2476 = vadd.f32 %v2206, %v2475
    %2477 = vmatmul.f32.gmra.mxu0 %v2438
    %v2478 = vpop.f32.mrf.mxu0
    %v2479 = vadd.f32 %v2209, %v2478
    %2480 = vmatmul.f32.gmra.mxu0 %v2441
    %v2481 = vpop.f32.mrf.mxu0
    %v2482 = vadd.f32 %v2212, %v2481
    %2483 = vdwg.mxu0
    %2484 = vmatpush.msra.mxu0 0.0
    %2485 = vmatpush.msra.mxu0 0.0
    %2486 = vmatpush.msra.mxu0 0.0
    %2487 = vmatpush.msra.mxu0 0.0
    %2488 = vmatpush.msra.mxu0 0.0
    %2489 = vmatpush.msra.mxu0 0.0
    %2490 = vmatpush.msra.mxu0 0.0
    %2491 = vmatpush.msra.mxu0 0.0
    %2492 = vmatpush.msra.mxu0 0.0
    %2493 = vmatpush.msra.mxu0 0.0
    %2494 = vmatpush.msra.mxu0 0.0
    %2495 = vmatpush.msra.mxu0 0.0
    %2496 = vmatpush.msra.mxu0 %v2112
    %2497 = vmatpush.msra.mxu0 %v2106
    %2498 = vmatpush.msra.mxu0 %v2100
    %2499 = vmatpush.msra.mxu0 %v2094
    %2500 = vmatmul.f32.gmra.mxu0 %v2420
    %v2501 = vpop.f32.mrf.mxu0
    %v2502 = vadd.f32 %v2232, %v2501
    %2503 = vmatmul.f32.gmra.mxu0 %v2423
    %v2504 = vpop.f32.mrf.mxu0
    %v2505 = vadd.f32 %v2235, %v2504
    %2506 = vmatmul.f32.gmra.mxu0 %v2426
    %v2507 = vpop.f32.mrf.mxu0
    %v2508 = vadd.f32 %v2238, %v2507
    %2509 = vmatmul.f32.gmra.mxu0 %v2429
    %v2510 = vpop.f32.mrf.mxu0
    %v2511 = vadd.f32 %v2241, %v2510
    %2512 = vmatmul.f32.gmra.mxu0 %v2432
    %v2513 = vpop.f32.mrf.mxu0
    %v2514 = vadd.f32 %v2244, %v2513
    %2515 = vmatmul.f32.gmra.mxu0 %v2435
    %v2516 = vpop.f32.mrf.mxu0
    %v2517 = vadd.f32 %v2247, %v2516
    %2518 = vmatmul.f32.gmra.mxu0 %v2438
    %v2519 = vpop.f32.mrf.mxu0
    %v2520 = vadd.f32 %v2250, %v2519
    %2521 = vmatmul.f32.gmra.mxu0 %v2441
    %v2522 = vpop.f32.mrf.mxu0
    %v2523 = vadd.f32 %v2253, %v2522
    %2524 = vdwg.mxu0
    %2525 = vmatpush.msra.mxu0 0.0
    %2526 = vmatpush.msra.mxu0 0.0
    %2527 = vmatpush.msra.mxu0 0.0
    %2528 = vmatpush.msra.mxu0 0.0
    %2529 = vmatpush.msra.mxu0 0.0
    %2530 = vmatpush.msra.mxu0 0.0
    %2531 = vmatpush.msra.mxu0 0.0
    %2532 = vmatpush.msra.mxu0 0.0
    %2533 = vmatpush.msra.mxu0 0.0
    %2534 = vmatpush.msra.mxu0 0.0
    %2535 = vmatpush.msra.mxu0 0.0
    %2536 = vmatpush.msra.mxu0 0.0
    %2537 = vmatpush.msra.mxu0 %v2113
    %2538 = vmatpush.msra.mxu0 %v2107
    %2539 = vmatpush.msra.mxu0 %v2101
    %2540 = vmatpush.msra.mxu0 %v2095
    %2541 = vmatmul.f32.gmra.mxu0 %v2420
    %v2542 = vpop.f32.mrf.mxu0
    %v2543 = vadd.f32 %v2273, %v2542
    %2544 = vmatmul.f32.gmra.mxu0 %v2423
    %v2545 = vpop.f32.mrf.mxu0
    %v2546 = vadd.f32 %v2276, %v2545
    %2547 = vmatmul.f32.gmra.mxu0 %v2426
    %v2548 = vpop.f32.mrf.mxu0
    %v2549 = vadd.f32 %v2279, %v2548
    %2550 = vmatmul.f32.gmra.mxu0 %v2429
    %v2551 = vpop.f32.mrf.mxu0
    %v2552 = vadd.f32 %v2282, %v2551
    %2553 = vmatmul.f32.gmra.mxu0 %v2432
    %v2554 = vpop.f32.mrf.mxu0
    %v2555 = vadd.f32 %v2285, %v2554
    %2556 = vmatmul.f32.gmra.mxu0 %v2435
    %v2557 = vpop.f32.mrf.mxu0
    %v2558 = vadd.f32 %v2288, %v2557
    %2559 = vmatmul.f32.gmra.mxu0 %v2438
    %v2560 = vpop.f32.mrf.mxu0
    %v2561 = vadd.f32 %v2291, %v2560
    %2562 = vmatmul.f32.gmra.mxu0 %v2441
    %v2563 = vpop.f32.mrf.mxu0
    %v2564 = vadd.f32 %v2294, %v2563
    %2565 = vdwg.mxu0
    %2566 = vmatpush.msra.mxu0 0.0
    %2567 = vmatpush.msra.mxu0 0.0
    %2568 = vmatpush.msra.mxu0 0.0
    %2569 = vmatpush.msra.mxu0 0.0
    %2570 = vmatpush.msra.mxu0 0.0
    %2571 = vmatpush.msra.mxu0 0.0
    %2572 = vmatpush.msra.mxu0 0.0
    %2573 = vmatpush.msra.mxu0 0.0
    %2574 = vmatpush.msra.mxu0 0.0
    %2575 = vmatpush.msra.mxu0 0.0
    %2576 = vmatpush.msra.mxu0 0.0
    %2577 = vmatpush.msra.mxu0 0.0
    %2578 = vmatpush.msra.mxu0 %v2114
    %2579 = vmatpush.msra.mxu0 %v2108
    %2580 = vmatpush.msra.mxu0 %v2102
    %2581 = vmatpush.msra.mxu0 %v2096
    %2582 = vmatmul.f32.gmra.mxu0 %v2420
    %v2583 = vpop.f32.mrf.mxu0
    %v2584 = vadd.f32 %v2314, %v2583
    %2585 = vmatmul.f32.gmra.mxu0 %v2423
    %v2586 = vpop.f32.mrf.mxu0
    %v2587 = vadd.f32 %v2317, %v2586
    %2588 = vmatmul.f32.gmra.mxu0 %v2426
    %v2589 = vpop.f32.mrf.mxu0
    %v2590 = vadd.f32 %v2320, %v2589
    %2591 = vmatmul.f32.gmra.mxu0 %v2429
    %v2592 = vpop.f32.mrf.mxu0
    %v2593 = vadd.f32 %v2323, %v2592
    %2594 = vmatmul.f32.gmra.mxu0 %v2432
    %v2595 = vpop.f32.mrf.mxu0
    %v2596 = vadd.f32 %v2326, %v2595
    %2597 = vmatmul.f32.gmra.mxu0 %v2435
    %v2598 = vpop.f32.mrf.mxu0
    %v2599 = vadd.f32 %v2329, %v2598
    %2600 = vmatmul.f32.gmra.mxu0 %v2438
    %v2601 = vpop.f32.mrf.mxu0
    %v2602 = vadd.f32 %v2332, %v2601
    %2603 = vmatmul.f32.gmra.mxu0 %v2441
    %v2604 = vpop.f32.mrf.mxu0
    %v2605 = vadd.f32 %v2335, %v2604
    %2606 = vdwg.mxu0
    %2607 = vmatpush.msra.mxu0 0.0
    %2608 = vmatpush.msra.mxu0 0.0
    %2609 = vmatpush.msra.mxu0 0.0
    %2610 = vmatpush.msra.mxu0 0.0
    %2611 = vmatpush.msra.mxu0 0.0
    %2612 = vmatpush.msra.mxu0 0.0
    %2613 = vmatpush.msra.mxu0 0.0
    %2614 = vmatpush.msra.mxu0 0.0
    %2615 = vmatpush.msra.mxu0 0.0
    %2616 = vmatpush.msra.mxu0 0.0
    %2617 = vmatpush.msra.mxu0 0.0
    %2618 = vmatpush.msra.mxu0 0.0
    %2619 = vmatpush.msra.mxu0 %v2115
    %2620 = vmatpush.msra.mxu0 %v2109
    %2621 = vmatpush.msra.mxu0 %v2103
    %2622 = vmatpush.msra.mxu0 %v2097
    %2623 = vmatmul.f32.gmra.mxu0 %v2420
    %v2624 = vpop.f32.mrf.mxu0
    %v2625 = vadd.f32 %v2355, %v2624
    %2626 = vmatmul.f32.gmra.mxu0 %v2423
    %v2627 = vpop.f32.mrf.mxu0
    %v2628 = vadd.f32 %v2358, %v2627
    %2629 = vmatmul.f32.gmra.mxu0 %v2426
    %v2630 = vpop.f32.mrf.mxu0
    %v2631 = vadd.f32 %v2361, %v2630
    %2632 = vmatmul.f32.gmra.mxu0 %v2429
    %v2633 = vpop.f32.mrf.mxu0
    %v2634 = vadd.f32 %v2364, %v2633
    %2635 = vmatmul.f32.gmra.mxu0 %v2432
    %v2636 = vpop.f32.mrf.mxu0
    %v2637 = vadd.f32 %v2367, %v2636
    %2638 = vmatmul.f32.gmra.mxu0 %v2435
    %v2639 = vpop.f32.mrf.mxu0
    %v2640 = vadd.f32 %v2370, %v2639
    %2641 = vmatmul.f32.gmra.mxu0 %v2438
    %v2642 = vpop.f32.mrf.mxu0
    %v2643 = vadd.f32 %v2373, %v2642
    %2644 = vmatmul.f32.gmra.mxu0 %v2441
    %v2645 = vpop.f32.mrf.mxu0
    %v2646 = vadd.f32 %v2376, %v2645
    %2647 = vdwg.mxu0
    %2648 = vmatpush.msra.mxu0 0.0
    %2649 = vmatpush.msra.mxu0 0.0
    %2650 = vmatpush.msra.mxu0 0.0
    %2651 = vmatpush.msra.mxu0 0.0
    %2652 = vmatpush.msra.mxu0 0.0
    %2653 = vmatpush.msra.mxu0 0.0
    %2654 = vmatpush.msra.mxu0 0.0
    %2655 = vmatpush.msra.mxu0 0.0
    %2656 = vmatpush.msra.mxu0 0.0
    %2657 = vmatpush.msra.mxu0 0.0
    %2658 = vmatpush.msra.mxu0 0.0
    %2659 = vmatpush.msra.mxu0 0.0
    %2660 = vmatpush.msra.mxu0 %v2116
    %2661 = vmatpush.msra.mxu0 %v2110
    %2662 = vmatpush.msra.mxu0 %v2104
    %2663 = vmatpush.msra.mxu0 %v2098
    %2664 = vmatmul.f32.gmra.mxu0 %v2420
    %v2665 = vpop.f32.mrf.mxu0
    %v2666 = vadd.f32 %v2396, %v2665
    %2667 = vmatmul.f32.gmra.mxu0 %v2423
    %v2668 = vpop.f32.mrf.mxu0
    %v2669 = vadd.f32 %v2399, %v2668
    %2670 = vmatmul.f32.gmra.mxu0 %v2426
    %v2671 = vpop.f32.mrf.mxu0
    %v2672 = vadd.f32 %v2402, %v2671
    %2673 = vmatmul.f32.gmra.mxu0 %v2429
    %v2674 = vpop.f32.mrf.mxu0
    %v2675 = vadd.f32 %v2405, %v2674
    %2676 = vmatmul.f32.gmra.mxu0 %v2432
    %v2677 = vpop.f32.mrf.mxu0
    %v2678 = vadd.f32 %v2408, %v2677
    %2679 = vmatmul.f32.gmra.mxu0 %v2435
    %v2680 = vpop.f32.mrf.mxu0
    %v2681 = vadd.f32 %v2411, %v2680
    %2682 = vmatmul.f32.gmra.mxu0 %v2438
    %v2683 = vpop.f32.mrf.mxu0
    %v2684 = vadd.f32 %v2414, %v2683
    %2685 = vmatmul.f32.gmra.mxu0 %v2441
    %v2686 = vpop.f32.mrf.mxu0
    %v2687 = vadd.f32 %v2417, %v2686
    %2688 = vdwg.mxu0
    %v2689 = vld [vmem:[%s10] sm:$0x3f]
    %v2691 = vperm.slane %v2689, 0
    %v2692 = vperm.slane %v2689, 1
    %v2693 = vperm.slane %v2689, 2
    %v2694 = vperm.slane %v2689, 3
    %v2695 = vperm.slane %v2689, 4
    %v2696 = vperm.slane %v2689, 5
    %v2703 = vadd.f32 %v2461, %v2691
    %v2704 = vadd.f32 %v2502, %v2692
    %v2705 = vadd.f32 %v2543, %v2693
    %v2706 = vadd.f32 %v2584, %v2694
    %v2707 = vadd.f32 %v2625, %v2695
    %v2708 = vadd.f32 %v2666, %v2696
    %v2709 = vadd.f32 %v2464, %v2691
    %v2710 = vadd.f32 %v2505, %v2692
    %v2711 = vadd.f32 %v2546, %v2693
    %v2712 = vadd.f32 %v2587, %v2694
    %v2713 = vadd.f32 %v2628, %v2695
    %v2714 = vadd.f32 %v2669, %v2696
    %v2715 = vadd.f32 %v2467, %v2691
    %v2716 = vadd.f32 %v2508, %v2692
    %v2717 = vadd.f32 %v2549, %v2693
    %v2718 = vadd.f32 %v2590, %v2694
    %v2719 = vadd.f32 %v2631, %v2695
    %v2720 = vadd.f32 %v2672, %v2696
    %v2721 = vadd.f32 %v2470, %v2691
    %v2722 = vadd.f32 %v2511, %v2692
    %v2723 = vadd.f32 %v2552, %v2693
    %v2724 = vadd.f32 %v2593, %v2694
    %v2725 = vadd.f32 %v2634, %v2695
    %v2726 = vadd.f32 %v2675, %v2696
    %v2727 = vadd.f32 %v2473, %v2691
    %v2728 = vadd.f32 %v2514, %v2692
    %v2729 = vadd.f32 %v2555, %v2693
    %v2730 = vadd.f32 %v2596, %v2694
    %v2731 = vadd.f32 %v2637, %v2695
    %v2732 = vadd.f32 %v2678, %v2696
    %v2733 = vadd.f32 %v2476, %v2691
    %v2734 = vadd.f32 %v2517, %v2692
    %v2735 = vadd.f32 %v2558, %v2693
    %v2736 = vadd.f32 %v2599, %v2694
    %v2737 = vadd.f32 %v2640, %v2695
    %v2738 = vadd.f32 %v2681, %v2696
    %v2739 = vadd.f32 %v2479, %v2691
    %v2740 = vadd.f32 %v2520, %v2692
    %v2741 = vadd.f32 %v2561, %v2693
    %v2742 = vadd.f32 %v2602, %v2694
    %v2743 = vadd.f32 %v2643, %v2695
    %v2744 = vadd.f32 %v2684, %v2696
    %v2745 = vadd.f32 %v2482, %v2691
    %v2746 = vadd.f32 %v2523, %v2692
    %v2747 = vadd.f32 %v2564, %v2693
    %v2748 = vadd.f32 %v2605, %v2694
    %v2749 = vadd.f32 %v2646, %v2695
    %v2750 = vadd.f32 %v2687, %v2696
    %2751 = vst [vmem:[#allocation3] sm:$0xff] %v2703
    %2752 = vst [vmem:[#allocation3 + $0x8] sm:$0xff] %v2704
    %2753 = vst [vmem:[#allocation3 + $0x10] sm:$0xff] %v2705
    %2754 = vst [vmem:[#allocation3 + $0x18] sm:$0xff] %v2706
    %2755 = vst [vmem:[#allocation3 + $0x20] sm:$0xff] %v2707
    %2756 = vst [vmem:[#allocation3 + $0x28] sm:$0xff] %v2708
    %2757 = vst [vmem:[#allocation3 + $0x30] sm:$0xff] %v2709
    %2758 = vst [vmem:[#allocation3 + $0x38] sm:$0xff] %v2710
    %2759 = vst [vmem:[#allocation3 + $0x40] sm:$0xff] %v2711
    %2760 = vst [vmem:[#allocation3 + $0x48] sm:$0xff] %v2712
    %2761 = vst [vmem:[#allocation3 + $0x50] sm:$0xff] %v2713
    %2762 = vst [vmem:[#allocation3 + $0x58] sm:$0xff] %v2714
    %2763 = vst [vmem:[#allocation3 + $0x60] sm:$0xff] %v2715
    %2764 = vst [vmem:[#allocation3 + $0x68] sm:$0xff] %v2716
    %2765 = vst [vmem:[#allocation3 + $0x70] sm:$0xff] %v2717
    %2766 = vst [vmem:[#allocation3 + $0x78] sm:$0xff] %v2718
    %2767 = vst [vmem:[#allocation3 + $0x80] sm:$0xff] %v2719
    %2768 = vst [vmem:[#allocation3 + $0x88] sm:$0xff] %v2720
    %2769 = vst [vmem:[#allocation3 + $0x90] sm:$0xff] %v2721
    %2770 = vst [vmem:[#allocation3 + $0x98] sm:$0xff] %v2722
    %2771 = vst [vmem:[#allocation3 + $0xa0] sm:$0xff] %v2723
    %2772 = vst [vmem:[#allocation3 + $0xa8] sm:$0xff] %v2724
    %2773 = vst [vmem:[#allocation3 + $0xb0] sm:$0xff] %v2725
    %2774 = vst [vmem:[#allocation3 + $0xb8] sm:$0xff] %v2726
    %2775 = vst [vmem:[#allocation3 + $0xc0] sm:$0xff] %v2727
    %2776 = vst [vmem:[#allocation3 + $0xc8] sm:$0xff] %v2728
    %2777 = vst [vmem:[#allocation3 + $0xd0] sm:$0xff] %v2729
    %2778 = vst [vmem:[#allocation3 + $0xd8] sm:$0xff] %v2730
    %2779 = vst [vmem:[#allocation3 + $0xe0] sm:$0xff] %v2731
    %2780 = vst [vmem:[#allocation3 + $0xe8] sm:$0xff] %v2732
    %2781 = vst [vmem:[#allocation3 + $0xf0] sm:$0xff] %v2733
    %2782 = vst [vmem:[#allocation3 + $0xf8] sm:$0xff] %v2734
    %2783 = vst [vmem:[#allocation3 + $0x100] sm:$0xff] %v2735
    %2784 = vst [vmem:[#allocation3 + $0x108] sm:$0xff] %v2736
    %2785 = vst [vmem:[#allocation3 + $0x110] sm:$0xff] %v2737
    %2786 = vst [vmem:[#allocation3 + $0x118] sm:$0xff] %v2738
    %2787 = vst [vmem:[#allocation3 + $0x120] sm:$0xff] %v2739
    %2788 = vst [vmem:[#allocation3 + $0x128] sm:$0xff] %v2740
    %2789 = vst [vmem:[#allocation3 + $0x130] sm:$0xff] %v2741
    %2790 = vst [vmem:[#allocation3 + $0x138] sm:$0xff] %v2742
    %2791 = vst [vmem:[#allocation3 + $0x140] sm:$0xff] %v2743
    %2792 = vst [vmem:[#allocation3 + $0x148] sm:$0xff] %v2744
    %2793 = vst [vmem:[#allocation3 + $0x150] sm:$0xff] %v2745
    %2794 = vst [vmem:[#allocation3 + $0x158] sm:$0xff] %v2746
    %2795 = vst [vmem:[#allocation3 + $0x160] sm:$0xff] %v2747
    %2796 = vst [vmem:[#allocation3 + $0x168] sm:$0xff] %v2748
    %2797 = vst [vmem:[#allocation3 + $0x170] sm:$0xff] %v2749
    %2798 = vst [vmem:[#allocation3 + $0x178] sm:$0xff] %v2750
    %v2799 = vld [vmem:[#allocation14] sm:$0xff]
    %v2800 = vld [vmem:[#allocation14 + $0x8] sm:$0xff]
    %v2801 = vld [vmem:[#allocation14 + $0x10] sm:$0xff]
    %v2802 = vld [vmem:[#allocation14 + $0x18] sm:$0xff]
    %v2803 = vld [vmem:[#allocation14 + $0x20] sm:$0xff]
    %v2804 = vld [vmem:[#allocation14 + $0x28] sm:$0xff]
    %v2805 = vld [vmem:[#allocation14 + $0x30] sm:$0xff]
    %v2806 = vld [vmem:[#allocation14 + $0x38] sm:$0xff]
    %v2807 = vld [vmem:[#allocation14 + $0x40] sm:$0xff]
    %v2808 = vld [vmem:[#allocation14 + $0x48] sm:$0xff]
    %v2809 = vld [vmem:[#allocation14 + $0x50] sm:$0xff]
    %v2810 = vld [vmem:[#allocation14 + $0x58] sm:$0xff]
    %v2811 = vld [vmem:[%s12] sm:$0x7]
    %v2812 = vld [vmem:[#allocation15] sm:$0xff]
    %v2813 = vld [vmem:[#allocation15 + $0x8] sm:$0xff]
    %v2814 = vld [vmem:[#allocation15 + $0x10] sm:$0xff]
    %v2815 = vld [vmem:[#allocation15 + $0x18] sm:$0xff]
    %v2816 = vld [vmem:[#allocation15 + $0x20] sm:$0xff]
    %v2817 = vld [vmem:[#allocation15 + $0x28] sm:$0xff]
    %v2818 = vld [vmem:[#allocation15 + $0x30] sm:$0xff]
    %v2819 = vld [vmem:[#allocation15 + $0x38] sm:$0xff]
    %v2820 = vld [vmem:[#allocation15 + $0x40] sm:$0xff]
    %v2821 = vld [vmem:[#allocation15 + $0x48] sm:$0xff]
    %v2822 = vld [vmem:[#allocation15 + $0x50] sm:$0xff]
    %v2823 = vld [vmem:[#allocation15 + $0x58] sm:$0xff]
    %v2824 = vld [vmem:[%s14] sm:$0x7]
    %s2825 = smul.addr %s615, 8
    %s2826 = scalar_lea.vmem [#allocation3], %s2825
    %v2827 = vld [vmem:[%s2826] sm:$0xff]
    %v2828 = vld [vmem:[%s2826 + $0x8] sm:$0xff]
    %v2829 = vld [vmem:[%s2826 + $0x10] sm:$0xff]
    %s2830 = smul.addr %s621, 8
    %s2831 = scalar_lea.vmem [#allocation3], %s2830
    %v2832 = vld [vmem:[%s2831 + $0x18] sm:$0xff]
    %v2833 = vld [vmem:[%s2831 + $0x20] sm:$0xff]
    %v2834 = vld [vmem:[%s2831 + $0x28] sm:$0xff]
    %v2836 = vperm.slane %v2811, 0
    %v2837 = vperm.slane %v2811, 1
    %v2838 = vperm.slane %v2811, 2
    %2842 = vmatpush.msra.mxu0 0.0
    %2843 = vmatpush.msra.mxu0 0.0
    %2844 = vmatpush.msra.mxu0 0.0
    %2845 = vmatpush.msra.mxu0 0.0
    %2846 = vmatpush.msra.mxu0 0.0
    %2847 = vmatpush.msra.mxu0 0.0
    %2848 = vmatpush.msra.mxu0 0.0
    %2849 = vmatpush.msra.mxu0 0.0
    %2850 = vmatpush.msra.mxu0 0.0
    %2851 = vmatpush.msra.mxu0 0.0
    %2852 = vmatpush.msra.mxu0 0.0
    %2853 = vmatpush.msra.mxu0 0.0
    %2854 = vmatpush.msra.mxu0 %v2808
    %2855 = vmatpush.msra.mxu0 %v2805
    %2856 = vmatpush.msra.mxu0 %v2802
    %2857 = vmatpush.msra.mxu0 %v2799
    %2858 = vmatmul.f32.gmra.mxu0 %v636
    %v2859 = vpop.f32.mrf.mxu0
    %v2860 = vadd.f32 %v2836, %v2859
    %2861 = vdwg.mxu0
    %2862 = vmatpush.msra.mxu0 0.0
    %2863 = vmatpush.msra.mxu0 0.0
    %2864 = vmatpush.msra.mxu0 0.0
    %2865 = vmatpush.msra.mxu0 0.0
    %2866 = vmatpush.msra.mxu0 0.0
    %2867 = vmatpush.msra.mxu0 0.0
    %2868 = vmatpush.msra.mxu0 0.0
    %2869 = vmatpush.msra.mxu0 0.0
    %2870 = vmatpush.msra.mxu0 0.0
    %2871 = vmatpush.msra.mxu0 0.0
    %2872 = vmatpush.msra.mxu0 0.0
    %2873 = vmatpush.msra.mxu0 0.0
    %2874 = vmatpush.msra.mxu0 %v2809
    %2875 = vmatpush.msra.mxu0 %v2806
    %2876 = vmatpush.msra.mxu0 %v2803
    %2877 = vmatpush.msra.mxu0 %v2800
    %2878 = vmatmul.f32.gmra.mxu0 %v636
    %v2879 = vpop.f32.mrf.mxu0
    %v2880 = vadd.f32 %v2837, %v2879
    %2881 = vdwg.mxu0
    %2882 = vmatpush.msra.mxu0 0.0
    %2883 = vmatpush.msra.mxu0 0.0
    %2884 = vmatpush.msra.mxu0 0.0
    %2885 = vmatpush.msra.mxu0 0.0
    %2886 = vmatpush.msra.mxu0 0.0
    %2887 = vmatpush.msra.mxu0 0.0
    %2888 = vmatpush.msra.mxu0 0.0
    %2889 = vmatpush.msra.mxu0 0.0
    %2890 = vmatpush.msra.mxu0 0.0
    %2891 = vmatpush.msra.mxu0 0.0
    %2892 = vmatpush.msra.mxu0 0.0
    %2893 = vmatpush.msra.mxu0 0.0
    %2894 = vmatpush.msra.mxu0 %v2810
    %2895 = vmatpush.msra.mxu0 %v2807
    %2896 = vmatpush.msra.mxu0 %v2804
    %2897 = vmatpush.msra.mxu0 %v2801
    %2898 = vmatmul.f32.gmra.mxu0 %v636
    %v2899 = vpop.f32.mrf.mxu0
    %v2900 = vadd.f32 %v2838, %v2899
    %2901 = vdwg.mxu0
    %v2903 = vperm.slane %v2824, 0
    %v2904 = vperm.slane %v2824, 1
    %v2905 = vperm.slane %v2824, 2
    %2909 = vmatpush.msra.mxu0 0.0
    %2910 = vmatpush.msra.mxu0 0.0
    %2911 = vmatpush.msra.mxu0 0.0
    %2912 = vmatpush.msra.mxu0 0.0
    %2913 = vmatpush.msra.mxu0 0.0
    %2914 = vmatpush.msra.mxu0 0.0
    %2915 = vmatpush.msra.mxu0 0.0
    %2916 = vmatpush.msra.mxu0 0.0
    %2917 = vmatpush.msra.mxu0 0.0
    %2918 = vmatpush.msra.mxu0 0.0
    %2919 = vmatpush.msra.mxu0 0.0
    %2920 = vmatpush.msra.mxu0 0.0
    %2921 = vmatpush.msra.mxu0 %v2821
    %2922 = vmatpush.msra.mxu0 %v2818
    %2923 = vmatpush.msra.mxu0 %v2815
    %2924 = vmatpush.msra.mxu0 %v2812
    %2925 = vmatmul.f32.gmra.mxu0 %v636
    %v2926 = vpop.f32.mrf.mxu0
    %v2927 = vadd.f32 %v2903, %v2926
    %2928 = vdwg.mxu0
    %2929 = vmatpush.msra.mxu0 0.0
    %2930 = vmatpush.msra.mxu0 0.0
    %2931 = vmatpush.msra.mxu0 0.0
    %2932 = vmatpush.msra.mxu0 0.0
    %2933 = vmatpush.msra.mxu0 0.0
    %2934 = vmatpush.msra.mxu0 0.0
    %2935 = vmatpush.msra.mxu0 0.0
    %2936 = vmatpush.msra.mxu0 0.0
    %2937 = vmatpush.msra.mxu0 0.0
    %2938 = vmatpush.msra.mxu0 0.0
    %2939 = vmatpush.msra.mxu0 0.0
    %2940 = vmatpush.msra.mxu0 0.0
    %2941 = vmatpush.msra.mxu0 %v2822
    %2942 = vmatpush.msra.mxu0 %v2819
    %2943 = vmatpush.msra.mxu0 %v2816
    %2944 = vmatpush.msra.mxu0 %v2813
    %2945 = vmatmul.f32.gmra.mxu0 %v636
    %v2946 = vpop.f32.mrf.mxu0
    %v2947 = vadd.f32 %v2904, %v2946
    %2948 = vdwg.mxu0
    %2949 = vmatpush.msra.mxu0 0.0
    %2950 = vmatpush.msra.mxu0 0.0
    %2951 = vmatpush.msra.mxu0 0.0
    %2952 = vmatpush.msra.mxu0 0.0
    %2953 = vmatpush.msra.mxu0 0.0
    %2954 = vmatpush.msra.mxu0 0.0
    %2955 = vmatpush.msra.mxu0 0.0
    %2956 = vmatpush.msra.mxu0 0.0
    %2957 = vmatpush.msra.mxu0 0.0
    %2958 = vmatpush.msra.mxu0 0.0
    %2959 = vmatpush.msra.mxu0 0.0
    %2960 = vmatpush.msra.mxu0 0.0
    %2961 = vmatpush.msra.mxu0 %v2823
    %2962 = vmatpush.msra.mxu0 %v2820
    %2963 = vmatpush.msra.mxu0 %v2817
    %2964 = vmatpush.msra.mxu0 %v2814
    %2965 = vmatmul.f32.gmra.mxu0 %v636
    %v2966 = vpop.f32.mrf.mxu0
    %v2967 = vadd.f32 %v2905, %v2966
    %2968 = vdwg.mxu0
    %v2969 = vadd.f32 %v2827, %v2860
    %v2970 = vadd.f32 %v2828, %v2880
    %v2971 = vmul.f32 %v2969, 0.5
    %v2972 = vmul.f32 %v2970, 0.5
    %v2973 = vtanh.pop %v2971
    %v2974 = vtanh.pop %v2972
    %v2975 = vadd.f32 %v2973, 1.0
    %v2976 = vadd.f32 %v2974, 1.0
    %v2977 = vmul.f32 %v2975, 0.5
    %v2978 = vmul.f32 %v2976, 0.5
    %v2979 = vmul.f32 %v2977, %v2900
    %v2980 = vadd.f32 %v2829, %v2979
    %v2981 = vtanh.pop %v2980
    %v2982 = vsub.f32 1.0, %v2978
    %v2983 = vmul.f32 %v2982, %v2981
    %v2984 = vmul.f32 %v2978, 0.0
    %v2985 = vadd.f32 %v2983, %v2984
    %v2986 = vadd.f32 %v2832, %v2927
    %v2987 = vadd.f32 %v2833, %v2947
    %v2988 = vmul.f32 %v2986, 0.5
    %v2989 = vmul.f32 %v2987, 0.5
    %v2990 = vtanh.pop %v2988
    %v2991 = vtanh.pop %v2989
    %v2992 = vadd.f32 %v2990, 1.0
    %v2993 = vadd.f32 %v2991, 1.0
    %v2994 = vmul.f32 %v2992, 0.5
    %v2995 = vmul.f32 %v2993, 0.5
    %v2996 = vmul.f32 %v2994, %v2967
    %v2997 = vadd.f32 %v2834, %v2996
    %v2998 = vtanh.pop %v2997
    %v2999 = vsub.f32 1.0, %v2995
    %v3000 = vmul.f32 %v2999, %v2998
    %v3001 = vmul.f32 %v2995, 0.0
    %v3002 = vadd.f32 %v3000, %v3001
    %v3003 = vsel %vm805, %v2985, 0.0
    %v3004 = vsel %vm811, %v3002, 0.0
    %s3005 = smul.addr %s816, 8
    %s3006 = scalar_lea.vmem [#allocation3], %s3005
    %v3007 = vld [vmem:[%s3006] sm:$0xff]
    %v3008 = vld [vmem:[%s3006 + $0x8] sm:$0xff]
    %v3009 = vld [vmem:[%s3006 + $0x10] sm:$0xff]
    %s3010 = smul.addr %s822, 8
    %s3011 = scalar_lea.vmem [#allocation3], %s3010
    %v3012 = vld [vmem:[%s3011 + $0x18] sm:$0xff]
    %v3013 = vld [vmem:[%s3011 + $0x20] sm:$0xff]
    %v3014 = vld [vmem:[%s3011 + $0x28] sm:$0xff]
    %v3016 = vsel %vm634, %v3003, 0
    %3018 = vmatpush.msra.mxu0 0.0
    %3019 = vmatpush.msra.mxu0 0.0
    %3020 = vmatpush.msra.mxu0 0.0
    %3021 = vmatpush.msra.mxu0 0.0
    %3022 = vmatpush.msra.mxu0 0.0
    %3023 = vmatpush.msra.mxu0 0.0
    %3024 = vmatpush.msra.mxu0 0.0
    %3025 = vmatpush.msra.mxu0 0.0
    %3026 = vmatpush.msra.mxu0 0.0
    %3027 = vmatpush.msra.mxu0 0.0
    %3028 = vmatpush.msra.mxu0 0.0
    %3029 = vmatpush.msra.mxu0 0.0
    %3030 = vmatpush.msra.mxu0 %v2808
    %3031 = vmatpush.msra.mxu0 %v2805
    %3032 = vmatpush.msra.mxu0 %v2802
    %3033 = vmatpush.msra.mxu0 %v2799
    %3034 = vmatmul.f32.gmra.mxu0 %v3016
    %v3035 = vpop.f32.mrf.mxu0
    %v3036 = vadd.f32 %v2836, %v3035
    %3037 = vdwg.mxu0
    %3038 = vmatpush.msra.mxu0 0.0
    %3039 = vmatpush.msra.mxu0 0.0
    %3040 = vmatpush.msra.mxu0 0.0
    %3041 = vmatpush.msra.mxu0 0.0
    %3042 = vmatpush.msra.mxu0 0.0
    %3043 = vmatpush.msra.mxu0 0.0
    %3044 = vmatpush.msra.mxu0 0.0
    %3045 = vmatpush.msra.mxu0 0.0
    %3046 = vmatpush.msra.mxu0 0.0
    %3047 = vmatpush.msra.mxu0 0.0
    %3048 = vmatpush.msra.mxu0 0.0
    %3049 = vmatpush.msra.mxu0 0.0
    %3050 = vmatpush.msra.mxu0 %v2809
    %3051 = vmatpush.msra.mxu0 %v2806
    %3052 = vmatpush.msra.mxu0 %v2803
    %3053 = vmatpush.msra.mxu0 %v2800
    %3054 = vmatmul.f32.gmra.mxu0 %v3016
    %v3055 = vpop.f32.mrf.mxu0
    %v3056 = vadd.f32 %v2837, %v3055
    %3057 = vdwg.mxu0
    %3058 = vmatpush.msra.mxu0 0.0
    %3059 = vmatpush.msra.mxu0 0.0
    %3060 = vmatpush.msra.mxu0 0.0
    %3061 = vmatpush.msra.mxu0 0.0
    %3062 = vmatpush.msra.mxu0 0.0
    %3063 = vmatpush.msra.mxu0 0.0
    %3064 = vmatpush.msra.mxu0 0.0
    %3065 = vmatpush.msra.mxu0 0.0
    %3066 = vmatpush.msra.mxu0 0.0
    %3067 = vmatpush.msra.mxu0 0.0
    %3068 = vmatpush.msra.mxu0 0.0
    %3069 = vmatpush.msra.mxu0 0.0
    %3070 = vmatpush.msra.mxu0 %v2810
    %3071 = vmatpush.msra.mxu0 %v2807
    %3072 = vmatpush.msra.mxu0 %v2804
    %3073 = vmatpush.msra.mxu0 %v2801
    %3074 = vmatmul.f32.gmra.mxu0 %v3016
    %v3075 = vpop.f32.mrf.mxu0
    %v3076 = vadd.f32 %v2838, %v3075
    %3077 = vdwg.mxu0
    %v3079 = vsel %vm634, %v3004, 0
    %3081 = vmatpush.msra.mxu0 0.0
    %3082 = vmatpush.msra.mxu0 0.0
    %3083 = vmatpush.msra.mxu0 0.0
    %3084 = vmatpush.msra.mxu0 0.0
    %3085 = vmatpush.msra.mxu0 0.0
    %3086 = vmatpush.msra.mxu0 0.0
    %3087 = vmatpush.msra.mxu0 0.0
    %3088 = vmatpush.msra.mxu0 0.0
    %3089 = vmatpush.msra.mxu0 0.0
    %3090 = vmatpush.msra.mxu0 0.0
    %3091 = vmatpush.msra.mxu0 0.0
    %3092 = vmatpush.msra.mxu0 0.0
    %3093 = vmatpush.msra.mxu0 %v2821
    %3094 = vmatpush.msra.mxu0 %v2818
    %3095 = vmatpush.msra.mxu0 %v2815
    %3096 = vmatpush.msra.mxu0 %v2812
    %3097 = vmatmul.f32.gmra.mxu0 %v3079
    %v3098 = vpop.f32.mrf.mxu0
    %v3099 = vadd.f32 %v2903, %v3098
    %3100 = vdwg.mxu0
    %3101 = vmatpush.msra.mxu0 0.0
    %3102 = vmatpush.msra.mxu0 0.0
    %3103 = vmatpush.msra.mxu0 0.0
    %3104 = vmatpush.msra.mxu0 0.0
    %3105 = vmatpush.msra.mxu0 0.0
    %3106 = vmatpush.msra.mxu0 0.0
    %3107 = vmatpush.msra.mxu0 0.0
    %3108 = vmatpush.msra.mxu0 0.0
    %3109 = vmatpush.msra.mxu0 0.0
    %3110 = vmatpush.msra.mxu0 0.0
    %3111 = vmatpush.msra.mxu0 0.0
    %3112 = vmatpush.msra.mxu0 0.0
    %3113 = vmatpush.msra.mxu0 %v2822
    %3114 = vmatpush.msra.mxu0 %v2819
    %3115 = vmatpush.msra.mxu0 %v2816
    %3116 = vmatpush.msra.mxu0 %v2813
    %3117 = vmatmul.f32.gmra.mxu0 %v3079
    %v3118 = vpop.f32.mrf.mxu0
    %v3119 = vadd.f32 %v2904, %v3118
    %3120 = vdwg.mxu0
    %3121 = vmatpush.msra.mxu0 0.0
    %3122 = vmatpush.msra.mxu0 0.0
    %3123 = vmatpush.msra.mxu0 0.0
    %3124 = vmatpush.msra.mxu0 0.0
    %3125 = vmatpush.msra.mxu0 0.0
    %3126 = vmatpush.msra.mxu0 0.0
    %3127 = vmatpush.msra.mxu0 0.0
    %3128 = vmatpush.msra.mxu0 0.0
    %3129 = vmatpush.msra.mxu0 0.0
    %3130 = vmatpush.msra.mxu0 0.0
    %3131 = vmatpush.msra.mxu0 0.0
    %3132 = vmatpush.msra.mxu0 0.0
    %3133 = vmatpush.msra.mxu0 %v2823
    %3134 = vmatpush.msra.mxu0 %v2820
    %3135 = vmatpush.msra.mxu0 %v2817
    %3136 = vmatpush.msra.mxu0 %v2814
    %3137 = vmatmul.f32.gmra.mxu0 %v3079
    %v3138 = vpop.f32.mrf.mxu0
    %v3139 = vadd.f32 %v2905, %v3138
    %3140 = vdwg.mxu0
    %v3141 = vadd.f32 %v3007, %v3036
    %v3142 = vadd.f32 %v3008, %v3056
    %v3143 = vmul.f32 %v3141, 0.5
    %v3144 = vmul.f32 %v3142, 0.5
    %v3145 = vtanh.pop %v3143
    %v3146 = vtanh.pop %v3144
    %v3147 = vadd.f32 %v3145, 1.0
    %v3148 = vadd.f32 %v3146, 1.0
    %v3149 = vmul.f32 %v3147, 0.5
    %v3150 = vmul.f32 %v3148, 0.5
    %v3151 = vmul.f32 %v3149, %v3076
    %v3152 = vadd.f32 %v3009, %v3151
    %v3153 = vtanh.pop %v3152
    %v3154 = vsub.f32 1.0, %v3150
    %v3155 = vmul.f32 %v3154, %v3153
    %v3156 = vmul.f32 %v3150, %v3003
    %v3157 = vadd.f32 %v3155, %v3156
    %v3158 = vadd.f32 %v3012, %v3099
    %v3159 = vadd.f32 %v3013, %v3119
    %v3160 = vmul.f32 %v3158, 0.5
    %v3161 = vmul.f32 %v3159, 0.5
    %v3162 = vtanh.pop %v3160
    %v3163 = vtanh.pop %v3161
    %v3164 = vadd.f32 %v3162, 1.0
    %v3165 = vadd.f32 %v3163, 1.0
    %v3166 = vmul.f32 %v3164, 0.5
    %v3167 = vmul.f32 %v3165, 0.5
    %v3168 = vmul.f32 %v3166, %v3139
    %v3169 = vadd.f32 %v3014, %v3168
    %v3170 = vtanh.pop %v3169
    %v3171 = vsub.f32 1.0, %v3167
    %v3172 = vmul.f32 %v3171, %v3170
    %v3173 = vmul.f32 %v3167, %v3004
    %v3174 = vadd.f32 %v3172, %v3173
    %v3175 = vsel %vm994, %v3157, %v3003
    %v3176 = vsel %vm1000, %v3174, %v3004
    %s3177 = smul.addr %s1008, 8
    %s3178 = scalar_lea.vmem [#allocation3], %s3177
    %v3179 = vld [vmem:[%s3178] sm:$0xff]
    %v3180 = vld [vmem:[%s3178 + $0x8] sm:$0xff]
    %v3181 = vld [vmem:[%s3178 + $0x10] sm:$0xff]
    %s3182 = smul.addr %s1014, 8
    %s3183 = scalar_lea.vmem [#allocation3], %s3182
    %v3184 = vld [vmem:[%s3183 + $0x18] sm:$0xff]
    %v3185 = vld [vmem:[%s3183 + $0x20] sm:$0xff]
    %v3186 = vld [vmem:[%s3183 + $0x28] sm:$0xff]
    %v3188 = vsel %vm634, %v3175, 0
    %3190 = vmatpush.msra.mxu0 0.0
    %3191 = vmatpush.msra.mxu0 0.0
    %3192 = vmatpush.msra.mxu0 0.0
    %3193 = vmatpush.msra.mxu0 0.0
    %3194 = vmatpush.msra.mxu0 0.0
    %3195 = vmatpush.msra.mxu0 0.0
    %3196 = vmatpush.msra.mxu0 0.0
    %3197 = vmatpush.msra.mxu0 0.0
    %3198 = vmatpush.msra.mxu0 0.0
    %3199 = vmatpush.msra.mxu0 0.0
    %3200 = vmatpush.msra.mxu0 0.0
    %3201 = vmatpush.msra.mxu0 0.0
    %3202 = vmatpush.msra.mxu0 %v2808
    %3203 = vmatpush.msra.mxu0 %v2805
    %3204 = vmatpush.msra.mxu0 %v2802
    %3205 = vmatpush.msra.mxu0 %v2799
    %3206 = vmatmul.f32.gmra.mxu0 %v3188
    %v3207 = vpop.f32.mrf.mxu0
    %v3208 = vadd.f32 %v2836, %v3207
    %3209 = vdwg.mxu0
    %3210 = vmatpush.msra.mxu0 0.0
    %3211 = vmatpush.msra.mxu0 0.0
    %3212 = vmatpush.msra.mxu0 0.0
    %3213 = vmatpush.msra.mxu0 0.0
    %3214 = vmatpush.msra.mxu0 0.0
    %3215 = vmatpush.msra.mxu0 0.0
    %3216 = vmatpush.msra.mxu0 0.0
    %3217 = vmatpush.msra.mxu0 0.0
    %3218 = vmatpush.msra.mxu0 0.0
    %3219 = vmatpush.msra.mxu0 0.0
    %3220 = vmatpush.msra.mxu0 0.0
    %3221 = vmatpush.msra.mxu0 0.0
    %3222 = vmatpush.msra.mxu0 %v2809
    %3223 = vmatpush.msra.mxu0 %v2806
    %3224 = vmatpush.msra.mxu0 %v2803
    %3225 = vmatpush.msra.mxu0 %v2800
    %3226 = vmatmul.f32.gmra.mxu0 %v3188
    %v3227 = vpop.f32.mrf.mxu0
    %v3228 = vadd.f32 %v2837, %v3227
    %3229 = vdwg.mxu0
    %3230 = vmatpush.msra.mxu0 0.0
    %3231 = vmatpush.msra.mxu0 0.0
    %3232 = vmatpush.msra.mxu0 0.0
    %3233 = vmatpush.msra.mxu0 0.0
    %3234 = vmatpush.msra.mxu0 0.0
    %3235 = vmatpush.msra.mxu0 0.0
    %3236 = vmatpush.msra.mxu0 0.0
    %3237 = vmatpush.msra.mxu0 0.0
    %3238 = vmatpush.msra.mxu0 0.0
    %3239 = vmatpush.msra.mxu0 0.0
    %3240 = vmatpush.msra.mxu0 0.0
    %3241 = vmatpush.msra.mxu0 0.0
    %3242 = vmatpush.msra.mxu0 %v2810
    %3243 = vmatpush.msra.mxu0 %v2807
    %3244 = vmatpush.msra.mxu0 %v2804
    %3245 = vmatpush.msra.mxu0 %v2801
    %3246 = vmatmul.f32.gmra.mxu0 %v3188
    %v3247 = vpop.f32.mrf.mxu0
    %v3248 = vadd.f32 %v2838, %v3247
    %3249 = vdwg.mxu0
    %v3251 = vsel %vm634, %v3176, 0
    %3253 = vmatpush.msra.mxu0 0.0
    %3254 = vmatpush.msra.mxu0 0.0
    %3255 = vmatpush.msra.mxu0 0.0
    %3256 = vmatpush.msra.mxu0 0.0
    %3257 = vmatpush.msra.mxu0 0.0
    %3258 = vmatpush.msra.mxu0 0.0
    %3259 = vmatpush.msra.mxu0 0.0
    %3260 = vmatpush.msra.mxu0 0.0
    %3261 = vmatpush.msra.mxu0 0.0
    %3262 = vmatpush.msra.mxu0 0.0
    %3263 = vmatpush.msra.mxu0 0.0
    %3264 = vmatpush.msra.mxu0 0.0
    %3265 = vmatpush.msra.mxu0 %v2821
    %3266 = vmatpush.msra.mxu0 %v2818
    %3267 = vmatpush.msra.mxu0 %v2815
    %3268 = vmatpush.msra.mxu0 %v2812
    %3269 = vmatmul.f32.gmra.mxu0 %v3251
    %v3270 = vpop.f32.mrf.mxu0
    %v3271 = vadd.f32 %v2903, %v3270
    %3272 = vdwg.mxu0
    %3273 = vmatpush.msra.mxu0 0.0
    %3274 = vmatpush.msra.mxu0 0.0
    %3275 = vmatpush.msra.mxu0 0.0
    %3276 = vmatpush.msra.mxu0 0.0
    %3277 = vmatpush.msra.mxu0 0.0
    %3278 = vmatpush.msra.mxu0 0.0
    %3279 = vmatpush.msra.mxu0 0.0
    %3280 = vmatpush.msra.mxu0 0.0
    %3281 = vmatpush.msra.mxu0 0.0
    %3282 = vmatpush.msra.mxu0 0.0
    %3283 = vmatpush.msra.mxu0 0.0
    %3284 = vmatpush.msra.mxu0 0.0
    %3285 = vmatpush.msra.mxu0 %v2822
    %3286 = vmatpush.msra.mxu0 %v2819
    %3287 = vmatpush.msra.mxu0 %v2816
    %3288 = vmatpush.msra.mxu0 %v2813
    %3289 = vmatmul.f32.gmra.mxu0 %v3251
    %v3290 = vpop.f32.mrf.mxu0
    %v3291 = vadd.f32 %v2904, %v3290
    %3292 = vdwg.mxu0
    %3293 = vmatpush.msra.mxu0 0.0
    %3294 = vmatpush.msra.mxu0 0.0
    %3295 = vmatpush.msra.mxu0 0.0
    %3296 = vmatpush.msra.mxu0 0.0
    %3297 = vmatpush.msra.mxu0 0.0
    %3298 = vmatpush.msra.mxu0 0.0
    %3299 = vmatpush.msra.mxu0 0.0
    %3300 = vmatpush.msra.mxu0 0.0
    %3301 = vmatpush.msra.mxu0 0.0
    %3302 = vmatpush.msra.mxu0 0.0
    %3303 = vmatpush.msra.mxu0 0.0
    %3304 = vmatpush.msra.mxu0 0.0
    %3305 = vmatpush.msra.mxu0 %v2823
    %3306 = vmatpush.msra.mxu0 %v2820
    %3307 = vmatpush.msra.mxu0 %v2817
    %3308 = vmatpush.msra.mxu0 %v2814
    %3309 = vmatmul.f32.gmra.mxu0 %v3251
    %v3310 = vpop.f32.mrf.mxu0
    %v3311 = vadd.f32 %v2905, %v3310
    %3312 = vdwg.mxu0
    %v3313 = vadd.f32 %v3179, %v3208
    %v3314 = vadd.f32 %v3180, %v3228
    %v3315 = vmul.f32 %v3313, 0.5
    %v3316 = vmul.f32 %v3314, 0.5
    %v3317 = vtanh.pop %v3315
    %v3318 = vtanh.pop %v3316
    %v3319 = vadd.f32 %v3317, 1.0
    %v3320 = vadd.f32 %v3318, 1.0
    %v3321 = vmul.f32 %v3319, 0.5
    %v3322 = vmul.f32 %v3320, 0.5
    %v3323 = vmul.f32 %v3321, %v3248
    %v3324 = vadd.f32 %v3181, %v3323
    %v3325 = vtanh.pop %v3324
    %v3326 = vsub.f32 1.0, %v3322
    %v3327 = vmul.f32 %v3326, %v3325
    %v3328 = vmul.f32 %v3322, %v3175
    %v3329 = vadd.f32 %v3327, %v3328
    %v3330 = vadd.f32 %v3184, %v3271
    %v3331 = vadd.f32 %v3185, %v3291
    %v3332 = vmul.f32 %v3330, 0.5
    %v3333 = vmul.f32 %v3331, 0.5
    %v3334 = vtanh.pop %v3332
    %v3335 = vtanh.pop %v3333
    %v3336 = vadd.f32 %v3334, 1.0
    %v3337 = vadd.f32 %v3335, 1.0
    %v3338 = vmul.f32 %v3336, 0.5
    %v3339 = vmul.f32 %v3337, 0.5
    %v3340 = vmul.f32 %v3338, %v3311
    %v3341 = vadd.f32 %v3186, %v3340
    %v3342 = vtanh.pop %v3341
    %v3343 = vsub.f32 1.0, %v3339
    %v3344 = vmul.f32 %v3343, %v3342
    %v3345 = vmul.f32 %v3339, %v3176
    %v3346 = vadd.f32 %v3344, %v3345
    %v3347 = vsel %vm1186, %v3329, %v3175
    %v3348 = vsel %vm1192, %v3346, %v3176
    %s3349 = smul.addr %s1200, 8
    %s3350 = scalar_lea.vmem [#allocation3], %s3349
    %v3351 = vld [vmem:[%s3350] sm:$0xff]
    %v3352 = vld [vmem:[%s3350 + $0x8] sm:$0xff]
    %v3353 = vld [vmem:[%s3350 + $0x10] sm:$0xff]
    %s3354 = smul.addr %s1206, 8
    %s3355 = scalar_lea.vmem [#allocation3], %s3354
    %v3356 = vld [vmem:[%s3355 + $0x18] sm:$0xff]
    %v3357 = vld [vmem:[%s3355 + $0x20] sm:$0xff]
    %v3358 = vld [vmem:[%s3355 + $0x28] sm:$0xff]
    %v3360 = vsel %vm634, %v3347, 0
    %3362 = vmatpush.msra.mxu0 0.0
    %3363 = vmatpush.msra.mxu0 0.0
    %3364 = vmatpush.msra.mxu0 0.0
    %3365 = vmatpush.msra.mxu0 0.0
    %3366 = vmatpush.msra.mxu0 0.0
    %3367 = vmatpush.msra.mxu0 0.0
    %3368 = vmatpush.msra.mxu0 0.0
    %3369 = vmatpush.msra.mxu0 0.0
    %3370 = vmatpush.msra.mxu0 0.0
    %3371 = vmatpush.msra.mxu0 0.0
    %3372 = vmatpush.msra.mxu0 0.0
    %3373 = vmatpush.msra.mxu0 0.0
    %3374 = vmatpush.msra.mxu0 %v2808
    %3375 = vmatpush.msra.mxu0 %v2805
    %3376 = vmatpush.msra.mxu0 %v2802
    %3377 = vmatpush.msra.mxu0 %v2799
    %3378 = vmatmul.f32.gmra.mxu0 %v3360
    %v3379 = vpop.f32.mrf.mxu0
    %v3380 = vadd.f32 %v2836, %v3379
    %3381 = vdwg.mxu0
    %3382 = vmatpush.msra.mxu0 0.0
    %3383 = vmatpush.msra.mxu0 0.0
    %3384 = vmatpush.msra.mxu0 0.0
    %3385 = vmatpush.msra.mxu0 0.0
    %3386 = vmatpush.msra.mxu0 0.0
    %3387 = vmatpush.msra.mxu0 0.0
    %3388 = vmatpush.msra.mxu0 0.0
    %3389 = vmatpush.msra.mxu0 0.0
    %3390 = vmatpush.msra.mxu0 0.0
    %3391 = vmatpush.msra.mxu0 0.0
    %3392 = vmatpush.msra.mxu0 0.0
    %3393 = vmatpush.msra.mxu0 0.0
    %3394 = vmatpush.msra.mxu0 %v2809
    %3395 = vmatpush.msra.mxu0 %v2806
    %3396 = vmatpush.msra.mxu0 %v2803
    %3397 = vmatpush.msra.mxu0 %v2800
    %3398 = vmatmul.f32.gmra.mxu0 %v3360
    %v3399 = vpop.f32.mrf.mxu0
    %v3400 = vadd.f32 %v2837, %v3399
    %3401 = vdwg.mxu0
    %3402 = vmatpush.msra.mxu0 0.0
    %3403 = vmatpush.msra.mxu0 0.0
    %3404 = vmatpush.msra.mxu0 0.0
    %3405 = vmatpush.msra.mxu0 0.0
    %3406 = vmatpush.msra.mxu0 0.0
    %3407 = vmatpush.msra.mxu0 0.0
    %3408 = vmatpush.msra.mxu0 0.0
    %3409 = vmatpush.msra.mxu0 0.0
    %3410 = vmatpush.msra.mxu0 0.0
    %3411 = vmatpush.msra.mxu0 0.0
    %3412 = vmatpush.msra.mxu0 0.0
    %3413 = vmatpush.msra.mxu0 0.0
    %3414 = vmatpush.msra.mxu0 %v2810
    %3415 = vmatpush.msra.mxu0 %v2807
    %3416 = vmatpush.msra.mxu0 %v2804
    %3417 = vmatpush.msra.mxu0 %v2801
    %3418 = vmatmul.f32.gmra.mxu0 %v3360
    %v3419 = vpop.f32.mrf.mxu0
    %v3420 = vadd.f32 %v2838, %v3419
    %3421 = vdwg.mxu0
    %v3423 = vsel %vm634, %v3348, 0
    %3425 = vmatpush.msra.mxu0 0.0
    %3426 = vmatpush.msra.mxu0 0.0
    %3427 = vmatpush.msra.mxu0 0.0
    %3428 = vmatpush.msra.mxu0 0.0
    %3429 = vmatpush.msra.mxu0 0.0
    %3430 = vmatpush.msra.mxu0 0.0
    %3431 = vmatpush.msra.mxu0 0.0
    %3432 = vmatpush.msra.mxu0 0.0
    %3433 = vmatpush.msra.mxu0 0.0
    %3434 = vmatpush.msra.mxu0 0.0
    %3435 = vmatpush.msra.mxu0 0.0
    %3436 = vmatpush.msra.mxu0 0.0
    %3437 = vmatpush.msra.mxu0 %v2821
    %3438 = vmatpush.msra.mxu0 %v2818
    %3439 = vmatpush.msra.mxu0 %v2815
    %3440 = vmatpush.msra.mxu0 %v2812
    %3441 = vmatmul.f32.gmra.mxu0 %v3423
    %v3442 = vpop.f32.mrf.mxu0
    %v3443 = vadd.f32 %v2903, %v3442
    %3444 = vdwg.mxu0
    %3445 = vmatpush.msra.mxu0 0.0
    %3446 = vmatpush.msra.mxu0 0.0
    %3447 = vmatpush.msra.mxu0 0.0
    %3448 = vmatpush.msra.mxu0 0.0
    %3449 = vmatpush.msra.mxu0 0.0
    %3450 = vmatpush.msra.mxu0 0.0
    %3451 = vmatpush.msra.mxu0 0.0
    %3452 = vmatpush.msra.mxu0 0.0
    %3453 = vmatpush.msra.mxu0 0.0
    %3454 = vmatpush.msra.mxu0 0.0
    %3455 = vmatpush.msra.mxu0 0.0
    %3456 = vmatpush.msra.mxu0 0.0
    %3457 = vmatpush.msra.mxu0 %v2822
    %3458 = vmatpush.msra.mxu0 %v2819
    %3459 = vmatpush.msra.mxu0 %v2816
    %3460 = vmatpush.msra.mxu0 %v2813
    %3461 = vmatmul.f32.gmra.mxu0 %v3423
    %v3462 = vpop.f32.mrf.mxu0
    %v3463 = vadd.f32 %v2904, %v3462
    %3464 = vdwg.mxu0
    %3465 = vmatpush.msra.mxu0 0.0
    %3466 = vmatpush.msra.mxu0 0.0
    %3467 = vmatpush.msra.mxu0 0.0
    %3468 = vmatpush.msra.mxu0 0.0
    %3469 = vmatpush.msra.mxu0 0.0
    %3470 = vmatpush.msra.mxu0 0.0
    %3471 = vmatpush.msra.mxu0 0.0
    %3472 = vmatpush.msra.mxu0 0.0
    %3473 = vmatpush.msra.mxu0 0.0
    %3474 = vmatpush.msra.mxu0 0.0
    %3475 = vmatpush.msra.mxu0 0.0
    %3476 = vmatpush.msra.mxu0 0.0
    %3477 = vmatpush.msra.mxu0 %v2823
    %3478 = vmatpush.msra.mxu0 %v2820
    %3479 = vmatpush.msra.mxu0 %v2817
    %3480 = vmatpush.msra.mxu0 %v2814
    %3481 = vmatmul.f32.gmra.mxu0 %v3423
    %v3482 = vpop.f32.mrf.mxu0
    %v3483 = vadd.f32 %v2905, %v3482
    %3484 = vdwg.mxu0
    %v3485 = vadd.f32 %v3351, %v3380
    %v3486 = vadd.f32 %v3352, %v3400
    %v3487 = vmul.f32 %v3485, 0.5
    %v3488 = vmul.f32 %v3486, 0.5
    %v3489 = vtanh.pop %v3487
    %v3490 = vtanh.pop %v3488
    %v3491 = vadd.f32 %v3489, 1.0
    %v3492 = vadd.f32 %v3490, 1.0
    %v3493 = vmul.f32 %v3491, 0.5
    %v3494 = vmul.f32 %v3492, 0.5
    %v3495 = vmul.f32 %v3493, %v3420
    %v3496 = vadd.f32 %v3353, %v3495
    %v3497 = vtanh.pop %v3496
    %v3498 = vsub.f32 1.0, %v3494
    %v3499 = vmul.f32 %v3498, %v3497
    %v3500 = vmul.f32 %v3494, %v3347
    %v3501 = vadd.f32 %v3499, %v3500
    %v3502 = vadd.f32 %v3356, %v3443
    %v3503 = vadd.f32 %v3357, %v3463
    %v3504 = vmul.f32 %v3502, 0.5
    %v3505 = vmul.f32 %v3503, 0.5
    %v3506 = vtanh.pop %v3504
    %v3507 = vtanh.pop %v3505
    %v3508 = vadd.f32 %v3506, 1.0
    %v3509 = vadd.f32 %v3507, 1.0
    %v3510 = vmul.f32 %v3508, 0.5
    %v3511 = vmul.f32 %v3509, 0.5
    %v3512 = vmul.f32 %v3510, %v3483
    %v3513 = vadd.f32 %v3358, %v3512
    %v3514 = vtanh.pop %v3513
    %v3515 = vsub.f32 1.0, %v3511
    %v3516 = vmul.f32 %v3515, %v3514
    %v3517 = vmul.f32 %v3511, %v3348
    %v3518 = vadd.f32 %v3516, %v3517
    %v3519 = vsel %vm1378, %v3501, %v3347
    %v3520 = vsel %vm1384, %v3518, %v3348
    %v3521 = vld [vmem:[%s3355] sm:$0xff]
    %v3522 = vld [vmem:[%s3355 + $0x8] sm:$0xff]
    %v3523 = vld [vmem:[%s3355 + $0x10] sm:$0xff]
    %v3524 = vld [vmem:[%s3350 + $0x18] sm:$0xff]
    %v3525 = vld [vmem:[%s3350 + $0x20] sm:$0xff]
    %v3526 = vld [vmem:[%s3350 + $0x28] sm:$0xff]
    %v3528 = vsel %vm634, %v3519, 0
    %3530 = vmatpush.msra.mxu0 0.0
    %3531 = vmatpush.msra.mxu0 0.0
    %3532 = vmatpush.msra.mxu0 0.0
    %3533 = vmatpush.msra.mxu0 0.0
    %3534 = vmatpush.msra.mxu0 0.0
    %3535 = vmatpush.msra.mxu0 0.0
    %3536 = vmatpush.msra.mxu0 0.0
    %3537 = vmatpush.msra.mxu0 0.0
    %3538 = vmatpush.msra.mxu0 0.0
    %3539 = vmatpush.msra.mxu0 0.0
    %3540 = vmatpush.msra.mxu0 0.0
    %3541 = vmatpush.msra.mxu0 0.0
    %3542 = vmatpush.msra.mxu0 %v2808
    %3543 = vmatpush.msra.mxu0 %v2805
    %3544 = vmatpush.msra.mxu0 %v2802
    %3545 = vmatpush.msra.mxu0 %v2799
    %3546 = vmatmul.f32.gmra.mxu0 %v3528
    %v3547 = vpop.f32.mrf.mxu0
    %v3548 = vadd.f32 %v2836, %v3547
    %3549 = vdwg.mxu0
    %3550 = vmatpush.msra.mxu0 0.0
    %3551 = vmatpush.msra.mxu0 0.0
    %3552 = vmatpush.msra.mxu0 0.0
    %3553 = vmatpush.msra.mxu0 0.0
    %3554 = vmatpush.msra.mxu0 0.0
    %3555 = vmatpush.msra.mxu0 0.0
    %3556 = vmatpush.msra.mxu0 0.0
    %3557 = vmatpush.msra.mxu0 0.0
    %3558 = vmatpush.msra.mxu0 0.0
    %3559 = vmatpush.msra.mxu0 0.0
    %3560 = vmatpush.msra.mxu0 0.0
    %3561 = vmatpush.msra.mxu0 0.0
    %3562 = vmatpush.msra.mxu0 %v2809
    %3563 = vmatpush.msra.mxu0 %v2806
    %3564 = vmatpush.msra.mxu0 %v2803
    %3565 = vmatpush.msra.mxu0 %v2800
    %3566 = vmatmul.f32.gmra.mxu0 %v3528
    %v3567 = vpop.f32.mrf.mxu0
    %v3568 = vadd.f32 %v2837, %v3567
    %3569 = vdwg.mxu0
    %3570 = vmatpush.msra.mxu0 0.0
    %3571 = vmatpush.msra.mxu0 0.0
    %3572 = vmatpush.msra.mxu0 0.0
    %3573 = vmatpush.msra.mxu0 0.0
    %3574 = vmatpush.msra.mxu0 0.0
    %3575 = vmatpush.msra.mxu0 0.0
    %3576 = vmatpush.msra.mxu0 0.0
    %3577 = vmatpush.msra.mxu0 0.0
    %3578 = vmatpush.msra.mxu0 0.0
    %3579 = vmatpush.msra.mxu0 0.0
    %3580 = vmatpush.msra.mxu0 0.0
    %3581 = vmatpush.msra.mxu0 0.0
    %3582 = vmatpush.msra.mxu0 %v2810
    %3583 = vmatpush.msra.mxu0 %v2807
    %3584 = vmatpush.msra.mxu0 %v2804
    %3585 = vmatpush.msra.mxu0 %v2801
    %3586 = vmatmul.f32.gmra.mxu0 %v3528
    %v3587 = vpop.f32.mrf.mxu0
    %v3588 = vadd.f32 %v2838, %v3587
    %3589 = vdwg.mxu0
    %v3591 = vsel %vm634, %v3520, 0
    %3593 = vmatpush.msra.mxu0 0.0
    %3594 = vmatpush.msra.mxu0 0.0
    %3595 = vmatpush.msra.mxu0 0.0
    %3596 = vmatpush.msra.mxu0 0.0
    %3597 = vmatpush.msra.mxu0 0.0
    %3598 = vmatpush.msra.mxu0 0.0
    %3599 = vmatpush.msra.mxu0 0.0
    %3600 = vmatpush.msra.mxu0 0.0
    %3601 = vmatpush.msra.mxu0 0.0
    %3602 = vmatpush.msra.mxu0 0.0
    %3603 = vmatpush.msra.mxu0 0.0
    %3604 = vmatpush.msra.mxu0 0.0
    %3605 = vmatpush.msra.mxu0 %v2821
    %3606 = vmatpush.msra.mxu0 %v2818
    %3607 = vmatpush.msra.mxu0 %v2815
    %3608 = vmatpush.msra.mxu0 %v2812
    %3609 = vmatmul.f32.gmra.mxu0 %v3591
    %v3610 = vpop.f32.mrf.mxu0
    %v3611 = vadd.f32 %v2903, %v3610
    %3612 = vdwg.mxu0
    %3613 = vmatpush.msra.mxu0 0.0
    %3614 = vmatpush.msra.mxu0 0.0
    %3615 = vmatpush.msra.mxu0 0.0
    %3616 = vmatpush.msra.mxu0 0.0
    %3617 = vmatpush.msra.mxu0 0.0
    %3618 = vmatpush.msra.mxu0 0.0
    %3619 = vmatpush.msra.mxu0 0.0
    %3620 = vmatpush.msra.mxu0 0.0
    %3621 = vmatpush.msra.mxu0 0.0
    %3622 = vmatpush.msra.mxu0 0.0
    %3623 = vmatpush.msra.mxu0 0.0
    %3624 = vmatpush.msra.mxu0 0.0
    %3625 = vmatpush.msra.mxu0 %v2822
    %3626 = vmatpush.msra.mxu0 %v2819
    %3627 = vmatpush.msra.mxu0 %v2816
    %3628 = vmatpush.msra.mxu0 %v2813
    %3629 = vmatmul.f32.gmra.mxu0 %v3591
    %v3630 = vpop.f32.mrf.mxu0
    %v3631 = vadd.f32 %v2904, %v3630
    %3632 = vdwg.mxu0
    %3633 = vmatpush.msra.mxu0 0.0
    %3634 = vmatpush.msra.mxu0 0.0
    %3635 = vmatpush.msra.mxu0 0.0
    %3636 = vmatpush.msra.mxu0 0.0
    %3637 = vmatpush.msra.mxu0 0.0
    %3638 = vmatpush.msra.mxu0 0.0
    %3639 = vmatpush.msra.mxu0 0.0
    %3640 = vmatpush.msra.mxu0 0.0
    %3641 = vmatpush.msra.mxu0 0.0
    %3642 = vmatpush.msra.mxu0 0.0
    %3643 = vmatpush.msra.mxu0 0.0
    %3644 = vmatpush.msra.mxu0 0.0
    %3645 = vmatpush.msra.mxu0 %v2823
    %3646 = vmatpush.msra.mxu0 %v2820
    %3647 = vmatpush.msra.mxu0 %v2817
    %3648 = vmatpush.msra.mxu0 %v2814
    %3649 = vmatmul.f32.gmra.mxu0 %v3591
    %v3650 = vpop.f32.mrf.mxu0
    %v3651 = vadd.f32 %v2905, %v3650
    %3652 = vdwg.mxu0
    %v3653 = vadd.f32 %v3521, %v3548
    %v3654 = vadd.f32 %v3522, %v3568
    %v3655 = vmul.f32 %v3653, 0.5
    %v3656 = vmul.f32 %v3654, 0.5
    %v3657 = vtanh.pop %v3655
    %v3658 = vtanh.pop %v3656
    %v3659 = vadd.f32 %v3657, 1.0
    %v3660 = vadd.f32 %v3658, 1.0
    %v3661 = vmul.f32 %v3659, 0.5
    %v3662 = vmul.f32 %v3660, 0.5
    %v3663 = vmul.f32 %v3661, %v3588
    %v3664 = vadd.f32 %v3523, %v3663
    %v3665 = vtanh.pop %v3664
    %v3666 = vsub.f32 1.0, %v3662
    %v3667 = vmul.f32 %v3666, %v3665
    %v3668 = vmul.f32 %v3662, %v3519
    %v3669 = vadd.f32 %v3667, %v3668
    %v3670 = vadd.f32 %v3524, %v3611
    %v3671 = vadd.f32 %v3525, %v3631
    %v3672 = vmul.f32 %v3670, 0.5
    %v3673 = vmul.f32 %v3671, 0.5
    %v3674 = vtanh.pop %v3672
    %v3675 = vtanh.pop %v3673
    %v3676 = vadd.f32 %v3674, 1.0
    %v3677 = vadd.f32 %v3675, 1.0
    %v3678 = vmul.f32 %v3676, 0.5
    %v3679 = vmul.f32 %v3677, 0.5
    %v3680 = vmul.f32 %v3678, %v3651
    %v3681 = vadd.f32 %v3526, %v3680
    %v3682 = vtanh.pop %v3681
    %v3683 = vsub.f32 1.0, %v3679
    %v3684 = vmul.f32 %v3683, %v3682
    %v3685 = vmul.f32 %v3679, %v3520
    %v3686 = vadd.f32 %v3684, %v3685
    %v3687 = vsel %vm1384, %v3669, %v3519
    %v3688 = vsel %vm1378, %v3686, %v3520
    %v3689 = vld [vmem:[%s3183] sm:$0xff]
    %v3690 = vld [vmem:[%s3183 + $0x8] sm:$0xff]
    %v3691 = vld [vmem:[%s3183 + $0x10] sm:$0xff]
    %v3692 = vld [vmem:[%s3178 + $0x18] sm:$0xff]
    %v3693 = vld [vmem:[%s3178 + $0x20] sm:$0xff]
    %v3694 = vld [vmem:[%s3178 + $0x28] sm:$0xff]
    %v3696 = vsel %vm634, %v3687, 0
    %3698 = vmatpush.msra.mxu0 0.0
    %3699 = vmatpush.msra.mxu0 0.0
    %3700 = vmatpush.msra.mxu0 0.0
    %3701 = vmatpush.msra.mxu0 0.0
    %3702 = vmatpush.msra.mxu0 0.0
    %3703 = vmatpush.msra.mxu0 0.0
    %3704 = vmatpush.msra.mxu0 0.0
    %3705 = vmatpush.msra.mxu0 0.0
    %3706 = vmatpush.msra.mxu0 0.0
    %3707 = vmatpush.msra.mxu0 0.0
    %3708 = vmatpush.msra.mxu0 0.0
    %3709 = vmatpush.msra.mxu0 0.0
    %3710 = vmatpush.msra.mxu0 %v2808
    %3711 = vmatpush.msra.mxu0 %v2805
    %3712 = vmatpush.msra.mxu0 %v2802
    %3713 = vmatpush.msra.mxu0 %v2799
    %3714 = vmatmul.f32.gmra.mxu0 %v3696
    %v3715 = vpop.f32.mrf.mxu0
    %v3716 = vadd.f32 %v2836, %v3715
    %3717 = vdwg.mxu0
    %3718 = vmatpush.msra.mxu0 0.0
    %3719 = vmatpush.msra.mxu0 0.0
    %3720 = vmatpush.msra.mxu0 0.0
    %3721 = vmatpush.msra.mxu0 0.0
    %3722 = vmatpush.msra.mxu0 0.0
    %3723 = vmatpush.msra.mxu0 0.0
    %3724 = vmatpush.msra.mxu0 0.0
    %3725 = vmatpush.msra.mxu0 0.0
    %3726 = vmatpush.msra.mxu0 0.0
    %3727 = vmatpush.msra.mxu0 0.0
    %3728 = vmatpush.msra.mxu0 0.0
    %3729 = vmatpush.msra.mxu0 0.0
    %3730 = vmatpush.msra.mxu0 %v2809
    %3731 = vmatpush.msra.mxu0 %v2806
    %3732 = vmatpush.msra.mxu0 %v2803
    %3733 = vmatpush.msra.mxu0 %v2800
    %3734 = vmatmul.f32.gmra.mxu0 %v3696
    %v3735 = vpop.f32.mrf.mxu0
    %v3736 = vadd.f32 %v2837, %v3735
    %3737 = vdwg.mxu0
    %3738 = vmatpush.msra.mxu0 0.0
    %3739 = vmatpush.msra.mxu0 0.0
    %3740 = vmatpush.msra.mxu0 0.0
    %3741 = vmatpush.msra.mxu0 0.0
    %3742 = vmatpush.msra.mxu0 0.0
    %3743 = vmatpush.msra.mxu0 0.0
    %3744 = vmatpush.msra.mxu0 0.0
    %3745 = vmatpush.msra.mxu0 0.0
    %3746 = vmatpush.msra.mxu0 0.0
    %3747 = vmatpush.msra.mxu0 0.0
    %3748 = vmatpush.msra.mxu0 0.0
    %3749 = vmatpush.msra.mxu0 0.0
    %3750 = vmatpush.msra.mxu0 %v2810
    %3751 = vmatpush.msra.mxu0 %v2807
    %3752 = vmatpush.msra.mxu0 %v2804
    %3753 = vmatpush.msra.mxu0 %v2801
    %3754 = vmatmul.f32.gmra.mxu0 %v3696
    %v3755 = vpop.f32.mrf.mxu0
    %v3756 = vadd.f32 %v2838, %v3755
    %3757 = vdwg.mxu0
    %v3759 = vsel %vm634, %v3688, 0
    %3761 = vmatpush.msra.mxu0 0.0
    %3762 = vmatpush.msra.mxu0 0.0
    %3763 = vmatpush.msra.mxu0 0.0
    %3764 = vmatpush.msra.mxu0 0.0
    %3765 = vmatpush.msra.mxu0 0.0
    %3766 = vmatpush.msra.mxu0 0.0
    %3767 = vmatpush.msra.mxu0 0.0
    %3768 = vmatpush.msra.mxu0 0.0
    %3769 = vmatpush.msra.mxu0 0.0
    %3770 = vmatpush.msra.mxu0 0.0
    %3771 = vmatpush.msra.mxu0 0.0
    %3772 = vmatpush.msra.mxu0 0.0
    %3773 = vmatpush.msra.mxu0 %v2821
    %3774 = vmatpush.msra.mxu0 %v2818
    %3775 = vmatpush.msra.mxu0 %v2815
    %3776 = vmatpush.msra.mxu0 %v2812
    %3777 = vmatmul.f32.gmra.mxu0 %v3759
    %v3778 = vpop.f32.mrf.mxu0
    %v3779 = vadd.f32 %v2903, %v3778
    %3780 = vdwg.mxu0
    %3781 = vmatpush.msra.mxu0 0.0
    %3782 = vmatpush.msra.mxu0 0.0
    %3783 = vmatpush.msra.mxu0 0.0
    %3784 = vmatpush.msra.mxu0 0.0
    %3785 = vmatpush.msra.mxu0 0.0
    %3786 = vmatpush.msra.mxu0 0.0
    %3787 = vmatpush.msra.mxu0 0.0
    %3788 = vmatpush.msra.mxu0 0.0
    %3789 = vmatpush.msra.mxu0 0.0
    %3790 = vmatpush.msra.mxu0 0.0
    %3791 = vmatpush.msra.mxu0 0.0
    %3792 = vmatpush.msra.mxu0 0.0
    %3793 = vmatpush.msra.mxu0 %v2822
    %3794 = vmatpush.msra.mxu0 %v2819
    %3795 = vmatpush.msra.mxu0 %v2816
    %3796 = vmatpush.msra.mxu0 %v2813
    %3797 = vmatmul.f32.gmra.mxu0 %v3759
    %v3798 = vpop.f32.mrf.mxu0
    %v3799 = vadd.f32 %v2904, %v3798
    %3800 = vdwg.mxu0
    %3801 = vmatpush.msra.mxu0 0.0
    %3802 = vmatpush.msra.mxu0 0.0
    %3803 = vmatpush.msra.mxu0 0.0
    %3804 = vmatpush.msra.mxu0 0.0
    %3805 = vmatpush.msra.mxu0 0.0
    %3806 = vmatpush.msra.mxu0 0.0
    %3807 = vmatpush.msra.mxu0 0.0
    %3808 = vmatpush.msra.mxu0 0.0
    %3809 = vmatpush.msra.mxu0 0.0
    %3810 = vmatpush.msra.mxu0 0.0
    %3811 = vmatpush.msra.mxu0 0.0
    %3812 = vmatpush.msra.mxu0 0.0
    %3813 = vmatpush.msra.mxu0 %v2823
    %3814 = vmatpush.msra.mxu0 %v2820
    %3815 = vmatpush.msra.mxu0 %v2817
    %3816 = vmatpush.msra.mxu0 %v2814
    %3817 = vmatmul.f32.gmra.mxu0 %v3759
    %v3818 = vpop.f32.mrf.mxu0
    %v3819 = vadd.f32 %v2905, %v3818
    %3820 = vdwg.mxu0
    %v3821 = vadd.f32 %v3689, %v3716
    %v3822 = vadd.f32 %v3690, %v3736
    %v3823 = vmul.f32 %v3821, 0.5
    %v3824 = vmul.f32 %v3822, 0.5
    %v3825 = vtanh.pop %v3823
    %v3826 = vtanh.pop %v3824
    %v3827 = vadd.f32 %v3825, 1.0
    %v3828 = vadd.f32 %v3826, 1.0
    %v3829 = vmul.f32 %v3827, 0.5
    %v3830 = vmul.f32 %v3828, 0.5
    %v3831 = vmul.f32 %v3829, %v3756
    %v3832 = vadd.f32 %v3691, %v3831
    %v3833 = vtanh.pop %v3832
    %v3834 = vsub.f32 1.0, %v3830
    %v3835 = vmul.f32 %v3834, %v3833
    %v3836 = vmul.f32 %v3830, %v3687
    %v3837 = vadd.f32 %v3835, %v3836
    %v3838 = vadd.f32 %v3692, %v3779
    %v3839 = vadd.f32 %v3693, %v3799
    %v3840 = vmul.f32 %v3838, 0.5
    %v3841 = vmul.f32 %v3839, 0.5
    %v3842 = vtanh.pop %v3840
    %v3843 = vtanh.pop %v3841
    %v3844 = vadd.f32 %v3842, 1.0
    %v3845 = vadd.f32 %v3843, 1.0
    %v3846 = vmul.f32 %v3844, 0.5
    %v3847 = vmul.f32 %v3845, 0.5
    %v3848 = vmul.f32 %v3846, %v3819
    %v3849 = vadd.f32 %v3694, %v3848
    %v3850 = vtanh.pop %v3849
    %v3851 = vsub.f32 1.0, %v3847
    %v3852 = vmul.f32 %v3851, %v3850
    %v3853 = vmul.f32 %v3847, %v3688
    %v3854 = vadd.f32 %v3852, %v3853
    %v3855 = vsel %vm1192, %v3837, %v3687
    %v3856 = vsel %vm1186, %v3854, %v3688
    %v3857 = vld [vmem:[%s3011] sm:$0xff]
    %v3858 = vld [vmem:[%s3011 + $0x8] sm:$0xff]
    %v3859 = vld [vmem:[%s3011 + $0x10] sm:$0xff]
    %v3860 = vld [vmem:[%s3006 + $0x18] sm:$0xff]
    %v3861 = vld [vmem:[%s3006 + $0x20] sm:$0xff]
    %v3862 = vld [vmem:[%s3006 + $0x28] sm:$0xff]
    %v3864 = vsel %vm634, %v3855, 0
    %3866 = vmatpush.msra.mxu0 0.0
    %3867 = vmatpush.msra.mxu0 0.0
    %3868 = vmatpush.msra.mxu0 0.0
    %3869 = vmatpush.msra.mxu0 0.0
    %3870 = vmatpush.msra.mxu0 0.0
    %3871 = vmatpush.msra.mxu0 0.0
    %3872 = vmatpush.msra.mxu0 0.0
    %3873 = vmatpush.msra.mxu0 0.0
    %3874 = vmatpush.msra.mxu0 0.0
    %3875 = vmatpush.msra.mxu0 0.0
    %3876 = vmatpush.msra.mxu0 0.0
    %3877 = vmatpush.msra.mxu0 0.0
    %3878 = vmatpush.msra.mxu0 %v2808
    %3879 = vmatpush.msra.mxu0 %v2805
    %3880 = vmatpush.msra.mxu0 %v2802
    %3881 = vmatpush.msra.mxu0 %v2799
    %3882 = vmatmul.f32.gmra.mxu0 %v3864
    %v3883 = vpop.f32.mrf.mxu0
    %v3884 = vadd.f32 %v2836, %v3883
    %3885 = vdwg.mxu0
    %3886 = vmatpush.msra.mxu0 0.0
    %3887 = vmatpush.msra.mxu0 0.0
    %3888 = vmatpush.msra.mxu0 0.0
    %3889 = vmatpush.msra.mxu0 0.0
    %3890 = vmatpush.msra.mxu0 0.0
    %3891 = vmatpush.msra.mxu0 0.0
    %3892 = vmatpush.msra.mxu0 0.0
    %3893 = vmatpush.msra.mxu0 0.0
    %3894 = vmatpush.msra.mxu0 0.0
    %3895 = vmatpush.msra.mxu0 0.0
    %3896 = vmatpush.msra.mxu0 0.0
    %3897 = vmatpush.msra.mxu0 0.0
    %3898 = vmatpush.msra.mxu0 %v2809
    %3899 = vmatpush.msra.mxu0 %v2806
    %3900 = vmatpush.msra.mxu0 %v2803
    %3901 = vmatpush.msra.mxu0 %v2800
    %3902 = vmatmul.f32.gmra.mxu0 %v3864
    %v3903 = vpop.f32.mrf.mxu0
    %v3904 = vadd.f32 %v2837, %v3903
    %3905 = vdwg.mxu0
    %3906 = vmatpush.msra.mxu0 0.0
    %3907 = vmatpush.msra.mxu0 0.0
    %3908 = vmatpush.msra.mxu0 0.0
    %3909 = vmatpush.msra.mxu0 0.0
    %3910 = vmatpush.msra.mxu0 0.0
    %3911 = vmatpush.msra.mxu0 0.0
    %3912 = vmatpush.msra.mxu0 0.0
    %3913 = vmatpush.msra.mxu0 0.0
    %3914 = vmatpush.msra.mxu0 0.0
    %3915 = vmatpush.msra.mxu0 0.0
    %3916 = vmatpush.msra.mxu0 0.0
    %3917 = vmatpush.msra.mxu0 0.0
    %3918 = vmatpush.msra.mxu0 %v2810
    %3919 = vmatpush.msra.mxu0 %v2807
    %3920 = vmatpush.msra.mxu0 %v2804
    %3921 = vmatpush.msra.mxu0 %v2801
    %3922 = vmatmul.f32.gmra.mxu0 %v3864
    %v3923 = vpop.f32.mrf.mxu0
    %v3924 = vadd.f32 %v2838, %v3923
    %3925 = vdwg.mxu0
    %v3927 = vsel %vm634, %v3856, 0
    %3929 = vmatpush.msra.mxu0 0.0
    %3930 = vmatpush.msra.mxu0 0.0
    %3931 = vmatpush.msra.mxu0 0.0
    %3932 = vmatpush.msra.mxu0 0.0
    %3933 = vmatpush.msra.mxu0 0.0
    %3934 = vmatpush.msra.mxu0 0.0
    %3935 = vmatpush.msra.mxu0 0.0
    %3936 = vmatpush.msra.mxu0 0.0
    %3937 = vmatpush.msra.mxu0 0.0
    %3938 = vmatpush.msra.mxu0 0.0
    %3939 = vmatpush.msra.mxu0 0.0
    %3940 = vmatpush.msra.mxu0 0.0
    %3941 = vmatpush.msra.mxu0 %v2821
    %3942 = vmatpush.msra.mxu0 %v2818
    %3943 = vmatpush.msra.mxu0 %v2815
    %3944 = vmatpush.msra.mxu0 %v2812
    %3945 = vmatmul.f32.gmra.mxu0 %v3927
    %v3946 = vpop.f32.mrf.mxu0
    %v3947 = vadd.f32 %v2903, %v3946
    %3948 = vdwg.mxu0
    %3949 = vmatpush.msra.mxu0 0.0
    %3950 = vmatpush.msra.mxu0 0.0
    %3951 = vmatpush.msra.mxu0 0.0
    %3952 = vmatpush.msra.mxu0 0.0
    %3953 = vmatpush.msra.mxu0 0.0
    %3954 = vmatpush.msra.mxu0 0.0
    %3955 = vmatpush.msra.mxu0 0.0
    %3956 = vmatpush.msra.mxu0 0.0
    %3957 = vmatpush.msra.mxu0 0.0
    %3958 = vmatpush.msra.mxu0 0.0
    %3959 = vmatpush.msra.mxu0 0.0
    %3960 = vmatpush.msra.mxu0 0.0
    %3961 = vmatpush.msra.mxu0 %v2822
    %3962 = vmatpush.msra.mxu0 %v2819
    %3963 = vmatpush.msra.mxu0 %v2816
    %3964 = vmatpush.msra.mxu0 %v2813
    %3965 = vmatmul.f32.gmra.mxu0 %v3927
    %v3966 = vpop.f32.mrf.mxu0
    %v3967 = vadd.f32 %v2904, %v3966
    %3968 = vdwg.mxu0
    %3969 = vmatpush.msra.mxu0 0.0
    %3970 = vmatpush.msra.mxu0 0.0
    %3971 = vmatpush.msra.mxu0 0.0
    %3972 = vmatpush.msra.mxu0 0.0
    %3973 = vmatpush.msra.mxu0 0.0
    %3974 = vmatpush.msra.mxu0 0.0
    %3975 = vmatpush.msra.mxu0 0.0
    %3976 = vmatpush.msra.mxu0 0.0
    %3977 = vmatpush.msra.mxu0 0.0
    %3978 = vmatpush.msra.mxu0 0.0
    %3979 = vmatpush.msra.mxu0 0.0
    %3980 = vmatpush.msra.mxu0 0.0
    %3981 = vmatpush.msra.mxu0 %v2823
    %3982 = vmatpush.msra.mxu0 %v2820
    %3983 = vmatpush.msra.mxu0 %v2817
    %3984 = vmatpush.msra.mxu0 %v2814
    %3985 = vmatmul.f32.gmra.mxu0 %v3927
    %v3986 = vpop.f32.mrf.mxu0
    %v3987 = vadd.f32 %v2905, %v3986
    %3988 = vdwg.mxu0
    %v3989 = vadd.f32 %v3857, %v3884
    %v3990 = vadd.f32 %v3858, %v3904
    %v3991 = vmul.f32 %v3989, 0.5
    %v3992 = vmul.f32 %v3990, 0.5
    %v3993 = vtanh.pop %v3991
    %v3994 = vtanh.pop %v3992
    %v3995 = vadd.f32 %v3993, 1.0
    %v3996 = vadd.f32 %v3994, 1.0
    %v3997 = vmul.f32 %v3995, 0.5
    %v3998 = vmul.f32 %v3996, 0.5
    %v3999 = vmul.f32 %v3997, %v3924
    %v4000 = vadd.f32 %v3859, %v3999
    %v4001 = vtanh.pop %v4000
    %v4002 = vsub.f32 1.0, %v3998
    %v4003 = vmul.f32 %v4002, %v4001
    %v4004 = vmul.f32 %v3998, %v3855
    %v4005 = vadd.f32 %v4003, %v4004
    %v4006 = vadd.f32 %v3860, %v3947
    %v4007 = vadd.f32 %v3861, %v3967
    %v4008 = vmul.f32 %v4006, 0.5
    %v4009 = vmul.f32 %v4007, 0.5
    %v4010 = vtanh.pop %v4008
    %v4011 = vtanh.pop %v4009
    %v4012 = vadd.f32 %v4010, 1.0
    %v4013 = vadd.f32 %v4011, 1.0
    %v4014 = vmul.f32 %v4012, 0.5
    %v4015 = vmul.f32 %v4013, 0.5
    %v4016 = vmul.f32 %v4014, %v3987
    %v4017 = vadd.f32 %v3862, %v4016
    %v4018 = vtanh.pop %v4017
    %v4019 = vsub.f32 1.0, %v4015
    %v4020 = vmul.f32 %v4019, %v4018
    %v4021 = vmul.f32 %v4015, %v3856
    %v4022 = vadd.f32 %v4020, %v4021
    %v4023 = vsel %vm1000, %v4005, %v3855
    %v4024 = vsel %vm994, %v4022, %v3856
    %v4025 = vld [vmem:[%s2831] sm:$0xff]
    %v4026 = vld [vmem:[%s2831 + $0x8] sm:$0xff]
    %v4027 = vld [vmem:[%s2831 + $0x10] sm:$0xff]
    %v4028 = vld [vmem:[%s2826 + $0x18] sm:$0xff]
    %v4029 = vld [vmem:[%s2826 + $0x20] sm:$0xff]
    %v4030 = vld [vmem:[%s2826 + $0x28] sm:$0xff]
    %v4032 = vsel %vm634, %v4023, 0
    %4034 = vmatpush.msra.mxu0 0.0
    %4035 = vmatpush.msra.mxu0 0.0
    %4036 = vmatpush.msra.mxu0 0.0
    %4037 = vmatpush.msra.mxu0 0.0
    %4038 = vmatpush.msra.mxu0 0.0
    %4039 = vmatpush.msra.mxu0 0.0
    %4040 = vmatpush.msra.mxu0 0.0
    %4041 = vmatpush.msra.mxu0 0.0
    %4042 = vmatpush.msra.mxu0 0.0
    %4043 = vmatpush.msra.mxu0 0.0
    %4044 = vmatpush.msra.mxu0 0.0
    %4045 = vmatpush.msra.mxu0 0.0
    %4046 = vmatpush.msra.mxu0 %v2808
    %4047 = vmatpush.msra.mxu0 %v2805
    %4048 = vmatpush.msra.mxu0 %v2802
    %4049 = vmatpush.msra.mxu0 %v2799
    %4050 = vmatmul.f32.gmra.mxu0 %v4032
    %v4051 = vpop.f32.mrf.mxu0
    %v4052 = vadd.f32 %v2836, %v4051
    %4053 = vdwg.mxu0
    %4054 = vmatpush.msra.mxu0 0.0
    %4055 = vmatpush.msra.mxu0 0.0
    %4056 = vmatpush.msra.mxu0 0.0
    %4057 = vmatpush.msra.mxu0 0.0
    %4058 = vmatpush.msra.mxu0 0.0
    %4059 = vmatpush.msra.mxu0 0.0
    %4060 = vmatpush.msra.mxu0 0.0
    %4061 = vmatpush.msra.mxu0 0.0
    %4062 = vmatpush.msra.mxu0 0.0
    %4063 = vmatpush.msra.mxu0 0.0
    %4064 = vmatpush.msra.mxu0 0.0
    %4065 = vmatpush.msra.mxu0 0.0
    %4066 = vmatpush.msra.mxu0 %v2809
    %4067 = vmatpush.msra.mxu0 %v2806
    %4068 = vmatpush.msra.mxu0 %v2803
    %4069 = vmatpush.msra.mxu0 %v2800
    %4070 = vmatmul.f32.gmra.mxu0 %v4032
    %v4071 = vpop.f32.mrf.mxu0
    %v4072 = vadd.f32 %v2837, %v4071
    %4073 = vdwg.mxu0
    %4074 = vmatpush.msra.mxu0 0.0
    %4075 = vmatpush.msra.mxu0 0.0
    %4076 = vmatpush.msra.mxu0 0.0
    %4077 = vmatpush.msra.mxu0 0.0
    %4078 = vmatpush.msra.mxu0 0.0
    %4079 = vmatpush.msra.mxu0 0.0
    %4080 = vmatpush.msra.mxu0 0.0
    %4081 = vmatpush.msra.mxu0 0.0
    %4082 = vmatpush.msra.mxu0 0.0
    %4083 = vmatpush.msra.mxu0 0.0
    %4084 = vmatpush.msra.mxu0 0.0
    %4085 = vmatpush.msra.mxu0 0.0
    %4086 = vmatpush.msra.mxu0 %v2810
    %4087 = vmatpush.msra.mxu0 %v2807
    %4088 = vmatpush.msra.mxu0 %v2804
    %4089 = vmatpush.msra.mxu0 %v2801
    %4090 = vmatmul.f32.gmra.mxu0 %v4032
    %v4091 = vpop.f32.mrf.mxu0
    %v4092 = vadd.f32 %v2838, %v4091
    %4093 = vdwg.mxu0
    %v4095 = vsel %vm634, %v4024, 0
    %4097 = vmatpush.msra.mxu0 0.0
    %4098 = vmatpush.msra.mxu0 0.0
    %4099 = vmatpush.msra.mxu0 0.0
    %4100 = vmatpush.msra.mxu0 0.0
    %4101 = vmatpush.msra.mxu0 0.0
    %4102 = vmatpush.msra.mxu0 0.0
    %4103 = vmatpush.msra.mxu0 0.0
    %4104 = vmatpush.msra.mxu0 0.0
    %4105 = vmatpush.msra.mxu0 0.0
    %4106 = vmatpush.msra.mxu0 0.0
    %4107 = vmatpush.msra.mxu0 0.0
    %4108 = vmatpush.msra.mxu0 0.0
    %4109 = vmatpush.msra.mxu0 %v2821
    %4110 = vmatpush.msra.mxu0 %v2818
    %4111 = vmatpush.msra.mxu0 %v2815
    %4112 = vmatpush.msra.mxu0 %v2812
    %4113 = vmatmul.f32.gmra.mxu0 %v4095
    %v4114 = vpop.f32.mrf.mxu0
    %v4115 = vadd.f32 %v2903, %v4114
    %4116 = vdwg.mxu0
    %4117 = vmatpush.msra.mxu0 0.0
    %4118 = vmatpush.msra.mxu0 0.0
    %4119 = vmatpush.msra.mxu0 0.0
    %4120 = vmatpush.msra.mxu0 0.0
    %4121 = vmatpush.msra.mxu0 0.0
    %4122 = vmatpush.msra.mxu0 0.0
    %4123 = vmatpush.msra.mxu0 0.0
    %4124 = vmatpush.msra.mxu0 0.0
    %4125 = vmatpush.msra.mxu0 0.0
    %4126 = vmatpush.msra.mxu0 0.0
    %4127 = vmatpush.msra.mxu0 0.0
    %4128 = vmatpush.msra.mxu0 0.0
    %4129 = vmatpush.msra.mxu0 %v2822
    %4130 = vmatpush.msra.mxu0 %v2819
    %4131 = vmatpush.msra.mxu0 %v2816
    %4132 = vmatpush.msra.mxu0 %v2813
    %4133 = vmatmul.f32.gmra.mxu0 %v4095
    %v4134 = vpop.f32.mrf.mxu0
    %v4135 = vadd.f32 %v2904, %v4134
    %4136 = vdwg.mxu0
    %4137 = vmatpush.msra.mxu0 0.0
    %4138 = vmatpush.msra.mxu0 0.0
    %4139 = vmatpush.msra.mxu0 0.0
    %4140 = vmatpush.msra.mxu0 0.0
    %4141 = vmatpush.msra.mxu0 0.0
    %4142 = vmatpush.msra.mxu0 0.0
    %4143 = vmatpush.msra.mxu0 0.0
    %4144 = vmatpush.msra.mxu0 0.0
    %4145 = vmatpush.msra.mxu0 0.0
    %4146 = vmatpush.msra.mxu0 0.0
    %4147 = vmatpush.msra.mxu0 0.0
    %4148 = vmatpush.msra.mxu0 0.0
    %4149 = vmatpush.msra.mxu0 %v2823
    %4150 = vmatpush.msra.mxu0 %v2820
    %4151 = vmatpush.msra.mxu0 %v2817
    %4152 = vmatpush.msra.mxu0 %v2814
    %4153 = vmatmul.f32.gmra.mxu0 %v4095
    %v4154 = vpop.f32.mrf.mxu0
    %v4155 = vadd.f32 %v2905, %v4154
    %4156 = vdwg.mxu0
    %v4157 = vadd.f32 %v4025, %v4052
    %v4158 = vadd.f32 %v4026, %v4072
    %v4159 = vmul.f32 %v4157, 0.5
    %v4160 = vmul.f32 %v4158, 0.5
    %v4161 = vtanh.pop %v4159
    %v4162 = vtanh.pop %v4160
    %v4163 = vadd.f32 %v4161, 1.0
    %v4164 = vadd.f32 %v4162, 1.0
    %v4165 = vmul.f32 %v4163, 0.5
    %v4166 = vmul.f32 %v4164, 0.5
    %v4167 = vmul.f32 %v4165, %v4092
    %v4168 = vadd.f32 %v4027, %v4167
    %v4169 = vtanh.pop %v4168
    %v4170 = vsub.f32 1.0, %v4166
    %v4171 = vmul.f32 %v4170, %v4169
    %v4172 = vmul.f32 %v4166, %v4023
    %v4173 = vadd.f32 %v4171, %v4172
    %v4174 = vadd.f32 %v4028, %v4115
    %v4175 = vadd.f32 %v4029, %v4135
    %v4176 = vmul.f32 %v4174, 0.5
    %v4177 = vmul.f32 %v4175, 0.5
    %v4178 = vtanh.pop %v4176
    %v4179 = vtanh.pop %v4177
    %v4180 = vadd.f32 %v4178, 1.0
    %v4181 = vadd.f32 %v4179, 1.0
    %v4182 = vmul.f32 %v4180, 0.5
    %v4183 = vmul.f32 %v4181, 0.5
    %v4184 = vmul.f32 %v4182, %v4155
    %v4185 = vadd.f32 %v4030, %v4184
    %v4186 = vtanh.pop %v4185
    %v4187 = vsub.f32 1.0, %v4183
    %v4188 = vmul.f32 %v4187, %v4186
    %v4189 = vmul.f32 %v4183, %v4024
    %v4190 = vadd.f32 %v4188, %v4189
    %v4191 = vsel %vm811, %v4173, %v4023
    %v4192 = vsel %vm805, %v4190, %v4024
    %v4193 = vld [vmem:[%s15] sm:$0xff]
    %v4194 = vld [vmem:[%s15 + $0x8] sm:$0xff]
    %v4195 = vld [vmem:[%s15 + $0x10] sm:$0xff]
    %v4196 = vld [vmem:[%s15 + $0x18] sm:$0xff]
    %v4197 = vld [vmem:[%s16] sm:$0xff]
    %v4198 = vld [vmem:[%s16 + $0x8] sm:$0xff]
    %v4199 = vld [vmem:[%s16 + $0x10] sm:$0xff]
    %v4200 = vld [vmem:[%s16 + $0x18] sm:$0xff]
    %v4202 = vsel %vm634, %v4191, 0
    %4204 = vmatpush.msra.mxu0 0.0
    %4205 = vmatpush.msra.mxu0 0.0
    %4206 = vmatpush.msra.mxu0 0.0
    %4207 = vmatpush.msra.mxu0 0.0
    %4208 = vmatpush.msra.mxu0 0.0
    %4209 = vmatpush.msra.mxu0 0.0
    %4210 = vmatpush.msra.mxu0 0.0
    %4211 = vmatpush.msra.mxu0 0.0
    %4212 = vmatpush.msra.mxu0 0.0
    %4213 = vmatpush.msra.mxu0 0.0
    %4214 = vmatpush.msra.mxu0 0.0
    %4215 = vmatpush.msra.mxu0 0.0
    %4216 = vmatpush.msra.mxu0 %v4200
    %4217 = vmatpush.msra.mxu0 %v4199
    %4218 = vmatpush.msra.mxu0 %v4198
    %4219 = vmatpush.msra.mxu0 %v4197
    %4220 = vmatmul.f32.gmra.mxu0 %v4202
    %v4221 = vpop.f32.mrf.mxu0
    %v4222 = vadd.f32 0.0, %v4221
    %4223 = vdwg.mxu0
    %v4225 = vsel %vm634, %v4192, 0
    %4227 = vmatpush.msra.mxu0 0.0
    %4228 = vmatpush.msra.mxu0 0.0
    %4229 = vmatpush.msra.mxu0 0.0
    %4230 = vmatpush.msra.mxu0 0.0
    %4231 = vmatpush.msra.mxu0 0.0
    %4232 = vmatpush.msra.mxu0 0.0
    %4233 = vmatpush.msra.mxu0 0.0
    %4234 = vmatpush.msra.mxu0 0.0
    %4235 = vmatpush.msra.mxu0 0.0
    %4236 = vmatpush.msra.mxu0 0.0
    %4237 = vmatpush.msra.mxu0 0.0
    %4238 = vmatpush.msra.mxu0 0.0
    %4239 = vmatpush.msra.mxu0 %v4196
    %4240 = vmatpush.msra.mxu0 %v4195
    %4241 = vmatpush.msra.mxu0 %v4194
    %4242 = vmatpush.msra.mxu0 %v4193
    %4243 = vmatmul.f32.gmra.mxu0 %v4225
    %v4244 = vpop.f32.mrf.mxu0
    %v4245 = vadd.f32 %v4222, %v4244
    %4246 = vdwg.mxu0
    %v4247 = vld [vmem:[%s17] sm:$0x1]
    %v4249 = vperm.slane %v4247, 0
    %v4251 = vadd.f32 %v4245, %v4249
    %vm4252 = vcmask 64512
    %4253 = vst.msk [vmem:[#allocation17] sm:$0xff] %vm4252, %v4251
    // Predicated region
    $region98: #{rnn_classifier_forward.1} parent=1 // pred_check
      _
    $region99: #{rnn_classifier_forward.1} parent=1 // pred_check_branch
      %4255 = sbr.rel (0) target = $region101
    $region100: #{rnn_classifier_forward.1} parent=1 // pred_region
      %4257 = vsyncadd [#allocation8], 0
      %s4259 = sshll.u32 [#allocation17], 4
      %s4260 = int_to_ptr.vmem [resolvable:$true] %s4259
      %s4261 = sshll.u32 %s18, 4
      %s4262 = int_to_ptr.hbm [resolvable:$true] %s4261
      %4264 = dma.vmem_to_hbm [thread:$0]  %s4260, 128, %s4262, [#allocation8]
    $region101: #{rnn_classifier_forward.1} parent=1 // pred_fallthru
      _
    // Predicated region
    $region102: #{rnn_classifier_forward.1} parent=1 // pred_check
      _
    $region103: #{rnn_classifier_forward.1} parent=1 // pred_check_branch
      %4266 = sbr.rel (0) target = $region105
    $region104: #{rnn_classifier_forward.1} parent=1 // pred_region
      %4268 = dma.done [#allocation8], 128
    $region105: #{rnn_classifier_forward.1} parent=1 // pred_fallthru
      _
    %4269 = vsyncpa [#allocation7], 1
    %4270 = vsyncpa [#allocation10], 1
    %4271 = vsyncpa [#allocation13], 1
    %4272 = vsyncpa [#allocation16], 1
    %4273 = vsyncpa [#allocation8], 1

</llo_original>
